<compile_context>
chip_gen: v5e
topology: v5e:2x2
jax: 0.10.0
libtpu: 0.0.40
codegen_flags: <defaults>
</compile_context>

<pallas_src>
import jax
import jax.numpy as jnp
from jax.experimental import pallas as pl
from jax.experimental.pallas import tpu as pltpu


def _round_up(x, m):
    return ((x + m - 1) // m) * m


# ---------------------------------------------------------------------------
# Pallas kernels
# ---------------------------------------------------------------------------
def _conv_bn_relu_kernel(w_ref, x_ref, s_ref, b_ref, o_ref):
    """o = relu((w @ x) * s + b).  w:(OC,K) bf16, x:(K,tm) bf16, s/b:(OC,1) f32."""
    acc = jnp.dot(w_ref[...], x_ref[...], preferred_element_type=jnp.float32)
    y = acc * s_ref[...] + b_ref[...]
    o_ref[...] = jnp.maximum(y, 0.0).astype(o_ref.dtype)


def _max4_kernel(a_ref, b_ref, c_ref, d_ref, o_ref):
    """Elementwise max of the 4 taps of a 2x2 max-pool."""
    o_ref[...] = jnp.maximum(jnp.maximum(a_ref[...], b_ref[...]),
                             jnp.maximum(c_ref[...], d_ref[...]))


def _mlp_kernel(x_ref, w1_ref, b1_ref, w2_ref, b2_ref, w3_ref, b3_ref, o_ref):
    """Fused fc1(relu) -> fc2(relu) -> fc3, all weights VMEM-resident."""
    h = jnp.dot(x_ref[...], w1_ref[...], preferred_element_type=jnp.float32)
    h = jnp.maximum(h + b1_ref[...], 0.0).astype(w2_ref.dtype)
    h = jnp.dot(h, w2_ref[...], preferred_element_type=jnp.float32)
    h = jnp.maximum(h + b2_ref[...], 0.0).astype(w3_ref.dtype)
    h = jnp.dot(h, w3_ref[...], preferred_element_type=jnp.float32)
    o_ref[...] = (h + b3_ref[...]).astype(o_ref.dtype)


# ---------------------------------------------------------------------------
# Layer wrappers (glue in JAX, hot path in Pallas)
# ---------------------------------------------------------------------------
def conv_bn_relu(x_cm, wmat, scale, shift, *, kh, kw, stride, pad):
    """x_cm: (C, N, H, W) bf16; wmat: (OC, C*kh*kw) bf16; scale/shift: (OC,1) f32.
    Returns (OC, N, OH, OW) bf16 (channel-major)."""
    C, N, H, W = x_cm.shape
    OC, K = wmat.shape
    # TODO(synk): move im2col into the conv kernel (manual DMA of input rows)
    #             to avoid the XLA patch materialization in HBM.
    xp = jnp.pad(x_cm, ((0, 0), (0, 0), (pad, pad), (pad, pad)))
    Hp, Wp = H + 2 * pad, W + 2 * pad
    oh = (Hp - kh) // stride + 1
    ow = (Wp - kw) // stride + 1
    taps = []
    for i in range(kh):
        for j in range(kw):
            taps.append(xp[:, :, i:i + stride * oh:stride, j:j + stride * ow:stride])
    # (C, KH*KW, N, oh, ow) -> (C*KH*KW, N*oh*ow); K axis is (C, KH, KW)-major,
    # matching PyTorch weight.reshape(OC, C*KH*KW).
    patches = jnp.stack(taps, axis=1).reshape(C * kh * kw, N * oh * ow)

    M = N * oh * ow
    tm = min(2048, _round_up(M, 128))
    Mp = _round_up(M, tm)
    if Mp > M:
        patches = jnp.pad(patches, ((0, 0), (0, Mp - M)))

    out = pl.pallas_call(
        _conv_bn_relu_kernel,
        out_shape=jax.ShapeDtypeStruct((OC, Mp), jnp.bfloat16),
        grid_spec=pltpu.PrefetchScalarGridSpec(
            num_scalar_prefetch=0,
            grid=(Mp // tm,),
            in_specs=[
                pl.BlockSpec((OC, K), lambda i: (0, 0)),   # weights, resident
                pl.BlockSpec((K, tm), lambda i: (0, i)),   # patch columns
                pl.BlockSpec((OC, 1), lambda i: (0, 0)),   # scale
                pl.BlockSpec((OC, 1), lambda i: (0, 0)),   # shift
            ],
            out_specs=pl.BlockSpec((OC, tm), lambda i: (0, i)),
        ),
        compiler_params=pltpu.CompilerParams(
            dimension_semantics=("parallel",)),
    )(wmat, patches, scale, shift)
    return out[:, :M].reshape(OC, N, oh, ow)


def maxpool2x2(x_cm):
    """F.max_pool2d(x, 2) semantics (floor division) on channel-major input."""
    # TODO(synk): single-pass gridded pooling kernel (strided in-kernel reads)
    #             would avoid materializing the 4 tap views in XLA.
    C, N, H, W = x_cm.shape
    ph, pw = H // 2, W // 2
    a = x_cm[:, :, 0:2 * ph:2, 0:2 * pw:2]
    b = x_cm[:, :, 0:2 * ph:2, 1:2 * pw:2]
    c = x_cm[:, :, 1:2 * ph:2, 0:2 * pw:2]
    d = x_cm[:, :, 1:2 * ph:2, 1:2 * pw:2]
    flat = lambda t: t.reshape(C * N, ph * pw)   # lane-dense last dim
    out = pl.pallas_call(
        _max4_kernel,
        out_shape=jax.ShapeDtypeStruct((C * N, ph * pw), x_cm.dtype),
    )(flat(a), flat(b), flat(c), flat(d))
    return out.reshape(C, N, ph, pw)


def mlp_head(x, fc1, fc2, fc3):
    """x: (B, 2304) bf16.  Fused fc1->relu->fc2->relu->fc3, f32 output."""
    B = x.shape[0]
    return pl.pallas_call(
        _mlp_kernel,
        out_shape=jax.ShapeDtypeStruct((B, fc3["w"].shape[1]), jnp.float32),
    )(x, fc1["w"], fc1["b"], fc2["w"], fc2["b"], fc3["w"], fc3["b"])


# ---------------------------------------------------------------------------
# Parameters: deterministic init (PyTorch-style shapes) + one-time prep
# ---------------------------------------------------------------------------
def init_params(key):
    def conv_p(key, oc, ic, kh, kw):
        ks = jax.random.split(key, 6)
        fan_in = ic * kh * kw
        return dict(
            w=jax.random.normal(ks[0], (oc, ic, kh, kw), jnp.float32) / jnp.sqrt(fan_in),
            b=0.01 * jax.random.normal(ks[1], (oc,), jnp.float32),
            gamma=1.0 + 0.05 * jax.random.normal(ks[2], (oc,), jnp.float32),
            beta=0.05 * jax.random.normal(ks[3], (oc,), jnp.float32),
            mean=0.05 * jax.random.normal(ks[4], (oc,), jnp.float32),
            var=jax.random.uniform(ks[5], (oc,), jnp.float32, 0.5, 1.5),
        )

    def fc_p(key, out_f, in_f):
        ks = jax.random.split(key, 2)
        return dict(
            w=jax.random.normal(ks[0], (out_f, in_f), jnp.float32) / jnp.sqrt(in_f),
            b=0.01 * jax.random.normal(ks[1], (out_f,), jnp.float32),
        )

    k = jax.random.split(key, 6)
    return dict(
        conv1=conv_p(k[0], 16, 3, 5, 5),
        conv2=conv_p(k[1], 32, 16, 5, 5),
        conv3=conv_p(k[2], 64, 32, 3, 3),
        fc1=fc_p(k[3], 500, 2304),
        fc2=fc_p(k[4], 50, 500),
        fc3=fc_p(k[5], 2, 50),
    )


def prepare_params(params, eps=1e-5):
    """One-time (outside the hot path): fold BN, reshape/transpose, cast bf16."""
    def conv_prep(p):
        oc = p["w"].shape[0]
        wmat = p["w"].reshape(oc, -1).astype(jnp.bfloat16)          # (OC, C*KH*KW)
        inv_std = 1.0 / jnp.sqrt(p["var"] + eps)
        scale = (p["gamma"] * inv_std).astype(jnp.float32)
        shift = (p["beta"] + (p["b"] - p["mean"]) * scale).astype(jnp.float32)
        return dict(w=wmat, scale=scale.reshape(oc, 1), shift=shift.reshape(oc, 1))

    def fc_prep(p):
        return dict(w=p["w"].T.astype(jnp.bfloat16),                # (in, out)
                    b=p["b"].reshape(1, -1).astype(jnp.float32))

    return dict(
        conv1=conv_prep(params["conv1"]),
        conv2=conv_prep(params["conv2"]),
        conv3=conv_prep(params["conv3"]),
        fc1=fc_prep(params["fc1"]),
        fc2=fc_prep(params["fc2"]),
        fc3=fc_prep(params["fc3"]),
    )


# ---------------------------------------------------------------------------
# Forward pass (mirrors CatDogCNN.forward)
# ---------------------------------------------------------------------------
@jax.jit
def cat_dog_cnn_forward(prep, x):
    # x: (N, 3, H, W) f32, NCHW like PyTorch -> channel-major bf16 internally.
    x = jnp.transpose(x, (1, 0, 2, 3)).astype(jnp.bfloat16)
    p = prep["conv1"]
    x = conv_bn_relu(x, p["w"], p["scale"], p["shift"], kh=5, kw=5, stride=2, pad=1)
    x = maxpool2x2(x)
    p = prep["conv2"]
    x = conv_bn_relu(x, p["w"], p["scale"], p["shift"], kh=5, kw=5, stride=2, pad=1)
    x = maxpool2x2(x)
    p = prep["conv3"]
    x = conv_bn_relu(x, p["w"], p["scale"], p["shift"], kh=3, kw=3, stride=1, pad=1)
    x = maxpool2x2(x)
    # Flatten in PyTorch NCHW order: (C, N, h, w) -> (N, C*h*w)
    C, N, h, w = x.shape
    x = jnp.transpose(x, (1, 0, 2, 3)).reshape(N, C * h * w)
    return mlp_head(x, prep["fc1"], prep["fc2"], prep["fc3"])


if __name__ == "__main__":
    key = jax.random.PRNGKey(0)
    pkey, xkey = jax.random.split(key)
    params = init_params(pkey)
    prep = prepare_params(params)
    # fc1 in_features=2304 == 64*6*6 forces 3x224x224 inputs (the module's
    # implied image size); batch kept small.
    x = jax.random.normal(xkey, (2, 3, 224, 224), jnp.float32)
    out = cat_dog_cnn_forward(prep, x)
    out = jax.block_until_ready(out)
    assert out.shape == (2, 2) and out.dtype == jnp.float32
    print("KERNEL_OK")
</pallas_src>

<mosaic_0001>
module attributes {stable_mosaic.version = 11 : i64} {
  func.func @_conv_bn_relu_kernel(%arg0: i32, %arg1: memref<16x75xbf16, #tpu.memory_space<vmem>>, %arg2: memref<75x2048xbf16, #tpu.memory_space<vmem>>, %arg3: memref<16x1xf32, #tpu.memory_space<vmem>>, %arg4: memref<16x1xf32, #tpu.memory_space<vmem>>, %arg5: memref<16x2048xbf16, #tpu.memory_space<vmem>>) attributes {dimension_semantics = [#tpu.dimension_semantics<parallel>], iteration_bounds = array<i64: 13>, scalar_prefetch = 0 : i64, scratch_operands = 0 : i64, tpu.core_type = #tpu.core_type<tc>, window_params = [{pipeline_mode = #tpu.pipeline_mode<synchronous>, transform_indices = @transform_0, window_bounds = array<i64: 16, 75>}, {transform_indices = @transform_1, window_bounds = array<i64: 75, 2048>}, {pipeline_mode = #tpu.pipeline_mode<synchronous>, transform_indices = @transform_2, window_bounds = array<i64: 16, 1>}, {pipeline_mode = #tpu.pipeline_mode<synchronous>, transform_indices = @transform_3, window_bounds = array<i64: 16, 1>}, {transform_indices = @transform_4, window_bounds = array<i64: 16, 2048>}]} {
    %c0 = arith.constant 0 : index
    %c0_0 = arith.constant 0 : index
    %0 = vector.load %arg1[%c0, %c0_0] : memref<16x75xbf16, #tpu.memory_space<vmem>>, vector<16x75xbf16>
    %c0_1 = arith.constant 0 : index
    %c0_2 = arith.constant 0 : index
    %1 = vector.load %arg2[%c0_1, %c0_2] : memref<75x2048xbf16, #tpu.memory_space<vmem>>, vector<75x2048xbf16>
    %cst = arith.constant dense<0.000000e+00> : vector<16x2048xf32>
    %2 = tpu.matmul %0, %1, %cst {dimension_numbers = #tpu.dot_dimension_numbers<[1], [0], [0], [1], [0, 0, 1, 1], [], []>} : vector<16x75xbf16>, vector<75x2048xbf16>, vector<16x2048xf32> -> vector<16x2048xf32>
    %c0_3 = arith.constant 0 : index
    %c0_4 = arith.constant 0 : index
    %3 = vector.load %arg3[%c0_3, %c0_4] : memref<16x1xf32, #tpu.memory_space<vmem>>, vector<16x1xf32>
    %4 = vector.broadcast %3 : vector<16x1xf32> to vector<16x2048xf32>
    %5 = arith.mulf %2, %4 : vector<16x2048xf32>
    %c0_5 = arith.constant 0 : index
    %c0_6 = arith.constant 0 : index
    %6 = vector.load %arg4[%c0_5, %c0_6] : memref<16x1xf32, #tpu.memory_space<vmem>>, vector<16x1xf32>
    %7 = vector.broadcast %6 : vector<16x1xf32> to vector<16x2048xf32>
    %8 = arith.addf %5, %7 : vector<16x2048xf32>
    %cst_7 = arith.constant 0.000000e+00 : f32
    %9 = vector.broadcast %cst_7 : f32 to vector<16x2048xf32>
    %10 = arith.maximumf %8, %9 : vector<16x2048xf32>
    %11 = arith.truncf %10 : vector<16x2048xf32> to vector<16x2048xbf16>
    %c0_8 = arith.constant 0 : index
    %c0_9 = arith.constant 0 : index
    %12 = vector.load %arg5[%c0_8, %c0_9] : memref<16x2048xbf16, #tpu.memory_space<vmem>>, vector<16x2048xbf16>
    tpu.vector_store %arg5[%c0_8, %c0_9], %11 {strides = array<i32>} : memref<16x2048xbf16, #tpu.memory_space<vmem>>, vector<16x2048xbf16>,
    return
  }
  func.func @transform_0(%arg0: i32) -> (i32, i32) {
    %c0_i32 = arith.constant 0 : i32
    %c0_i32_0 = arith.constant 0 : i32
    %c0_i32_1 = arith.constant 0 : i32
    return %c0_i32, %c0_i32_0 : i32, i32
  }
  func.func @transform_1(%arg0: i32) -> (i32, i32) {
    %c0_i32 = arith.constant 0 : i32
    %c0_i32_0 = arith.constant 0 : i32
    return %c0_i32, %arg0 : i32, i32
  }
  func.func @transform_2(%arg0: i32) -> (i32, i32) {
    %c0_i32 = arith.constant 0 : i32
    %c0_i32_0 = arith.constant 0 : i32
    %c0_i32_1 = arith.constant 0 : i32
    return %c0_i32, %c0_i32_0 : i32, i32
  }
  func.func @transform_3(%arg0: i32) -> (i32, i32) {
    %c0_i32 = arith.constant 0 : i32
    %c0_i32_0 = arith.constant 0 : i32
    %c0_i32_1 = arith.constant 0 : i32
    return %c0_i32, %c0_i32_0 : i32, i32
  }
  func.func @transform_4(%arg0: i32) -> (i32, i32) {
    %c0_i32 = arith.constant 0 : i32
    %c0_i32_0 = arith.constant 0 : i32
    return %c0_i32, %arg0 : i32, i32
  }
}

module attributes {stable_mosaic.version = 11 : i64} {
  func.func @_max4_kernel(%arg0: memref<32x3025xbf16, #tpu.memory_space<vmem>>, %arg1: memref<32x3025xbf16, #tpu.memory_space<vmem>>, %arg2: memref<32x3025xbf16, #tpu.memory_space<vmem>>, %arg3: memref<32x3025xbf16, #tpu.memory_space<vmem>>, %arg4: memref<32x3025xbf16, #tpu.memory_space<vmem>>) attributes {dimension_semantics = [], scalar_prefetch = 0 : i64, scratch_operands = 0 : i64, tpu.core_type = #tpu.core_type<tc>} {
    %c0 = arith.constant 0 : index
    %c0_0 = arith.constant 0 : index
    %0 = vector.load %arg0[%c0, %c0_0] : memref<32x3025xbf16, #tpu.memory_space<vmem>>, vector<32x3025xbf16>
    %c0_1 = arith.constant 0 : index
    %c0_2 = arith.constant 0 : index
    %1 = vector.load %arg1[%c0_1, %c0_2] : memref<32x3025xbf16, #tpu.memory_space<vmem>>, vector<32x3025xbf16>
    %2 = arith.maximumf %0, %1 : vector<32x3025xbf16>
    %c0_3 = arith.constant 0 : index
    %c0_4 = arith.constant 0 : index
    %3 = vector.load %arg2[%c0_3, %c0_4] : memref<32x3025xbf16, #tpu.memory_space<vmem>>, vector<32x3025xbf16>
    %c0_5 = arith.constant 0 : index
    %c0_6 = arith.constant 0 : index
    %4 = vector.load %arg3[%c0_5, %c0_6] : memref<32x3025xbf16, #tpu.memory_space<vmem>>, vector<32x3025xbf16>
    %5 = arith.maximumf %3, %4 : vector<32x3025xbf16>
    %6 = arith.maximumf %2, %5 : vector<32x3025xbf16>
    %c0_7 = arith.constant 0 : index
    %c0_8 = arith.constant 0 : index
    %7 = vector.load %arg4[%c0_7, %c0_8] : memref<32x3025xbf16, #tpu.memory_space<vmem>>, vector<32x3025xbf16>
    tpu.vector_store %arg4[%c0_7, %c0_8], %6 {strides = array<i32>} : memref<32x3025xbf16, #tpu.memory_space<vmem>>, vector<32x3025xbf16>,
    return
  }
}

module attributes {stable_mosaic.version = 11 : i64} {
  func.func @_conv_bn_relu_kernel(%arg0: i32, %arg1: memref<32x400xbf16, #tpu.memory_space<vmem>>, %arg2: memref<400x1536xbf16, #tpu.memory_space<vmem>>, %arg3: memref<32x1xf32, #tpu.memory_space<vmem>>, %arg4: memref<32x1xf32, #tpu.memory_space<vmem>>, %arg5: memref<32x1536xbf16, #tpu.memory_space<vmem>>) attributes {dimension_semantics = [#tpu.dimension_semantics<parallel>], iteration_bounds = array<i64: 1>, scalar_prefetch = 0 : i64, scratch_operands = 0 : i64, tpu.core_type = #tpu.core_type<tc>, window_params = [{pipeline_mode = #tpu.pipeline_mode<synchronous>, transform_indices = @transform_0, window_bounds = array<i64: 32, 400>}, {transform_indices = @transform_1, window_bounds = array<i64: 400, 1536>}, {pipeline_mode = #tpu.pipeline_mode<synchronous>, transform_indices = @transform_2, window_bounds = array<i64: 32, 1>}, {pipeline_mode = #tpu.pipeline_mode<synchronous>, transform_indices = @transform_3, window_bounds = array<i64: 32, 1>}, {transform_indices = @transform_4, window_bounds = array<i64: 32, 1536>}]} {
    %c0 = arith.constant 0 : index
    %c0_0 = arith.constant 0 : index
    %0 = vector.load %arg1[%c0, %c0_0] : memref<32x400xbf16, #tpu.memory_space<vmem>>, vector<32x400xbf16>
    %c0_1 = arith.constant 0 : index
    %c0_2 = arith.constant 0 : index
    %1 = vector.load %arg2[%c0_1, %c0_2] : memref<400x1536xbf16, #tpu.memory_space<vmem>>, vector<400x1536xbf16>
    %cst = arith.constant dense<0.000000e+00> : vector<32x1536xf32>
    %2 = tpu.matmul %0, %1, %cst {dimension_numbers = #tpu.dot_dimension_numbers<[1], [0], [0], [1], [0, 0, 1, 1], [], []>} : vector<32x400xbf16>, vector<400x1536xbf16>, vector<32x1536xf32> -> vector<32x1536xf32>
    %c0_3 = arith.constant 0 : index
    %c0_4 = arith.constant 0 : index
    %3 = vector.load %arg3[%c0_3, %c0_4] : memref<32x1xf32, #tpu.memory_space<vmem>>, vector<32x1xf32>
    %4 = vector.broadcast %3 : vector<32x1xf32> to vector<32x1536xf32>
    %5 = arith.mulf %2, %4 : vector<32x1536xf32>
    %c0_5 = arith.constant 0 : index
    %c0_6 = arith.constant 0 : index
    %6 = vector.load %arg4[%c0_5, %c0_6] : memref<32x1xf32, #tpu.memory_space<vmem>>, vector<32x1xf32>
    %7 = vector.broadcast %6 : vector<32x1xf32> to vector<32x1536xf32>
    %8 = arith.addf %5, %7 : vector<32x1536xf32>
    %cst_7 = arith.constant 0.000000e+00 : f32
    %9 = vector.broadcast %cst_7 : f32 to vector<32x1536xf32>
    %10 = arith.maximumf %8, %9 : vector<32x1536xf32>
    %11 = arith.truncf %10 : vector<32x1536xf32> to vector<32x1536xbf16>
    %c0_8 = arith.constant 0 : index
    %c0_9 = arith.constant 0 : index
    %12 = vector.load %arg5[%c0_8, %c0_9] : memref<32x1536xbf16, #tpu.memory_space<vmem>>, vector<32x1536xbf16>
    tpu.vector_store %arg5[%c0_8, %c0_9], %11 {strides = array<i32>} : memref<32x1536xbf16, #tpu.memory_space<vmem>>, vector<32x1536xbf16>,
    return
  }
  func.func @transform_0(%arg0: i32) -> (i32, i32) {
    %c0_i32 = arith.constant 0 : i32
    %c0_i32_0 = arith.constant 0 : i32
    %c0_i32_1 = arith.constant 0 : i32
    return %c0_i32, %c0_i32_0 : i32, i32
  }
  func.func @transform_1(%arg0: i32) -> (i32, i32) {
    %c0_i32 = arith.constant 0 : i32
    %c0_i32_0 = arith.constant 0 : i32
    return %c0_i32, %arg0 : i32, i32
  }
  func.func @transform_2(%arg0: i32) -> (i32, i32) {
    %c0_i32 = arith.constant 0 : i32
    %c0_i32_0 = arith.constant 0 : i32
    %c0_i32_1 = arith.constant 0 : i32
    return %c0_i32, %c0_i32_0 : i32, i32
  }
  func.func @transform_3(%arg0: i32) -> (i32, i32) {
    %c0_i32 = arith.constant 0 : i32
    %c0_i32_0 = arith.constant 0 : i32
    %c0_i32_1 = arith.constant 0 : i32
    return %c0_i32, %c0_i32_0 : i32, i32
  }
  func.func @transform_4(%arg0: i32) -> (i32, i32) {
    %c0_i32 = arith.constant 0 : i32
    %c0_i32_0 = arith.constant 0 : i32
    return %c0_i32, %arg0 : i32, i32
  }
}

module attributes {stable_mosaic.version = 11 : i64} {
  func.func @_max4_kernel(%arg0: memref<64x169xbf16, #tpu.memory_space<vmem>>, %arg1: memref<64x169xbf16, #tpu.memory_space<vmem>>, %arg2: memref<64x169xbf16, #tpu.memory_space<vmem>>, %arg3: memref<64x169xbf16, #tpu.memory_space<vmem>>, %arg4: memref<64x169xbf16, #tpu.memory_space<vmem>>) attributes {dimension_semantics = [], scalar_prefetch = 0 : i64, scratch_operands = 0 : i64, tpu.core_type = #tpu.core_type<tc>} {
    %c0 = arith.constant 0 : index
    %c0_0 = arith.constant 0 : index
    %0 = vector.load %arg0[%c0, %c0_0] : memref<64x169xbf16, #tpu.memory_space<vmem>>, vector<64x169xbf16>
    %c0_1 = arith.constant 0 : index
    %c0_2 = arith.constant 0 : index
    %1 = vector.load %arg1[%c0_1, %c0_2] : memref<64x169xbf16, #tpu.memory_space<vmem>>, vector<64x169xbf16>
    %2 = arith.maximumf %0, %1 : vector<64x169xbf16>
    %c0_3 = arith.constant 0 : index
    %c0_4 = arith.constant 0 : index
    %3 = vector.load %arg2[%c0_3, %c0_4] : memref<64x169xbf16, #tpu.memory_space<vmem>>, vector<64x169xbf16>
    %c0_5 = arith.constant 0 : index
    %c0_6 = arith.constant 0 : index
    %4 = vector.load %arg3[%c0_5, %c0_6] : memref<64x169xbf16, #tpu.memory_space<vmem>>, vector<64x169xbf16>
    %5 = arith.maximumf %3, %4 : vector<64x169xbf16>
    %6 = arith.maximumf %2, %5 : vector<64x169xbf16>
    %c0_7 = arith.constant 0 : index
    %c0_8 = arith.constant 0 : index
    %7 = vector.load %arg4[%c0_7, %c0_8] : memref<64x169xbf16, #tpu.memory_space<vmem>>, vector<64x169xbf16>
    tpu.vector_store %arg4[%c0_7, %c0_8], %6 {strides = array<i32>} : memref<64x169xbf16, #tpu.memory_space<vmem>>, vector<64x169xbf16>,
    return
  }
}

module attributes {stable_mosaic.version = 11 : i64} {
  func.func @_conv_bn_relu_kernel(%arg0: i32, %arg1: memref<64x288xbf16, #tpu.memory_space<vmem>>, %arg2: memref<288x384xbf16, #tpu.memory_space<vmem>>, %arg3: memref<64x1xf32, #tpu.memory_space<vmem>>, %arg4: memref<64x1xf32, #tpu.memory_space<vmem>>, %arg5: memref<64x384xbf16, #tpu.memory_space<vmem>>) attributes {dimension_semantics = [#tpu.dimension_semantics<parallel>], iteration_bounds = array<i64: 1>, scalar_prefetch = 0 : i64, scratch_operands = 0 : i64, tpu.core_type = #tpu.core_type<tc>, window_params = [{pipeline_mode = #tpu.pipeline_mode<synchronous>, transform_indices = @transform_0, window_bounds = array<i64: 64, 288>}, {transform_indices = @transform_1, window_bounds = array<i64: 288, 384>}, {pipeline_mode = #tpu.pipeline_mode<synchronous>, transform_indices = @transform_2, window_bounds = array<i64: 64, 1>}, {pipeline_mode = #tpu.pipeline_mode<synchronous>, transform_indices = @transform_3, window_bounds = array<i64: 64, 1>}, {transform_indices = @transform_4, window_bounds = array<i64: 64, 384>}]} {
    %c0 = arith.constant 0 : index
    %c0_0 = arith.constant 0 : index
    %0 = vector.load %arg1[%c0, %c0_0] : memref<64x288xbf16, #tpu.memory_space<vmem>>, vector<64x288xbf16>
    %c0_1 = arith.constant 0 : index
    %c0_2 = arith.constant 0 : index
    %1 = vector.load %arg2[%c0_1, %c0_2] : memref<288x384xbf16, #tpu.memory_space<vmem>>, vector<288x384xbf16>
    %cst = arith.constant dense<0.000000e+00> : vector<64x384xf32>
    %2 = tpu.matmul %0, %1, %cst {dimension_numbers = #tpu.dot_dimension_numbers<[1], [0], [0], [1], [0, 0, 1, 1], [], []>} : vector<64x288xbf16>, vector<288x384xbf16>, vector<64x384xf32> -> vector<64x384xf32>
    %c0_3 = arith.constant 0 : index
    %c0_4 = arith.constant 0 : index
    %3 = vector.load %arg3[%c0_3, %c0_4] : memref<64x1xf32, #tpu.memory_space<vmem>>, vector<64x1xf32>
    %4 = vector.broadcast %3 : vector<64x1xf32> to vector<64x384xf32>
    %5 = arith.mulf %2, %4 : vector<64x384xf32>
    %c0_5 = arith.constant 0 : index
    %c0_6 = arith.constant 0 : index
    %6 = vector.load %arg4[%c0_5, %c0_6] : memref<64x1xf32, #tpu.memory_space<vmem>>, vector<64x1xf32>
    %7 = vector.broadcast %6 : vector<64x1xf32> to vector<64x384xf32>
    %8 = arith.addf %5, %7 : vector<64x384xf32>
    %cst_7 = arith.constant 0.000000e+00 : f32
    %9 = vector.broadcast %cst_7 : f32 to vector<64x384xf32>
    %10 = arith.maximumf %8, %9 : vector<64x384xf32>
    %11 = arith.truncf %10 : vector<64x384xf32> to vector<64x384xbf16>
    %c0_8 = arith.constant 0 : index
    %c0_9 = arith.constant 0 : index
    %12 = vector.load %arg5[%c0_8, %c0_9] : memref<64x384xbf16, #tpu.memory_space<vmem>>, vector<64x384xbf16>
    tpu.vector_store %arg5[%c0_8, %c0_9], %11 {strides = array<i32>} : memref<64x384xbf16, #tpu.memory_space<vmem>>, vector<64x384xbf16>,
    return
  }
  func.func @transform_0(%arg0: i32) -> (i32, i32) {
    %c0_i32 = arith.constant 0 : i32
    %c0_i32_0 = arith.constant 0 : i32
    %c0_i32_1 = arith.constant 0 : i32
    return %c0_i32, %c0_i32_0 : i32, i32
  }
  func.func @transform_1(%arg0: i32) -> (i32, i32) {
    %c0_i32 = arith.constant 0 : i32
    %c0_i32_0 = arith.constant 0 : i32
    return %c0_i32, %arg0 : i32, i32
  }
  func.func @transform_2(%arg0: i32) -> (i32, i32) {
    %c0_i32 = arith.constant 0 : i32
    %c0_i32_0 = arith.constant 0 : i32
    %c0_i32_1 = arith.constant 0 : i32
    return %c0_i32, %c0_i32_0 : i32, i32
  }
  func.func @transform_3(%arg0: i32) -> (i32, i32) {
    %c0_i32 = arith.constant 0 : i32
    %c0_i32_0 = arith.constant 0 : i32
    %c0_i32_1 = arith.constant 0 : i32
    return %c0_i32, %c0_i32_0 : i32, i32
  }
  func.func @transform_4(%arg0: i32) -> (i32, i32) {
    %c0_i32 = arith.constant 0 : i32
    %c0_i32_0 = arith.constant 0 : i32
    return %c0_i32, %arg0 : i32, i32
  }
}

module attributes {stable_mosaic.version = 11 : i64} {
  func.func @_max4_kernel(%arg0: memref<128x36xbf16, #tpu.memory_space<vmem>>, %arg1: memref<128x36xbf16, #tpu.memory_space<vmem>>, %arg2: memref<128x36xbf16, #tpu.memory_space<vmem>>, %arg3: memref<128x36xbf16, #tpu.memory_space<vmem>>, %arg4: memref<128x36xbf16, #tpu.memory_space<vmem>>) attributes {dimension_semantics = [], scalar_prefetch = 0 : i64, scratch_operands = 0 : i64, tpu.core_type = #tpu.core_type<tc>} {
    %c0 = arith.constant 0 : index
    %c0_0 = arith.constant 0 : index
    %0 = vector.load %arg0[%c0, %c0_0] : memref<128x36xbf16, #tpu.memory_space<vmem>>, vector<128x36xbf16>
    %c0_1 = arith.constant 0 : index
    %c0_2 = arith.constant 0 : index
    %1 = vector.load %arg1[%c0_1, %c0_2] : memref<128x36xbf16, #tpu.memory_space<vmem>>, vector<128x36xbf16>
    %2 = arith.maximumf %0, %1 : vector<128x36xbf16>
    %c0_3 = arith.constant 0 : index
    %c0_4 = arith.constant 0 : index
    %3 = vector.load %arg2[%c0_3, %c0_4] : memref<128x36xbf16, #tpu.memory_space<vmem>>, vector<128x36xbf16>
    %c0_5 = arith.constant 0 : index
    %c0_6 = arith.constant 0 : index
    %4 = vector.load %arg3[%c0_5, %c0_6] : memref<128x36xbf16, #tpu.memory_space<vmem>>, vector<128x36xbf16>
    %5 = arith.maximumf %3, %4 : vector<128x36xbf16>
    %6 = arith.maximumf %2, %5 : vector<128x36xbf16>
    %c0_7 = arith.constant 0 : index
    %c0_8 = arith.constant 0 : index
    %7 = vector.load %arg4[%c0_7, %c0_8] : memref<128x36xbf16, #tpu.memory_space<vmem>>, vector<128x36xbf16>
    tpu.vector_store %arg4[%c0_7, %c0_8], %6 {strides = array<i32>} : memref<128x36xbf16, #tpu.memory_space<vmem>>, vector<128x36xbf16>,
    return
  }
}

module attributes {stable_mosaic.version = 11 : i64} {
  func.func @_mlp_kernel(%arg0: memref<2x2304xbf16, #tpu.memory_space<vmem>>, %arg1: memref<2304x500xbf16, #tpu.memory_space<vmem>>, %arg2: memref<1x500xf32, #tpu.memory_space<vmem>>, %arg3: memref<500x50xbf16, #tpu.memory_space<vmem>>, %arg4: memref<1x50xf32, #tpu.memory_space<vmem>>, %arg5: memref<50x2xbf16, #tpu.memory_space<vmem>>, %arg6: memref<1x2xf32, #tpu.memory_space<vmem>>, %arg7: memref<2x2xf32, #tpu.memory_space<vmem>>) attributes {dimension_semantics = [], scalar_prefetch = 0 : i64, scratch_operands = 0 : i64, tpu.core_type = #tpu.core_type<tc>} {
    %c0 = arith.constant 0 : index
    %c0_0 = arith.constant 0 : index
    %0 = vector.load %arg0[%c0, %c0_0] : memref<2x2304xbf16, #tpu.memory_space<vmem>>, vector<2x2304xbf16>
    %c0_1 = arith.constant 0 : index
    %c0_2 = arith.constant 0 : index
    %1 = vector.load %arg1[%c0_1, %c0_2] : memref<2304x500xbf16, #tpu.memory_space<vmem>>, vector<2304x500xbf16>
    %cst = arith.constant dense<0.000000e+00> : vector<2x500xf32>
    %2 = tpu.matmul %0, %1, %cst {dimension_numbers = #tpu.dot_dimension_numbers<[1], [0], [0], [1], [0, 0, 1, 1], [], []>} : vector<2x2304xbf16>, vector<2304x500xbf16>, vector<2x500xf32> -> vector<2x500xf32>
    %c0_3 = arith.constant 0 : index
    %c0_4 = arith.constant 0 : index
    %3 = vector.load %arg2[%c0_3, %c0_4] : memref<1x500xf32, #tpu.memory_space<vmem>>, vector<1x500xf32>
    %4 = vector.broadcast %3 : vector<1x500xf32> to vector<2x500xf32>
    %5 = arith.addf %2, %4 : vector<2x500xf32>
    %cst_5 = arith.constant 0.000000e+00 : f32
    %6 = vector.broadcast %cst_5 : f32 to vector<2x500xf32>
    %7 = arith.maximumf %5, %6 : vector<2x500xf32>
    %8 = arith.truncf %7 : vector<2x500xf32> to vector<2x500xbf16>
    %c0_6 = arith.constant 0 : index
    %c0_7 = arith.constant 0 : index
    %9 = vector.load %arg3[%c0_6, %c0_7] : memref<500x50xbf16, #tpu.memory_space<vmem>>, vector<500x50xbf16>
    %cst_8 = arith.constant dense<0.000000e+00> : vector<2x50xf32>
    %10 = tpu.matmul %8, %9, %cst_8 {dimension_numbers = #tpu.dot_dimension_numbers<[1], [0], [0], [1], [0, 0, 1, 1], [], []>} : vector<2x500xbf16>, vector<500x50xbf16>, vector<2x50xf32> -> vector<2x50xf32>
    %c0_9 = arith.constant 0 : index
    %c0_10 = arith.constant 0 : index
    %11 = vector.load %arg4[%c0_9, %c0_10] : memref<1x50xf32, #tpu.memory_space<vmem>>, vector<1x50xf32>
    %12 = vector.broadcast %11 : vector<1x50xf32> to vector<2x50xf32>
    %13 = arith.addf %10, %12 : vector<2x50xf32>
    %cst_11 = arith.constant 0.000000e+00 : f32
    %14 = vector.broadcast %cst_11 : f32 to vector<2x50xf32>
    %15 = arith.maximumf %13, %14 : vector<2x50xf32>
    %16 = arith.truncf %15 : vector<2x50xf32> to vector<2x50xbf16>
    %c0_12 = arith.constant 0 : index
    %c0_13 = arith.constant 0 : index
    %17 = vector.load %arg5[%c0_12, %c0_13] : memref<50x2xbf16, #tpu.memory_space<vmem>>, vector<50x2xbf16>
    %cst_14 = arith.constant dense<0.000000e+00> : vector<2x2xf32>
    %18 = tpu.matmul %16, %17, %cst_14 {dimension_numbers = #tpu.dot_dimension_numbers<[1], [0], [0], [1], [0, 0, 1, 1], [], []>} : vector<2x50xbf16>, vector<50x2xbf16>, vector<2x2xf32> -> vector<2x2xf32>
    %c0_15 = arith.constant 0 : index
    %c0_16 = arith.constant 0 : index
    %19 = vector.load %arg6[%c0_15, %c0_16] : memref<1x2xf32, #tpu.memory_space<vmem>>, vector<1x2xf32>
    %20 = vector.broadcast %19 : vector<1x2xf32> to vector<2x2xf32>
    %21 = arith.addf %18, %20 : vector<2x2xf32>
    %c0_17 = arith.constant 0 : index
    %c0_18 = arith.constant 0 : index
    %22 = vector.load %arg7[%c0_17, %c0_18] : memref<2x2xf32, #tpu.memory_space<vmem>>, vector<2x2xf32>
    tpu.vector_store %arg7[%c0_17, %c0_18], %21 {strides = array<i32>} : memref<2x2xf32, #tpu.memory_space<vmem>>, vector<2x2xf32>,
    return
  }
}

</mosaic_0001>

<llo_original>
// kernel: cat_dog_cnn_forward.7
$region0: #{cat_dog_cnn_forward.7}
  #allocation0 [shape = 'u32[]', space=smem, size = 0x4, offset = 0x4, fixed_abs, tag = 'smem constant byte address 0x4 - core index']
  #allocation1 [shape = 'u32[72,128]{1,0:T(1,128)}', space=vmem, size = 0x9000, scoped, tag = 'internal scratch']
  %s0 = inlined_call_operand.vmem [shape: bf16[16,75], index: 0, kind: input, shape index: {}]
  %s1 = inlined_call_operand.vmem [shape: bf16[75,26624], index: 1, kind: input, shape index: {}]
  %s2 = inlined_call_operand.vmem [shape: f32[16,1], index: 2, kind: input, shape index: {}]
  %s3 = inlined_call_operand.vmem [shape: f32[16,1], index: 3, kind: input, shape index: {}]
  %s4 = inlined_call_operand.vmem [shape: bf16[16,26624], index: 4, kind: output, shape index: {}]
  %s5 = sld [smem:[#allocation0]]
  $region91: #{cat_dog_cnn_forward.7} parent=0
    _
  %s7 = ssub.s32 1, %s5
  %s8 = scalar_select 0, %s7, %s5
  $region1: #{cat_dog_cnn_forward.7} parent=0
    #allocation2 [shape = 'u8[655360]{0}', space=vmem, size = 0xa0000, scoped, tag = 'input window, operand 1']
    #allocation3 [shape = 'u8[131072]{0}', space=vmem, size = 0x20000, scoped, tag = 'output window, operand 0']
    loop: start=0, step=1, limit=15
    $region2: #{cat_dog_cnn_forward.7} parent=1 // loop_pre_header
      _
    $region3: #{cat_dog_cnn_forward.7} parent=1 // loop_header
      %s10 = sphi 0, %s14
      %p11 = scmp.ge.s32.totalorder %s10, 15
      %s18 = sphi 0, %s18
      %s20 = sphi 0, %s18
      %s21 = sphi 0, %s20
      %s35 = sphi 0, %s21
      %s41 = sphi 0, %s43
      %s44 = sphi 0, %s41
      %s45 = sphi 0, %s44
      %s61 = sphi 0, %s45
      %s65 = sphi 0, %s65
      %s67 = sphi 0, %s65
      %s68 = sphi 0, %s67
      %s82 = sphi 0, %s68
      %s86 = sphi 0, %s86
      %s88 = sphi 0, %s86
      %s89 = sphi 0, %s88
      %s103 = sphi 0, %s89
      %s109 = sphi 0, %s111
      %s112 = sphi 0, %s109
      %s113 = sphi 0, %s112
      %s129 = sphi 0, %s113
    $region4: #{cat_dog_cnn_forward.7} parent=1 // loop_header_branch
      %13 = sbr.rel (%p11) target = $region8
    $region5: #{cat_dog_cnn_forward.7} parent=1 // loop_body
      %s15 = ssub.s32 %s10, 1
      %s16 = ssub.s32 %s10, 2
      %s17 = sadd.s32 %s10, 1
      %s19 = sadd.s32 %s18, 1
      %p22 = scmp.eq.s32.totalorder %s10, 12
      %p23 = scmp.ne.s32.totalorder %s18, %s20
      %p24 = scmp.eq.s32.totalorder %s10, 0
      %p25 = por %p23, %p24
      %p26 = scmp.ne.s32.totalorder %s18, %s20
      %p27 = scmp.eq.s32.totalorder %s15, 12
      %p28 = por %p26, %p27
      %p29 = scmp.ne.s32.totalorder %s20, %s21
      %p30 = scmp.eq.s32.totalorder %s15, 0
      %p31 = por %p29, %p30
      %p32 = scmp.ne.s32.totalorder %s20, %s21
      %p33 = scmp.eq.s32.totalorder %s16, 12
      %p34 = por %p32, %p33
      %p36 = scmp.ne.s32.totalorder %s21, %s35
      %p37 = scmp.eq.s32.totalorder %s16, 0
      %p38 = por %p36, %p37
      %s39 = ssub.s32 %s10, %s17
      %p40 = scmp.eq.s32.totalorder %s39, 0
      %s42 = sadd.s32 %s41, 1
      %s43 = scalar_select %p40, %s41, %s42
      %p46 = pneg %p40
      %p47 = scmp.eq.s32.totalorder %s10, 12
      %p48 = por %p46, %p47
      %p49 = scmp.ne.s32.totalorder %s41, %s44
      %p50 = scmp.eq.s32.totalorder %s10, 0
      %p51 = por %p49, %p50
      %p52 = scmp.ne.s32.totalorder %s41, %s44
      %p53 = scmp.eq.s32.totalorder %s15, 12
      %p54 = por %p52, %p53
      %p55 = scmp.ne.s32.totalorder %s44, %s45
      %p56 = scmp.eq.s32.totalorder %s15, 0
      %p57 = por %p55, %p56
      %p58 = scmp.ne.s32.totalorder %s44, %s45
      %p59 = scmp.eq.s32.totalorder %s16, 12
      %p60 = por %p58, %p59
      %p62 = scmp.ne.s32.totalorder %s45, %s61
      %p63 = scmp.eq.s32.totalorder %s16, 0
      %p64 = por %p62, %p63
      %s66 = sadd.s32 %s65, 1
      %p69 = scmp.eq.s32.totalorder %s10, 12
      %p70 = scmp.ne.s32.totalorder %s65, %s67
      %p71 = scmp.eq.s32.totalorder %s10, 0
      %p72 = por %p70, %p71
      %p73 = scmp.ne.s32.totalorder %s65, %s67
      %p74 = scmp.eq.s32.totalorder %s15, 12
      %p75 = por %p73, %p74
      %p76 = scmp.ne.s32.totalorder %s67, %s68
      %p77 = scmp.eq.s32.totalorder %s15, 0
      %p78 = por %p76, %p77
      %p79 = scmp.ne.s32.totalorder %s67, %s68
      %p80 = scmp.eq.s32.totalorder %s16, 12
      %p81 = por %p79, %p80
      %p83 = scmp.ne.s32.totalorder %s68, %s82
      %p84 = scmp.eq.s32.totalorder %s16, 0
      %p85 = por %p83, %p84
      %s87 = sadd.s32 %s86, 1
      %p90 = scmp.eq.s32.totalorder %s10, 12
      %p91 = scmp.ne.s32.totalorder %s86, %s88
      %p92 = scmp.eq.s32.totalorder %s10, 0
      %p93 = por %p91, %p92
      %p94 = scmp.ne.s32.totalorder %s86, %s88
      %p95 = scmp.eq.s32.totalorder %s15, 12
      %p96 = por %p94, %p95
      %p97 = scmp.ne.s32.totalorder %s88, %s89
      %p98 = scmp.eq.s32.totalorder %s15, 0
      %p99 = por %p97, %p98
      %p100 = scmp.ne.s32.totalorder %s88, %s89
      %p101 = scmp.eq.s32.totalorder %s16, 12
      %p102 = por %p100, %p101
      %p104 = scmp.ne.s32.totalorder %s89, %s103
      %p105 = scmp.eq.s32.totalorder %s16, 0
      %p106 = por %p104, %p105
      %s107 = ssub.s32 %s10, %s17
      %p108 = scmp.eq.s32.totalorder %s107, 0
      %s110 = sadd.s32 %s109, 1
      %s111 = scalar_select %p108, %s109, %s110
      %p114 = pneg %p108
      %p115 = scmp.eq.s32.totalorder %s10, 12
      %p116 = por %p114, %p115
      %p117 = scmp.ne.s32.totalorder %s109, %s112
      %p118 = scmp.eq.s32.totalorder %s10, 0
      %p119 = por %p117, %p118
      %p120 = scmp.ne.s32.totalorder %s109, %s112
      %p121 = scmp.eq.s32.totalorder %s15, 12
      %p122 = por %p120, %p121
      %p123 = scmp.ne.s32.totalorder %s112, %s113
      %p124 = scmp.eq.s32.totalorder %s15, 0
      %p125 = por %p123, %p124
      %p126 = scmp.ne.s32.totalorder %s112, %s113
      %p127 = scmp.eq.s32.totalorder %s16, 12
      %p128 = por %p126, %p127
      %p130 = scmp.ne.s32.totalorder %s113, %s129
      %p131 = scmp.eq.s32.totalorder %s16, 0
      %p132 = por %p130, %p131
      %p133 = scmp.le.s32.totalorder 1, %s10
      %p134 = scmp.lt.s32.totalorder %s10, 14
      %p135 = pnand %p133, %p134
      %p136 = pneg %p135
      // Predicated region
      $region9: #{cat_dog_cnn_forward.7} parent=5 // pred_check
        _
      $region10: #{cat_dog_cnn_forward.7} parent=5 // pred_check_branch
        %138 = sbr.rel (%p135) target = $region12
      $region11: #{cat_dog_cnn_forward.7} parent=5 // pred_region
        %s139 = ssub.s32 %s10, 1
        // Predicated region
        $region13: #{cat_dog_cnn_forward.7} parent=11 // pred_check
          %p140 = pneg %p31
        $region14: #{cat_dog_cnn_forward.7} parent=11 // pred_check_branch
          %142 = sbr.rel (%p140) target = $region16
        $region15: #{cat_dog_cnn_forward.7} parent=11 // pred_region
          _
        $region16: #{cat_dog_cnn_forward.7} parent=11 // pred_fallthru
          _
        // Predicated region
        $region17: #{cat_dog_cnn_forward.7} parent=11 // pred_check
          %p143 = pneg %p78
        $region18: #{cat_dog_cnn_forward.7} parent=11 // pred_check_branch
          %145 = sbr.rel (%p143) target = $region20
        $region19: #{cat_dog_cnn_forward.7} parent=11 // pred_region
          _
        $region20: #{cat_dog_cnn_forward.7} parent=11 // pred_fallthru
          _
        // Predicated region
        $region21: #{cat_dog_cnn_forward.7} parent=11 // pred_check
          %p146 = pneg %p99
        $region22: #{cat_dog_cnn_forward.7} parent=11 // pred_check_branch
          %148 = sbr.rel (%p146) target = $region24
        $region23: #{cat_dog_cnn_forward.7} parent=11 // pred_region
          _
        $region24: #{cat_dog_cnn_forward.7} parent=11 // pred_fallthru
          _
      $region12: #{cat_dog_cnn_forward.7} parent=5 // pred_fallthru
        _
      %p149 = scmp.lt.s32.totalorder %s10, 13
      // Predicated region
      $region25: #{cat_dog_cnn_forward.7} parent=5 // pred_check
        %p150 = pneg %p149
      $region26: #{cat_dog_cnn_forward.7} parent=5 // pred_check_branch
        %152 = sbr.rel (%p150) target = $region28
      $region27: #{cat_dog_cnn_forward.7} parent=5 // pred_region
        // Predicated region
        $region29: #{cat_dog_cnn_forward.7} parent=27 // pred_check
          %p153 = pneg %p51
        $region30: #{cat_dog_cnn_forward.7} parent=27 // pred_check_branch
          %155 = sbr.rel (%p153) target = $region32
        $region31: #{cat_dog_cnn_forward.7} parent=27 // pred_region
          %s156 = sand.u32 %s41, 1
          %s157 = sand.u32 %s41, 1
          %s158 = smul.addr %s157, 640
          %s159 = scalar_lea.vmem [#allocation2], %s158
          %s160 = smul.u32 16, %s10
          %s161 = smul.addr %s160, 4
          %s162 = scalar_lea.vmem %s1, %s161
          // Predicated region
          $region33: #{cat_dog_cnn_forward.7} parent=31 // pred_check
            _
          $region34: #{cat_dog_cnn_forward.7} parent=31 // pred_check_branch
            %164 = sbr.rel (0) target = $region36
          $region35: #{cat_dog_cnn_forward.7} parent=31 // pred_region
            // Predicated region
            $region37: #{cat_dog_cnn_forward.7} parent=35 // pred_check
              _
            $region38: #{cat_dog_cnn_forward.7} parent=35 // pred_check_branch
              %166 = sbr.rel (0) target = $region40
            $region39: #{cat_dog_cnn_forward.7} parent=35 // pred_region
              loop: start=0, step=1, limit=1
              $region41: #{cat_dog_cnn_forward.7} parent=39 // loop_pre_header
                _
              $region42: #{cat_dog_cnn_forward.7} parent=39 // loop_header
                %s168 = sphi 0, %s172
                %p169 = scmp.ge.s32.totalorder %s168, 1
                %s173 = sphi %s162, %s162
                %s174 = sphi %s159, %s159
              $region43: #{cat_dog_cnn_forward.7} parent=39 // loop_header_branch
                %171 = sbr.rel (%p169) target = $region47
              $region44: #{cat_dog_cnn_forward.7} parent=39 // loop_body
                %v175 = vld [vmem:[%s173] sm:$0xff]
                %176 = vst [vmem:[%s174] sm:$0xff] %v175
                %v177 = vld [vmem:[%s173 + $0x8] sm:$0xff]
                %178 = vst [vmem:[%s174 + $0x8] sm:$0xff] %v177
                %v179 = vld [vmem:[%s173 + $0x10] sm:$0xff]
                %180 = vst [vmem:[%s174 + $0x10] sm:$0xff] %v179
                %v181 = vld [vmem:[%s173 + $0x18] sm:$0xff]
                %182 = vst [vmem:[%s174 + $0x18] sm:$0xff] %v181
                %v183 = vld [vmem:[%s173 + $0x20] sm:$0xff]
                %184 = vst [vmem:[%s174 + $0x20] sm:$0xff] %v183
                %v185 = vld [vmem:[%s173 + $0x28] sm:$0xff]
                %186 = vst [vmem:[%s174 + $0x28] sm:$0xff] %v185
                %v187 = vld [vmem:[%s173 + $0x30] sm:$0xff]
                %188 = vst [vmem:[%s174 + $0x30] sm:$0xff] %v187
                %v189 = vld [vmem:[%s173 + $0x38] sm:$0xff]
                %190 = vst [vmem:[%s174 + $0x38] sm:$0xff] %v189
                %v191 = vld [vmem:[%s173 + $0x340] sm:$0xff]
                %192 = vst [vmem:[%s174 + $0x40] sm:$0xff] %v191
                %v193 = vld [vmem:[%s173 + $0x348] sm:$0xff]
                %194 = vst [vmem:[%s174 + $0x48] sm:$0xff] %v193
                %v195 = vld [vmem:[%s173 + $0x350] sm:$0xff]
                %196 = vst [vmem:[%s174 + $0x50] sm:$0xff] %v195
                %v197 = vld [vmem:[%s173 + $0x358] sm:$0xff]
                %198 = vst [vmem:[%s174 + $0x58] sm:$0xff] %v197
                %v199 = vld [vmem:[%s173 + $0x360] sm:$0xff]
                %200 = vst [vmem:[%s174 + $0x60] sm:$0xff] %v199
                %v201 = vld [vmem:[%s173 + $0x368] sm:$0xff]
                %202 = vst [vmem:[%s174 + $0x68] sm:$0xff] %v201
                %v203 = vld [vmem:[%s173 + $0x370] sm:$0xff]
                %204 = vst [vmem:[%s174 + $0x70] sm:$0xff] %v203
                %v205 = vld [vmem:[%s173 + $0x378] sm:$0xff]
                %206 = vst [vmem:[%s174 + $0x78] sm:$0xff] %v205
                %v207 = vld [vmem:[%s173 + $0x680] sm:$0xff]
                %208 = vst [vmem:[%s174 + $0x80] sm:$0xff] %v207
                %v209 = vld [vmem:[%s173 + $0x688] sm:$0xff]
                %210 = vst [vmem:[%s174 + $0x88] sm:$0xff] %v209
                %v211 = vld [vmem:[%s173 + $0x690] sm:$0xff]
                %212 = vst [vmem:[%s174 + $0x90] sm:$0xff] %v211
                %v213 = vld [vmem:[%s173 + $0x698] sm:$0xff]
                %214 = vst [vmem:[%s174 + $0x98] sm:$0xff] %v213
                %v215 = vld [vmem:[%s173 + $0x6a0] sm:$0xff]
                %216 = vst [vmem:[%s174 + $0xa0] sm:$0xff] %v215
                %v217 = vld [vmem:[%s173 + $0x6a8] sm:$0xff]
                %218 = vst [vmem:[%s174 + $0xa8] sm:$0xff] %v217
                %v219 = vld [vmem:[%s173 + $0x6b0] sm:$0xff]
                %220 = vst [vmem:[%s174 + $0xb0] sm:$0xff] %v219
                %v221 = vld [vmem:[%s173 + $0x6b8] sm:$0xff]
                %222 = vst [vmem:[%s174 + $0xb8] sm:$0xff] %v221
                %v223 = vld [vmem:[%s173 + $0x9c0] sm:$0xff]
                %224 = vst [vmem:[%s174 + $0xc0] sm:$0xff] %v223
                %v225 = vld [vmem:[%s173 + $0x9c8] sm:$0xff]
                %226 = vst [vmem:[%s174 + $0xc8] sm:$0xff] %v225
                %v227 = vld [vmem:[%s173 + $0x9d0] sm:$0xff]
                %228 = vst [vmem:[%s174 + $0xd0] sm:$0xff] %v227
                %v229 = vld [vmem:[%s173 + $0x9d8] sm:$0xff]
                %230 = vst [vmem:[%s174 + $0xd8] sm:$0xff] %v229
                %v231 = vld [vmem:[%s173 + $0x9e0] sm:$0xff]
                %232 = vst [vmem:[%s174 + $0xe0] sm:$0xff] %v231
                %v233 = vld [vmem:[%s173 + $0x9e8] sm:$0xff]
                %234 = vst [vmem:[%s174 + $0xe8] sm:$0xff] %v233
                %v235 = vld [vmem:[%s173 + $0x9f0] sm:$0xff]
                %236 = vst [vmem:[%s174 + $0xf0] sm:$0xff] %v235
                %v237 = vld [vmem:[%s173 + $0x9f8] sm:$0xff]
                %238 = vst [vmem:[%s174 + $0xf8] sm:$0xff] %v237
                %v239 = vld [vmem:[%s173 + $0xd00] sm:$0xff]
                %240 = vst [vmem:[%s174 + $0x100] sm:$0xff] %v239
                %v241 = vld [vmem:[%s173 + $0xd08] sm:$0xff]
                %242 = vst [vmem:[%s174 + $0x108] sm:$0xff] %v241
                %v243 = vld [vmem:[%s173 + $0xd10] sm:$0xff]
                %244 = vst [vmem:[%s174 + $0x110] sm:$0xff] %v243
                %v245 = vld [vmem:[%s173 + $0xd18] sm:$0xff]
                %246 = vst [vmem:[%s174 + $0x118] sm:$0xff] %v245
                %v247 = vld [vmem:[%s173 + $0xd20] sm:$0xff]
                %248 = vst [vmem:[%s174 + $0x120] sm:$0xff] %v247
                %v249 = vld [vmem:[%s173 + $0xd28] sm:$0xff]
                %250 = vst [vmem:[%s174 + $0x128] sm:$0xff] %v249
                %v251 = vld [vmem:[%s173 + $0xd30] sm:$0xff]
                %252 = vst [vmem:[%s174 + $0x130] sm:$0xff] %v251
                %v253 = vld [vmem:[%s173 + $0xd38] sm:$0xff]
                %254 = vst [vmem:[%s174 + $0x138] sm:$0xff] %v253
                %v255 = vld [vmem:[%s173 + $0x1040] sm:$0xff]
                %256 = vst [vmem:[%s174 + $0x140] sm:$0xff] %v255
                %v257 = vld [vmem:[%s173 + $0x1048] sm:$0xff]
                %258 = vst [vmem:[%s174 + $0x148] sm:$0xff] %v257
                %v259 = vld [vmem:[%s173 + $0x1050] sm:$0xff]
                %260 = vst [vmem:[%s174 + $0x150] sm:$0xff] %v259
                %v261 = vld [vmem:[%s173 + $0x1058] sm:$0xff]
                %262 = vst [vmem:[%s174 + $0x158] sm:$0xff] %v261
                %v263 = vld [vmem:[%s173 + $0x1060] sm:$0xff]
                %264 = vst [vmem:[%s174 + $0x160] sm:$0xff] %v263
                %v265 = vld [vmem:[%s173 + $0x1068] sm:$0xff]
                %266 = vst [vmem:[%s174 + $0x168] sm:$0xff] %v265
                %v267 = vld [vmem:[%s173 + $0x1070] sm:$0xff]
                %268 = vst [vmem:[%s174 + $0x170] sm:$0xff] %v267
                %v269 = vld [vmem:[%s173 + $0x1078] sm:$0xff]
                %270 = vst [vmem:[%s174 + $0x178] sm:$0xff] %v269
                %v271 = vld [vmem:[%s173 + $0x1380] sm:$0xff]
                %272 = vst [vmem:[%s174 + $0x180] sm:$0xff] %v271
                %v273 = vld [vmem:[%s173 + $0x1388] sm:$0xff]
                %274 = vst [vmem:[%s174 + $0x188] sm:$0xff] %v273
                %v275 = vld [vmem:[%s173 + $0x1390] sm:$0xff]
                %276 = vst [vmem:[%s174 + $0x190] sm:$0xff] %v275
                %v277 = vld [vmem:[%s173 + $0x1398] sm:$0xff]
                %278 = vst [vmem:[%s174 + $0x198] sm:$0xff] %v277
                %v279 = vld [vmem:[%s173 + $0x13a0] sm:$0xff]
                %280 = vst [vmem:[%s174 + $0x1a0] sm:$0xff] %v279
                %v281 = vld [vmem:[%s173 + $0x13a8] sm:$0xff]
                %282 = vst [vmem:[%s174 + $0x1a8] sm:$0xff] %v281
                %v283 = vld [vmem:[%s173 + $0x13b0] sm:$0xff]
                %284 = vst [vmem:[%s174 + $0x1b0] sm:$0xff] %v283
                %v285 = vld [vmem:[%s173 + $0x13b8] sm:$0xff]
                %286 = vst [vmem:[%s174 + $0x1b8] sm:$0xff] %v285
                %v287 = vld [vmem:[%s173 + $0x16c0] sm:$0xff]
                %288 = vst [vmem:[%s174 + $0x1c0] sm:$0xff] %v287
                %v289 = vld [vmem:[%s173 + $0x16c8] sm:$0xff]
                %290 = vst [vmem:[%s174 + $0x1c8] sm:$0xff] %v289
                %v291 = vld [vmem:[%s173 + $0x16d0] sm:$0xff]
                %292 = vst [vmem:[%s174 + $0x1d0] sm:$0xff] %v291
                %v293 = vld [vmem:[%s173 + $0x16d8] sm:$0xff]
                %294 = vst [vmem:[%s174 + $0x1d8] sm:$0xff] %v293
                %v295 = vld [vmem:[%s173 + $0x16e0] sm:$0xff]
                %296 = vst [vmem:[%s174 + $0x1e0] sm:$0xff] %v295
                %v297 = vld [vmem:[%s173 + $0x16e8] sm:$0xff]
                %298 = vst [vmem:[%s174 + $0x1e8] sm:$0xff] %v297
                %v299 = vld [vmem:[%s173 + $0x16f0] sm:$0xff]
                %300 = vst [vmem:[%s174 + $0x1f0] sm:$0xff] %v299
                %v301 = vld [vmem:[%s173 + $0x16f8] sm:$0xff]
                %302 = vst [vmem:[%s174 + $0x1f8] sm:$0xff] %v301
                %v303 = vld [vmem:[%s173 + $0x1a00] sm:$0xff]
                %304 = vst [vmem:[%s174 + $0x200] sm:$0xff] %v303
                %v305 = vld [vmem:[%s173 + $0x1a08] sm:$0xff]
                %306 = vst [vmem:[%s174 + $0x208] sm:$0xff] %v305
                %v307 = vld [vmem:[%s173 + $0x1a10] sm:$0xff]
                %308 = vst [vmem:[%s174 + $0x210] sm:$0xff] %v307
                %v309 = vld [vmem:[%s173 + $0x1a18] sm:$0xff]
                %310 = vst [vmem:[%s174 + $0x218] sm:$0xff] %v309
                %v311 = vld [vmem:[%s173 + $0x1a20] sm:$0xff]
                %312 = vst [vmem:[%s174 + $0x220] sm:$0xff] %v311
                %v313 = vld [vmem:[%s173 + $0x1a28] sm:$0xff]
                %314 = vst [vmem:[%s174 + $0x228] sm:$0xff] %v313
                %v315 = vld [vmem:[%s173 + $0x1a30] sm:$0xff]
                %316 = vst [vmem:[%s174 + $0x230] sm:$0xff] %v315
                %v317 = vld [vmem:[%s173 + $0x1a38] sm:$0xff]
                %318 = vst [vmem:[%s174 + $0x238] sm:$0xff] %v317
                %v319 = vld [vmem:[%s173 + $0x1d40] sm:$0xff]
                %320 = vst [vmem:[%s174 + $0x240] sm:$0xff] %v319
                %v321 = vld [vmem:[%s173 + $0x1d48] sm:$0xff]
                %322 = vst [vmem:[%s174 + $0x248] sm:$0xff] %v321
                %v323 = vld [vmem:[%s173 + $0x1d50] sm:$0xff]
                %324 = vst [vmem:[%s174 + $0x250] sm:$0xff] %v323
                %v325 = vld [vmem:[%s173 + $0x1d58] sm:$0xff]
                %326 = vst [vmem:[%s174 + $0x258] sm:$0xff] %v325
                %v327 = vld [vmem:[%s173 + $0x1d60] sm:$0xff]
                %328 = vst [vmem:[%s174 + $0x260] sm:$0xff] %v327
                %v329 = vld [vmem:[%s173 + $0x1d68] sm:$0xff]
                %330 = vst [vmem:[%s174 + $0x268] sm:$0xff] %v329
                %v331 = vld [vmem:[%s173 + $0x1d70] sm:$0xff]
                %332 = vst [vmem:[%s174 + $0x270] sm:$0xff] %v331
                %v333 = vld [vmem:[%s173 + $0x1d78] sm:$0xff]
                %334 = vst [vmem:[%s174 + $0x278] sm:$0xff] %v333
              $region45: #{cat_dog_cnn_forward.7} parent=39 // loop_footer
                %s172 = sadd.s32 1, %s168
              $region46: #{cat_dog_cnn_forward.7} parent=39 // loop_footer_branch
                %167 = sbr.rel target = $region42
              $region47: #{cat_dog_cnn_forward.7} parent=39 // loop_exit
                _
            $region40: #{cat_dog_cnn_forward.7} parent=35 // pred_fallthru
              _
            // Predicated region
            $region48: #{cat_dog_cnn_forward.7} parent=35 // pred_check
              _
            $region49: #{cat_dog_cnn_forward.7} parent=35 // pred_check_branch
              %336 = sbr.rel target = $region51
            $region50: #{cat_dog_cnn_forward.7} parent=35 // pred_region
              _
            $region51: #{cat_dog_cnn_forward.7} parent=35 // pred_fallthru
              _
          $region36: #{cat_dog_cnn_forward.7} parent=31 // pred_fallthru
            _
          %337 = vnop
        $region32: #{cat_dog_cnn_forward.7} parent=27 // pred_fallthru
          _
      $region28: #{cat_dog_cnn_forward.7} parent=5 // pred_fallthru
        _
      %p338 = scmp.le.s32.totalorder 1, %s10
      %p339 = scmp.lt.s32.totalorder %s10, 14
      %p340 = pnand %p338, %p339
      %p341 = pneg %p340
      // Predicated region
      $region52: #{cat_dog_cnn_forward.7} parent=5 // pred_check
        _
      $region53: #{cat_dog_cnn_forward.7} parent=5 // pred_check_branch
        %343 = sbr.rel (%p340) target = $region55
      $region54: #{cat_dog_cnn_forward.7} parent=5 // pred_region
        %s344 = ssub.s32 %s10, 1
        %s345 = sand.u32 %s44, 1
        %s346 = sand.u32 %s44, 1
        %s347 = smul.addr %s346, 640
        %s348 = scalar_lea.vmem [#allocation2], %s347
        // Predicated region
        $region56: #{cat_dog_cnn_forward.7} parent=54 // pred_check
          %p349 = pneg %p57
        $region57: #{cat_dog_cnn_forward.7} parent=54 // pred_check_branch
          %351 = sbr.rel (%p349) target = $region59
        $region58: #{cat_dog_cnn_forward.7} parent=54 // pred_region
          _
        $region59: #{cat_dog_cnn_forward.7} parent=54 // pred_fallthru
          _
        %p352 = pneg %p31
        %p353 = pneg %p28
        %s354 = sand.u32 %s44, 1
        %s355 = sand.u32 %s44, 1
        %s356 = smul.addr %s355, 640
        %s357 = scalar_lea.vmem [#allocation2], %s356
        %p358 = pneg %p57
        %p359 = pneg %p54
        %p360 = pneg %p78
        %p361 = pneg %p75
        %p362 = pneg %p99
        %p363 = pneg %p96
        %p364 = pneg %p125
        %p365 = pneg %p122
        %s366 = sand.u32 %s112, 1
        %s367 = sand.u32 %s112, 1
        %s368 = smul.addr %s367, 128
        %s369 = scalar_lea.vmem [#allocation3], %s368
        %s370 = smul.u32 16, %s15
        %s371 = smul.u32 16, %s15
        %v373 = vld [vmem:[%s0] sm:$0xf]
        %v374 = vld [vmem:[%s0 + $0x4] sm:$0xf]
        %v375 = vld [vmem:[%s348] sm:$0xff]
        %v376 = vld [vmem:[%s348 + $0x8] sm:$0xff]
        %v377 = vld [vmem:[%s348 + $0x10] sm:$0xff]
        %v378 = vld [vmem:[%s348 + $0x18] sm:$0xff]
        %v379 = vld [vmem:[%s348 + $0x20] sm:$0xff]
        %v380 = vld [vmem:[%s348 + $0x28] sm:$0xff]
        %v381 = vld [vmem:[%s348 + $0x30] sm:$0xff]
        %v382 = vld [vmem:[%s348 + $0x38] sm:$0xff]
        %v383 = vld [vmem:[%s348 + $0x40] sm:$0xff]
        %v384 = vld [vmem:[%s348 + $0x48] sm:$0xff]
        %v385 = vld [vmem:[%s348 + $0x50] sm:$0xff]
        %v386 = vld [vmem:[%s348 + $0x58] sm:$0xff]
        %v387 = vld [vmem:[%s348 + $0x60] sm:$0xff]
        %v388 = vld [vmem:[%s348 + $0x68] sm:$0xff]
        %v389 = vld [vmem:[%s348 + $0x70] sm:$0xff]
        %v390 = vld [vmem:[%s348 + $0x78] sm:$0xff]
        %v391 = vld [vmem:[%s348 + $0x80] sm:$0xff]
        %v392 = vld [vmem:[%s348 + $0x88] sm:$0xff]
        %v393 = vld [vmem:[%s348 + $0x90] sm:$0xff]
        %v394 = vld [vmem:[%s348 + $0x98] sm:$0xff]
        %v395 = vld [vmem:[%s348 + $0xa0] sm:$0xff]
        %v396 = vld [vmem:[%s348 + $0xa8] sm:$0xff]
        %v397 = vld [vmem:[%s348 + $0xb0] sm:$0xff]
        %v398 = vld [vmem:[%s348 + $0xb8] sm:$0xff]
        %v399 = vld [vmem:[%s348 + $0xc0] sm:$0xff]
        %v400 = vld [vmem:[%s348 + $0xc8] sm:$0xff]
        %v401 = vld [vmem:[%s348 + $0xd0] sm:$0xff]
        %v402 = vld [vmem:[%s348 + $0xd8] sm:$0xff]
        %v403 = vld [vmem:[%s348 + $0xe0] sm:$0xff]
        %v404 = vld [vmem:[%s348 + $0xe8] sm:$0xff]
        %v405 = vld [vmem:[%s348 + $0xf0] sm:$0xff]
        %v406 = vld [vmem:[%s348 + $0xf8] sm:$0xff]
        %v407 = vld [vmem:[%s348 + $0x100] sm:$0xff]
        %v408 = vld [vmem:[%s348 + $0x108] sm:$0xff]
        %v409 = vld [vmem:[%s348 + $0x110] sm:$0xff]
        %v410 = vld [vmem:[%s348 + $0x118] sm:$0xff]
        %v411 = vld [vmem:[%s348 + $0x120] sm:$0xff]
        %v412 = vld [vmem:[%s348 + $0x128] sm:$0xff]
        %v413 = vld [vmem:[%s348 + $0x130] sm:$0xff]
        %v414 = vld [vmem:[%s348 + $0x138] sm:$0xff]
        %v415 = vld [vmem:[%s348 + $0x140] sm:$0xff]
        %v416 = vld [vmem:[%s348 + $0x148] sm:$0xff]
        %v417 = vld [vmem:[%s348 + $0x150] sm:$0xff]
        %v418 = vld [vmem:[%s348 + $0x158] sm:$0xff]
        %v419 = vld [vmem:[%s348 + $0x160] sm:$0xff]
        %v420 = vld [vmem:[%s348 + $0x168] sm:$0xff]
        %v421 = vld [vmem:[%s348 + $0x170] sm:$0xff]
        %v422 = vld [vmem:[%s348 + $0x178] sm:$0xff]
        %v423 = vld [vmem:[%s348 + $0x180] sm:$0xff]
        %v424 = vld [vmem:[%s348 + $0x188] sm:$0xff]
        %v425 = vld [vmem:[%s348 + $0x190] sm:$0xff]
        %v426 = vld [vmem:[%s348 + $0x198] sm:$0xff]
        %v427 = vld [vmem:[%s348 + $0x1a0] sm:$0xff]
        %v428 = vld [vmem:[%s348 + $0x1a8] sm:$0xff]
        %v429 = vld [vmem:[%s348 + $0x1b0] sm:$0xff]
        %v430 = vld [vmem:[%s348 + $0x1b8] sm:$0xff]
        %v431 = vld [vmem:[%s348 + $0x1c0] sm:$0xff]
        %v432 = vld [vmem:[%s348 + $0x1c8] sm:$0xff]
        %v433 = vld [vmem:[%s348 + $0x1d0] sm:$0xff]
        %v434 = vld [vmem:[%s348 + $0x1d8] sm:$0xff]
        %v435 = vld [vmem:[%s348 + $0x1e0] sm:$0xff]
        %v436 = vld [vmem:[%s348 + $0x1e8] sm:$0xff]
        %v437 = vld [vmem:[%s348 + $0x1f0] sm:$0xff]
        %v438 = vld [vmem:[%s348 + $0x1f8] sm:$0xff]
        %v439 = vld [vmem:[%s348 + $0x200] sm:$0xff]
        %v440 = vld [vmem:[%s348 + $0x208] sm:$0xff]
        %v441 = vld [vmem:[%s348 + $0x210] sm:$0xff]
        %v442 = vld [vmem:[%s348 + $0x218] sm:$0xff]
        %v443 = vld [vmem:[%s348 + $0x220] sm:$0xff]
        %v444 = vld [vmem:[%s348 + $0x228] sm:$0xff]
        %v445 = vld [vmem:[%s348 + $0x230] sm:$0xff]
        %v446 = vld [vmem:[%s348 + $0x238] sm:$0xff]
        %v447 = vld [vmem:[%s348 + $0x240] sm:$0x33]
        %v448 = vld [vmem:[%s348 + $0x248] sm:$0x33]
        %v449 = vld [vmem:[%s348 + $0x250] sm:$0x33]
        %v450 = vld [vmem:[%s348 + $0x258] sm:$0x33]
        %v451 = vld [vmem:[%s348 + $0x260] sm:$0x33]
        %v452 = vld [vmem:[%s348 + $0x268] sm:$0x33]
        %v453 = vld [vmem:[%s348 + $0x270] sm:$0x33]
        %v454 = vld [vmem:[%s348 + $0x278] sm:$0x33]
        %v457 = vunpack.c.l.b16 %v373
        %v458 = vunpack.c.l.b16 %v374
        %v459 = vpack.c.b16 %v458, %v457
        %v540 = vunpack.c.l.b16 %v375
        %v541 = vunpack.c.h.b16 %v375
        %v542 = vunpack.c.l.b16 %v376
        %v543 = vunpack.c.h.b16 %v376
        %v544 = vunpack.c.l.b16 %v377
        %v545 = vunpack.c.h.b16 %v377
        %v546 = vunpack.c.l.b16 %v378
        %v547 = vunpack.c.h.b16 %v378
        %v548 = vunpack.c.l.b16 %v379
        %v549 = vunpack.c.h.b16 %v379
        %v550 = vunpack.c.l.b16 %v380
        %v551 = vunpack.c.h.b16 %v380
        %v552 = vunpack.c.l.b16 %v381
        %v553 = vunpack.c.h.b16 %v381
        %v554 = vunpack.c.l.b16 %v382
        %v555 = vunpack.c.h.b16 %v382
        %v556 = vunpack.c.l.b16 %v383
        %v557 = vunpack.c.h.b16 %v383
        %v558 = vunpack.c.l.b16 %v384
        %v559 = vunpack.c.h.b16 %v384
        %v560 = vunpack.c.l.b16 %v385
        %v561 = vunpack.c.h.b16 %v385
        %v562 = vunpack.c.l.b16 %v386
        %v563 = vunpack.c.h.b16 %v386
        %v564 = vunpack.c.l.b16 %v387
        %v565 = vunpack.c.h.b16 %v387
        %v566 = vunpack.c.l.b16 %v388
        %v567 = vunpack.c.h.b16 %v388
        %v568 = vunpack.c.l.b16 %v389
        %v569 = vunpack.c.h.b16 %v389
        %v570 = vunpack.c.l.b16 %v390
        %v571 = vunpack.c.h.b16 %v390
        %v572 = vunpack.c.l.b16 %v391
        %v573 = vunpack.c.h.b16 %v391
        %v574 = vunpack.c.l.b16 %v392
        %v575 = vunpack.c.h.b16 %v392
        %v576 = vunpack.c.l.b16 %v393
        %v577 = vunpack.c.h.b16 %v393
        %v578 = vunpack.c.l.b16 %v394
        %v579 = vunpack.c.h.b16 %v394
        %v580 = vunpack.c.l.b16 %v395
        %v581 = vunpack.c.h.b16 %v395
        %v582 = vunpack.c.l.b16 %v396
        %v583 = vunpack.c.h.b16 %v396
        %v584 = vunpack.c.l.b16 %v397
        %v585 = vunpack.c.h.b16 %v397
        %v586 = vunpack.c.l.b16 %v398
        %v587 = vunpack.c.h.b16 %v398
        %v588 = vunpack.c.l.b16 %v399
        %v589 = vunpack.c.h.b16 %v399
        %v590 = vunpack.c.l.b16 %v400
        %v591 = vunpack.c.h.b16 %v400
        %v592 = vunpack.c.l.b16 %v401
        %v593 = vunpack.c.h.b16 %v401
        %v594 = vunpack.c.l.b16 %v402
        %v595 = vunpack.c.h.b16 %v402
        %v596 = vunpack.c.l.b16 %v403
        %v597 = vunpack.c.h.b16 %v403
        %v598 = vunpack.c.l.b16 %v404
        %v599 = vunpack.c.h.b16 %v404
        %v600 = vunpack.c.l.b16 %v405
        %v601 = vunpack.c.h.b16 %v405
        %v602 = vunpack.c.l.b16 %v406
        %v603 = vunpack.c.h.b16 %v406
        %v604 = vunpack.c.l.b16 %v407
        %v605 = vunpack.c.h.b16 %v407
        %v606 = vunpack.c.l.b16 %v408
        %v607 = vunpack.c.h.b16 %v408
        %v608 = vunpack.c.l.b16 %v409
        %v609 = vunpack.c.h.b16 %v409
        %v610 = vunpack.c.l.b16 %v410
        %v611 = vunpack.c.h.b16 %v410
        %v612 = vunpack.c.l.b16 %v411
        %v613 = vunpack.c.h.b16 %v411
        %v614 = vunpack.c.l.b16 %v412
        %v615 = vunpack.c.h.b16 %v412
        %v616 = vunpack.c.l.b16 %v413
        %v617 = vunpack.c.h.b16 %v413
        %v618 = vunpack.c.l.b16 %v414
        %v619 = vunpack.c.h.b16 %v414
        %v620 = vunpack.c.l.b16 %v415
        %v621 = vunpack.c.h.b16 %v415
        %v622 = vunpack.c.l.b16 %v416
        %v623 = vunpack.c.h.b16 %v416
        %v624 = vunpack.c.l.b16 %v417
        %v625 = vunpack.c.h.b16 %v417
        %v626 = vunpack.c.l.b16 %v418
        %v627 = vunpack.c.h.b16 %v418
        %v628 = vunpack.c.l.b16 %v419
        %v629 = vunpack.c.h.b16 %v419
        %v630 = vunpack.c.l.b16 %v420
        %v631 = vunpack.c.h.b16 %v420
        %v632 = vunpack.c.l.b16 %v421
        %v633 = vunpack.c.h.b16 %v421
        %v634 = vunpack.c.l.b16 %v422
        %v635 = vunpack.c.h.b16 %v422
        %v636 = vunpack.c.l.b16 %v423
        %v637 = vunpack.c.h.b16 %v423
        %v638 = vunpack.c.l.b16 %v424
        %v639 = vunpack.c.h.b16 %v424
        %v640 = vunpack.c.l.b16 %v425
        %v641 = vunpack.c.h.b16 %v425
        %v642 = vunpack.c.l.b16 %v426
        %v643 = vunpack.c.h.b16 %v426
        %v644 = vunpack.c.l.b16 %v427
        %v645 = vunpack.c.h.b16 %v427
        %v646 = vunpack.c.l.b16 %v428
        %v647 = vunpack.c.h.b16 %v428
        %v648 = vunpack.c.l.b16 %v429
        %v649 = vunpack.c.h.b16 %v429
        %v650 = vunpack.c.l.b16 %v430
        %v651 = vunpack.c.h.b16 %v430
        %v652 = vunpack.c.l.b16 %v431
        %v653 = vunpack.c.h.b16 %v431
        %v654 = vunpack.c.l.b16 %v432
        %v655 = vunpack.c.h.b16 %v432
        %v656 = vunpack.c.l.b16 %v433
        %v657 = vunpack.c.h.b16 %v433
        %v658 = vunpack.c.l.b16 %v434
        %v659 = vunpack.c.h.b16 %v434
        %v660 = vunpack.c.l.b16 %v435
        %v661 = vunpack.c.h.b16 %v435
        %v662 = vunpack.c.l.b16 %v436
        %v663 = vunpack.c.h.b16 %v436
        %v664 = vunpack.c.l.b16 %v437
        %v665 = vunpack.c.h.b16 %v437
        %v666 = vunpack.c.l.b16 %v438
        %v667 = vunpack.c.h.b16 %v438
        %v668 = vunpack.c.l.b16 %v439
        %v669 = vunpack.c.h.b16 %v439
        %v670 = vunpack.c.l.b16 %v440
        %v671 = vunpack.c.h.b16 %v440
        %v672 = vunpack.c.l.b16 %v441
        %v673 = vunpack.c.h.b16 %v441
        %v674 = vunpack.c.l.b16 %v442
        %v675 = vunpack.c.h.b16 %v442
        %v676 = vunpack.c.l.b16 %v443
        %v677 = vunpack.c.h.b16 %v443
        %v678 = vunpack.c.l.b16 %v444
        %v679 = vunpack.c.h.b16 %v444
        %v680 = vunpack.c.l.b16 %v445
        %v681 = vunpack.c.h.b16 %v445
        %v682 = vunpack.c.l.b16 %v446
        %v683 = vunpack.c.h.b16 %v446
        %v684 = vunpack.c.l.b16 %v447
        %v685 = vunpack.c.h.b16 %v447
        %v686 = vunpack.c.l.b16 %v448
        %v687 = vunpack.c.h.b16 %v448
        %v688 = vunpack.c.l.b16 %v449
        %v689 = vunpack.c.h.b16 %v449
        %v690 = vunpack.c.l.b16 %v450
        %v691 = vunpack.c.h.b16 %v450
        %v692 = vunpack.c.l.b16 %v451
        %v693 = vunpack.c.h.b16 %v451
        %v694 = vunpack.c.l.b16 %v452
        %v695 = vunpack.c.h.b16 %v452
        %v696 = vunpack.c.l.b16 %v453
        %v697 = vunpack.c.h.b16 %v453
        %v698 = vunpack.c.l.b16 %v454
        %v699 = vunpack.c.h.b16 %v454
        %v700 = vpack.c.b16 %v556, %v540
        %v701 = vpack.c.b16 %v557, %v541
        %v702 = vpack.c.b16 %v558, %v542
        %v703 = vpack.c.b16 %v559, %v543
        %v704 = vpack.c.b16 %v560, %v544
        %v705 = vpack.c.b16 %v561, %v545
        %v706 = vpack.c.b16 %v562, %v546
        %v707 = vpack.c.b16 %v563, %v547
        %v708 = vpack.c.b16 %v564, %v548
        %v709 = vpack.c.b16 %v565, %v549
        %v710 = vpack.c.b16 %v566, %v550
        %v711 = vpack.c.b16 %v567, %v551
        %v712 = vpack.c.b16 %v568, %v552
        %v713 = vpack.c.b16 %v569, %v553
        %v714 = vpack.c.b16 %v570, %v554
        %v715 = vpack.c.b16 %v571, %v555
        %v716 = vpack.c.b16 %v588, %v572
        %v717 = vpack.c.b16 %v589, %v573
        %v718 = vpack.c.b16 %v590, %v574
        %v719 = vpack.c.b16 %v591, %v575
        %v720 = vpack.c.b16 %v592, %v576
        %v721 = vpack.c.b16 %v593, %v577
        %v722 = vpack.c.b16 %v594, %v578
        %v723 = vpack.c.b16 %v595, %v579
        %v724 = vpack.c.b16 %v596, %v580
        %v725 = vpack.c.b16 %v597, %v581
        %v726 = vpack.c.b16 %v598, %v582
        %v727 = vpack.c.b16 %v599, %v583
        %v728 = vpack.c.b16 %v600, %v584
        %v729 = vpack.c.b16 %v601, %v585
        %v730 = vpack.c.b16 %v602, %v586
        %v731 = vpack.c.b16 %v603, %v587
        %v732 = vpack.c.b16 %v620, %v604
        %v733 = vpack.c.b16 %v621, %v605
        %v734 = vpack.c.b16 %v622, %v606
        %v735 = vpack.c.b16 %v623, %v607
        %v736 = vpack.c.b16 %v624, %v608
        %v737 = vpack.c.b16 %v625, %v609
        %v738 = vpack.c.b16 %v626, %v610
        %v739 = vpack.c.b16 %v627, %v611
        %v740 = vpack.c.b16 %v628, %v612
        %v741 = vpack.c.b16 %v629, %v613
        %v742 = vpack.c.b16 %v630, %v614
        %v743 = vpack.c.b16 %v631, %v615
        %v744 = vpack.c.b16 %v632, %v616
        %v745 = vpack.c.b16 %v633, %v617
        %v746 = vpack.c.b16 %v634, %v618
        %v747 = vpack.c.b16 %v635, %v619
        %v748 = vpack.c.b16 %v652, %v636
        %v749 = vpack.c.b16 %v653, %v637
        %v750 = vpack.c.b16 %v654, %v638
        %v751 = vpack.c.b16 %v655, %v639
        %v752 = vpack.c.b16 %v656, %v640
        %v753 = vpack.c.b16 %v657, %v641
        %v754 = vpack.c.b16 %v658, %v642
        %v755 = vpack.c.b16 %v659, %v643
        %v756 = vpack.c.b16 %v660, %v644
        %v757 = vpack.c.b16 %v661, %v645
        %v758 = vpack.c.b16 %v662, %v646
        %v759 = vpack.c.b16 %v663, %v647
        %v760 = vpack.c.b16 %v664, %v648
        %v761 = vpack.c.b16 %v665, %v649
        %v762 = vpack.c.b16 %v666, %v650
        %v763 = vpack.c.b16 %v667, %v651
        %v764 = vpack.c.b16 %v684, %v668
        %v765 = vpack.c.b16 %v685, %v669
        %v766 = vpack.c.b16 %v686, %v670
        %v767 = vpack.c.b16 %v687, %v671
        %v768 = vpack.c.b16 %v688, %v672
        %v769 = vpack.c.b16 %v689, %v673
        %v770 = vpack.c.b16 %v690, %v674
        %v771 = vpack.c.b16 %v691, %v675
        %v772 = vpack.c.b16 %v692, %v676
        %v773 = vpack.c.b16 %v693, %v677
        %v774 = vpack.c.b16 %v694, %v678
        %v775 = vpack.c.b16 %v695, %v679
        %v776 = vpack.c.b16 %v696, %v680
        %v777 = vpack.c.b16 %v697, %v681
        %v778 = vpack.c.b16 %v698, %v682
        %v779 = vpack.c.b16 %v699, %v683
        %vm844 = vcmask 613376
        %v846 = vsel %vm844, %v459, 0
        %vm848 = vcmask 1044480
        %vm849 = vcmask 1045504
        %v850 = vsel %vm848, 4294967295, 65535
        %v851 = vsel %vm849, %v850, 0
        %v853 = vand.u32 %v764, %v851
        %v856 = vand.u32 %v765, %v851
        %v859 = vand.u32 %v766, %v851
        %v862 = vand.u32 %v767, %v851
        %v865 = vand.u32 %v768, %v851
        %v868 = vand.u32 %v769, %v851
        %v871 = vand.u32 %v770, %v851
        %v874 = vand.u32 %v771, %v851
        %v877 = vand.u32 %v772, %v851
        %v880 = vand.u32 %v773, %v851
        %v883 = vand.u32 %v774, %v851
        %v886 = vand.u32 %v775, %v851
        %v889 = vand.u32 %v776, %v851
        %v892 = vand.u32 %v777, %v851
        %v895 = vand.u32 %v778, %v851
        %v898 = vand.u32 %v779, %v851
        %900 = vmatpush.bf16.msra.mxu0 0
        %901 = vmatpush.bf16.msra.mxu0 0
        %902 = vmatpush.bf16.msra.mxu0 0
        %903 = vmatpush.bf16.msra.mxu0 %v853
        %904 = vmatpush.bf16.msra.mxu0 %v748
        %905 = vmatpush.bf16.msra.mxu0 %v732
        %906 = vmatpush.bf16.msra.mxu0 %v716
        %907 = vmatpush.bf16.msra.mxu0 %v700
        %908 = vmatmul.bf16.gmra.mxu0 %v846
        %v909 = vpop.f32.mrf.mxu0
        %v910 = vadd.f32 0.0, %v909
        %v911 = vpop.f32.mrf.mxu0
        %v912 = vadd.f32 0.0, %v911
        %913 = vdwg.mxu0
        %914 = vmatpush.bf16.msra.mxu0 0
        %915 = vmatpush.bf16.msra.mxu0 0
        %916 = vmatpush.bf16.msra.mxu0 0
        %917 = vmatpush.bf16.msra.mxu0 %v856
        %918 = vmatpush.bf16.msra.mxu0 %v749
        %919 = vmatpush.bf16.msra.mxu0 %v733
        %920 = vmatpush.bf16.msra.mxu0 %v717
        %921 = vmatpush.bf16.msra.mxu0 %v701
        %922 = vmatmul.bf16.gmra.mxu0 %v846
        %v923 = vpop.f32.mrf.mxu0
        %v924 = vadd.f32 0.0, %v923
        %v925 = vpop.f32.mrf.mxu0
        %v926 = vadd.f32 0.0, %v925
        %927 = vdwg.mxu0
        %928 = vmatpush.bf16.msra.mxu0 0
        %929 = vmatpush.bf16.msra.mxu0 0
        %930 = vmatpush.bf16.msra.mxu0 0
        %931 = vmatpush.bf16.msra.mxu0 %v859
        %932 = vmatpush.bf16.msra.mxu0 %v750
        %933 = vmatpush.bf16.msra.mxu0 %v734
        %934 = vmatpush.bf16.msra.mxu0 %v718
        %935 = vmatpush.bf16.msra.mxu0 %v702
        %936 = vmatmul.bf16.gmra.mxu0 %v846
        %v937 = vpop.f32.mrf.mxu0
        %v938 = vadd.f32 0.0, %v937
        %v939 = vpop.f32.mrf.mxu0
        %v940 = vadd.f32 0.0, %v939
        %941 = vdwg.mxu0
        %942 = vmatpush.bf16.msra.mxu0 0
        %943 = vmatpush.bf16.msra.mxu0 0
        %944 = vmatpush.bf16.msra.mxu0 0
        %945 = vmatpush.bf16.msra.mxu0 %v862
        %946 = vmatpush.bf16.msra.mxu0 %v751
        %947 = vmatpush.bf16.msra.mxu0 %v735
        %948 = vmatpush.bf16.msra.mxu0 %v719
        %949 = vmatpush.bf16.msra.mxu0 %v703
        %950 = vmatmul.bf16.gmra.mxu0 %v846
        %v951 = vpop.f32.mrf.mxu0
        %v952 = vadd.f32 0.0, %v951
        %v953 = vpop.f32.mrf.mxu0
        %v954 = vadd.f32 0.0, %v953
        %955 = vdwg.mxu0
        %956 = vmatpush.bf16.msra.mxu0 0
        %957 = vmatpush.bf16.msra.mxu0 0
        %958 = vmatpush.bf16.msra.mxu0 0
        %959 = vmatpush.bf16.msra.mxu0 %v865
        %960 = vmatpush.bf16.msra.mxu0 %v752
        %961 = vmatpush.bf16.msra.mxu0 %v736
        %962 = vmatpush.bf16.msra.mxu0 %v720
        %963 = vmatpush.bf16.msra.mxu0 %v704
        %964 = vmatmul.bf16.gmra.mxu0 %v846
        %v965 = vpop.f32.mrf.mxu0
        %v966 = vadd.f32 0.0, %v965
        %v967 = vpop.f32.mrf.mxu0
        %v968 = vadd.f32 0.0, %v967
        %969 = vdwg.mxu0
        %970 = vmatpush.bf16.msra.mxu0 0
        %971 = vmatpush.bf16.msra.mxu0 0
        %972 = vmatpush.bf16.msra.mxu0 0
        %973 = vmatpush.bf16.msra.mxu0 %v868
        %974 = vmatpush.bf16.msra.mxu0 %v753
        %975 = vmatpush.bf16.msra.mxu0 %v737
        %976 = vmatpush.bf16.msra.mxu0 %v721
        %977 = vmatpush.bf16.msra.mxu0 %v705
        %978 = vmatmul.bf16.gmra.mxu0 %v846
        %v979 = vpop.f32.mrf.mxu0
        %v980 = vadd.f32 0.0, %v979
        %v981 = vpop.f32.mrf.mxu0
        %v982 = vadd.f32 0.0, %v981
        %983 = vdwg.mxu0
        %984 = vmatpush.bf16.msra.mxu0 0
        %985 = vmatpush.bf16.msra.mxu0 0
        %986 = vmatpush.bf16.msra.mxu0 0
        %987 = vmatpush.bf16.msra.mxu0 %v871
        %988 = vmatpush.bf16.msra.mxu0 %v754
        %989 = vmatpush.bf16.msra.mxu0 %v738
        %990 = vmatpush.bf16.msra.mxu0 %v722
        %991 = vmatpush.bf16.msra.mxu0 %v706
        %992 = vmatmul.bf16.gmra.mxu0 %v846
        %v993 = vpop.f32.mrf.mxu0
        %v994 = vadd.f32 0.0, %v993
        %v995 = vpop.f32.mrf.mxu0
        %v996 = vadd.f32 0.0, %v995
        %997 = vdwg.mxu0
        %998 = vmatpush.bf16.msra.mxu0 0
        %999 = vmatpush.bf16.msra.mxu0 0
        %1000 = vmatpush.bf16.msra.mxu0 0
        %1001 = vmatpush.bf16.msra.mxu0 %v874
        %1002 = vmatpush.bf16.msra.mxu0 %v755
        %1003 = vmatpush.bf16.msra.mxu0 %v739
        %1004 = vmatpush.bf16.msra.mxu0 %v723
        %1005 = vmatpush.bf16.msra.mxu0 %v707
        %1006 = vmatmul.bf16.gmra.mxu0 %v846
        %v1007 = vpop.f32.mrf.mxu0
        %v1008 = vadd.f32 0.0, %v1007
        %v1009 = vpop.f32.mrf.mxu0
        %v1010 = vadd.f32 0.0, %v1009
        %1011 = vdwg.mxu0
        %1012 = vmatpush.bf16.msra.mxu0 0
        %1013 = vmatpush.bf16.msra.mxu0 0
        %1014 = vmatpush.bf16.msra.mxu0 0
        %1015 = vmatpush.bf16.msra.mxu0 %v877
        %1016 = vmatpush.bf16.msra.mxu0 %v756
        %1017 = vmatpush.bf16.msra.mxu0 %v740
        %1018 = vmatpush.bf16.msra.mxu0 %v724
        %1019 = vmatpush.bf16.msra.mxu0 %v708
        %1020 = vmatmul.bf16.gmra.mxu0 %v846
        %v1021 = vpop.f32.mrf.mxu0
        %v1022 = vadd.f32 0.0, %v1021
        %v1023 = vpop.f32.mrf.mxu0
        %v1024 = vadd.f32 0.0, %v1023
        %1025 = vdwg.mxu0
        %1026 = vmatpush.bf16.msra.mxu0 0
        %1027 = vmatpush.bf16.msra.mxu0 0
        %1028 = vmatpush.bf16.msra.mxu0 0
        %1029 = vmatpush.bf16.msra.mxu0 %v880
        %1030 = vmatpush.bf16.msra.mxu0 %v757
        %1031 = vmatpush.bf16.msra.mxu0 %v741
        %1032 = vmatpush.bf16.msra.mxu0 %v725
        %1033 = vmatpush.bf16.msra.mxu0 %v709
        %1034 = vmatmul.bf16.gmra.mxu0 %v846
        %v1035 = vpop.f32.mrf.mxu0
        %v1036 = vadd.f32 0.0, %v1035
        %v1037 = vpop.f32.mrf.mxu0
        %v1038 = vadd.f32 0.0, %v1037
        %1039 = vdwg.mxu0
        %1040 = vmatpush.bf16.msra.mxu0 0
        %1041 = vmatpush.bf16.msra.mxu0 0
        %1042 = vmatpush.bf16.msra.mxu0 0
        %1043 = vmatpush.bf16.msra.mxu0 %v883
        %1044 = vmatpush.bf16.msra.mxu0 %v758
        %1045 = vmatpush.bf16.msra.mxu0 %v742
        %1046 = vmatpush.bf16.msra.mxu0 %v726
        %1047 = vmatpush.bf16.msra.mxu0 %v710
        %1048 = vmatmul.bf16.gmra.mxu0 %v846
        %v1049 = vpop.f32.mrf.mxu0
        %v1050 = vadd.f32 0.0, %v1049
        %v1051 = vpop.f32.mrf.mxu0
        %v1052 = vadd.f32 0.0, %v1051
        %1053 = vdwg.mxu0
        %1054 = vmatpush.bf16.msra.mxu0 0
        %1055 = vmatpush.bf16.msra.mxu0 0
        %1056 = vmatpush.bf16.msra.mxu0 0
        %1057 = vmatpush.bf16.msra.mxu0 %v886
        %1058 = vmatpush.bf16.msra.mxu0 %v759
        %1059 = vmatpush.bf16.msra.mxu0 %v743
        %1060 = vmatpush.bf16.msra.mxu0 %v727
        %1061 = vmatpush.bf16.msra.mxu0 %v711
        %1062 = vmatmul.bf16.gmra.mxu0 %v846
        %v1063 = vpop.f32.mrf.mxu0
        %v1064 = vadd.f32 0.0, %v1063
        %v1065 = vpop.f32.mrf.mxu0
        %v1066 = vadd.f32 0.0, %v1065
        %1067 = vdwg.mxu0
        %1068 = vmatpush.bf16.msra.mxu0 0
        %1069 = vmatpush.bf16.msra.mxu0 0
        %1070 = vmatpush.bf16.msra.mxu0 0
        %1071 = vmatpush.bf16.msra.mxu0 %v889
        %1072 = vmatpush.bf16.msra.mxu0 %v760
        %1073 = vmatpush.bf16.msra.mxu0 %v744
        %1074 = vmatpush.bf16.msra.mxu0 %v728
        %1075 = vmatpush.bf16.msra.mxu0 %v712
        %1076 = vmatmul.bf16.gmra.mxu0 %v846
        %v1077 = vpop.f32.mrf.mxu0
        %v1078 = vadd.f32 0.0, %v1077
        %v1079 = vpop.f32.mrf.mxu0
        %v1080 = vadd.f32 0.0, %v1079
        %1081 = vdwg.mxu0
        %1082 = vmatpush.bf16.msra.mxu0 0
        %1083 = vmatpush.bf16.msra.mxu0 0
        %1084 = vmatpush.bf16.msra.mxu0 0
        %1085 = vmatpush.bf16.msra.mxu0 %v892
        %1086 = vmatpush.bf16.msra.mxu0 %v761
        %1087 = vmatpush.bf16.msra.mxu0 %v745
        %1088 = vmatpush.bf16.msra.mxu0 %v729
        %1089 = vmatpush.bf16.msra.mxu0 %v713
        %1090 = vmatmul.bf16.gmra.mxu0 %v846
        %v1091 = vpop.f32.mrf.mxu0
        %v1092 = vadd.f32 0.0, %v1091
        %v1093 = vpop.f32.mrf.mxu0
        %v1094 = vadd.f32 0.0, %v1093
        %1095 = vdwg.mxu0
        %1096 = vmatpush.bf16.msra.mxu0 0
        %1097 = vmatpush.bf16.msra.mxu0 0
        %1098 = vmatpush.bf16.msra.mxu0 0
        %1099 = vmatpush.bf16.msra.mxu0 %v895
        %1100 = vmatpush.bf16.msra.mxu0 %v762
        %1101 = vmatpush.bf16.msra.mxu0 %v746
        %1102 = vmatpush.bf16.msra.mxu0 %v730
        %1103 = vmatpush.bf16.msra.mxu0 %v714
        %1104 = vmatmul.bf16.gmra.mxu0 %v846
        %v1105 = vpop.f32.mrf.mxu0
        %v1106 = vadd.f32 0.0, %v1105
        %v1107 = vpop.f32.mrf.mxu0
        %v1108 = vadd.f32 0.0, %v1107
        %1109 = vdwg.mxu0
        %1110 = vmatpush.bf16.msra.mxu0 0
        %1111 = vmatpush.bf16.msra.mxu0 0
        %1112 = vmatpush.bf16.msra.mxu0 0
        %1113 = vmatpush.bf16.msra.mxu0 %v898
        %1114 = vmatpush.bf16.msra.mxu0 %v763
        %1115 = vmatpush.bf16.msra.mxu0 %v747
        %1116 = vmatpush.bf16.msra.mxu0 %v731
        %1117 = vmatpush.bf16.msra.mxu0 %v715
        %1118 = vmatmul.bf16.gmra.mxu0 %v846
        %v1119 = vpop.f32.mrf.mxu0
        %v1120 = vadd.f32 0.0, %v1119
        %v1121 = vpop.f32.mrf.mxu0
        %v1122 = vadd.f32 0.0, %v1121
        %1123 = vdwg.mxu0
        %v1124 = vld [vmem:[%s2] sm:$0xff]
        %v1125 = vld [vmem:[%s2 + $0x8] sm:$0xff]
        %1127 = vset.pattern.permute.xlu0 0
        %1128 = vperm.xlu0 %1127, %v1124
        %v1129 = vpop.permute.xlu0 %1128
        %1132 = vset.pattern.permute.xlu0 0
        %1133 = vperm.xlu0 %1132, %v1125
        %v1134 = vpop.permute.xlu0 %1133
        %v1136 = vmul.f32 %v910, %v1129
        %v1137 = vmul.f32 %v924, %v1129
        %v1138 = vmul.f32 %v938, %v1129
        %v1139 = vmul.f32 %v952, %v1129
        %v1140 = vmul.f32 %v966, %v1129
        %v1141 = vmul.f32 %v980, %v1129
        %v1142 = vmul.f32 %v994, %v1129
        %v1143 = vmul.f32 %v1008, %v1129
        %v1144 = vmul.f32 %v1022, %v1129
        %v1145 = vmul.f32 %v1036, %v1129
        %v1146 = vmul.f32 %v1050, %v1129
        %v1147 = vmul.f32 %v1064, %v1129
        %v1148 = vmul.f32 %v1078, %v1129
        %v1149 = vmul.f32 %v1092, %v1129
        %v1150 = vmul.f32 %v1106, %v1129
        %v1151 = vmul.f32 %v1120, %v1129
        %v1152 = vmul.f32 %v912, %v1134
        %v1153 = vmul.f32 %v926, %v1134
        %v1154 = vmul.f32 %v940, %v1134
        %v1155 = vmul.f32 %v954, %v1134
        %v1156 = vmul.f32 %v968, %v1134
        %v1157 = vmul.f32 %v982, %v1134
        %v1158 = vmul.f32 %v996, %v1134
        %v1159 = vmul.f32 %v1010, %v1134
        %v1160 = vmul.f32 %v1024, %v1134
        %v1161 = vmul.f32 %v1038, %v1134
        %v1162 = vmul.f32 %v1052, %v1134
        %v1163 = vmul.f32 %v1066, %v1134
        %v1164 = vmul.f32 %v1080, %v1134
        %v1165 = vmul.f32 %v1094, %v1134
        %v1166 = vmul.f32 %v1108, %v1134
        %v1167 = vmul.f32 %v1122, %v1134
        %v1168 = vld [vmem:[%s3] sm:$0xff]
        %v1169 = vld [vmem:[%s3 + $0x8] sm:$0xff]
        %1171 = vset.pattern.permute.xlu0 0
        %1172 = vperm.xlu0 %1171, %v1168
        %v1173 = vpop.permute.xlu0 %1172
        %1176 = vset.pattern.permute.xlu0 0
        %1177 = vperm.xlu0 %1176, %v1169
        %v1178 = vpop.permute.xlu0 %1177
        %v1180 = vadd.f32 %v1136, %v1173
        %v1181 = vadd.f32 %v1137, %v1173
        %v1182 = vadd.f32 %v1138, %v1173
        %v1183 = vadd.f32 %v1139, %v1173
        %v1184 = vadd.f32 %v1140, %v1173
        %v1185 = vadd.f32 %v1141, %v1173
        %v1186 = vadd.f32 %v1142, %v1173
        %v1187 = vadd.f32 %v1143, %v1173
        %v1188 = vadd.f32 %v1144, %v1173
        %v1189 = vadd.f32 %v1145, %v1173
        %v1190 = vadd.f32 %v1146, %v1173
        %v1191 = vadd.f32 %v1147, %v1173
        %v1192 = vadd.f32 %v1148, %v1173
        %v1193 = vadd.f32 %v1149, %v1173
        %v1194 = vadd.f32 %v1150, %v1173
        %v1195 = vadd.f32 %v1151, %v1173
        %v1196 = vadd.f32 %v1152, %v1178
        %v1197 = vadd.f32 %v1153, %v1178
        %v1198 = vadd.f32 %v1154, %v1178
        %v1199 = vadd.f32 %v1155, %v1178
        %v1200 = vadd.f32 %v1156, %v1178
        %v1201 = vadd.f32 %v1157, %v1178
        %v1202 = vadd.f32 %v1158, %v1178
        %v1203 = vadd.f32 %v1159, %v1178
        %v1204 = vadd.f32 %v1160, %v1178
        %v1205 = vadd.f32 %v1161, %v1178
        %v1206 = vadd.f32 %v1162, %v1178
        %v1207 = vadd.f32 %v1163, %v1178
        %v1208 = vadd.f32 %v1164, %v1178
        %v1209 = vadd.f32 %v1165, %v1178
        %v1210 = vadd.f32 %v1166, %v1178
        %v1211 = vadd.f32 %v1167, %v1178
        %v1212 = vmax.f32 %v1180, 0.0
        %v1213 = vmax.f32 %v1181, 0.0
        %v1214 = vmax.f32 %v1182, 0.0
        %v1215 = vmax.f32 %v1183, 0.0
        %v1216 = vmax.f32 %v1184, 0.0
        %v1217 = vmax.f32 %v1185, 0.0
        %v1218 = vmax.f32 %v1186, 0.0
        %v1219 = vmax.f32 %v1187, 0.0
        %v1220 = vmax.f32 %v1188, 0.0
        %v1221 = vmax.f32 %v1189, 0.0
        %v1222 = vmax.f32 %v1190, 0.0
        %v1223 = vmax.f32 %v1191, 0.0
        %v1224 = vmax.f32 %v1192, 0.0
        %v1225 = vmax.f32 %v1193, 0.0
        %v1226 = vmax.f32 %v1194, 0.0
        %v1227 = vmax.f32 %v1195, 0.0
        %v1228 = vmax.f32 %v1196, 0.0
        %v1229 = vmax.f32 %v1197, 0.0
        %v1230 = vmax.f32 %v1198, 0.0
        %v1231 = vmax.f32 %v1199, 0.0
        %v1232 = vmax.f32 %v1200, 0.0
        %v1233 = vmax.f32 %v1201, 0.0
        %v1234 = vmax.f32 %v1202, 0.0
        %v1235 = vmax.f32 %v1203, 0.0
        %v1236 = vmax.f32 %v1204, 0.0
        %v1237 = vmax.f32 %v1205, 0.0
        %v1238 = vmax.f32 %v1206, 0.0
        %v1239 = vmax.f32 %v1207, 0.0
        %v1240 = vmax.f32 %v1208, 0.0
        %v1241 = vmax.f32 %v1209, 0.0
        %v1242 = vmax.f32 %v1210, 0.0
        %v1243 = vmax.f32 %v1211, 0.0
        %v1244 = vpack.c.bf16 %v1213, %v1212
        %v1245 = vpack.c.bf16 %v1215, %v1214
        %v1246 = vpack.c.bf16 %v1217, %v1216
        %v1247 = vpack.c.bf16 %v1219, %v1218
        %v1248 = vpack.c.bf16 %v1221, %v1220
        %v1249 = vpack.c.bf16 %v1223, %v1222
        %v1250 = vpack.c.bf16 %v1225, %v1224
        %v1251 = vpack.c.bf16 %v1227, %v1226
        %v1252 = vpack.c.bf16 %v1229, %v1228
        %v1253 = vpack.c.bf16 %v1231, %v1230
        %v1254 = vpack.c.bf16 %v1233, %v1232
        %v1255 = vpack.c.bf16 %v1235, %v1234
        %v1256 = vpack.c.bf16 %v1237, %v1236
        %v1257 = vpack.c.bf16 %v1239, %v1238
        %v1258 = vpack.c.bf16 %v1241, %v1240
        %v1259 = vpack.c.bf16 %v1243, %v1242
        %1260 = vst [vmem:[%s369] sm:$0xff] %v1244
        %1261 = vst [vmem:[%s369 + $0x8] sm:$0xff] %v1245
        %1262 = vst [vmem:[%s369 + $0x10] sm:$0xff] %v1246
        %1263 = vst [vmem:[%s369 + $0x18] sm:$0xff] %v1247
        %1264 = vst [vmem:[%s369 + $0x20] sm:$0xff] %v1248
        %1265 = vst [vmem:[%s369 + $0x28] sm:$0xff] %v1249
        %1266 = vst [vmem:[%s369 + $0x30] sm:$0xff] %v1250
        %1267 = vst [vmem:[%s369 + $0x38] sm:$0xff] %v1251
        %1268 = vst [vmem:[%s369 + $0x40] sm:$0xff] %v1252
        %1269 = vst [vmem:[%s369 + $0x48] sm:$0xff] %v1253
        %1270 = vst [vmem:[%s369 + $0x50] sm:$0xff] %v1254
        %1271 = vst [vmem:[%s369 + $0x58] sm:$0xff] %v1255
        %1272 = vst [vmem:[%s369 + $0x60] sm:$0xff] %v1256
        %1273 = vst [vmem:[%s369 + $0x68] sm:$0xff] %v1257
        %1274 = vst [vmem:[%s369 + $0x70] sm:$0xff] %v1258
        %1275 = vst [vmem:[%s369 + $0x78] sm:$0xff] %v1259
        %s1276 = sand.u32 %s112, 1
        %s1277 = sand.u32 %s112, 1
        %s1278 = smul.addr %s1277, 128
        %s1279 = scalar_lea.vmem [#allocation3], %s1278
        // Predicated region
        $region60: #{cat_dog_cnn_forward.7} parent=54 // pred_check
          %p1280 = pneg %p122
        $region61: #{cat_dog_cnn_forward.7} parent=54 // pred_check_branch
          %1282 = sbr.rel (%p1280) target = $region63
        $region62: #{cat_dog_cnn_forward.7} parent=54 // pred_region
          %s1283 = smul.u32 16, %s15
          %s1284 = smul.addr %s1283, 4
          %s1285 = scalar_lea.vmem %s4, %s1284
          // Predicated region
          $region64: #{cat_dog_cnn_forward.7} parent=62 // pred_check
            _
          $region65: #{cat_dog_cnn_forward.7} parent=62 // pred_check_branch
            %1287 = sbr.rel (0) target = $region67
          $region66: #{cat_dog_cnn_forward.7} parent=62 // pred_region
            // Predicated region
            $region68: #{cat_dog_cnn_forward.7} parent=66 // pred_check
              _
            $region69: #{cat_dog_cnn_forward.7} parent=66 // pred_check_branch
              %1289 = sbr.rel (0) target = $region71
            $region70: #{cat_dog_cnn_forward.7} parent=66 // pred_region
              loop: start=0, step=1, limit=1
              $region72: #{cat_dog_cnn_forward.7} parent=70 // loop_pre_header
                _
              $region73: #{cat_dog_cnn_forward.7} parent=70 // loop_header
                %s1291 = sphi 0, %s1295
                %p1292 = scmp.ge.s32.totalorder %s1291, 1
                %s1296 = sphi %s1279, %s1279
                %s1297 = sphi %s1285, %s1285
              $region74: #{cat_dog_cnn_forward.7} parent=70 // loop_header_branch
                %1294 = sbr.rel (%p1292) target = $region78
              $region75: #{cat_dog_cnn_forward.7} parent=70 // loop_body
                %v1298 = vld [vmem:[%s1296] sm:$0xff]
                %1299 = vst [vmem:[%s1297] sm:$0xff] %v1298
                %v1300 = vld [vmem:[%s1296 + $0x8] sm:$0xff]
                %1301 = vst [vmem:[%s1297 + $0x8] sm:$0xff] %v1300
                %v1302 = vld [vmem:[%s1296 + $0x10] sm:$0xff]
                %1303 = vst [vmem:[%s1297 + $0x10] sm:$0xff] %v1302
                %v1304 = vld [vmem:[%s1296 + $0x18] sm:$0xff]
                %1305 = vst [vmem:[%s1297 + $0x18] sm:$0xff] %v1304
                %v1306 = vld [vmem:[%s1296 + $0x20] sm:$0xff]
                %1307 = vst [vmem:[%s1297 + $0x20] sm:$0xff] %v1306
                %v1308 = vld [vmem:[%s1296 + $0x28] sm:$0xff]
                %1309 = vst [vmem:[%s1297 + $0x28] sm:$0xff] %v1308
                %v1310 = vld [vmem:[%s1296 + $0x30] sm:$0xff]
                %1311 = vst [vmem:[%s1297 + $0x30] sm:$0xff] %v1310
                %v1312 = vld [vmem:[%s1296 + $0x38] sm:$0xff]
                %1313 = vst [vmem:[%s1297 + $0x38] sm:$0xff] %v1312
                %v1314 = vld [vmem:[%s1296 + $0x40] sm:$0xff]
                %1315 = vst [vmem:[%s1297 + $0x340] sm:$0xff] %v1314
                %v1316 = vld [vmem:[%s1296 + $0x48] sm:$0xff]
                %1317 = vst [vmem:[%s1297 + $0x348] sm:$0xff] %v1316
                %v1318 = vld [vmem:[%s1296 + $0x50] sm:$0xff]
                %1319 = vst [vmem:[%s1297 + $0x350] sm:$0xff] %v1318
                %v1320 = vld [vmem:[%s1296 + $0x58] sm:$0xff]
                %1321 = vst [vmem:[%s1297 + $0x358] sm:$0xff] %v1320
                %v1322 = vld [vmem:[%s1296 + $0x60] sm:$0xff]
                %1323 = vst [vmem:[%s1297 + $0x360] sm:$0xff] %v1322
                %v1324 = vld [vmem:[%s1296 + $0x68] sm:$0xff]
                %1325 = vst [vmem:[%s1297 + $0x368] sm:$0xff] %v1324
                %v1326 = vld [vmem:[%s1296 + $0x70] sm:$0xff]
                %1327 = vst [vmem:[%s1297 + $0x370] sm:$0xff] %v1326
                %v1328 = vld [vmem:[%s1296 + $0x78] sm:$0xff]
                %1329 = vst [vmem:[%s1297 + $0x378] sm:$0xff] %v1328
              $region76: #{cat_dog_cnn_forward.7} parent=70 // loop_footer
                %s1295 = sadd.s32 1, %s1291
              $region77: #{cat_dog_cnn_forward.7} parent=70 // loop_footer_branch
                %1290 = sbr.rel target = $region73
              $region78: #{cat_dog_cnn_forward.7} parent=70 // loop_exit
                _
            $region71: #{cat_dog_cnn_forward.7} parent=66 // pred_fallthru
              _
            // Predicated region
            $region79: #{cat_dog_cnn_forward.7} parent=66 // pred_check
              _
            $region80: #{cat_dog_cnn_forward.7} parent=66 // pred_check_branch
              %1331 = sbr.rel target = $region82
            $region81: #{cat_dog_cnn_forward.7} parent=66 // pred_region
              _
            $region82: #{cat_dog_cnn_forward.7} parent=66 // pred_fallthru
              _
          $region67: #{cat_dog_cnn_forward.7} parent=62 // pred_fallthru
            _
          %1332 = vnop
        $region63: #{cat_dog_cnn_forward.7} parent=54 // pred_fallthru
          _
      $region55: #{cat_dog_cnn_forward.7} parent=5 // pred_fallthru
        _
      %p1333 = scmp.le.s32.totalorder 2, %s10
      // Predicated region
      $region83: #{cat_dog_cnn_forward.7} parent=5 // pred_check
        %p1334 = pneg %p1333
      $region84: #{cat_dog_cnn_forward.7} parent=5 // pred_check_branch
        %1336 = sbr.rel (%p1334) target = $region86
      $region85: #{cat_dog_cnn_forward.7} parent=5 // pred_region
        %s1337 = ssub.s32 %s10, 2
        // Predicated region
        $region87: #{cat_dog_cnn_forward.7} parent=85 // pred_check
          %p1338 = pneg %p128
        $region88: #{cat_dog_cnn_forward.7} parent=85 // pred_check_branch
          %1340 = sbr.rel (%p1338) target = $region90
        $region89: #{cat_dog_cnn_forward.7} parent=85 // pred_region
          %s1341 = sand.u32 %s113, 1
          %s1342 = sand.u32 %s113, 1
          %s1343 = smul.addr %s1342, 128
          %s1344 = scalar_lea.vmem [#allocation3], %s1343
        $region90: #{cat_dog_cnn_forward.7} parent=85 // pred_fallthru
          _
      $region86: #{cat_dog_cnn_forward.7} parent=5 // pred_fallthru
        _
    $region6: #{cat_dog_cnn_forward.7} parent=1 // loop_footer
      %s14 = sadd.s32 1, %s10
    $region7: #{cat_dog_cnn_forward.7} parent=1 // loop_footer_branch
      %9 = sbr.rel target = $region3
    $region8: #{cat_dog_cnn_forward.7} parent=1 // loop_exit
      _

// kernel: cat_dog_cnn_forward.8
$region0: #{cat_dog_cnn_forward.8}
  #allocation0 [shape = 'u32[]', space=smem, size = 0x4, offset = 0x4, fixed_abs, tag = 'smem constant byte address 0x4 - core index']
  #allocation1 [shape = 'u32[72,128]{1,0:T(1,128)}', space=vmem, size = 0x9000, scoped, tag = 'internal scratch']
  %s0 = inlined_call_operand.vmem [shape: bf16[32,3025], index: 0, kind: input, shape index: {}]
  %s1 = inlined_call_operand.vmem [shape: bf16[32,3025], index: 1, kind: input, shape index: {}]
  %s2 = inlined_call_operand.vmem [shape: bf16[32,3025], index: 2, kind: input, shape index: {}]
  %s3 = inlined_call_operand.vmem [shape: bf16[32,3025], index: 3, kind: input, shape index: {}]
  %s4 = inlined_call_operand.vmem [shape: bf16[32,3025], index: 4, kind: output, shape index: {}]
  %s5 = sld [smem:[#allocation0]]
  $region26: #{cat_dog_cnn_forward.8} parent=0
    _
  %s7 = ssub.s32 1, %s5
  %s8 = scalar_select 0, %s7, %s5
  // Predicated region
  $region2: #{cat_dog_cnn_forward.8} parent=0 // pred_check
    _
  $region3: #{cat_dog_cnn_forward.8} parent=0 // pred_check_branch
    %10 = sbr.rel (0) target = $region5
  $region4: #{cat_dog_cnn_forward.8} parent=0 // pred_region
    _
  $region5: #{cat_dog_cnn_forward.8} parent=0 // pred_fallthru
    _
  // Predicated region
  $region6: #{cat_dog_cnn_forward.8} parent=0 // pred_check
    _
  $region7: #{cat_dog_cnn_forward.8} parent=0 // pred_check_branch
    %12 = sbr.rel (0) target = $region9
  $region8: #{cat_dog_cnn_forward.8} parent=0 // pred_region
    _
  $region9: #{cat_dog_cnn_forward.8} parent=0 // pred_fallthru
    _
  // Predicated region
  $region10: #{cat_dog_cnn_forward.8} parent=0 // pred_check
    _
  $region11: #{cat_dog_cnn_forward.8} parent=0 // pred_check_branch
    %14 = sbr.rel (0) target = $region13
  $region12: #{cat_dog_cnn_forward.8} parent=0 // pred_region
    _
  $region13: #{cat_dog_cnn_forward.8} parent=0 // pred_fallthru
    _
  // Predicated region
  $region14: #{cat_dog_cnn_forward.8} parent=0 // pred_check
    _
  $region15: #{cat_dog_cnn_forward.8} parent=0 // pred_check_branch
    %16 = sbr.rel (0) target = $region17
  $region16: #{cat_dog_cnn_forward.8} parent=0 // pred_region
    _
  $region17: #{cat_dog_cnn_forward.8} parent=0 // pred_fallthru
    _
  %v17 = vld [vmem:[%s0] sm:$0xff]
  %v18 = vld [vmem:[%s0 + $0x8] sm:$0xff]
  %v19 = vld [vmem:[%s0 + $0x10] sm:$0xff]
  %v20 = vld [vmem:[%s0 + $0x18] sm:$0xff]
  %v21 = vld [vmem:[%s0 + $0x20] sm:$0xff]
  %v22 = vld [vmem:[%s0 + $0x28] sm:$0xff]
  %v23 = vld [vmem:[%s0 + $0x30] sm:$0xff]
  %v24 = vld [vmem:[%s0 + $0x38] sm:$0xff]
  %v25 = vld [vmem:[%s0 + $0x40] sm:$0xff]
  %v26 = vld [vmem:[%s0 + $0x48] sm:$0xff]
  %v27 = vld [vmem:[%s0 + $0x50] sm:$0xff]
  %v28 = vld [vmem:[%s0 + $0x58] sm:$0xff]
  %v29 = vld [vmem:[%s0 + $0x60] sm:$0xff]
  %v30 = vld [vmem:[%s0 + $0x68] sm:$0xff]
  %v31 = vld [vmem:[%s0 + $0x70] sm:$0xff]
  %v32 = vld [vmem:[%s0 + $0x78] sm:$0xff]
  %v33 = vld [vmem:[%s0 + $0x80] sm:$0xff]
  %v34 = vld [vmem:[%s0 + $0x88] sm:$0xff]
  %v35 = vld [vmem:[%s0 + $0x90] sm:$0xff]
  %v36 = vld [vmem:[%s0 + $0x98] sm:$0xff]
  %v37 = vld [vmem:[%s0 + $0xa0] sm:$0xff]
  %v38 = vld [vmem:[%s0 + $0xa8] sm:$0xff]
  %v39 = vld [vmem:[%s0 + $0xb0] sm:$0xff]
  %v40 = vld [vmem:[%s0 + $0xb8] sm:$0xff]
  %v41 = vld [vmem:[%s0 + $0xc0] sm:$0xff]
  %v42 = vld [vmem:[%s0 + $0xc8] sm:$0xff]
  %v43 = vld [vmem:[%s0 + $0xd0] sm:$0xff]
  %v44 = vld [vmem:[%s0 + $0xd8] sm:$0xff]
  %v45 = vld [vmem:[%s0 + $0xe0] sm:$0xff]
  %v46 = vld [vmem:[%s0 + $0xe8] sm:$0xff]
  %v47 = vld [vmem:[%s0 + $0xf0] sm:$0xff]
  %v48 = vld [vmem:[%s0 + $0xf8] sm:$0xff]
  %v49 = vld [vmem:[%s0 + $0x100] sm:$0xff]
  %v50 = vld [vmem:[%s0 + $0x108] sm:$0xff]
  %v51 = vld [vmem:[%s0 + $0x110] sm:$0xff]
  %v52 = vld [vmem:[%s0 + $0x118] sm:$0xff]
  %v53 = vld [vmem:[%s0 + $0x120] sm:$0xff]
  %v54 = vld [vmem:[%s0 + $0x128] sm:$0xff]
  %v55 = vld [vmem:[%s0 + $0x130] sm:$0xff]
  %v56 = vld [vmem:[%s0 + $0x138] sm:$0xff]
  %v57 = vld [vmem:[%s0 + $0x140] sm:$0xff]
  %v58 = vld [vmem:[%s0 + $0x148] sm:$0xff]
  %v59 = vld [vmem:[%s0 + $0x150] sm:$0xff]
  %v60 = vld [vmem:[%s0 + $0x158] sm:$0xff]
  %v61 = vld [vmem:[%s0 + $0x160] sm:$0xff]
  %v62 = vld [vmem:[%s0 + $0x168] sm:$0xff]
  %v63 = vld [vmem:[%s0 + $0x170] sm:$0xff]
  %v64 = vld [vmem:[%s0 + $0x178] sm:$0xff]
  %v65 = vld [vmem:[%s1] sm:$0xff]
  %v66 = vld [vmem:[%s1 + $0x8] sm:$0xff]
  %v67 = vld [vmem:[%s1 + $0x10] sm:$0xff]
  %v68 = vld [vmem:[%s1 + $0x18] sm:$0xff]
  %v69 = vld [vmem:[%s1 + $0x20] sm:$0xff]
  %v70 = vld [vmem:[%s1 + $0x28] sm:$0xff]
  %v71 = vld [vmem:[%s1 + $0x30] sm:$0xff]
  %v72 = vld [vmem:[%s1 + $0x38] sm:$0xff]
  %v73 = vld [vmem:[%s1 + $0x40] sm:$0xff]
  %v74 = vld [vmem:[%s1 + $0x48] sm:$0xff]
  %v75 = vld [vmem:[%s1 + $0x50] sm:$0xff]
  %v76 = vld [vmem:[%s1 + $0x58] sm:$0xff]
  %v77 = vld [vmem:[%s1 + $0x60] sm:$0xff]
  %v78 = vld [vmem:[%s1 + $0x68] sm:$0xff]
  %v79 = vld [vmem:[%s1 + $0x70] sm:$0xff]
  %v80 = vld [vmem:[%s1 + $0x78] sm:$0xff]
  %v81 = vld [vmem:[%s1 + $0x80] sm:$0xff]
  %v82 = vld [vmem:[%s1 + $0x88] sm:$0xff]
  %v83 = vld [vmem:[%s1 + $0x90] sm:$0xff]
  %v84 = vld [vmem:[%s1 + $0x98] sm:$0xff]
  %v85 = vld [vmem:[%s1 + $0xa0] sm:$0xff]
  %v86 = vld [vmem:[%s1 + $0xa8] sm:$0xff]
  %v87 = vld [vmem:[%s1 + $0xb0] sm:$0xff]
  %v88 = vld [vmem:[%s1 + $0xb8] sm:$0xff]
  %v89 = vld [vmem:[%s1 + $0xc0] sm:$0xff]
  %v90 = vld [vmem:[%s1 + $0xc8] sm:$0xff]
  %v91 = vld [vmem:[%s1 + $0xd0] sm:$0xff]
  %v92 = vld [vmem:[%s1 + $0xd8] sm:$0xff]
  %v93 = vld [vmem:[%s1 + $0xe0] sm:$0xff]
  %v94 = vld [vmem:[%s1 + $0xe8] sm:$0xff]
  %v95 = vld [vmem:[%s1 + $0xf0] sm:$0xff]
  %v96 = vld [vmem:[%s1 + $0xf8] sm:$0xff]
  %v97 = vld [vmem:[%s1 + $0x100] sm:$0xff]
  %v98 = vld [vmem:[%s1 + $0x108] sm:$0xff]
  %v99 = vld [vmem:[%s1 + $0x110] sm:$0xff]
  %v100 = vld [vmem:[%s1 + $0x118] sm:$0xff]
  %v101 = vld [vmem:[%s1 + $0x120] sm:$0xff]
  %v102 = vld [vmem:[%s1 + $0x128] sm:$0xff]
  %v103 = vld [vmem:[%s1 + $0x130] sm:$0xff]
  %v104 = vld [vmem:[%s1 + $0x138] sm:$0xff]
  %v105 = vld [vmem:[%s1 + $0x140] sm:$0xff]
  %v106 = vld [vmem:[%s1 + $0x148] sm:$0xff]
  %v107 = vld [vmem:[%s1 + $0x150] sm:$0xff]
  %v108 = vld [vmem:[%s1 + $0x158] sm:$0xff]
  %v109 = vld [vmem:[%s1 + $0x160] sm:$0xff]
  %v110 = vld [vmem:[%s1 + $0x168] sm:$0xff]
  %v111 = vld [vmem:[%s1 + $0x170] sm:$0xff]
  %v112 = vld [vmem:[%s1 + $0x178] sm:$0xff]
  %v113 = vunpack.c.l.bf16 %v17
  %v114 = vunpack.c.h.bf16 %v17
  %v115 = vunpack.c.l.bf16 %v18
  %v116 = vunpack.c.h.bf16 %v18
  %v117 = vunpack.c.l.bf16 %v19
  %v118 = vunpack.c.h.bf16 %v19
  %v119 = vunpack.c.l.bf16 %v20
  %v120 = vunpack.c.h.bf16 %v20
  %v121 = vunpack.c.l.bf16 %v21
  %v122 = vunpack.c.h.bf16 %v21
  %v123 = vunpack.c.l.bf16 %v22
  %v124 = vunpack.c.h.bf16 %v22
  %v125 = vunpack.c.l.bf16 %v23
  %v126 = vunpack.c.h.bf16 %v23
  %v127 = vunpack.c.l.bf16 %v24
  %v128 = vunpack.c.h.bf16 %v24
  %v129 = vunpack.c.l.bf16 %v25
  %v130 = vunpack.c.h.bf16 %v25
  %v131 = vunpack.c.l.bf16 %v26
  %v132 = vunpack.c.h.bf16 %v26
  %v133 = vunpack.c.l.bf16 %v27
  %v134 = vunpack.c.h.bf16 %v27
  %v135 = vunpack.c.l.bf16 %v28
  %v136 = vunpack.c.h.bf16 %v28
  %v137 = vunpack.c.l.bf16 %v29
  %v138 = vunpack.c.h.bf16 %v29
  %v139 = vunpack.c.l.bf16 %v30
  %v140 = vunpack.c.h.bf16 %v30
  %v141 = vunpack.c.l.bf16 %v31
  %v142 = vunpack.c.h.bf16 %v31
  %v143 = vunpack.c.l.bf16 %v32
  %v144 = vunpack.c.h.bf16 %v32
  %v145 = vunpack.c.l.bf16 %v33
  %v146 = vunpack.c.h.bf16 %v33
  %v147 = vunpack.c.l.bf16 %v34
  %v148 = vunpack.c.h.bf16 %v34
  %v149 = vunpack.c.l.bf16 %v35
  %v150 = vunpack.c.h.bf16 %v35
  %v151 = vunpack.c.l.bf16 %v36
  %v152 = vunpack.c.h.bf16 %v36
  %v153 = vunpack.c.l.bf16 %v37
  %v154 = vunpack.c.h.bf16 %v37
  %v155 = vunpack.c.l.bf16 %v38
  %v156 = vunpack.c.h.bf16 %v38
  %v157 = vunpack.c.l.bf16 %v39
  %v158 = vunpack.c.h.bf16 %v39
  %v159 = vunpack.c.l.bf16 %v40
  %v160 = vunpack.c.h.bf16 %v40
  %v161 = vunpack.c.l.bf16 %v41
  %v162 = vunpack.c.h.bf16 %v41
  %v163 = vunpack.c.l.bf16 %v42
  %v164 = vunpack.c.h.bf16 %v42
  %v165 = vunpack.c.l.bf16 %v43
  %v166 = vunpack.c.h.bf16 %v43
  %v167 = vunpack.c.l.bf16 %v44
  %v168 = vunpack.c.h.bf16 %v44
  %v169 = vunpack.c.l.bf16 %v45
  %v170 = vunpack.c.h.bf16 %v45
  %v171 = vunpack.c.l.bf16 %v46
  %v172 = vunpack.c.h.bf16 %v46
  %v173 = vunpack.c.l.bf16 %v47
  %v174 = vunpack.c.h.bf16 %v47
  %v175 = vunpack.c.l.bf16 %v48
  %v176 = vunpack.c.h.bf16 %v48
  %v177 = vunpack.c.l.bf16 %v49
  %v178 = vunpack.c.h.bf16 %v49
  %v179 = vunpack.c.l.bf16 %v50
  %v180 = vunpack.c.h.bf16 %v50
  %v181 = vunpack.c.l.bf16 %v51
  %v182 = vunpack.c.h.bf16 %v51
  %v183 = vunpack.c.l.bf16 %v52
  %v184 = vunpack.c.h.bf16 %v52
  %v185 = vunpack.c.l.bf16 %v53
  %v186 = vunpack.c.h.bf16 %v53
  %v187 = vunpack.c.l.bf16 %v54
  %v188 = vunpack.c.h.bf16 %v54
  %v189 = vunpack.c.l.bf16 %v55
  %v190 = vunpack.c.h.bf16 %v55
  %v191 = vunpack.c.l.bf16 %v56
  %v192 = vunpack.c.h.bf16 %v56
  %v193 = vunpack.c.l.bf16 %v57
  %v194 = vunpack.c.h.bf16 %v57
  %v195 = vunpack.c.l.bf16 %v58
  %v196 = vunpack.c.h.bf16 %v58
  %v197 = vunpack.c.l.bf16 %v59
  %v198 = vunpack.c.h.bf16 %v59
  %v199 = vunpack.c.l.bf16 %v60
  %v200 = vunpack.c.h.bf16 %v60
  %v201 = vunpack.c.l.bf16 %v61
  %v202 = vunpack.c.h.bf16 %v61
  %v203 = vunpack.c.l.bf16 %v62
  %v204 = vunpack.c.h.bf16 %v62
  %v205 = vunpack.c.l.bf16 %v63
  %v206 = vunpack.c.h.bf16 %v63
  %v207 = vunpack.c.l.bf16 %v64
  %v208 = vunpack.c.h.bf16 %v64
  %v209 = vunpack.c.l.bf16 %v65
  %v210 = vunpack.c.h.bf16 %v65
  %v211 = vunpack.c.l.bf16 %v66
  %v212 = vunpack.c.h.bf16 %v66
  %v213 = vunpack.c.l.bf16 %v67
  %v214 = vunpack.c.h.bf16 %v67
  %v215 = vunpack.c.l.bf16 %v68
  %v216 = vunpack.c.h.bf16 %v68
  %v217 = vunpack.c.l.bf16 %v69
  %v218 = vunpack.c.h.bf16 %v69
  %v219 = vunpack.c.l.bf16 %v70
  %v220 = vunpack.c.h.bf16 %v70
  %v221 = vunpack.c.l.bf16 %v71
  %v222 = vunpack.c.h.bf16 %v71
  %v223 = vunpack.c.l.bf16 %v72
  %v224 = vunpack.c.h.bf16 %v72
  %v225 = vunpack.c.l.bf16 %v73
  %v226 = vunpack.c.h.bf16 %v73
  %v227 = vunpack.c.l.bf16 %v74
  %v228 = vunpack.c.h.bf16 %v74
  %v229 = vunpack.c.l.bf16 %v75
  %v230 = vunpack.c.h.bf16 %v75
  %v231 = vunpack.c.l.bf16 %v76
  %v232 = vunpack.c.h.bf16 %v76
  %v233 = vunpack.c.l.bf16 %v77
  %v234 = vunpack.c.h.bf16 %v77
  %v235 = vunpack.c.l.bf16 %v78
  %v236 = vunpack.c.h.bf16 %v78
  %v237 = vunpack.c.l.bf16 %v79
  %v238 = vunpack.c.h.bf16 %v79
  %v239 = vunpack.c.l.bf16 %v80
  %v240 = vunpack.c.h.bf16 %v80
  %v241 = vunpack.c.l.bf16 %v81
  %v242 = vunpack.c.h.bf16 %v81
  %v243 = vunpack.c.l.bf16 %v82
  %v244 = vunpack.c.h.bf16 %v82
  %v245 = vunpack.c.l.bf16 %v83
  %v246 = vunpack.c.h.bf16 %v83
  %v247 = vunpack.c.l.bf16 %v84
  %v248 = vunpack.c.h.bf16 %v84
  %v249 = vunpack.c.l.bf16 %v85
  %v250 = vunpack.c.h.bf16 %v85
  %v251 = vunpack.c.l.bf16 %v86
  %v252 = vunpack.c.h.bf16 %v86
  %v253 = vunpack.c.l.bf16 %v87
  %v254 = vunpack.c.h.bf16 %v87
  %v255 = vunpack.c.l.bf16 %v88
  %v256 = vunpack.c.h.bf16 %v88
  %v257 = vunpack.c.l.bf16 %v89
  %v258 = vunpack.c.h.bf16 %v89
  %v259 = vunpack.c.l.bf16 %v90
  %v260 = vunpack.c.h.bf16 %v90
  %v261 = vunpack.c.l.bf16 %v91
  %v262 = vunpack.c.h.bf16 %v91
  %v263 = vunpack.c.l.bf16 %v92
  %v264 = vunpack.c.h.bf16 %v92
  %v265 = vunpack.c.l.bf16 %v93
  %v266 = vunpack.c.h.bf16 %v93
  %v267 = vunpack.c.l.bf16 %v94
  %v268 = vunpack.c.h.bf16 %v94
  %v269 = vunpack.c.l.bf16 %v95
  %v270 = vunpack.c.h.bf16 %v95
  %v271 = vunpack.c.l.bf16 %v96
  %v272 = vunpack.c.h.bf16 %v96
  %v273 = vunpack.c.l.bf16 %v97
  %v274 = vunpack.c.h.bf16 %v97
  %v275 = vunpack.c.l.bf16 %v98
  %v276 = vunpack.c.h.bf16 %v98
  %v277 = vunpack.c.l.bf16 %v99
  %v278 = vunpack.c.h.bf16 %v99
  %v279 = vunpack.c.l.bf16 %v100
  %v280 = vunpack.c.h.bf16 %v100
  %v281 = vunpack.c.l.bf16 %v101
  %v282 = vunpack.c.h.bf16 %v101
  %v283 = vunpack.c.l.bf16 %v102
  %v284 = vunpack.c.h.bf16 %v102
  %v285 = vunpack.c.l.bf16 %v103
  %v286 = vunpack.c.h.bf16 %v103
  %v287 = vunpack.c.l.bf16 %v104
  %v288 = vunpack.c.h.bf16 %v104
  %v289 = vunpack.c.l.bf16 %v105
  %v290 = vunpack.c.h.bf16 %v105
  %v291 = vunpack.c.l.bf16 %v106
  %v292 = vunpack.c.h.bf16 %v106
  %v293 = vunpack.c.l.bf16 %v107
  %v294 = vunpack.c.h.bf16 %v107
  %v295 = vunpack.c.l.bf16 %v108
  %v296 = vunpack.c.h.bf16 %v108
  %v297 = vunpack.c.l.bf16 %v109
  %v298 = vunpack.c.h.bf16 %v109
  %v299 = vunpack.c.l.bf16 %v110
  %v300 = vunpack.c.h.bf16 %v110
  %v301 = vunpack.c.l.bf16 %v111
  %v302 = vunpack.c.h.bf16 %v111
  %v303 = vunpack.c.l.bf16 %v112
  %v304 = vunpack.c.h.bf16 %v112
  %v305 = vmax.f32 %v113, %v209
  %v306 = vmax.f32 %v114, %v210
  %v307 = vmax.f32 %v115, %v211
  %v308 = vmax.f32 %v116, %v212
  %v309 = vmax.f32 %v117, %v213
  %v310 = vmax.f32 %v118, %v214
  %v311 = vmax.f32 %v119, %v215
  %v312 = vmax.f32 %v120, %v216
  %v313 = vmax.f32 %v121, %v217
  %v314 = vmax.f32 %v122, %v218
  %v315 = vmax.f32 %v123, %v219
  %v316 = vmax.f32 %v124, %v220
  %v317 = vmax.f32 %v125, %v221
  %v318 = vmax.f32 %v126, %v222
  %v319 = vmax.f32 %v127, %v223
  %v320 = vmax.f32 %v128, %v224
  %v321 = vmax.f32 %v129, %v225
  %v322 = vmax.f32 %v130, %v226
  %v323 = vmax.f32 %v131, %v227
  %v324 = vmax.f32 %v132, %v228
  %v325 = vmax.f32 %v133, %v229
  %v326 = vmax.f32 %v134, %v230
  %v327 = vmax.f32 %v135, %v231
  %v328 = vmax.f32 %v136, %v232
  %v329 = vmax.f32 %v137, %v233
  %v330 = vmax.f32 %v138, %v234
  %v331 = vmax.f32 %v139, %v235
  %v332 = vmax.f32 %v140, %v236
  %v333 = vmax.f32 %v141, %v237
  %v334 = vmax.f32 %v142, %v238
  %v335 = vmax.f32 %v143, %v239
  %v336 = vmax.f32 %v144, %v240
  %v337 = vmax.f32 %v145, %v241
  %v338 = vmax.f32 %v146, %v242
  %v339 = vmax.f32 %v147, %v243
  %v340 = vmax.f32 %v148, %v244
  %v341 = vmax.f32 %v149, %v245
  %v342 = vmax.f32 %v150, %v246
  %v343 = vmax.f32 %v151, %v247
  %v344 = vmax.f32 %v152, %v248
  %v345 = vmax.f32 %v153, %v249
  %v346 = vmax.f32 %v154, %v250
  %v347 = vmax.f32 %v155, %v251
  %v348 = vmax.f32 %v156, %v252
  %v349 = vmax.f32 %v157, %v253
  %v350 = vmax.f32 %v158, %v254
  %v351 = vmax.f32 %v159, %v255
  %v352 = vmax.f32 %v160, %v256
  %v353 = vmax.f32 %v161, %v257
  %v354 = vmax.f32 %v162, %v258
  %v355 = vmax.f32 %v163, %v259
  %v356 = vmax.f32 %v164, %v260
  %v357 = vmax.f32 %v165, %v261
  %v358 = vmax.f32 %v166, %v262
  %v359 = vmax.f32 %v167, %v263
  %v360 = vmax.f32 %v168, %v264
  %v361 = vmax.f32 %v169, %v265
  %v362 = vmax.f32 %v170, %v266
  %v363 = vmax.f32 %v171, %v267
  %v364 = vmax.f32 %v172, %v268
  %v365 = vmax.f32 %v173, %v269
  %v366 = vmax.f32 %v174, %v270
  %v367 = vmax.f32 %v175, %v271
  %v368 = vmax.f32 %v176, %v272
  %v369 = vmax.f32 %v177, %v273
  %v370 = vmax.f32 %v178, %v274
  %v371 = vmax.f32 %v179, %v275
  %v372 = vmax.f32 %v180, %v276
  %v373 = vmax.f32 %v181, %v277
  %v374 = vmax.f32 %v182, %v278
  %v375 = vmax.f32 %v183, %v279
  %v376 = vmax.f32 %v184, %v280
  %v377 = vmax.f32 %v185, %v281
  %v378 = vmax.f32 %v186, %v282
  %v379 = vmax.f32 %v187, %v283
  %v380 = vmax.f32 %v188, %v284
  %v381 = vmax.f32 %v189, %v285
  %v382 = vmax.f32 %v190, %v286
  %v383 = vmax.f32 %v191, %v287
  %v384 = vmax.f32 %v192, %v288
  %v385 = vmax.f32 %v193, %v289
  %v386 = vmax.f32 %v194, %v290
  %v387 = vmax.f32 %v195, %v291
  %v388 = vmax.f32 %v196, %v292
  %v389 = vmax.f32 %v197, %v293
  %v390 = vmax.f32 %v198, %v294
  %v391 = vmax.f32 %v199, %v295
  %v392 = vmax.f32 %v200, %v296
  %v393 = vmax.f32 %v201, %v297
  %v394 = vmax.f32 %v202, %v298
  %v395 = vmax.f32 %v203, %v299
  %v396 = vmax.f32 %v204, %v300
  %v397 = vmax.f32 %v205, %v301
  %v398 = vmax.f32 %v206, %v302
  %v399 = vmax.f32 %v207, %v303
  %v400 = vmax.f32 %v208, %v304
  %v401 = vpack.c.bf16 %v306, %v305
  %v402 = vpack.c.bf16 %v308, %v307
  %v403 = vpack.c.bf16 %v310, %v309
  %v404 = vpack.c.bf16 %v312, %v311
  %v405 = vpack.c.bf16 %v314, %v313
  %v406 = vpack.c.bf16 %v316, %v315
  %v407 = vpack.c.bf16 %v318, %v317
  %v408 = vpack.c.bf16 %v320, %v319
  %v409 = vpack.c.bf16 %v322, %v321
  %v410 = vpack.c.bf16 %v324, %v323
  %v411 = vpack.c.bf16 %v326, %v325
  %v412 = vpack.c.bf16 %v328, %v327
  %v413 = vpack.c.bf16 %v330, %v329
  %v414 = vpack.c.bf16 %v332, %v331
  %v415 = vpack.c.bf16 %v334, %v333
  %v416 = vpack.c.bf16 %v336, %v335
  %v417 = vpack.c.bf16 %v338, %v337
  %v418 = vpack.c.bf16 %v340, %v339
  %v419 = vpack.c.bf16 %v342, %v341
  %v420 = vpack.c.bf16 %v344, %v343
  %v421 = vpack.c.bf16 %v346, %v345
  %v422 = vpack.c.bf16 %v348, %v347
  %v423 = vpack.c.bf16 %v350, %v349
  %v424 = vpack.c.bf16 %v352, %v351
  %v425 = vpack.c.bf16 %v354, %v353
  %v426 = vpack.c.bf16 %v356, %v355
  %v427 = vpack.c.bf16 %v358, %v357
  %v428 = vpack.c.bf16 %v360, %v359
  %v429 = vpack.c.bf16 %v362, %v361
  %v430 = vpack.c.bf16 %v364, %v363
  %v431 = vpack.c.bf16 %v366, %v365
  %v432 = vpack.c.bf16 %v368, %v367
  %v433 = vpack.c.bf16 %v370, %v369
  %v434 = vpack.c.bf16 %v372, %v371
  %v435 = vpack.c.bf16 %v374, %v373
  %v436 = vpack.c.bf16 %v376, %v375
  %v437 = vpack.c.bf16 %v378, %v377
  %v438 = vpack.c.bf16 %v380, %v379
  %v439 = vpack.c.bf16 %v382, %v381
  %v440 = vpack.c.bf16 %v384, %v383
  %v441 = vpack.c.bf16 %v386, %v385
  %v442 = vpack.c.bf16 %v388, %v387
  %v443 = vpack.c.bf16 %v390, %v389
  %v444 = vpack.c.bf16 %v392, %v391
  %v445 = vpack.c.bf16 %v394, %v393
  %v446 = vpack.c.bf16 %v396, %v395
  %v447 = vpack.c.bf16 %v398, %v397
  %v448 = vpack.c.bf16 %v400, %v399
  %v449 = vld [vmem:[%s2] sm:$0xff]
  %v450 = vld [vmem:[%s2 + $0x8] sm:$0xff]
  %v451 = vld [vmem:[%s2 + $0x10] sm:$0xff]
  %v452 = vld [vmem:[%s2 + $0x18] sm:$0xff]
  %v453 = vld [vmem:[%s2 + $0x20] sm:$0xff]
  %v454 = vld [vmem:[%s2 + $0x28] sm:$0xff]
  %v455 = vld [vmem:[%s2 + $0x30] sm:$0xff]
  %v456 = vld [vmem:[%s2 + $0x38] sm:$0xff]
  %v457 = vld [vmem:[%s2 + $0x40] sm:$0xff]
  %v458 = vld [vmem:[%s2 + $0x48] sm:$0xff]
  %v459 = vld [vmem:[%s2 + $0x50] sm:$0xff]
  %v460 = vld [vmem:[%s2 + $0x58] sm:$0xff]
  %v461 = vld [vmem:[%s2 + $0x60] sm:$0xff]
  %v462 = vld [vmem:[%s2 + $0x68] sm:$0xff]
  %v463 = vld [vmem:[%s2 + $0x70] sm:$0xff]
  %v464 = vld [vmem:[%s2 + $0x78] sm:$0xff]
  %v465 = vld [vmem:[%s2 + $0x80] sm:$0xff]
  %v466 = vld [vmem:[%s2 + $0x88] sm:$0xff]
  %v467 = vld [vmem:[%s2 + $0x90] sm:$0xff]
  %v468 = vld [vmem:[%s2 + $0x98] sm:$0xff]
  %v469 = vld [vmem:[%s2 + $0xa0] sm:$0xff]
  %v470 = vld [vmem:[%s2 + $0xa8] sm:$0xff]
  %v471 = vld [vmem:[%s2 + $0xb0] sm:$0xff]
  %v472 = vld [vmem:[%s2 + $0xb8] sm:$0xff]
  %v473 = vld [vmem:[%s2 + $0xc0] sm:$0xff]
  %v474 = vld [vmem:[%s2 + $0xc8] sm:$0xff]
  %v475 = vld [vmem:[%s2 + $0xd0] sm:$0xff]
  %v476 = vld [vmem:[%s2 + $0xd8] sm:$0xff]
  %v477 = vld [vmem:[%s2 + $0xe0] sm:$0xff]
  %v478 = vld [vmem:[%s2 + $0xe8] sm:$0xff]
  %v479 = vld [vmem:[%s2 + $0xf0] sm:$0xff]
  %v480 = vld [vmem:[%s2 + $0xf8] sm:$0xff]
  %v481 = vld [vmem:[%s2 + $0x100] sm:$0xff]
  %v482 = vld [vmem:[%s2 + $0x108] sm:$0xff]
  %v483 = vld [vmem:[%s2 + $0x110] sm:$0xff]
  %v484 = vld [vmem:[%s2 + $0x118] sm:$0xff]
  %v485 = vld [vmem:[%s2 + $0x120] sm:$0xff]
  %v486 = vld [vmem:[%s2 + $0x128] sm:$0xff]
  %v487 = vld [vmem:[%s2 + $0x130] sm:$0xff]
  %v488 = vld [vmem:[%s2 + $0x138] sm:$0xff]
  %v489 = vld [vmem:[%s2 + $0x140] sm:$0xff]
  %v490 = vld [vmem:[%s2 + $0x148] sm:$0xff]
  %v491 = vld [vmem:[%s2 + $0x150] sm:$0xff]
  %v492 = vld [vmem:[%s2 + $0x158] sm:$0xff]
  %v493 = vld [vmem:[%s2 + $0x160] sm:$0xff]
  %v494 = vld [vmem:[%s2 + $0x168] sm:$0xff]
  %v495 = vld [vmem:[%s2 + $0x170] sm:$0xff]
  %v496 = vld [vmem:[%s2 + $0x178] sm:$0xff]
  %v497 = vld [vmem:[%s3] sm:$0xff]
  %v498 = vld [vmem:[%s3 + $0x8] sm:$0xff]
  %v499 = vld [vmem:[%s3 + $0x10] sm:$0xff]
  %v500 = vld [vmem:[%s3 + $0x18] sm:$0xff]
  %v501 = vld [vmem:[%s3 + $0x20] sm:$0xff]
  %v502 = vld [vmem:[%s3 + $0x28] sm:$0xff]
  %v503 = vld [vmem:[%s3 + $0x30] sm:$0xff]
  %v504 = vld [vmem:[%s3 + $0x38] sm:$0xff]
  %v505 = vld [vmem:[%s3 + $0x40] sm:$0xff]
  %v506 = vld [vmem:[%s3 + $0x48] sm:$0xff]
  %v507 = vld [vmem:[%s3 + $0x50] sm:$0xff]
  %v508 = vld [vmem:[%s3 + $0x58] sm:$0xff]
  %v509 = vld [vmem:[%s3 + $0x60] sm:$0xff]
  %v510 = vld [vmem:[%s3 + $0x68] sm:$0xff]
  %v511 = vld [vmem:[%s3 + $0x70] sm:$0xff]
  %v512 = vld [vmem:[%s3 + $0x78] sm:$0xff]
  %v513 = vld [vmem:[%s3 + $0x80] sm:$0xff]
  %v514 = vld [vmem:[%s3 + $0x88] sm:$0xff]
  %v515 = vld [vmem:[%s3 + $0x90] sm:$0xff]
  %v516 = vld [vmem:[%s3 + $0x98] sm:$0xff]
  %v517 = vld [vmem:[%s3 + $0xa0] sm:$0xff]
  %v518 = vld [vmem:[%s3 + $0xa8] sm:$0xff]
  %v519 = vld [vmem:[%s3 + $0xb0] sm:$0xff]
  %v520 = vld [vmem:[%s3 + $0xb8] sm:$0xff]
  %v521 = vld [vmem:[%s3 + $0xc0] sm:$0xff]
  %v522 = vld [vmem:[%s3 + $0xc8] sm:$0xff]
  %v523 = vld [vmem:[%s3 + $0xd0] sm:$0xff]
  %v524 = vld [vmem:[%s3 + $0xd8] sm:$0xff]
  %v525 = vld [vmem:[%s3 + $0xe0] sm:$0xff]
  %v526 = vld [vmem:[%s3 + $0xe8] sm:$0xff]
  %v527 = vld [vmem:[%s3 + $0xf0] sm:$0xff]
  %v528 = vld [vmem:[%s3 + $0xf8] sm:$0xff]
  %v529 = vld [vmem:[%s3 + $0x100] sm:$0xff]
  %v530 = vld [vmem:[%s3 + $0x108] sm:$0xff]
  %v531 = vld [vmem:[%s3 + $0x110] sm:$0xff]
  %v532 = vld [vmem:[%s3 + $0x118] sm:$0xff]
  %v533 = vld [vmem:[%s3 + $0x120] sm:$0xff]
  %v534 = vld [vmem:[%s3 + $0x128] sm:$0xff]
  %v535 = vld [vmem:[%s3 + $0x130] sm:$0xff]
  %v536 = vld [vmem:[%s3 + $0x138] sm:$0xff]
  %v537 = vld [vmem:[%s3 + $0x140] sm:$0xff]
  %v538 = vld [vmem:[%s3 + $0x148] sm:$0xff]
  %v539 = vld [vmem:[%s3 + $0x150] sm:$0xff]
  %v540 = vld [vmem:[%s3 + $0x158] sm:$0xff]
  %v541 = vld [vmem:[%s3 + $0x160] sm:$0xff]
  %v542 = vld [vmem:[%s3 + $0x168] sm:$0xff]
  %v543 = vld [vmem:[%s3 + $0x170] sm:$0xff]
  %v544 = vld [vmem:[%s3 + $0x178] sm:$0xff]
  %v545 = vunpack.c.l.bf16 %v449
  %v546 = vunpack.c.h.bf16 %v449
  %v547 = vunpack.c.l.bf16 %v450
  %v548 = vunpack.c.h.bf16 %v450
  %v549 = vunpack.c.l.bf16 %v451
  %v550 = vunpack.c.h.bf16 %v451
  %v551 = vunpack.c.l.bf16 %v452
  %v552 = vunpack.c.h.bf16 %v452
  %v553 = vunpack.c.l.bf16 %v453
  %v554 = vunpack.c.h.bf16 %v453
  %v555 = vunpack.c.l.bf16 %v454
  %v556 = vunpack.c.h.bf16 %v454
  %v557 = vunpack.c.l.bf16 %v455
  %v558 = vunpack.c.h.bf16 %v455
  %v559 = vunpack.c.l.bf16 %v456
  %v560 = vunpack.c.h.bf16 %v456
  %v561 = vunpack.c.l.bf16 %v457
  %v562 = vunpack.c.h.bf16 %v457
  %v563 = vunpack.c.l.bf16 %v458
  %v564 = vunpack.c.h.bf16 %v458
  %v565 = vunpack.c.l.bf16 %v459
  %v566 = vunpack.c.h.bf16 %v459
  %v567 = vunpack.c.l.bf16 %v460
  %v568 = vunpack.c.h.bf16 %v460
  %v569 = vunpack.c.l.bf16 %v461
  %v570 = vunpack.c.h.bf16 %v461
  %v571 = vunpack.c.l.bf16 %v462
  %v572 = vunpack.c.h.bf16 %v462
  %v573 = vunpack.c.l.bf16 %v463
  %v574 = vunpack.c.h.bf16 %v463
  %v575 = vunpack.c.l.bf16 %v464
  %v576 = vunpack.c.h.bf16 %v464
  %v577 = vunpack.c.l.bf16 %v465
  %v578 = vunpack.c.h.bf16 %v465
  %v579 = vunpack.c.l.bf16 %v466
  %v580 = vunpack.c.h.bf16 %v466
  %v581 = vunpack.c.l.bf16 %v467
  %v582 = vunpack.c.h.bf16 %v467
  %v583 = vunpack.c.l.bf16 %v468
  %v584 = vunpack.c.h.bf16 %v468
  %v585 = vunpack.c.l.bf16 %v469
  %v586 = vunpack.c.h.bf16 %v469
  %v587 = vunpack.c.l.bf16 %v470
  %v588 = vunpack.c.h.bf16 %v470
  %v589 = vunpack.c.l.bf16 %v471
  %v590 = vunpack.c.h.bf16 %v471
  %v591 = vunpack.c.l.bf16 %v472
  %v592 = vunpack.c.h.bf16 %v472
  %v593 = vunpack.c.l.bf16 %v473
  %v594 = vunpack.c.h.bf16 %v473
  %v595 = vunpack.c.l.bf16 %v474
  %v596 = vunpack.c.h.bf16 %v474
  %v597 = vunpack.c.l.bf16 %v475
  %v598 = vunpack.c.h.bf16 %v475
  %v599 = vunpack.c.l.bf16 %v476
  %v600 = vunpack.c.h.bf16 %v476
  %v601 = vunpack.c.l.bf16 %v477
  %v602 = vunpack.c.h.bf16 %v477
  %v603 = vunpack.c.l.bf16 %v478
  %v604 = vunpack.c.h.bf16 %v478
  %v605 = vunpack.c.l.bf16 %v479
  %v606 = vunpack.c.h.bf16 %v479
  %v607 = vunpack.c.l.bf16 %v480
  %v608 = vunpack.c.h.bf16 %v480
  %v609 = vunpack.c.l.bf16 %v481
  %v610 = vunpack.c.h.bf16 %v481
  %v611 = vunpack.c.l.bf16 %v482
  %v612 = vunpack.c.h.bf16 %v482
  %v613 = vunpack.c.l.bf16 %v483
  %v614 = vunpack.c.h.bf16 %v483
  %v615 = vunpack.c.l.bf16 %v484
  %v616 = vunpack.c.h.bf16 %v484
  %v617 = vunpack.c.l.bf16 %v485
  %v618 = vunpack.c.h.bf16 %v485
  %v619 = vunpack.c.l.bf16 %v486
  %v620 = vunpack.c.h.bf16 %v486
  %v621 = vunpack.c.l.bf16 %v487
  %v622 = vunpack.c.h.bf16 %v487
  %v623 = vunpack.c.l.bf16 %v488
  %v624 = vunpack.c.h.bf16 %v488
  %v625 = vunpack.c.l.bf16 %v489
  %v626 = vunpack.c.h.bf16 %v489
  %v627 = vunpack.c.l.bf16 %v490
  %v628 = vunpack.c.h.bf16 %v490
  %v629 = vunpack.c.l.bf16 %v491
  %v630 = vunpack.c.h.bf16 %v491
  %v631 = vunpack.c.l.bf16 %v492
  %v632 = vunpack.c.h.bf16 %v492
  %v633 = vunpack.c.l.bf16 %v493
  %v634 = vunpack.c.h.bf16 %v493
  %v635 = vunpack.c.l.bf16 %v494
  %v636 = vunpack.c.h.bf16 %v494
  %v637 = vunpack.c.l.bf16 %v495
  %v638 = vunpack.c.h.bf16 %v495
  %v639 = vunpack.c.l.bf16 %v496
  %v640 = vunpack.c.h.bf16 %v496
  %v641 = vunpack.c.l.bf16 %v497
  %v642 = vunpack.c.h.bf16 %v497
  %v643 = vunpack.c.l.bf16 %v498
  %v644 = vunpack.c.h.bf16 %v498
  %v645 = vunpack.c.l.bf16 %v499
  %v646 = vunpack.c.h.bf16 %v499
  %v647 = vunpack.c.l.bf16 %v500
  %v648 = vunpack.c.h.bf16 %v500
  %v649 = vunpack.c.l.bf16 %v501
  %v650 = vunpack.c.h.bf16 %v501
  %v651 = vunpack.c.l.bf16 %v502
  %v652 = vunpack.c.h.bf16 %v502
  %v653 = vunpack.c.l.bf16 %v503
  %v654 = vunpack.c.h.bf16 %v503
  %v655 = vunpack.c.l.bf16 %v504
  %v656 = vunpack.c.h.bf16 %v504
  %v657 = vunpack.c.l.bf16 %v505
  %v658 = vunpack.c.h.bf16 %v505
  %v659 = vunpack.c.l.bf16 %v506
  %v660 = vunpack.c.h.bf16 %v506
  %v661 = vunpack.c.l.bf16 %v507
  %v662 = vunpack.c.h.bf16 %v507
  %v663 = vunpack.c.l.bf16 %v508
  %v664 = vunpack.c.h.bf16 %v508
  %v665 = vunpack.c.l.bf16 %v509
  %v666 = vunpack.c.h.bf16 %v509
  %v667 = vunpack.c.l.bf16 %v510
  %v668 = vunpack.c.h.bf16 %v510
  %v669 = vunpack.c.l.bf16 %v511
  %v670 = vunpack.c.h.bf16 %v511
  %v671 = vunpack.c.l.bf16 %v512
  %v672 = vunpack.c.h.bf16 %v512
  %v673 = vunpack.c.l.bf16 %v513
  %v674 = vunpack.c.h.bf16 %v513
  %v675 = vunpack.c.l.bf16 %v514
  %v676 = vunpack.c.h.bf16 %v514
  %v677 = vunpack.c.l.bf16 %v515
  %v678 = vunpack.c.h.bf16 %v515
  %v679 = vunpack.c.l.bf16 %v516
  %v680 = vunpack.c.h.bf16 %v516
  %v681 = vunpack.c.l.bf16 %v517
  %v682 = vunpack.c.h.bf16 %v517
  %v683 = vunpack.c.l.bf16 %v518
  %v684 = vunpack.c.h.bf16 %v518
  %v685 = vunpack.c.l.bf16 %v519
  %v686 = vunpack.c.h.bf16 %v519
  %v687 = vunpack.c.l.bf16 %v520
  %v688 = vunpack.c.h.bf16 %v520
  %v689 = vunpack.c.l.bf16 %v521
  %v690 = vunpack.c.h.bf16 %v521
  %v691 = vunpack.c.l.bf16 %v522
  %v692 = vunpack.c.h.bf16 %v522
  %v693 = vunpack.c.l.bf16 %v523
  %v694 = vunpack.c.h.bf16 %v523
  %v695 = vunpack.c.l.bf16 %v524
  %v696 = vunpack.c.h.bf16 %v524
  %v697 = vunpack.c.l.bf16 %v525
  %v698 = vunpack.c.h.bf16 %v525
  %v699 = vunpack.c.l.bf16 %v526
  %v700 = vunpack.c.h.bf16 %v526
  %v701 = vunpack.c.l.bf16 %v527
  %v702 = vunpack.c.h.bf16 %v527
  %v703 = vunpack.c.l.bf16 %v528
  %v704 = vunpack.c.h.bf16 %v528
  %v705 = vunpack.c.l.bf16 %v529
  %v706 = vunpack.c.h.bf16 %v529
  %v707 = vunpack.c.l.bf16 %v530
  %v708 = vunpack.c.h.bf16 %v530
  %v709 = vunpack.c.l.bf16 %v531
  %v710 = vunpack.c.h.bf16 %v531
  %v711 = vunpack.c.l.bf16 %v532
  %v712 = vunpack.c.h.bf16 %v532
  %v713 = vunpack.c.l.bf16 %v533
  %v714 = vunpack.c.h.bf16 %v533
  %v715 = vunpack.c.l.bf16 %v534
  %v716 = vunpack.c.h.bf16 %v534
  %v717 = vunpack.c.l.bf16 %v535
  %v718 = vunpack.c.h.bf16 %v535
  %v719 = vunpack.c.l.bf16 %v536
  %v720 = vunpack.c.h.bf16 %v536
  %v721 = vunpack.c.l.bf16 %v537
  %v722 = vunpack.c.h.bf16 %v537
  %v723 = vunpack.c.l.bf16 %v538
  %v724 = vunpack.c.h.bf16 %v538
  %v725 = vunpack.c.l.bf16 %v539
  %v726 = vunpack.c.h.bf16 %v539
  %v727 = vunpack.c.l.bf16 %v540
  %v728 = vunpack.c.h.bf16 %v540
  %v729 = vunpack.c.l.bf16 %v541
  %v730 = vunpack.c.h.bf16 %v541
  %v731 = vunpack.c.l.bf16 %v542
  %v732 = vunpack.c.h.bf16 %v542
  %v733 = vunpack.c.l.bf16 %v543
  %v734 = vunpack.c.h.bf16 %v543
  %v735 = vunpack.c.l.bf16 %v544
  %v736 = vunpack.c.h.bf16 %v544
  %v737 = vmax.f32 %v545, %v641
  %v738 = vmax.f32 %v546, %v642
  %v739 = vmax.f32 %v547, %v643
  %v740 = vmax.f32 %v548, %v644
  %v741 = vmax.f32 %v549, %v645
  %v742 = vmax.f32 %v550, %v646
  %v743 = vmax.f32 %v551, %v647
  %v744 = vmax.f32 %v552, %v648
  %v745 = vmax.f32 %v553, %v649
  %v746 = vmax.f32 %v554, %v650
  %v747 = vmax.f32 %v555, %v651
  %v748 = vmax.f32 %v556, %v652
  %v749 = vmax.f32 %v557, %v653
  %v750 = vmax.f32 %v558, %v654
  %v751 = vmax.f32 %v559, %v655
  %v752 = vmax.f32 %v560, %v656
  %v753 = vmax.f32 %v561, %v657
  %v754 = vmax.f32 %v562, %v658
  %v755 = vmax.f32 %v563, %v659
  %v756 = vmax.f32 %v564, %v660
  %v757 = vmax.f32 %v565, %v661
  %v758 = vmax.f32 %v566, %v662
  %v759 = vmax.f32 %v567, %v663
  %v760 = vmax.f32 %v568, %v664
  %v761 = vmax.f32 %v569, %v665
  %v762 = vmax.f32 %v570, %v666
  %v763 = vmax.f32 %v571, %v667
  %v764 = vmax.f32 %v572, %v668
  %v765 = vmax.f32 %v573, %v669
  %v766 = vmax.f32 %v574, %v670
  %v767 = vmax.f32 %v575, %v671
  %v768 = vmax.f32 %v576, %v672
  %v769 = vmax.f32 %v577, %v673
  %v770 = vmax.f32 %v578, %v674
  %v771 = vmax.f32 %v579, %v675
  %v772 = vmax.f32 %v580, %v676
  %v773 = vmax.f32 %v581, %v677
  %v774 = vmax.f32 %v582, %v678
  %v775 = vmax.f32 %v583, %v679
  %v776 = vmax.f32 %v584, %v680
  %v777 = vmax.f32 %v585, %v681
  %v778 = vmax.f32 %v586, %v682
  %v779 = vmax.f32 %v587, %v683
  %v780 = vmax.f32 %v588, %v684
  %v781 = vmax.f32 %v589, %v685
  %v782 = vmax.f32 %v590, %v686
  %v783 = vmax.f32 %v591, %v687
  %v784 = vmax.f32 %v592, %v688
  %v785 = vmax.f32 %v593, %v689
  %v786 = vmax.f32 %v594, %v690
  %v787 = vmax.f32 %v595, %v691
  %v788 = vmax.f32 %v596, %v692
  %v789 = vmax.f32 %v597, %v693
  %v790 = vmax.f32 %v598, %v694
  %v791 = vmax.f32 %v599, %v695
  %v792 = vmax.f32 %v600, %v696
  %v793 = vmax.f32 %v601, %v697
  %v794 = vmax.f32 %v602, %v698
  %v795 = vmax.f32 %v603, %v699
  %v796 = vmax.f32 %v604, %v700
  %v797 = vmax.f32 %v605, %v701
  %v798 = vmax.f32 %v606, %v702
  %v799 = vmax.f32 %v607, %v703
  %v800 = vmax.f32 %v608, %v704
  %v801 = vmax.f32 %v609, %v705
  %v802 = vmax.f32 %v610, %v706
  %v803 = vmax.f32 %v611, %v707
  %v804 = vmax.f32 %v612, %v708
  %v805 = vmax.f32 %v613, %v709
  %v806 = vmax.f32 %v614, %v710
  %v807 = vmax.f32 %v615, %v711
  %v808 = vmax.f32 %v616, %v712
  %v809 = vmax.f32 %v617, %v713
  %v810 = vmax.f32 %v618, %v714
  %v811 = vmax.f32 %v619, %v715
  %v812 = vmax.f32 %v620, %v716
  %v813 = vmax.f32 %v621, %v717
  %v814 = vmax.f32 %v622, %v718
  %v815 = vmax.f32 %v623, %v719
  %v816 = vmax.f32 %v624, %v720
  %v817 = vmax.f32 %v625, %v721
  %v818 = vmax.f32 %v626, %v722
  %v819 = vmax.f32 %v627, %v723
  %v820 = vmax.f32 %v628, %v724
  %v821 = vmax.f32 %v629, %v725
  %v822 = vmax.f32 %v630, %v726
  %v823 = vmax.f32 %v631, %v727
  %v824 = vmax.f32 %v632, %v728
  %v825 = vmax.f32 %v633, %v729
  %v826 = vmax.f32 %v634, %v730
  %v827 = vmax.f32 %v635, %v731
  %v828 = vmax.f32 %v636, %v732
  %v829 = vmax.f32 %v637, %v733
  %v830 = vmax.f32 %v638, %v734
  %v831 = vmax.f32 %v639, %v735
  %v832 = vmax.f32 %v640, %v736
  %v833 = vpack.c.bf16 %v738, %v737
  %v834 = vpack.c.bf16 %v740, %v739
  %v835 = vpack.c.bf16 %v742, %v741
  %v836 = vpack.c.bf16 %v744, %v743
  %v837 = vpack.c.bf16 %v746, %v745
  %v838 = vpack.c.bf16 %v748, %v747
  %v839 = vpack.c.bf16 %v750, %v749
  %v840 = vpack.c.bf16 %v752, %v751
  %v841 = vpack.c.bf16 %v754, %v753
  %v842 = vpack.c.bf16 %v756, %v755
  %v843 = vpack.c.bf16 %v758, %v757
  %v844 = vpack.c.bf16 %v760, %v759
  %v845 = vpack.c.bf16 %v762, %v761
  %v846 = vpack.c.bf16 %v764, %v763
  %v847 = vpack.c.bf16 %v766, %v765
  %v848 = vpack.c.bf16 %v768, %v767
  %v849 = vpack.c.bf16 %v770, %v769
  %v850 = vpack.c.bf16 %v772, %v771
  %v851 = vpack.c.bf16 %v774, %v773
  %v852 = vpack.c.bf16 %v776, %v775
  %v853 = vpack.c.bf16 %v778, %v777
  %v854 = vpack.c.bf16 %v780, %v779
  %v855 = vpack.c.bf16 %v782, %v781
  %v856 = vpack.c.bf16 %v784, %v783
  %v857 = vpack.c.bf16 %v786, %v785
  %v858 = vpack.c.bf16 %v788, %v787
  %v859 = vpack.c.bf16 %v790, %v789
  %v860 = vpack.c.bf16 %v792, %v791
  %v861 = vpack.c.bf16 %v794, %v793
  %v862 = vpack.c.bf16 %v796, %v795
  %v863 = vpack.c.bf16 %v798, %v797
  %v864 = vpack.c.bf16 %v800, %v799
  %v865 = vpack.c.bf16 %v802, %v801
  %v866 = vpack.c.bf16 %v804, %v803
  %v867 = vpack.c.bf16 %v806, %v805
  %v868 = vpack.c.bf16 %v808, %v807
  %v869 = vpack.c.bf16 %v810, %v809
  %v870 = vpack.c.bf16 %v812, %v811
  %v871 = vpack.c.bf16 %v814, %v813
  %v872 = vpack.c.bf16 %v816, %v815
  %v873 = vpack.c.bf16 %v818, %v817
  %v874 = vpack.c.bf16 %v820, %v819
  %v875 = vpack.c.bf16 %v822, %v821
  %v876 = vpack.c.bf16 %v824, %v823
  %v877 = vpack.c.bf16 %v826, %v825
  %v878 = vpack.c.bf16 %v828, %v827
  %v879 = vpack.c.bf16 %v830, %v829
  %v880 = vpack.c.bf16 %v832, %v831
  %v881 = vunpack.c.l.bf16 %v401
  %v882 = vunpack.c.h.bf16 %v401
  %v883 = vunpack.c.l.bf16 %v402
  %v884 = vunpack.c.h.bf16 %v402
  %v885 = vunpack.c.l.bf16 %v403
  %v886 = vunpack.c.h.bf16 %v403
  %v887 = vunpack.c.l.bf16 %v404
  %v888 = vunpack.c.h.bf16 %v404
  %v889 = vunpack.c.l.bf16 %v405
  %v890 = vunpack.c.h.bf16 %v405
  %v891 = vunpack.c.l.bf16 %v406
  %v892 = vunpack.c.h.bf16 %v406
  %v893 = vunpack.c.l.bf16 %v407
  %v894 = vunpack.c.h.bf16 %v407
  %v895 = vunpack.c.l.bf16 %v408
  %v896 = vunpack.c.h.bf16 %v408
  %v897 = vunpack.c.l.bf16 %v409
  %v898 = vunpack.c.h.bf16 %v409
  %v899 = vunpack.c.l.bf16 %v410
  %v900 = vunpack.c.h.bf16 %v410
  %v901 = vunpack.c.l.bf16 %v411
  %v902 = vunpack.c.h.bf16 %v411
  %v903 = vunpack.c.l.bf16 %v412
  %v904 = vunpack.c.h.bf16 %v412
  %v905 = vunpack.c.l.bf16 %v413
  %v906 = vunpack.c.h.bf16 %v413
  %v907 = vunpack.c.l.bf16 %v414
  %v908 = vunpack.c.h.bf16 %v414
  %v909 = vunpack.c.l.bf16 %v415
  %v910 = vunpack.c.h.bf16 %v415
  %v911 = vunpack.c.l.bf16 %v416
  %v912 = vunpack.c.h.bf16 %v416
  %v913 = vunpack.c.l.bf16 %v417
  %v914 = vunpack.c.h.bf16 %v417
  %v915 = vunpack.c.l.bf16 %v418
  %v916 = vunpack.c.h.bf16 %v418
  %v917 = vunpack.c.l.bf16 %v419
  %v918 = vunpack.c.h.bf16 %v419
  %v919 = vunpack.c.l.bf16 %v420
  %v920 = vunpack.c.h.bf16 %v420
  %v921 = vunpack.c.l.bf16 %v421
  %v922 = vunpack.c.h.bf16 %v421
  %v923 = vunpack.c.l.bf16 %v422
  %v924 = vunpack.c.h.bf16 %v422
  %v925 = vunpack.c.l.bf16 %v423
  %v926 = vunpack.c.h.bf16 %v423
  %v927 = vunpack.c.l.bf16 %v424
  %v928 = vunpack.c.h.bf16 %v424
  %v929 = vunpack.c.l.bf16 %v425
  %v930 = vunpack.c.h.bf16 %v425
  %v931 = vunpack.c.l.bf16 %v426
  %v932 = vunpack.c.h.bf16 %v426
  %v933 = vunpack.c.l.bf16 %v427
  %v934 = vunpack.c.h.bf16 %v427
  %v935 = vunpack.c.l.bf16 %v428
  %v936 = vunpack.c.h.bf16 %v428
  %v937 = vunpack.c.l.bf16 %v429
  %v938 = vunpack.c.h.bf16 %v429
  %v939 = vunpack.c.l.bf16 %v430
  %v940 = vunpack.c.h.bf16 %v430
  %v941 = vunpack.c.l.bf16 %v431
  %v942 = vunpack.c.h.bf16 %v431
  %v943 = vunpack.c.l.bf16 %v432
  %v944 = vunpack.c.h.bf16 %v432
  %v945 = vunpack.c.l.bf16 %v433
  %v946 = vunpack.c.h.bf16 %v433
  %v947 = vunpack.c.l.bf16 %v434
  %v948 = vunpack.c.h.bf16 %v434
  %v949 = vunpack.c.l.bf16 %v435
  %v950 = vunpack.c.h.bf16 %v435
  %v951 = vunpack.c.l.bf16 %v436
  %v952 = vunpack.c.h.bf16 %v436
  %v953 = vunpack.c.l.bf16 %v437
  %v954 = vunpack.c.h.bf16 %v437
  %v955 = vunpack.c.l.bf16 %v438
  %v956 = vunpack.c.h.bf16 %v438
  %v957 = vunpack.c.l.bf16 %v439
  %v958 = vunpack.c.h.bf16 %v439
  %v959 = vunpack.c.l.bf16 %v440
  %v960 = vunpack.c.h.bf16 %v440
  %v961 = vunpack.c.l.bf16 %v441
  %v962 = vunpack.c.h.bf16 %v441
  %v963 = vunpack.c.l.bf16 %v442
  %v964 = vunpack.c.h.bf16 %v442
  %v965 = vunpack.c.l.bf16 %v443
  %v966 = vunpack.c.h.bf16 %v443
  %v967 = vunpack.c.l.bf16 %v444
  %v968 = vunpack.c.h.bf16 %v444
  %v969 = vunpack.c.l.bf16 %v445
  %v970 = vunpack.c.h.bf16 %v445
  %v971 = vunpack.c.l.bf16 %v446
  %v972 = vunpack.c.h.bf16 %v446
  %v973 = vunpack.c.l.bf16 %v447
  %v974 = vunpack.c.h.bf16 %v447
  %v975 = vunpack.c.l.bf16 %v448
  %v976 = vunpack.c.h.bf16 %v448
  %v977 = vunpack.c.l.bf16 %v833
  %v978 = vunpack.c.h.bf16 %v833
  %v979 = vunpack.c.l.bf16 %v834
  %v980 = vunpack.c.h.bf16 %v834
  %v981 = vunpack.c.l.bf16 %v835
  %v982 = vunpack.c.h.bf16 %v835
  %v983 = vunpack.c.l.bf16 %v836
  %v984 = vunpack.c.h.bf16 %v836
  %v985 = vunpack.c.l.bf16 %v837
  %v986 = vunpack.c.h.bf16 %v837
  %v987 = vunpack.c.l.bf16 %v838
  %v988 = vunpack.c.h.bf16 %v838
  %v989 = vunpack.c.l.bf16 %v839
  %v990 = vunpack.c.h.bf16 %v839
  %v991 = vunpack.c.l.bf16 %v840
  %v992 = vunpack.c.h.bf16 %v840
  %v993 = vunpack.c.l.bf16 %v841
  %v994 = vunpack.c.h.bf16 %v841
  %v995 = vunpack.c.l.bf16 %v842
  %v996 = vunpack.c.h.bf16 %v842
  %v997 = vunpack.c.l.bf16 %v843
  %v998 = vunpack.c.h.bf16 %v843
  %v999 = vunpack.c.l.bf16 %v844
  %v1000 = vunpack.c.h.bf16 %v844
  %v1001 = vunpack.c.l.bf16 %v845
  %v1002 = vunpack.c.h.bf16 %v845
  %v1003 = vunpack.c.l.bf16 %v846
  %v1004 = vunpack.c.h.bf16 %v846
  %v1005 = vunpack.c.l.bf16 %v847
  %v1006 = vunpack.c.h.bf16 %v847
  %v1007 = vunpack.c.l.bf16 %v848
  %v1008 = vunpack.c.h.bf16 %v848
  %v1009 = vunpack.c.l.bf16 %v849
  %v1010 = vunpack.c.h.bf16 %v849
  %v1011 = vunpack.c.l.bf16 %v850
  %v1012 = vunpack.c.h.bf16 %v850
  %v1013 = vunpack.c.l.bf16 %v851
  %v1014 = vunpack.c.h.bf16 %v851
  %v1015 = vunpack.c.l.bf16 %v852
  %v1016 = vunpack.c.h.bf16 %v852
  %v1017 = vunpack.c.l.bf16 %v853
  %v1018 = vunpack.c.h.bf16 %v853
  %v1019 = vunpack.c.l.bf16 %v854
  %v1020 = vunpack.c.h.bf16 %v854
  %v1021 = vunpack.c.l.bf16 %v855
  %v1022 = vunpack.c.h.bf16 %v855
  %v1023 = vunpack.c.l.bf16 %v856
  %v1024 = vunpack.c.h.bf16 %v856
  %v1025 = vunpack.c.l.bf16 %v857
  %v1026 = vunpack.c.h.bf16 %v857
  %v1027 = vunpack.c.l.bf16 %v858
  %v1028 = vunpack.c.h.bf16 %v858
  %v1029 = vunpack.c.l.bf16 %v859
  %v1030 = vunpack.c.h.bf16 %v859
  %v1031 = vunpack.c.l.bf16 %v860
  %v1032 = vunpack.c.h.bf16 %v860
  %v1033 = vunpack.c.l.bf16 %v861
  %v1034 = vunpack.c.h.bf16 %v861
  %v1035 = vunpack.c.l.bf16 %v862
  %v1036 = vunpack.c.h.bf16 %v862
  %v1037 = vunpack.c.l.bf16 %v863
  %v1038 = vunpack.c.h.bf16 %v863
  %v1039 = vunpack.c.l.bf16 %v864
  %v1040 = vunpack.c.h.bf16 %v864
  %v1041 = vunpack.c.l.bf16 %v865
  %v1042 = vunpack.c.h.bf16 %v865
  %v1043 = vunpack.c.l.bf16 %v866
  %v1044 = vunpack.c.h.bf16 %v866
  %v1045 = vunpack.c.l.bf16 %v867
  %v1046 = vunpack.c.h.bf16 %v867
  %v1047 = vunpack.c.l.bf16 %v868
  %v1048 = vunpack.c.h.bf16 %v868
  %v1049 = vunpack.c.l.bf16 %v869
  %v1050 = vunpack.c.h.bf16 %v869
  %v1051 = vunpack.c.l.bf16 %v870
  %v1052 = vunpack.c.h.bf16 %v870
  %v1053 = vunpack.c.l.bf16 %v871
  %v1054 = vunpack.c.h.bf16 %v871
  %v1055 = vunpack.c.l.bf16 %v872
  %v1056 = vunpack.c.h.bf16 %v872
  %v1057 = vunpack.c.l.bf16 %v873
  %v1058 = vunpack.c.h.bf16 %v873
  %v1059 = vunpack.c.l.bf16 %v874
  %v1060 = vunpack.c.h.bf16 %v874
  %v1061 = vunpack.c.l.bf16 %v875
  %v1062 = vunpack.c.h.bf16 %v875
  %v1063 = vunpack.c.l.bf16 %v876
  %v1064 = vunpack.c.h.bf16 %v876
  %v1065 = vunpack.c.l.bf16 %v877
  %v1066 = vunpack.c.h.bf16 %v877
  %v1067 = vunpack.c.l.bf16 %v878
  %v1068 = vunpack.c.h.bf16 %v878
  %v1069 = vunpack.c.l.bf16 %v879
  %v1070 = vunpack.c.h.bf16 %v879
  %v1071 = vunpack.c.l.bf16 %v880
  %v1072 = vunpack.c.h.bf16 %v880
  %v1073 = vmax.f32 %v881, %v977
  %v1074 = vmax.f32 %v882, %v978
  %v1075 = vmax.f32 %v883, %v979
  %v1076 = vmax.f32 %v884, %v980
  %v1077 = vmax.f32 %v885, %v981
  %v1078 = vmax.f32 %v886, %v982
  %v1079 = vmax.f32 %v887, %v983
  %v1080 = vmax.f32 %v888, %v984
  %v1081 = vmax.f32 %v889, %v985
  %v1082 = vmax.f32 %v890, %v986
  %v1083 = vmax.f32 %v891, %v987
  %v1084 = vmax.f32 %v892, %v988
  %v1085 = vmax.f32 %v893, %v989
  %v1086 = vmax.f32 %v894, %v990
  %v1087 = vmax.f32 %v895, %v991
  %v1088 = vmax.f32 %v896, %v992
  %v1089 = vmax.f32 %v897, %v993
  %v1090 = vmax.f32 %v898, %v994
  %v1091 = vmax.f32 %v899, %v995
  %v1092 = vmax.f32 %v900, %v996
  %v1093 = vmax.f32 %v901, %v997
  %v1094 = vmax.f32 %v902, %v998
  %v1095 = vmax.f32 %v903, %v999
  %v1096 = vmax.f32 %v904, %v1000
  %v1097 = vmax.f32 %v905, %v1001
  %v1098 = vmax.f32 %v906, %v1002
  %v1099 = vmax.f32 %v907, %v1003
  %v1100 = vmax.f32 %v908, %v1004
  %v1101 = vmax.f32 %v909, %v1005
  %v1102 = vmax.f32 %v910, %v1006
  %v1103 = vmax.f32 %v911, %v1007
  %v1104 = vmax.f32 %v912, %v1008
  %v1105 = vmax.f32 %v913, %v1009
  %v1106 = vmax.f32 %v914, %v1010
  %v1107 = vmax.f32 %v915, %v1011
  %v1108 = vmax.f32 %v916, %v1012
  %v1109 = vmax.f32 %v917, %v1013
  %v1110 = vmax.f32 %v918, %v1014
  %v1111 = vmax.f32 %v919, %v1015
  %v1112 = vmax.f32 %v920, %v1016
  %v1113 = vmax.f32 %v921, %v1017
  %v1114 = vmax.f32 %v922, %v1018
  %v1115 = vmax.f32 %v923, %v1019
  %v1116 = vmax.f32 %v924, %v1020
  %v1117 = vmax.f32 %v925, %v1021
  %v1118 = vmax.f32 %v926, %v1022
  %v1119 = vmax.f32 %v927, %v1023
  %v1120 = vmax.f32 %v928, %v1024
  %v1121 = vmax.f32 %v929, %v1025
  %v1122 = vmax.f32 %v930, %v1026
  %v1123 = vmax.f32 %v931, %v1027
  %v1124 = vmax.f32 %v932, %v1028
  %v1125 = vmax.f32 %v933, %v1029
  %v1126 = vmax.f32 %v934, %v1030
  %v1127 = vmax.f32 %v935, %v1031
  %v1128 = vmax.f32 %v936, %v1032
  %v1129 = vmax.f32 %v937, %v1033
  %v1130 = vmax.f32 %v938, %v1034
  %v1131 = vmax.f32 %v939, %v1035
  %v1132 = vmax.f32 %v940, %v1036
  %v1133 = vmax.f32 %v941, %v1037
  %v1134 = vmax.f32 %v942, %v1038
  %v1135 = vmax.f32 %v943, %v1039
  %v1136 = vmax.f32 %v944, %v1040
  %v1137 = vmax.f32 %v945, %v1041
  %v1138 = vmax.f32 %v946, %v1042
  %v1139 = vmax.f32 %v947, %v1043
  %v1140 = vmax.f32 %v948, %v1044
  %v1141 = vmax.f32 %v949, %v1045
  %v1142 = vmax.f32 %v950, %v1046
  %v1143 = vmax.f32 %v951, %v1047
  %v1144 = vmax.f32 %v952, %v1048
  %v1145 = vmax.f32 %v953, %v1049
  %v1146 = vmax.f32 %v954, %v1050
  %v1147 = vmax.f32 %v955, %v1051
  %v1148 = vmax.f32 %v956, %v1052
  %v1149 = vmax.f32 %v957, %v1053
  %v1150 = vmax.f32 %v958, %v1054
  %v1151 = vmax.f32 %v959, %v1055
  %v1152 = vmax.f32 %v960, %v1056
  %v1153 = vmax.f32 %v961, %v1057
  %v1154 = vmax.f32 %v962, %v1058
  %v1155 = vmax.f32 %v963, %v1059
  %v1156 = vmax.f32 %v964, %v1060
  %v1157 = vmax.f32 %v965, %v1061
  %v1158 = vmax.f32 %v966, %v1062
  %v1159 = vmax.f32 %v967, %v1063
  %v1160 = vmax.f32 %v968, %v1064
  %v1161 = vmax.f32 %v969, %v1065
  %v1162 = vmax.f32 %v970, %v1066
  %v1163 = vmax.f32 %v971, %v1067
  %v1164 = vmax.f32 %v972, %v1068
  %v1165 = vmax.f32 %v973, %v1069
  %v1166 = vmax.f32 %v974, %v1070
  %v1167 = vmax.f32 %v975, %v1071
  %v1168 = vmax.f32 %v976, %v1072
  %v1169 = vpack.c.bf16 %v1074, %v1073
  %v1170 = vpack.c.bf16 %v1076, %v1075
  %v1171 = vpack.c.bf16 %v1078, %v1077
  %v1172 = vpack.c.bf16 %v1080, %v1079
  %v1173 = vpack.c.bf16 %v1082, %v1081
  %v1174 = vpack.c.bf16 %v1084, %v1083
  %v1175 = vpack.c.bf16 %v1086, %v1085
  %v1176 = vpack.c.bf16 %v1088, %v1087
  %v1177 = vpack.c.bf16 %v1090, %v1089
  %v1178 = vpack.c.bf16 %v1092, %v1091
  %v1179 = vpack.c.bf16 %v1094, %v1093
  %v1180 = vpack.c.bf16 %v1096, %v1095
  %v1181 = vpack.c.bf16 %v1098, %v1097
  %v1182 = vpack.c.bf16 %v1100, %v1099
  %v1183 = vpack.c.bf16 %v1102, %v1101
  %v1184 = vpack.c.bf16 %v1104, %v1103
  %v1185 = vpack.c.bf16 %v1106, %v1105
  %v1186 = vpack.c.bf16 %v1108, %v1107
  %v1187 = vpack.c.bf16 %v1110, %v1109
  %v1188 = vpack.c.bf16 %v1112, %v1111
  %v1189 = vpack.c.bf16 %v1114, %v1113
  %v1190 = vpack.c.bf16 %v1116, %v1115
  %v1191 = vpack.c.bf16 %v1118, %v1117
  %v1192 = vpack.c.bf16 %v1120, %v1119
  %v1193 = vpack.c.bf16 %v1122, %v1121
  %v1194 = vpack.c.bf16 %v1124, %v1123
  %v1195 = vpack.c.bf16 %v1126, %v1125
  %v1196 = vpack.c.bf16 %v1128, %v1127
  %v1197 = vpack.c.bf16 %v1130, %v1129
  %v1198 = vpack.c.bf16 %v1132, %v1131
  %v1199 = vpack.c.bf16 %v1134, %v1133
  %v1200 = vpack.c.bf16 %v1136, %v1135
  %v1201 = vpack.c.bf16 %v1138, %v1137
  %v1202 = vpack.c.bf16 %v1140, %v1139
  %v1203 = vpack.c.bf16 %v1142, %v1141
  %v1204 = vpack.c.bf16 %v1144, %v1143
  %v1205 = vpack.c.bf16 %v1146, %v1145
  %v1206 = vpack.c.bf16 %v1148, %v1147
  %v1207 = vpack.c.bf16 %v1150, %v1149
  %v1208 = vpack.c.bf16 %v1152, %v1151
  %v1209 = vpack.c.bf16 %v1154, %v1153
  %v1210 = vpack.c.bf16 %v1156, %v1155
  %v1211 = vpack.c.bf16 %v1158, %v1157
  %v1212 = vpack.c.bf16 %v1160, %v1159
  %v1213 = vpack.c.bf16 %v1162, %v1161
  %v1214 = vpack.c.bf16 %v1164, %v1163
  %v1215 = vpack.c.bf16 %v1166, %v1165
  %v1216 = vpack.c.bf16 %v1168, %v1167
  %1217 = vst [vmem:[%s4] sm:$0xff] %v1169
  %1218 = vst [vmem:[%s4 + $0x8] sm:$0xff] %v1170
  %1219 = vst [vmem:[%s4 + $0x10] sm:$0xff] %v1171
  %1220 = vst [vmem:[%s4 + $0x18] sm:$0xff] %v1172
  %1221 = vst [vmem:[%s4 + $0x20] sm:$0xff] %v1173
  %1222 = vst [vmem:[%s4 + $0x28] sm:$0xff] %v1174
  %1223 = vst [vmem:[%s4 + $0x30] sm:$0xff] %v1175
  %1224 = vst [vmem:[%s4 + $0x38] sm:$0xff] %v1176
  %1225 = vst [vmem:[%s4 + $0x40] sm:$0xff] %v1177
  %1226 = vst [vmem:[%s4 + $0x48] sm:$0xff] %v1178
  %1227 = vst [vmem:[%s4 + $0x50] sm:$0xff] %v1179
  %vm1228 = vcmask 1043456
  %vm1229 = vcmask 662532
  %vm1230 = vmor %vm1229, %vm1228
  %1231 = vst.msk [vmem:[%s4 + $0x58] sm:$0xff] %vm1230, %v1180
  %1232 = vst [vmem:[%s4 + $0x60] sm:$0xff] %v1181
  %1233 = vst [vmem:[%s4 + $0x68] sm:$0xff] %v1182
  %1234 = vst [vmem:[%s4 + $0x70] sm:$0xff] %v1183
  %1235 = vst [vmem:[%s4 + $0x78] sm:$0xff] %v1184
  %1236 = vst [vmem:[%s4 + $0x80] sm:$0xff] %v1185
  %1237 = vst [vmem:[%s4 + $0x88] sm:$0xff] %v1186
  %1238 = vst [vmem:[%s4 + $0x90] sm:$0xff] %v1187
  %1239 = vst [vmem:[%s4 + $0x98] sm:$0xff] %v1188
  %1240 = vst [vmem:[%s4 + $0xa0] sm:$0xff] %v1189
  %1241 = vst [vmem:[%s4 + $0xa8] sm:$0xff] %v1190
  %1242 = vst [vmem:[%s4 + $0xb0] sm:$0xff] %v1191
  %1243 = vst.msk [vmem:[%s4 + $0xb8] sm:$0xff] %vm1230, %v1192
  %1244 = vst [vmem:[%s4 + $0xc0] sm:$0xff] %v1193
  %1245 = vst [vmem:[%s4 + $0xc8] sm:$0xff] %v1194
  %1246 = vst [vmem:[%s4 + $0xd0] sm:$0xff] %v1195
  %1247 = vst [vmem:[%s4 + $0xd8] sm:$0xff] %v1196
  %1248 = vst [vmem:[%s4 + $0xe0] sm:$0xff] %v1197
  %1249 = vst [vmem:[%s4 + $0xe8] sm:$0xff] %v1198
  %1250 = vst [vmem:[%s4 + $0xf0] sm:$0xff] %v1199
  %1251 = vst [vmem:[%s4 + $0xf8] sm:$0xff] %v1200
  %1252 = vst [vmem:[%s4 + $0x100] sm:$0xff] %v1201
  %1253 = vst [vmem:[%s4 + $0x108] sm:$0xff] %v1202
  %1254 = vst [vmem:[%s4 + $0x110] sm:$0xff] %v1203
  %1255 = vst.msk [vmem:[%s4 + $0x118] sm:$0xff] %vm1230, %v1204
  %1256 = vst [vmem:[%s4 + $0x120] sm:$0xff] %v1205
  %1257 = vst [vmem:[%s4 + $0x128] sm:$0xff] %v1206
  %1258 = vst [vmem:[%s4 + $0x130] sm:$0xff] %v1207
  %1259 = vst [vmem:[%s4 + $0x138] sm:$0xff] %v1208
  %1260 = vst [vmem:[%s4 + $0x140] sm:$0xff] %v1209
  %1261 = vst [vmem:[%s4 + $0x148] sm:$0xff] %v1210
  %1262 = vst [vmem:[%s4 + $0x150] sm:$0xff] %v1211
  %1263 = vst [vmem:[%s4 + $0x158] sm:$0xff] %v1212
  %1264 = vst [vmem:[%s4 + $0x160] sm:$0xff] %v1213
  %1265 = vst [vmem:[%s4 + $0x168] sm:$0xff] %v1214
  %1266 = vst [vmem:[%s4 + $0x170] sm:$0xff] %v1215
  %1267 = vst.msk [vmem:[%s4 + $0x178] sm:$0xff] %vm1230, %v1216
  // Predicated region
  $region18: #{cat_dog_cnn_forward.8} parent=0 // pred_check
    _
  $region19: #{cat_dog_cnn_forward.8} parent=0 // pred_check_branch
    %1269 = sbr.rel (0) target = $region21
  $region20: #{cat_dog_cnn_forward.8} parent=0 // pred_region
    _
  $region21: #{cat_dog_cnn_forward.8} parent=0 // pred_fallthru
    _
  // Predicated region
  $region22: #{cat_dog_cnn_forward.8} parent=0 // pred_check
    _
  $region23: #{cat_dog_cnn_forward.8} parent=0 // pred_check_branch
    %1271 = sbr.rel (0) target = $region25
  $region24: #{cat_dog_cnn_forward.8} parent=0 // pred_region
    _
  $region25: #{cat_dog_cnn_forward.8} parent=0 // pred_fallthru
    _

// kernel: cat_dog_cnn_forward.9
$region0: #{cat_dog_cnn_forward.9}
  #allocation0 [shape = 'u32[]', space=smem, size = 0x4, offset = 0x4, fixed_abs, tag = 'smem constant byte address 0x4 - core index']
  #allocation1 [shape = 'u32[72,128]{1,0:T(1,128)}', space=vmem, size = 0x9000, scoped, tag = 'internal scratch']
  %s0 = inlined_call_operand.vmem [shape: bf16[32,400], index: 0, kind: input, shape index: {}]
  %s1 = inlined_call_operand.vmem [shape: bf16[400,1536], index: 1, kind: input, shape index: {}]
  %s2 = inlined_call_operand.vmem [shape: f32[32,1], index: 2, kind: input, shape index: {}]
  %s3 = inlined_call_operand.vmem [shape: f32[32,1], index: 3, kind: input, shape index: {}]
  %s4 = inlined_call_operand.vmem [shape: bf16[32,1536], index: 4, kind: output, shape index: {}]
  %s5 = sld [smem:[#allocation0]]
  $region26: #{cat_dog_cnn_forward.9} parent=0
    _
  %s7 = ssub.s32 1, %s5
  %s8 = scalar_select 0, %s7, %s5
  // Predicated region
  $region2: #{cat_dog_cnn_forward.9} parent=0 // pred_check
    _
  $region3: #{cat_dog_cnn_forward.9} parent=0 // pred_check_branch
    %10 = sbr.rel (0) target = $region5
  $region4: #{cat_dog_cnn_forward.9} parent=0 // pred_region
    _
  $region5: #{cat_dog_cnn_forward.9} parent=0 // pred_fallthru
    _
  // Predicated region
  $region6: #{cat_dog_cnn_forward.9} parent=0 // pred_check
    _
  $region7: #{cat_dog_cnn_forward.9} parent=0 // pred_check_branch
    %12 = sbr.rel (0) target = $region9
  $region8: #{cat_dog_cnn_forward.9} parent=0 // pred_region
    _
  $region9: #{cat_dog_cnn_forward.9} parent=0 // pred_fallthru
    _
  // Predicated region
  $region10: #{cat_dog_cnn_forward.9} parent=0 // pred_check
    _
  $region11: #{cat_dog_cnn_forward.9} parent=0 // pred_check_branch
    %14 = sbr.rel (0) target = $region13
  $region12: #{cat_dog_cnn_forward.9} parent=0 // pred_region
    _
  $region13: #{cat_dog_cnn_forward.9} parent=0 // pred_fallthru
    _
  // Predicated region
  $region14: #{cat_dog_cnn_forward.9} parent=0 // pred_check
    _
  $region15: #{cat_dog_cnn_forward.9} parent=0 // pred_check_branch
    %16 = sbr.rel (0) target = $region17
  $region16: #{cat_dog_cnn_forward.9} parent=0 // pred_region
    _
  $region17: #{cat_dog_cnn_forward.9} parent=0 // pred_fallthru
    _
  %v18 = vld [vmem:[%s0] sm:$0xff]
  %v19 = vld [vmem:[%s0 + $0x8] sm:$0xff]
  %v20 = vld [vmem:[%s0 + $0x10] sm:$0xff]
  %v21 = vld [vmem:[%s0 + $0x18] sm:$0xff]
  %v22 = vld [vmem:[%s0 + $0x20] sm:$0xff]
  %v23 = vld [vmem:[%s0 + $0x28] sm:$0xff]
  %v24 = vld [vmem:[%s0 + $0x30] sm:$0xff]
  %v25 = vld [vmem:[%s0 + $0x38] sm:$0xff]
  %v26 = vld [vmem:[%s1] sm:$0xff]
  %v27 = vld [vmem:[%s1 + $0x8] sm:$0xff]
  %v28 = vld [vmem:[%s1 + $0x10] sm:$0xff]
  %v29 = vld [vmem:[%s1 + $0x18] sm:$0xff]
  %v30 = vld [vmem:[%s1 + $0x20] sm:$0xff]
  %v31 = vld [vmem:[%s1 + $0x28] sm:$0xff]
  %v32 = vld [vmem:[%s1 + $0x30] sm:$0xff]
  %v33 = vld [vmem:[%s1 + $0x38] sm:$0xff]
  %v34 = vld [vmem:[%s1 + $0x40] sm:$0xff]
  %v35 = vld [vmem:[%s1 + $0x48] sm:$0xff]
  %v36 = vld [vmem:[%s1 + $0x50] sm:$0xff]
  %v37 = vld [vmem:[%s1 + $0x58] sm:$0xff]
  %v38 = vld [vmem:[%s1 + $0x60] sm:$0xff]
  %v39 = vld [vmem:[%s1 + $0x68] sm:$0xff]
  %v40 = vld [vmem:[%s1 + $0x70] sm:$0xff]
  %v41 = vld [vmem:[%s1 + $0x78] sm:$0xff]
  %v42 = vld [vmem:[%s1 + $0x80] sm:$0xff]
  %v43 = vld [vmem:[%s1 + $0x88] sm:$0xff]
  %v44 = vld [vmem:[%s1 + $0x90] sm:$0xff]
  %v45 = vld [vmem:[%s1 + $0x98] sm:$0xff]
  %v46 = vld [vmem:[%s1 + $0xa0] sm:$0xff]
  %v47 = vld [vmem:[%s1 + $0xa8] sm:$0xff]
  %v48 = vld [vmem:[%s1 + $0xb0] sm:$0xff]
  %v49 = vld [vmem:[%s1 + $0xb8] sm:$0xff]
  %v50 = vld [vmem:[%s1 + $0xc0] sm:$0xff]
  %v51 = vld [vmem:[%s1 + $0xc8] sm:$0xff]
  %v52 = vld [vmem:[%s1 + $0xd0] sm:$0xff]
  %v53 = vld [vmem:[%s1 + $0xd8] sm:$0xff]
  %v54 = vld [vmem:[%s1 + $0xe0] sm:$0xff]
  %v55 = vld [vmem:[%s1 + $0xe8] sm:$0xff]
  %v56 = vld [vmem:[%s1 + $0xf0] sm:$0xff]
  %v57 = vld [vmem:[%s1 + $0xf8] sm:$0xff]
  %v58 = vld [vmem:[%s1 + $0x100] sm:$0xff]
  %v59 = vld [vmem:[%s1 + $0x108] sm:$0xff]
  %v60 = vld [vmem:[%s1 + $0x110] sm:$0xff]
  %v61 = vld [vmem:[%s1 + $0x118] sm:$0xff]
  %v62 = vld [vmem:[%s1 + $0x120] sm:$0xff]
  %v63 = vld [vmem:[%s1 + $0x128] sm:$0xff]
  %v64 = vld [vmem:[%s1 + $0x130] sm:$0xff]
  %v65 = vld [vmem:[%s1 + $0x138] sm:$0xff]
  %v66 = vld [vmem:[%s1 + $0x140] sm:$0xff]
  %v67 = vld [vmem:[%s1 + $0x148] sm:$0xff]
  %v68 = vld [vmem:[%s1 + $0x150] sm:$0xff]
  %v69 = vld [vmem:[%s1 + $0x158] sm:$0xff]
  %v70 = vld [vmem:[%s1 + $0x160] sm:$0xff]
  %v71 = vld [vmem:[%s1 + $0x168] sm:$0xff]
  %v72 = vld [vmem:[%s1 + $0x170] sm:$0xff]
  %v73 = vld [vmem:[%s1 + $0x178] sm:$0xff]
  %v74 = vld [vmem:[%s1 + $0x180] sm:$0xff]
  %v75 = vld [vmem:[%s1 + $0x188] sm:$0xff]
  %v76 = vld [vmem:[%s1 + $0x190] sm:$0xff]
  %v77 = vld [vmem:[%s1 + $0x198] sm:$0xff]
  %v78 = vld [vmem:[%s1 + $0x1a0] sm:$0xff]
  %v79 = vld [vmem:[%s1 + $0x1a8] sm:$0xff]
  %v80 = vld [vmem:[%s1 + $0x1b0] sm:$0xff]
  %v81 = vld [vmem:[%s1 + $0x1b8] sm:$0xff]
  %v82 = vld [vmem:[%s1 + $0x1c0] sm:$0xff]
  %v83 = vld [vmem:[%s1 + $0x1c8] sm:$0xff]
  %v84 = vld [vmem:[%s1 + $0x1d0] sm:$0xff]
  %v85 = vld [vmem:[%s1 + $0x1d8] sm:$0xff]
  %v86 = vld [vmem:[%s1 + $0x1e0] sm:$0xff]
  %v87 = vld [vmem:[%s1 + $0x1e8] sm:$0xff]
  %v88 = vld [vmem:[%s1 + $0x1f0] sm:$0xff]
  %v89 = vld [vmem:[%s1 + $0x1f8] sm:$0xff]
  %v90 = vld [vmem:[%s1 + $0x200] sm:$0xff]
  %v91 = vld [vmem:[%s1 + $0x208] sm:$0xff]
  %v92 = vld [vmem:[%s1 + $0x210] sm:$0xff]
  %v93 = vld [vmem:[%s1 + $0x218] sm:$0xff]
  %v94 = vld [vmem:[%s1 + $0x220] sm:$0xff]
  %v95 = vld [vmem:[%s1 + $0x228] sm:$0xff]
  %v96 = vld [vmem:[%s1 + $0x230] sm:$0xff]
  %v97 = vld [vmem:[%s1 + $0x238] sm:$0xff]
  %v98 = vld [vmem:[%s1 + $0x240] sm:$0xff]
  %v99 = vld [vmem:[%s1 + $0x248] sm:$0xff]
  %v100 = vld [vmem:[%s1 + $0x250] sm:$0xff]
  %v101 = vld [vmem:[%s1 + $0x258] sm:$0xff]
  %v102 = vld [vmem:[%s1 + $0x260] sm:$0xff]
  %v103 = vld [vmem:[%s1 + $0x268] sm:$0xff]
  %v104 = vld [vmem:[%s1 + $0x270] sm:$0xff]
  %v105 = vld [vmem:[%s1 + $0x278] sm:$0xff]
  %v106 = vld [vmem:[%s1 + $0x280] sm:$0xff]
  %v107 = vld [vmem:[%s1 + $0x288] sm:$0xff]
  %v108 = vld [vmem:[%s1 + $0x290] sm:$0xff]
  %v109 = vld [vmem:[%s1 + $0x298] sm:$0xff]
  %v110 = vld [vmem:[%s1 + $0x2a0] sm:$0xff]
  %v111 = vld [vmem:[%s1 + $0x2a8] sm:$0xff]
  %v112 = vld [vmem:[%s1 + $0x2b0] sm:$0xff]
  %v113 = vld [vmem:[%s1 + $0x2b8] sm:$0xff]
  %v114 = vld [vmem:[%s1 + $0x2c0] sm:$0xff]
  %v115 = vld [vmem:[%s1 + $0x2c8] sm:$0xff]
  %v116 = vld [vmem:[%s1 + $0x2d0] sm:$0xff]
  %v117 = vld [vmem:[%s1 + $0x2d8] sm:$0xff]
  %v118 = vld [vmem:[%s1 + $0x2e0] sm:$0xff]
  %v119 = vld [vmem:[%s1 + $0x2e8] sm:$0xff]
  %v120 = vld [vmem:[%s1 + $0x2f0] sm:$0xff]
  %v121 = vld [vmem:[%s1 + $0x2f8] sm:$0xff]
  %v122 = vld [vmem:[%s1 + $0x300] sm:$0xff]
  %v123 = vld [vmem:[%s1 + $0x308] sm:$0xff]
  %v124 = vld [vmem:[%s1 + $0x310] sm:$0xff]
  %v125 = vld [vmem:[%s1 + $0x318] sm:$0xff]
  %v126 = vld [vmem:[%s1 + $0x320] sm:$0xff]
  %v127 = vld [vmem:[%s1 + $0x328] sm:$0xff]
  %v128 = vld [vmem:[%s1 + $0x330] sm:$0xff]
  %v129 = vld [vmem:[%s1 + $0x338] sm:$0xff]
  %v130 = vld [vmem:[%s1 + $0x340] sm:$0xff]
  %v131 = vld [vmem:[%s1 + $0x348] sm:$0xff]
  %v132 = vld [vmem:[%s1 + $0x350] sm:$0xff]
  %v133 = vld [vmem:[%s1 + $0x358] sm:$0xff]
  %v134 = vld [vmem:[%s1 + $0x360] sm:$0xff]
  %v135 = vld [vmem:[%s1 + $0x368] sm:$0xff]
  %v136 = vld [vmem:[%s1 + $0x370] sm:$0xff]
  %v137 = vld [vmem:[%s1 + $0x378] sm:$0xff]
  %v138 = vld [vmem:[%s1 + $0x380] sm:$0xff]
  %v139 = vld [vmem:[%s1 + $0x388] sm:$0xff]
  %v140 = vld [vmem:[%s1 + $0x390] sm:$0xff]
  %v141 = vld [vmem:[%s1 + $0x398] sm:$0xff]
  %v142 = vld [vmem:[%s1 + $0x3a0] sm:$0xff]
  %v143 = vld [vmem:[%s1 + $0x3a8] sm:$0xff]
  %v144 = vld [vmem:[%s1 + $0x3b0] sm:$0xff]
  %v145 = vld [vmem:[%s1 + $0x3b8] sm:$0xff]
  %v146 = vld [vmem:[%s1 + $0x3c0] sm:$0xff]
  %v147 = vld [vmem:[%s1 + $0x3c8] sm:$0xff]
  %v148 = vld [vmem:[%s1 + $0x3d0] sm:$0xff]
  %v149 = vld [vmem:[%s1 + $0x3d8] sm:$0xff]
  %v150 = vld [vmem:[%s1 + $0x3e0] sm:$0xff]
  %v151 = vld [vmem:[%s1 + $0x3e8] sm:$0xff]
  %v152 = vld [vmem:[%s1 + $0x3f0] sm:$0xff]
  %v153 = vld [vmem:[%s1 + $0x3f8] sm:$0xff]
  %v154 = vld [vmem:[%s1 + $0x400] sm:$0xff]
  %v155 = vld [vmem:[%s1 + $0x408] sm:$0xff]
  %v156 = vld [vmem:[%s1 + $0x410] sm:$0xff]
  %v157 = vld [vmem:[%s1 + $0x418] sm:$0xff]
  %v158 = vld [vmem:[%s1 + $0x420] sm:$0xff]
  %v159 = vld [vmem:[%s1 + $0x428] sm:$0xff]
  %v160 = vld [vmem:[%s1 + $0x430] sm:$0xff]
  %v161 = vld [vmem:[%s1 + $0x438] sm:$0xff]
  %v162 = vld [vmem:[%s1 + $0x440] sm:$0xff]
  %v163 = vld [vmem:[%s1 + $0x448] sm:$0xff]
  %v164 = vld [vmem:[%s1 + $0x450] sm:$0xff]
  %v165 = vld [vmem:[%s1 + $0x458] sm:$0xff]
  %v166 = vld [vmem:[%s1 + $0x460] sm:$0xff]
  %v167 = vld [vmem:[%s1 + $0x468] sm:$0xff]
  %v168 = vld [vmem:[%s1 + $0x470] sm:$0xff]
  %v169 = vld [vmem:[%s1 + $0x478] sm:$0xff]
  %v170 = vld [vmem:[%s1 + $0x480] sm:$0xff]
  %v171 = vld [vmem:[%s1 + $0x488] sm:$0xff]
  %v172 = vld [vmem:[%s1 + $0x490] sm:$0xff]
  %v173 = vld [vmem:[%s1 + $0x498] sm:$0xff]
  %v174 = vld [vmem:[%s1 + $0x4a0] sm:$0xff]
  %v175 = vld [vmem:[%s1 + $0x4a8] sm:$0xff]
  %v176 = vld [vmem:[%s1 + $0x4b0] sm:$0xff]
  %v177 = vld [vmem:[%s1 + $0x4b8] sm:$0xff]
  %v178 = vld [vmem:[%s1 + $0x4c0] sm:$0xff]
  %v179 = vld [vmem:[%s1 + $0x4c8] sm:$0xff]
  %v180 = vld [vmem:[%s1 + $0x4d0] sm:$0xff]
  %v181 = vld [vmem:[%s1 + $0x4d8] sm:$0xff]
  %v182 = vld [vmem:[%s1 + $0x4e0] sm:$0xff]
  %v183 = vld [vmem:[%s1 + $0x4e8] sm:$0xff]
  %v184 = vld [vmem:[%s1 + $0x4f0] sm:$0xff]
  %v185 = vld [vmem:[%s1 + $0x4f8] sm:$0xff]
  %v186 = vld [vmem:[%s1 + $0x500] sm:$0xff]
  %v187 = vld [vmem:[%s1 + $0x508] sm:$0xff]
  %v188 = vld [vmem:[%s1 + $0x510] sm:$0xff]
  %v189 = vld [vmem:[%s1 + $0x518] sm:$0xff]
  %v190 = vld [vmem:[%s1 + $0x520] sm:$0xff]
  %v191 = vld [vmem:[%s1 + $0x528] sm:$0xff]
  %v192 = vld [vmem:[%s1 + $0x530] sm:$0xff]
  %v193 = vld [vmem:[%s1 + $0x538] sm:$0xff]
  %v194 = vld [vmem:[%s1 + $0x540] sm:$0xff]
  %v195 = vld [vmem:[%s1 + $0x548] sm:$0xff]
  %v196 = vld [vmem:[%s1 + $0x550] sm:$0xff]
  %v197 = vld [vmem:[%s1 + $0x558] sm:$0xff]
  %v198 = vld [vmem:[%s1 + $0x560] sm:$0xff]
  %v199 = vld [vmem:[%s1 + $0x568] sm:$0xff]
  %v200 = vld [vmem:[%s1 + $0x570] sm:$0xff]
  %v201 = vld [vmem:[%s1 + $0x578] sm:$0xff]
  %v202 = vld [vmem:[%s1 + $0x580] sm:$0xff]
  %v203 = vld [vmem:[%s1 + $0x588] sm:$0xff]
  %v204 = vld [vmem:[%s1 + $0x590] sm:$0xff]
  %v205 = vld [vmem:[%s1 + $0x598] sm:$0xff]
  %v206 = vld [vmem:[%s1 + $0x5a0] sm:$0xff]
  %v207 = vld [vmem:[%s1 + $0x5a8] sm:$0xff]
  %v208 = vld [vmem:[%s1 + $0x5b0] sm:$0xff]
  %v209 = vld [vmem:[%s1 + $0x5b8] sm:$0xff]
  %v210 = vld [vmem:[%s1 + $0x5c0] sm:$0xff]
  %v211 = vld [vmem:[%s1 + $0x5c8] sm:$0xff]
  %v212 = vld [vmem:[%s1 + $0x5d0] sm:$0xff]
  %v213 = vld [vmem:[%s1 + $0x5d8] sm:$0xff]
  %v214 = vld [vmem:[%s1 + $0x5e0] sm:$0xff]
  %v215 = vld [vmem:[%s1 + $0x5e8] sm:$0xff]
  %v216 = vld [vmem:[%s1 + $0x5f0] sm:$0xff]
  %v217 = vld [vmem:[%s1 + $0x5f8] sm:$0xff]
  %v218 = vld [vmem:[%s1 + $0x600] sm:$0xff]
  %v219 = vld [vmem:[%s1 + $0x608] sm:$0xff]
  %v220 = vld [vmem:[%s1 + $0x610] sm:$0xff]
  %v221 = vld [vmem:[%s1 + $0x618] sm:$0xff]
  %v222 = vld [vmem:[%s1 + $0x620] sm:$0xff]
  %v223 = vld [vmem:[%s1 + $0x628] sm:$0xff]
  %v224 = vld [vmem:[%s1 + $0x630] sm:$0xff]
  %v225 = vld [vmem:[%s1 + $0x638] sm:$0xff]
  %v226 = vld [vmem:[%s1 + $0x640] sm:$0xff]
  %v227 = vld [vmem:[%s1 + $0x648] sm:$0xff]
  %v228 = vld [vmem:[%s1 + $0x650] sm:$0xff]
  %v229 = vld [vmem:[%s1 + $0x658] sm:$0xff]
  %v230 = vld [vmem:[%s1 + $0x660] sm:$0xff]
  %v231 = vld [vmem:[%s1 + $0x668] sm:$0xff]
  %v232 = vld [vmem:[%s1 + $0x670] sm:$0xff]
  %v233 = vld [vmem:[%s1 + $0x678] sm:$0xff]
  %v234 = vld [vmem:[%s1 + $0x680] sm:$0xff]
  %v235 = vld [vmem:[%s1 + $0x688] sm:$0xff]
  %v236 = vld [vmem:[%s1 + $0x690] sm:$0xff]
  %v237 = vld [vmem:[%s1 + $0x698] sm:$0xff]
  %v238 = vld [vmem:[%s1 + $0x6a0] sm:$0xff]
  %v239 = vld [vmem:[%s1 + $0x6a8] sm:$0xff]
  %v240 = vld [vmem:[%s1 + $0x6b0] sm:$0xff]
  %v241 = vld [vmem:[%s1 + $0x6b8] sm:$0xff]
  %v242 = vld [vmem:[%s1 + $0x6c0] sm:$0xff]
  %v243 = vld [vmem:[%s1 + $0x6c8] sm:$0xff]
  %v244 = vld [vmem:[%s1 + $0x6d0] sm:$0xff]
  %v245 = vld [vmem:[%s1 + $0x6d8] sm:$0xff]
  %v246 = vld [vmem:[%s1 + $0x6e0] sm:$0xff]
  %v247 = vld [vmem:[%s1 + $0x6e8] sm:$0xff]
  %v248 = vld [vmem:[%s1 + $0x6f0] sm:$0xff]
  %v249 = vld [vmem:[%s1 + $0x6f8] sm:$0xff]
  %v250 = vld [vmem:[%s1 + $0x700] sm:$0xff]
  %v251 = vld [vmem:[%s1 + $0x708] sm:$0xff]
  %v252 = vld [vmem:[%s1 + $0x710] sm:$0xff]
  %v253 = vld [vmem:[%s1 + $0x718] sm:$0xff]
  %v254 = vld [vmem:[%s1 + $0x720] sm:$0xff]
  %v255 = vld [vmem:[%s1 + $0x728] sm:$0xff]
  %v256 = vld [vmem:[%s1 + $0x730] sm:$0xff]
  %v257 = vld [vmem:[%s1 + $0x738] sm:$0xff]
  %v258 = vld [vmem:[%s1 + $0x740] sm:$0xff]
  %v259 = vld [vmem:[%s1 + $0x748] sm:$0xff]
  %v260 = vld [vmem:[%s1 + $0x750] sm:$0xff]
  %v261 = vld [vmem:[%s1 + $0x758] sm:$0xff]
  %v262 = vld [vmem:[%s1 + $0x760] sm:$0xff]
  %v263 = vld [vmem:[%s1 + $0x768] sm:$0xff]
  %v264 = vld [vmem:[%s1 + $0x770] sm:$0xff]
  %v265 = vld [vmem:[%s1 + $0x778] sm:$0xff]
  %v266 = vld [vmem:[%s1 + $0x780] sm:$0xff]
  %v267 = vld [vmem:[%s1 + $0x788] sm:$0xff]
  %v268 = vld [vmem:[%s1 + $0x790] sm:$0xff]
  %v269 = vld [vmem:[%s1 + $0x798] sm:$0xff]
  %v270 = vld [vmem:[%s1 + $0x7a0] sm:$0xff]
  %v271 = vld [vmem:[%s1 + $0x7a8] sm:$0xff]
  %v272 = vld [vmem:[%s1 + $0x7b0] sm:$0xff]
  %v273 = vld [vmem:[%s1 + $0x7b8] sm:$0xff]
  %v274 = vld [vmem:[%s1 + $0x7c0] sm:$0xff]
  %v275 = vld [vmem:[%s1 + $0x7c8] sm:$0xff]
  %v276 = vld [vmem:[%s1 + $0x7d0] sm:$0xff]
  %v277 = vld [vmem:[%s1 + $0x7d8] sm:$0xff]
  %v278 = vld [vmem:[%s1 + $0x7e0] sm:$0xff]
  %v279 = vld [vmem:[%s1 + $0x7e8] sm:$0xff]
  %v280 = vld [vmem:[%s1 + $0x7f0] sm:$0xff]
  %v281 = vld [vmem:[%s1 + $0x7f8] sm:$0xff]
  %v282 = vld [vmem:[%s1 + $0x800] sm:$0xff]
  %v283 = vld [vmem:[%s1 + $0x808] sm:$0xff]
  %v284 = vld [vmem:[%s1 + $0x810] sm:$0xff]
  %v285 = vld [vmem:[%s1 + $0x818] sm:$0xff]
  %v286 = vld [vmem:[%s1 + $0x820] sm:$0xff]
  %v287 = vld [vmem:[%s1 + $0x828] sm:$0xff]
  %v288 = vld [vmem:[%s1 + $0x830] sm:$0xff]
  %v289 = vld [vmem:[%s1 + $0x838] sm:$0xff]
  %v290 = vld [vmem:[%s1 + $0x840] sm:$0xff]
  %v291 = vld [vmem:[%s1 + $0x848] sm:$0xff]
  %v292 = vld [vmem:[%s1 + $0x850] sm:$0xff]
  %v293 = vld [vmem:[%s1 + $0x858] sm:$0xff]
  %v294 = vld [vmem:[%s1 + $0x860] sm:$0xff]
  %v295 = vld [vmem:[%s1 + $0x868] sm:$0xff]
  %v296 = vld [vmem:[%s1 + $0x870] sm:$0xff]
  %v297 = vld [vmem:[%s1 + $0x878] sm:$0xff]
  %v298 = vld [vmem:[%s1 + $0x880] sm:$0xff]
  %v299 = vld [vmem:[%s1 + $0x888] sm:$0xff]
  %v300 = vld [vmem:[%s1 + $0x890] sm:$0xff]
  %v301 = vld [vmem:[%s1 + $0x898] sm:$0xff]
  %v302 = vld [vmem:[%s1 + $0x8a0] sm:$0xff]
  %v303 = vld [vmem:[%s1 + $0x8a8] sm:$0xff]
  %v304 = vld [vmem:[%s1 + $0x8b0] sm:$0xff]
  %v305 = vld [vmem:[%s1 + $0x8b8] sm:$0xff]
  %v306 = vld [vmem:[%s1 + $0x8c0] sm:$0xff]
  %v307 = vld [vmem:[%s1 + $0x8c8] sm:$0xff]
  %v308 = vld [vmem:[%s1 + $0x8d0] sm:$0xff]
  %v309 = vld [vmem:[%s1 + $0x8d8] sm:$0xff]
  %v310 = vld [vmem:[%s1 + $0x8e0] sm:$0xff]
  %v311 = vld [vmem:[%s1 + $0x8e8] sm:$0xff]
  %v312 = vld [vmem:[%s1 + $0x8f0] sm:$0xff]
  %v313 = vld [vmem:[%s1 + $0x8f8] sm:$0xff]
  %v314 = vld [vmem:[%s1 + $0x900] sm:$0xff]
  %v315 = vld [vmem:[%s1 + $0x908] sm:$0xff]
  %v316 = vld [vmem:[%s1 + $0x910] sm:$0xff]
  %v317 = vld [vmem:[%s1 + $0x918] sm:$0xff]
  %v318 = vld [vmem:[%s1 + $0x920] sm:$0xff]
  %v319 = vld [vmem:[%s1 + $0x928] sm:$0xff]
  %v320 = vld [vmem:[%s1 + $0x930] sm:$0xff]
  %v321 = vld [vmem:[%s1 + $0x938] sm:$0xff]
  %v322 = vld [vmem:[%s1 + $0x940] sm:$0xff]
  %v323 = vld [vmem:[%s1 + $0x948] sm:$0xff]
  %v324 = vld [vmem:[%s1 + $0x950] sm:$0xff]
  %v325 = vld [vmem:[%s1 + $0x958] sm:$0xff]
  %v334 = vunpack.c.l.b16 %v18
  %v335 = vunpack.c.h.b16 %v18
  %v336 = vunpack.c.l.b16 %v19
  %v337 = vunpack.c.h.b16 %v19
  %v338 = vunpack.c.l.b16 %v20
  %v339 = vunpack.c.h.b16 %v20
  %v340 = vunpack.c.l.b16 %v21
  %v341 = vunpack.c.h.b16 %v21
  %v342 = vunpack.c.l.b16 %v22
  %v343 = vunpack.c.h.b16 %v22
  %v344 = vunpack.c.l.b16 %v23
  %v345 = vunpack.c.h.b16 %v23
  %v346 = vunpack.c.l.b16 %v24
  %v347 = vunpack.c.h.b16 %v24
  %v348 = vunpack.c.l.b16 %v25
  %v349 = vunpack.c.h.b16 %v25
  %v350 = vpack.c.b16 %v338, %v334
  %v351 = vpack.c.b16 %v339, %v335
  %v352 = vpack.c.b16 %v340, %v336
  %v353 = vpack.c.b16 %v341, %v337
  %v354 = vpack.c.b16 %v346, %v342
  %v355 = vpack.c.b16 %v347, %v343
  %v356 = vpack.c.b16 %v348, %v344
  %v357 = vpack.c.b16 %v349, %v345
  %v664 = vunpack.c.l.b16 %v26
  %v665 = vunpack.c.h.b16 %v26
  %v666 = vunpack.c.l.b16 %v27
  %v667 = vunpack.c.h.b16 %v27
  %v668 = vunpack.c.l.b16 %v28
  %v669 = vunpack.c.h.b16 %v28
  %v670 = vunpack.c.l.b16 %v29
  %v671 = vunpack.c.h.b16 %v29
  %v672 = vunpack.c.l.b16 %v30
  %v673 = vunpack.c.h.b16 %v30
  %v674 = vunpack.c.l.b16 %v31
  %v675 = vunpack.c.h.b16 %v31
  %v676 = vunpack.c.l.b16 %v32
  %v677 = vunpack.c.h.b16 %v32
  %v678 = vunpack.c.l.b16 %v33
  %v679 = vunpack.c.h.b16 %v33
  %v680 = vunpack.c.l.b16 %v34
  %v681 = vunpack.c.h.b16 %v34
  %v682 = vunpack.c.l.b16 %v35
  %v683 = vunpack.c.h.b16 %v35
  %v684 = vunpack.c.l.b16 %v36
  %v685 = vunpack.c.h.b16 %v36
  %v686 = vunpack.c.l.b16 %v37
  %v687 = vunpack.c.h.b16 %v37
  %v688 = vunpack.c.l.b16 %v38
  %v689 = vunpack.c.h.b16 %v38
  %v690 = vunpack.c.l.b16 %v39
  %v691 = vunpack.c.h.b16 %v39
  %v692 = vunpack.c.l.b16 %v40
  %v693 = vunpack.c.h.b16 %v40
  %v694 = vunpack.c.l.b16 %v41
  %v695 = vunpack.c.h.b16 %v41
  %v696 = vunpack.c.l.b16 %v42
  %v697 = vunpack.c.h.b16 %v42
  %v698 = vunpack.c.l.b16 %v43
  %v699 = vunpack.c.h.b16 %v43
  %v700 = vunpack.c.l.b16 %v44
  %v701 = vunpack.c.h.b16 %v44
  %v702 = vunpack.c.l.b16 %v45
  %v703 = vunpack.c.h.b16 %v45
  %v704 = vunpack.c.l.b16 %v46
  %v705 = vunpack.c.h.b16 %v46
  %v706 = vunpack.c.l.b16 %v47
  %v707 = vunpack.c.h.b16 %v47
  %v708 = vunpack.c.l.b16 %v48
  %v709 = vunpack.c.h.b16 %v48
  %v710 = vunpack.c.l.b16 %v49
  %v711 = vunpack.c.h.b16 %v49
  %v712 = vunpack.c.l.b16 %v50
  %v713 = vunpack.c.h.b16 %v50
  %v714 = vunpack.c.l.b16 %v51
  %v715 = vunpack.c.h.b16 %v51
  %v716 = vunpack.c.l.b16 %v52
  %v717 = vunpack.c.h.b16 %v52
  %v718 = vunpack.c.l.b16 %v53
  %v719 = vunpack.c.h.b16 %v53
  %v720 = vunpack.c.l.b16 %v54
  %v721 = vunpack.c.h.b16 %v54
  %v722 = vunpack.c.l.b16 %v55
  %v723 = vunpack.c.h.b16 %v55
  %v724 = vunpack.c.l.b16 %v56
  %v725 = vunpack.c.h.b16 %v56
  %v726 = vunpack.c.l.b16 %v57
  %v727 = vunpack.c.h.b16 %v57
  %v728 = vunpack.c.l.b16 %v58
  %v729 = vunpack.c.h.b16 %v58
  %v730 = vunpack.c.l.b16 %v59
  %v731 = vunpack.c.h.b16 %v59
  %v732 = vunpack.c.l.b16 %v60
  %v733 = vunpack.c.h.b16 %v60
  %v734 = vunpack.c.l.b16 %v61
  %v735 = vunpack.c.h.b16 %v61
  %v736 = vunpack.c.l.b16 %v62
  %v737 = vunpack.c.h.b16 %v62
  %v738 = vunpack.c.l.b16 %v63
  %v739 = vunpack.c.h.b16 %v63
  %v740 = vunpack.c.l.b16 %v64
  %v741 = vunpack.c.h.b16 %v64
  %v742 = vunpack.c.l.b16 %v65
  %v743 = vunpack.c.h.b16 %v65
  %v744 = vunpack.c.l.b16 %v66
  %v745 = vunpack.c.h.b16 %v66
  %v746 = vunpack.c.l.b16 %v67
  %v747 = vunpack.c.h.b16 %v67
  %v748 = vunpack.c.l.b16 %v68
  %v749 = vunpack.c.h.b16 %v68
  %v750 = vunpack.c.l.b16 %v69
  %v751 = vunpack.c.h.b16 %v69
  %v752 = vunpack.c.l.b16 %v70
  %v753 = vunpack.c.h.b16 %v70
  %v754 = vunpack.c.l.b16 %v71
  %v755 = vunpack.c.h.b16 %v71
  %v756 = vunpack.c.l.b16 %v72
  %v757 = vunpack.c.h.b16 %v72
  %v758 = vunpack.c.l.b16 %v73
  %v759 = vunpack.c.h.b16 %v73
  %v760 = vunpack.c.l.b16 %v74
  %v761 = vunpack.c.h.b16 %v74
  %v762 = vunpack.c.l.b16 %v75
  %v763 = vunpack.c.h.b16 %v75
  %v764 = vunpack.c.l.b16 %v76
  %v765 = vunpack.c.h.b16 %v76
  %v766 = vunpack.c.l.b16 %v77
  %v767 = vunpack.c.h.b16 %v77
  %v768 = vunpack.c.l.b16 %v78
  %v769 = vunpack.c.h.b16 %v78
  %v770 = vunpack.c.l.b16 %v79
  %v771 = vunpack.c.h.b16 %v79
  %v772 = vunpack.c.l.b16 %v80
  %v773 = vunpack.c.h.b16 %v80
  %v774 = vunpack.c.l.b16 %v81
  %v775 = vunpack.c.h.b16 %v81
  %v776 = vunpack.c.l.b16 %v82
  %v777 = vunpack.c.h.b16 %v82
  %v778 = vunpack.c.l.b16 %v83
  %v779 = vunpack.c.h.b16 %v83
  %v780 = vunpack.c.l.b16 %v84
  %v781 = vunpack.c.h.b16 %v84
  %v782 = vunpack.c.l.b16 %v85
  %v783 = vunpack.c.h.b16 %v85
  %v784 = vunpack.c.l.b16 %v86
  %v785 = vunpack.c.h.b16 %v86
  %v786 = vunpack.c.l.b16 %v87
  %v787 = vunpack.c.h.b16 %v87
  %v788 = vunpack.c.l.b16 %v88
  %v789 = vunpack.c.h.b16 %v88
  %v790 = vunpack.c.l.b16 %v89
  %v791 = vunpack.c.h.b16 %v89
  %v792 = vunpack.c.l.b16 %v90
  %v793 = vunpack.c.h.b16 %v90
  %v794 = vunpack.c.l.b16 %v91
  %v795 = vunpack.c.h.b16 %v91
  %v796 = vunpack.c.l.b16 %v92
  %v797 = vunpack.c.h.b16 %v92
  %v798 = vunpack.c.l.b16 %v93
  %v799 = vunpack.c.h.b16 %v93
  %v800 = vunpack.c.l.b16 %v94
  %v801 = vunpack.c.h.b16 %v94
  %v802 = vunpack.c.l.b16 %v95
  %v803 = vunpack.c.h.b16 %v95
  %v804 = vunpack.c.l.b16 %v96
  %v805 = vunpack.c.h.b16 %v96
  %v806 = vunpack.c.l.b16 %v97
  %v807 = vunpack.c.h.b16 %v97
  %v808 = vunpack.c.l.b16 %v98
  %v809 = vunpack.c.h.b16 %v98
  %v810 = vunpack.c.l.b16 %v99
  %v811 = vunpack.c.h.b16 %v99
  %v812 = vunpack.c.l.b16 %v100
  %v813 = vunpack.c.h.b16 %v100
  %v814 = vunpack.c.l.b16 %v101
  %v815 = vunpack.c.h.b16 %v101
  %v816 = vunpack.c.l.b16 %v102
  %v817 = vunpack.c.h.b16 %v102
  %v818 = vunpack.c.l.b16 %v103
  %v819 = vunpack.c.h.b16 %v103
  %v820 = vunpack.c.l.b16 %v104
  %v821 = vunpack.c.h.b16 %v104
  %v822 = vunpack.c.l.b16 %v105
  %v823 = vunpack.c.h.b16 %v105
  %v824 = vunpack.c.l.b16 %v106
  %v825 = vunpack.c.h.b16 %v106
  %v826 = vunpack.c.l.b16 %v107
  %v827 = vunpack.c.h.b16 %v107
  %v828 = vunpack.c.l.b16 %v108
  %v829 = vunpack.c.h.b16 %v108
  %v830 = vunpack.c.l.b16 %v109
  %v831 = vunpack.c.h.b16 %v109
  %v832 = vunpack.c.l.b16 %v110
  %v833 = vunpack.c.h.b16 %v110
  %v834 = vunpack.c.l.b16 %v111
  %v835 = vunpack.c.h.b16 %v111
  %v836 = vunpack.c.l.b16 %v112
  %v837 = vunpack.c.h.b16 %v112
  %v838 = vunpack.c.l.b16 %v113
  %v839 = vunpack.c.h.b16 %v113
  %v840 = vunpack.c.l.b16 %v114
  %v841 = vunpack.c.h.b16 %v114
  %v842 = vunpack.c.l.b16 %v115
  %v843 = vunpack.c.h.b16 %v115
  %v844 = vunpack.c.l.b16 %v116
  %v845 = vunpack.c.h.b16 %v116
  %v846 = vunpack.c.l.b16 %v117
  %v847 = vunpack.c.h.b16 %v117
  %v848 = vunpack.c.l.b16 %v118
  %v849 = vunpack.c.h.b16 %v118
  %v850 = vunpack.c.l.b16 %v119
  %v851 = vunpack.c.h.b16 %v119
  %v852 = vunpack.c.l.b16 %v120
  %v853 = vunpack.c.h.b16 %v120
  %v854 = vunpack.c.l.b16 %v121
  %v855 = vunpack.c.h.b16 %v121
  %v856 = vunpack.c.l.b16 %v122
  %v857 = vunpack.c.h.b16 %v122
  %v858 = vunpack.c.l.b16 %v123
  %v859 = vunpack.c.h.b16 %v123
  %v860 = vunpack.c.l.b16 %v124
  %v861 = vunpack.c.h.b16 %v124
  %v862 = vunpack.c.l.b16 %v125
  %v863 = vunpack.c.h.b16 %v125
  %v864 = vunpack.c.l.b16 %v126
  %v865 = vunpack.c.h.b16 %v126
  %v866 = vunpack.c.l.b16 %v127
  %v867 = vunpack.c.h.b16 %v127
  %v868 = vunpack.c.l.b16 %v128
  %v869 = vunpack.c.h.b16 %v128
  %v870 = vunpack.c.l.b16 %v129
  %v871 = vunpack.c.h.b16 %v129
  %v872 = vunpack.c.l.b16 %v130
  %v873 = vunpack.c.h.b16 %v130
  %v874 = vunpack.c.l.b16 %v131
  %v875 = vunpack.c.h.b16 %v131
  %v876 = vunpack.c.l.b16 %v132
  %v877 = vunpack.c.h.b16 %v132
  %v878 = vunpack.c.l.b16 %v133
  %v879 = vunpack.c.h.b16 %v133
  %v880 = vunpack.c.l.b16 %v134
  %v881 = vunpack.c.h.b16 %v134
  %v882 = vunpack.c.l.b16 %v135
  %v883 = vunpack.c.h.b16 %v135
  %v884 = vunpack.c.l.b16 %v136
  %v885 = vunpack.c.h.b16 %v136
  %v886 = vunpack.c.l.b16 %v137
  %v887 = vunpack.c.h.b16 %v137
  %v888 = vunpack.c.l.b16 %v138
  %v889 = vunpack.c.h.b16 %v138
  %v890 = vunpack.c.l.b16 %v139
  %v891 = vunpack.c.h.b16 %v139
  %v892 = vunpack.c.l.b16 %v140
  %v893 = vunpack.c.h.b16 %v140
  %v894 = vunpack.c.l.b16 %v141
  %v895 = vunpack.c.h.b16 %v141
  %v896 = vunpack.c.l.b16 %v142
  %v897 = vunpack.c.h.b16 %v142
  %v898 = vunpack.c.l.b16 %v143
  %v899 = vunpack.c.h.b16 %v143
  %v900 = vunpack.c.l.b16 %v144
  %v901 = vunpack.c.h.b16 %v144
  %v902 = vunpack.c.l.b16 %v145
  %v903 = vunpack.c.h.b16 %v145
  %v904 = vunpack.c.l.b16 %v146
  %v905 = vunpack.c.h.b16 %v146
  %v906 = vunpack.c.l.b16 %v147
  %v907 = vunpack.c.h.b16 %v147
  %v908 = vunpack.c.l.b16 %v148
  %v909 = vunpack.c.h.b16 %v148
  %v910 = vunpack.c.l.b16 %v149
  %v911 = vunpack.c.h.b16 %v149
  %v912 = vunpack.c.l.b16 %v150
  %v913 = vunpack.c.h.b16 %v150
  %v914 = vunpack.c.l.b16 %v151
  %v915 = vunpack.c.h.b16 %v151
  %v916 = vunpack.c.l.b16 %v152
  %v917 = vunpack.c.h.b16 %v152
  %v918 = vunpack.c.l.b16 %v153
  %v919 = vunpack.c.h.b16 %v153
  %v920 = vunpack.c.l.b16 %v154
  %v921 = vunpack.c.h.b16 %v154
  %v922 = vunpack.c.l.b16 %v155
  %v923 = vunpack.c.h.b16 %v155
  %v924 = vunpack.c.l.b16 %v156
  %v925 = vunpack.c.h.b16 %v156
  %v926 = vunpack.c.l.b16 %v157
  %v927 = vunpack.c.h.b16 %v157
  %v928 = vunpack.c.l.b16 %v158
  %v929 = vunpack.c.h.b16 %v158
  %v930 = vunpack.c.l.b16 %v159
  %v931 = vunpack.c.h.b16 %v159
  %v932 = vunpack.c.l.b16 %v160
  %v933 = vunpack.c.h.b16 %v160
  %v934 = vunpack.c.l.b16 %v161
  %v935 = vunpack.c.h.b16 %v161
  %v936 = vunpack.c.l.b16 %v162
  %v937 = vunpack.c.h.b16 %v162
  %v938 = vunpack.c.l.b16 %v163
  %v939 = vunpack.c.h.b16 %v163
  %v940 = vunpack.c.l.b16 %v164
  %v941 = vunpack.c.h.b16 %v164
  %v942 = vunpack.c.l.b16 %v165
  %v943 = vunpack.c.h.b16 %v165
  %v944 = vunpack.c.l.b16 %v166
  %v945 = vunpack.c.h.b16 %v166
  %v946 = vunpack.c.l.b16 %v167
  %v947 = vunpack.c.h.b16 %v167
  %v948 = vunpack.c.l.b16 %v168
  %v949 = vunpack.c.h.b16 %v168
  %v950 = vunpack.c.l.b16 %v169
  %v951 = vunpack.c.h.b16 %v169
  %v952 = vunpack.c.l.b16 %v170
  %v953 = vunpack.c.h.b16 %v170
  %v954 = vunpack.c.l.b16 %v171
  %v955 = vunpack.c.h.b16 %v171
  %v956 = vunpack.c.l.b16 %v172
  %v957 = vunpack.c.h.b16 %v172
  %v958 = vunpack.c.l.b16 %v173
  %v959 = vunpack.c.h.b16 %v173
  %v960 = vunpack.c.l.b16 %v174
  %v961 = vunpack.c.h.b16 %v174
  %v962 = vunpack.c.l.b16 %v175
  %v963 = vunpack.c.h.b16 %v175
  %v964 = vunpack.c.l.b16 %v176
  %v965 = vunpack.c.h.b16 %v176
  %v966 = vunpack.c.l.b16 %v177
  %v967 = vunpack.c.h.b16 %v177
  %v968 = vunpack.c.l.b16 %v178
  %v969 = vunpack.c.h.b16 %v178
  %v970 = vunpack.c.l.b16 %v179
  %v971 = vunpack.c.h.b16 %v179
  %v972 = vunpack.c.l.b16 %v180
  %v973 = vunpack.c.h.b16 %v180
  %v974 = vunpack.c.l.b16 %v181
  %v975 = vunpack.c.h.b16 %v181
  %v976 = vunpack.c.l.b16 %v182
  %v977 = vunpack.c.h.b16 %v182
  %v978 = vunpack.c.l.b16 %v183
  %v979 = vunpack.c.h.b16 %v183
  %v980 = vunpack.c.l.b16 %v184
  %v981 = vunpack.c.h.b16 %v184
  %v982 = vunpack.c.l.b16 %v185
  %v983 = vunpack.c.h.b16 %v185
  %v984 = vunpack.c.l.b16 %v186
  %v985 = vunpack.c.h.b16 %v186
  %v986 = vunpack.c.l.b16 %v187
  %v987 = vunpack.c.h.b16 %v187
  %v988 = vunpack.c.l.b16 %v188
  %v989 = vunpack.c.h.b16 %v188
  %v990 = vunpack.c.l.b16 %v189
  %v991 = vunpack.c.h.b16 %v189
  %v992 = vunpack.c.l.b16 %v190
  %v993 = vunpack.c.h.b16 %v190
  %v994 = vunpack.c.l.b16 %v191
  %v995 = vunpack.c.h.b16 %v191
  %v996 = vunpack.c.l.b16 %v192
  %v997 = vunpack.c.h.b16 %v192
  %v998 = vunpack.c.l.b16 %v193
  %v999 = vunpack.c.h.b16 %v193
  %v1000 = vunpack.c.l.b16 %v194
  %v1001 = vunpack.c.h.b16 %v194
  %v1002 = vunpack.c.l.b16 %v195
  %v1003 = vunpack.c.h.b16 %v195
  %v1004 = vunpack.c.l.b16 %v196
  %v1005 = vunpack.c.h.b16 %v196
  %v1006 = vunpack.c.l.b16 %v197
  %v1007 = vunpack.c.h.b16 %v197
  %v1008 = vunpack.c.l.b16 %v198
  %v1009 = vunpack.c.h.b16 %v198
  %v1010 = vunpack.c.l.b16 %v199
  %v1011 = vunpack.c.h.b16 %v199
  %v1012 = vunpack.c.l.b16 %v200
  %v1013 = vunpack.c.h.b16 %v200
  %v1014 = vunpack.c.l.b16 %v201
  %v1015 = vunpack.c.h.b16 %v201
  %v1016 = vunpack.c.l.b16 %v202
  %v1017 = vunpack.c.h.b16 %v202
  %v1018 = vunpack.c.l.b16 %v203
  %v1019 = vunpack.c.h.b16 %v203
  %v1020 = vunpack.c.l.b16 %v204
  %v1021 = vunpack.c.h.b16 %v204
  %v1022 = vunpack.c.l.b16 %v205
  %v1023 = vunpack.c.h.b16 %v205
  %v1024 = vunpack.c.l.b16 %v206
  %v1025 = vunpack.c.h.b16 %v206
  %v1026 = vunpack.c.l.b16 %v207
  %v1027 = vunpack.c.h.b16 %v207
  %v1028 = vunpack.c.l.b16 %v208
  %v1029 = vunpack.c.h.b16 %v208
  %v1030 = vunpack.c.l.b16 %v209
  %v1031 = vunpack.c.h.b16 %v209
  %v1032 = vunpack.c.l.b16 %v210
  %v1033 = vunpack.c.h.b16 %v210
  %v1034 = vunpack.c.l.b16 %v211
  %v1035 = vunpack.c.h.b16 %v211
  %v1036 = vunpack.c.l.b16 %v212
  %v1037 = vunpack.c.h.b16 %v212
  %v1038 = vunpack.c.l.b16 %v213
  %v1039 = vunpack.c.h.b16 %v213
  %v1040 = vunpack.c.l.b16 %v214
  %v1041 = vunpack.c.h.b16 %v214
  %v1042 = vunpack.c.l.b16 %v215
  %v1043 = vunpack.c.h.b16 %v215
  %v1044 = vunpack.c.l.b16 %v216
  %v1045 = vunpack.c.h.b16 %v216
  %v1046 = vunpack.c.l.b16 %v217
  %v1047 = vunpack.c.h.b16 %v217
  %v1048 = vunpack.c.l.b16 %v218
  %v1049 = vunpack.c.h.b16 %v218
  %v1050 = vunpack.c.l.b16 %v219
  %v1051 = vunpack.c.h.b16 %v219
  %v1052 = vunpack.c.l.b16 %v220
  %v1053 = vunpack.c.h.b16 %v220
  %v1054 = vunpack.c.l.b16 %v221
  %v1055 = vunpack.c.h.b16 %v221
  %v1056 = vunpack.c.l.b16 %v222
  %v1057 = vunpack.c.h.b16 %v222
  %v1058 = vunpack.c.l.b16 %v223
  %v1059 = vunpack.c.h.b16 %v223
  %v1060 = vunpack.c.l.b16 %v224
  %v1061 = vunpack.c.h.b16 %v224
  %v1062 = vunpack.c.l.b16 %v225
  %v1063 = vunpack.c.h.b16 %v225
  %v1064 = vunpack.c.l.b16 %v226
  %v1065 = vunpack.c.h.b16 %v226
  %v1066 = vunpack.c.l.b16 %v227
  %v1067 = vunpack.c.h.b16 %v227
  %v1068 = vunpack.c.l.b16 %v228
  %v1069 = vunpack.c.h.b16 %v228
  %v1070 = vunpack.c.l.b16 %v229
  %v1071 = vunpack.c.h.b16 %v229
  %v1072 = vunpack.c.l.b16 %v230
  %v1073 = vunpack.c.h.b16 %v230
  %v1074 = vunpack.c.l.b16 %v231
  %v1075 = vunpack.c.h.b16 %v231
  %v1076 = vunpack.c.l.b16 %v232
  %v1077 = vunpack.c.h.b16 %v232
  %v1078 = vunpack.c.l.b16 %v233
  %v1079 = vunpack.c.h.b16 %v233
  %v1080 = vunpack.c.l.b16 %v234
  %v1081 = vunpack.c.h.b16 %v234
  %v1082 = vunpack.c.l.b16 %v235
  %v1083 = vunpack.c.h.b16 %v235
  %v1084 = vunpack.c.l.b16 %v236
  %v1085 = vunpack.c.h.b16 %v236
  %v1086 = vunpack.c.l.b16 %v237
  %v1087 = vunpack.c.h.b16 %v237
  %v1088 = vunpack.c.l.b16 %v238
  %v1089 = vunpack.c.h.b16 %v238
  %v1090 = vunpack.c.l.b16 %v239
  %v1091 = vunpack.c.h.b16 %v239
  %v1092 = vunpack.c.l.b16 %v240
  %v1093 = vunpack.c.h.b16 %v240
  %v1094 = vunpack.c.l.b16 %v241
  %v1095 = vunpack.c.h.b16 %v241
  %v1096 = vunpack.c.l.b16 %v242
  %v1097 = vunpack.c.h.b16 %v242
  %v1098 = vunpack.c.l.b16 %v243
  %v1099 = vunpack.c.h.b16 %v243
  %v1100 = vunpack.c.l.b16 %v244
  %v1101 = vunpack.c.h.b16 %v244
  %v1102 = vunpack.c.l.b16 %v245
  %v1103 = vunpack.c.h.b16 %v245
  %v1104 = vunpack.c.l.b16 %v246
  %v1105 = vunpack.c.h.b16 %v246
  %v1106 = vunpack.c.l.b16 %v247
  %v1107 = vunpack.c.h.b16 %v247
  %v1108 = vunpack.c.l.b16 %v248
  %v1109 = vunpack.c.h.b16 %v248
  %v1110 = vunpack.c.l.b16 %v249
  %v1111 = vunpack.c.h.b16 %v249
  %v1112 = vunpack.c.l.b16 %v250
  %v1113 = vunpack.c.h.b16 %v250
  %v1114 = vunpack.c.l.b16 %v251
  %v1115 = vunpack.c.h.b16 %v251
  %v1116 = vunpack.c.l.b16 %v252
  %v1117 = vunpack.c.h.b16 %v252
  %v1118 = vunpack.c.l.b16 %v253
  %v1119 = vunpack.c.h.b16 %v253
  %v1120 = vunpack.c.l.b16 %v254
  %v1121 = vunpack.c.h.b16 %v254
  %v1122 = vunpack.c.l.b16 %v255
  %v1123 = vunpack.c.h.b16 %v255
  %v1124 = vunpack.c.l.b16 %v256
  %v1125 = vunpack.c.h.b16 %v256
  %v1126 = vunpack.c.l.b16 %v257
  %v1127 = vunpack.c.h.b16 %v257
  %v1128 = vunpack.c.l.b16 %v258
  %v1129 = vunpack.c.h.b16 %v258
  %v1130 = vunpack.c.l.b16 %v259
  %v1131 = vunpack.c.h.b16 %v259
  %v1132 = vunpack.c.l.b16 %v260
  %v1133 = vunpack.c.h.b16 %v260
  %v1134 = vunpack.c.l.b16 %v261
  %v1135 = vunpack.c.h.b16 %v261
  %v1136 = vunpack.c.l.b16 %v262
  %v1137 = vunpack.c.h.b16 %v262
  %v1138 = vunpack.c.l.b16 %v263
  %v1139 = vunpack.c.h.b16 %v263
  %v1140 = vunpack.c.l.b16 %v264
  %v1141 = vunpack.c.h.b16 %v264
  %v1142 = vunpack.c.l.b16 %v265
  %v1143 = vunpack.c.h.b16 %v265
  %v1144 = vunpack.c.l.b16 %v266
  %v1145 = vunpack.c.h.b16 %v266
  %v1146 = vunpack.c.l.b16 %v267
  %v1147 = vunpack.c.h.b16 %v267
  %v1148 = vunpack.c.l.b16 %v268
  %v1149 = vunpack.c.h.b16 %v268
  %v1150 = vunpack.c.l.b16 %v269
  %v1151 = vunpack.c.h.b16 %v269
  %v1152 = vunpack.c.l.b16 %v270
  %v1153 = vunpack.c.h.b16 %v270
  %v1154 = vunpack.c.l.b16 %v271
  %v1155 = vunpack.c.h.b16 %v271
  %v1156 = vunpack.c.l.b16 %v272
  %v1157 = vunpack.c.h.b16 %v272
  %v1158 = vunpack.c.l.b16 %v273
  %v1159 = vunpack.c.h.b16 %v273
  %v1160 = vunpack.c.l.b16 %v274
  %v1161 = vunpack.c.h.b16 %v274
  %v1162 = vunpack.c.l.b16 %v275
  %v1163 = vunpack.c.h.b16 %v275
  %v1164 = vunpack.c.l.b16 %v276
  %v1165 = vunpack.c.h.b16 %v276
  %v1166 = vunpack.c.l.b16 %v277
  %v1167 = vunpack.c.h.b16 %v277
  %v1168 = vunpack.c.l.b16 %v278
  %v1169 = vunpack.c.h.b16 %v278
  %v1170 = vunpack.c.l.b16 %v279
  %v1171 = vunpack.c.h.b16 %v279
  %v1172 = vunpack.c.l.b16 %v280
  %v1173 = vunpack.c.h.b16 %v280
  %v1174 = vunpack.c.l.b16 %v281
  %v1175 = vunpack.c.h.b16 %v281
  %v1176 = vunpack.c.l.b16 %v282
  %v1177 = vunpack.c.h.b16 %v282
  %v1178 = vunpack.c.l.b16 %v283
  %v1179 = vunpack.c.h.b16 %v283
  %v1180 = vunpack.c.l.b16 %v284
  %v1181 = vunpack.c.h.b16 %v284
  %v1182 = vunpack.c.l.b16 %v285
  %v1183 = vunpack.c.h.b16 %v285
  %v1184 = vunpack.c.l.b16 %v286
  %v1185 = vunpack.c.h.b16 %v286
  %v1186 = vunpack.c.l.b16 %v287
  %v1187 = vunpack.c.h.b16 %v287
  %v1188 = vunpack.c.l.b16 %v288
  %v1189 = vunpack.c.h.b16 %v288
  %v1190 = vunpack.c.l.b16 %v289
  %v1191 = vunpack.c.h.b16 %v289
  %v1192 = vunpack.c.l.b16 %v290
  %v1193 = vunpack.c.h.b16 %v290
  %v1194 = vunpack.c.l.b16 %v291
  %v1195 = vunpack.c.h.b16 %v291
  %v1196 = vunpack.c.l.b16 %v292
  %v1197 = vunpack.c.h.b16 %v292
  %v1198 = vunpack.c.l.b16 %v293
  %v1199 = vunpack.c.h.b16 %v293
  %v1200 = vunpack.c.l.b16 %v294
  %v1201 = vunpack.c.h.b16 %v294
  %v1202 = vunpack.c.l.b16 %v295
  %v1203 = vunpack.c.h.b16 %v295
  %v1204 = vunpack.c.l.b16 %v296
  %v1205 = vunpack.c.h.b16 %v296
  %v1206 = vunpack.c.l.b16 %v297
  %v1207 = vunpack.c.h.b16 %v297
  %v1208 = vunpack.c.l.b16 %v298
  %v1209 = vunpack.c.h.b16 %v298
  %v1210 = vunpack.c.l.b16 %v299
  %v1211 = vunpack.c.h.b16 %v299
  %v1212 = vunpack.c.l.b16 %v300
  %v1213 = vunpack.c.h.b16 %v300
  %v1214 = vunpack.c.l.b16 %v301
  %v1215 = vunpack.c.h.b16 %v301
  %v1216 = vunpack.c.l.b16 %v302
  %v1217 = vunpack.c.h.b16 %v302
  %v1218 = vunpack.c.l.b16 %v303
  %v1219 = vunpack.c.h.b16 %v303
  %v1220 = vunpack.c.l.b16 %v304
  %v1221 = vunpack.c.h.b16 %v304
  %v1222 = vunpack.c.l.b16 %v305
  %v1223 = vunpack.c.h.b16 %v305
  %v1224 = vunpack.c.l.b16 %v306
  %v1225 = vunpack.c.h.b16 %v306
  %v1226 = vunpack.c.l.b16 %v307
  %v1227 = vunpack.c.h.b16 %v307
  %v1228 = vunpack.c.l.b16 %v308
  %v1229 = vunpack.c.h.b16 %v308
  %v1230 = vunpack.c.l.b16 %v309
  %v1231 = vunpack.c.h.b16 %v309
  %v1232 = vunpack.c.l.b16 %v310
  %v1233 = vunpack.c.h.b16 %v310
  %v1234 = vunpack.c.l.b16 %v311
  %v1235 = vunpack.c.h.b16 %v311
  %v1236 = vunpack.c.l.b16 %v312
  %v1237 = vunpack.c.h.b16 %v312
  %v1238 = vunpack.c.l.b16 %v313
  %v1239 = vunpack.c.h.b16 %v313
  %v1240 = vunpack.c.l.b16 %v314
  %v1241 = vunpack.c.h.b16 %v314
  %v1242 = vunpack.c.l.b16 %v315
  %v1243 = vunpack.c.h.b16 %v315
  %v1244 = vunpack.c.l.b16 %v316
  %v1245 = vunpack.c.h.b16 %v316
  %v1246 = vunpack.c.l.b16 %v317
  %v1247 = vunpack.c.h.b16 %v317
  %v1248 = vunpack.c.l.b16 %v318
  %v1249 = vunpack.c.h.b16 %v318
  %v1250 = vunpack.c.l.b16 %v319
  %v1251 = vunpack.c.h.b16 %v319
  %v1252 = vunpack.c.l.b16 %v320
  %v1253 = vunpack.c.h.b16 %v320
  %v1254 = vunpack.c.l.b16 %v321
  %v1255 = vunpack.c.h.b16 %v321
  %v1256 = vunpack.c.l.b16 %v322
  %v1257 = vunpack.c.h.b16 %v322
  %v1258 = vunpack.c.l.b16 %v323
  %v1259 = vunpack.c.h.b16 %v323
  %v1260 = vunpack.c.l.b16 %v324
  %v1261 = vunpack.c.h.b16 %v324
  %v1262 = vunpack.c.l.b16 %v325
  %v1263 = vunpack.c.h.b16 %v325
  %v1264 = vpack.c.b16 %v676, %v664
  %v1265 = vpack.c.b16 %v677, %v665
  %v1266 = vpack.c.b16 %v678, %v666
  %v1267 = vpack.c.b16 %v679, %v667
  %v1268 = vpack.c.b16 %v680, %v668
  %v1269 = vpack.c.b16 %v681, %v669
  %v1270 = vpack.c.b16 %v682, %v670
  %v1271 = vpack.c.b16 %v683, %v671
  %v1272 = vpack.c.b16 %v684, %v672
  %v1273 = vpack.c.b16 %v685, %v673
  %v1274 = vpack.c.b16 %v686, %v674
  %v1275 = vpack.c.b16 %v687, %v675
  %v1276 = vpack.c.b16 %v700, %v688
  %v1277 = vpack.c.b16 %v701, %v689
  %v1278 = vpack.c.b16 %v702, %v690
  %v1279 = vpack.c.b16 %v703, %v691
  %v1280 = vpack.c.b16 %v704, %v692
  %v1281 = vpack.c.b16 %v705, %v693
  %v1282 = vpack.c.b16 %v706, %v694
  %v1283 = vpack.c.b16 %v707, %v695
  %v1284 = vpack.c.b16 %v708, %v696
  %v1285 = vpack.c.b16 %v709, %v697
  %v1286 = vpack.c.b16 %v710, %v698
  %v1287 = vpack.c.b16 %v711, %v699
  %v1288 = vpack.c.b16 %v724, %v712
  %v1289 = vpack.c.b16 %v725, %v713
  %v1290 = vpack.c.b16 %v726, %v714
  %v1291 = vpack.c.b16 %v727, %v715
  %v1292 = vpack.c.b16 %v728, %v716
  %v1293 = vpack.c.b16 %v729, %v717
  %v1294 = vpack.c.b16 %v730, %v718
  %v1295 = vpack.c.b16 %v731, %v719
  %v1296 = vpack.c.b16 %v732, %v720
  %v1297 = vpack.c.b16 %v733, %v721
  %v1298 = vpack.c.b16 %v734, %v722
  %v1299 = vpack.c.b16 %v735, %v723
  %v1300 = vpack.c.b16 %v748, %v736
  %v1301 = vpack.c.b16 %v749, %v737
  %v1302 = vpack.c.b16 %v750, %v738
  %v1303 = vpack.c.b16 %v751, %v739
  %v1304 = vpack.c.b16 %v752, %v740
  %v1305 = vpack.c.b16 %v753, %v741
  %v1306 = vpack.c.b16 %v754, %v742
  %v1307 = vpack.c.b16 %v755, %v743
  %v1308 = vpack.c.b16 %v756, %v744
  %v1309 = vpack.c.b16 %v757, %v745
  %v1310 = vpack.c.b16 %v758, %v746
  %v1311 = vpack.c.b16 %v759, %v747
  %v1312 = vpack.c.b16 %v772, %v760
  %v1313 = vpack.c.b16 %v773, %v761
  %v1314 = vpack.c.b16 %v774, %v762
  %v1315 = vpack.c.b16 %v775, %v763
  %v1316 = vpack.c.b16 %v776, %v764
  %v1317 = vpack.c.b16 %v777, %v765
  %v1318 = vpack.c.b16 %v778, %v766
  %v1319 = vpack.c.b16 %v779, %v767
  %v1320 = vpack.c.b16 %v780, %v768
  %v1321 = vpack.c.b16 %v781, %v769
  %v1322 = vpack.c.b16 %v782, %v770
  %v1323 = vpack.c.b16 %v783, %v771
  %v1324 = vpack.c.b16 %v796, %v784
  %v1325 = vpack.c.b16 %v797, %v785
  %v1326 = vpack.c.b16 %v798, %v786
  %v1327 = vpack.c.b16 %v799, %v787
  %v1328 = vpack.c.b16 %v800, %v788
  %v1329 = vpack.c.b16 %v801, %v789
  %v1330 = vpack.c.b16 %v802, %v790
  %v1331 = vpack.c.b16 %v803, %v791
  %v1332 = vpack.c.b16 %v804, %v792
  %v1333 = vpack.c.b16 %v805, %v793
  %v1334 = vpack.c.b16 %v806, %v794
  %v1335 = vpack.c.b16 %v807, %v795
  %v1336 = vpack.c.b16 %v820, %v808
  %v1337 = vpack.c.b16 %v821, %v809
  %v1338 = vpack.c.b16 %v822, %v810
  %v1339 = vpack.c.b16 %v823, %v811
  %v1340 = vpack.c.b16 %v824, %v812
  %v1341 = vpack.c.b16 %v825, %v813
  %v1342 = vpack.c.b16 %v826, %v814
  %v1343 = vpack.c.b16 %v827, %v815
  %v1344 = vpack.c.b16 %v828, %v816
  %v1345 = vpack.c.b16 %v829, %v817
  %v1346 = vpack.c.b16 %v830, %v818
  %v1347 = vpack.c.b16 %v831, %v819
  %v1348 = vpack.c.b16 %v844, %v832
  %v1349 = vpack.c.b16 %v845, %v833
  %v1350 = vpack.c.b16 %v846, %v834
  %v1351 = vpack.c.b16 %v847, %v835
  %v1352 = vpack.c.b16 %v848, %v836
  %v1353 = vpack.c.b16 %v849, %v837
  %v1354 = vpack.c.b16 %v850, %v838
  %v1355 = vpack.c.b16 %v851, %v839
  %v1356 = vpack.c.b16 %v852, %v840
  %v1357 = vpack.c.b16 %v853, %v841
  %v1358 = vpack.c.b16 %v854, %v842
  %v1359 = vpack.c.b16 %v855, %v843
  %v1360 = vpack.c.b16 %v868, %v856
  %v1361 = vpack.c.b16 %v869, %v857
  %v1362 = vpack.c.b16 %v870, %v858
  %v1363 = vpack.c.b16 %v871, %v859
  %v1364 = vpack.c.b16 %v872, %v860
  %v1365 = vpack.c.b16 %v873, %v861
  %v1366 = vpack.c.b16 %v874, %v862
  %v1367 = vpack.c.b16 %v875, %v863
  %v1368 = vpack.c.b16 %v876, %v864
  %v1369 = vpack.c.b16 %v877, %v865
  %v1370 = vpack.c.b16 %v878, %v866
  %v1371 = vpack.c.b16 %v879, %v867
  %v1372 = vpack.c.b16 %v892, %v880
  %v1373 = vpack.c.b16 %v893, %v881
  %v1374 = vpack.c.b16 %v894, %v882
  %v1375 = vpack.c.b16 %v895, %v883
  %v1376 = vpack.c.b16 %v896, %v884
  %v1377 = vpack.c.b16 %v897, %v885
  %v1378 = vpack.c.b16 %v898, %v886
  %v1379 = vpack.c.b16 %v899, %v887
  %v1380 = vpack.c.b16 %v900, %v888
  %v1381 = vpack.c.b16 %v901, %v889
  %v1382 = vpack.c.b16 %v902, %v890
  %v1383 = vpack.c.b16 %v903, %v891
  %v1384 = vpack.c.b16 %v916, %v904
  %v1385 = vpack.c.b16 %v917, %v905
  %v1386 = vpack.c.b16 %v918, %v906
  %v1387 = vpack.c.b16 %v919, %v907
  %v1388 = vpack.c.b16 %v920, %v908
  %v1389 = vpack.c.b16 %v921, %v909
  %v1390 = vpack.c.b16 %v922, %v910
  %v1391 = vpack.c.b16 %v923, %v911
  %v1392 = vpack.c.b16 %v924, %v912
  %v1393 = vpack.c.b16 %v925, %v913
  %v1394 = vpack.c.b16 %v926, %v914
  %v1395 = vpack.c.b16 %v927, %v915
  %v1396 = vpack.c.b16 %v940, %v928
  %v1397 = vpack.c.b16 %v941, %v929
  %v1398 = vpack.c.b16 %v942, %v930
  %v1399 = vpack.c.b16 %v943, %v931
  %v1400 = vpack.c.b16 %v944, %v932
  %v1401 = vpack.c.b16 %v945, %v933
  %v1402 = vpack.c.b16 %v946, %v934
  %v1403 = vpack.c.b16 %v947, %v935
  %v1404 = vpack.c.b16 %v948, %v936
  %v1405 = vpack.c.b16 %v949, %v937
  %v1406 = vpack.c.b16 %v950, %v938
  %v1407 = vpack.c.b16 %v951, %v939
  %v1408 = vpack.c.b16 %v964, %v952
  %v1409 = vpack.c.b16 %v965, %v953
  %v1410 = vpack.c.b16 %v966, %v954
  %v1411 = vpack.c.b16 %v967, %v955
  %v1412 = vpack.c.b16 %v968, %v956
  %v1413 = vpack.c.b16 %v969, %v957
  %v1414 = vpack.c.b16 %v970, %v958
  %v1415 = vpack.c.b16 %v971, %v959
  %v1416 = vpack.c.b16 %v972, %v960
  %v1417 = vpack.c.b16 %v973, %v961
  %v1418 = vpack.c.b16 %v974, %v962
  %v1419 = vpack.c.b16 %v975, %v963
  %v1420 = vpack.c.b16 %v988, %v976
  %v1421 = vpack.c.b16 %v989, %v977
  %v1422 = vpack.c.b16 %v990, %v978
  %v1423 = vpack.c.b16 %v991, %v979
  %v1424 = vpack.c.b16 %v992, %v980
  %v1425 = vpack.c.b16 %v993, %v981
  %v1426 = vpack.c.b16 %v994, %v982
  %v1427 = vpack.c.b16 %v995, %v983
  %v1428 = vpack.c.b16 %v996, %v984
  %v1429 = vpack.c.b16 %v997, %v985
  %v1430 = vpack.c.b16 %v998, %v986
  %v1431 = vpack.c.b16 %v999, %v987
  %v1432 = vpack.c.b16 %v1012, %v1000
  %v1433 = vpack.c.b16 %v1013, %v1001
  %v1434 = vpack.c.b16 %v1014, %v1002
  %v1435 = vpack.c.b16 %v1015, %v1003
  %v1436 = vpack.c.b16 %v1016, %v1004
  %v1437 = vpack.c.b16 %v1017, %v1005
  %v1438 = vpack.c.b16 %v1018, %v1006
  %v1439 = vpack.c.b16 %v1019, %v1007
  %v1440 = vpack.c.b16 %v1020, %v1008
  %v1441 = vpack.c.b16 %v1021, %v1009
  %v1442 = vpack.c.b16 %v1022, %v1010
  %v1443 = vpack.c.b16 %v1023, %v1011
  %v1444 = vpack.c.b16 %v1036, %v1024
  %v1445 = vpack.c.b16 %v1037, %v1025
  %v1446 = vpack.c.b16 %v1038, %v1026
  %v1447 = vpack.c.b16 %v1039, %v1027
  %v1448 = vpack.c.b16 %v1040, %v1028
  %v1449 = vpack.c.b16 %v1041, %v1029
  %v1450 = vpack.c.b16 %v1042, %v1030
  %v1451 = vpack.c.b16 %v1043, %v1031
  %v1452 = vpack.c.b16 %v1044, %v1032
  %v1453 = vpack.c.b16 %v1045, %v1033
  %v1454 = vpack.c.b16 %v1046, %v1034
  %v1455 = vpack.c.b16 %v1047, %v1035
  %v1456 = vpack.c.b16 %v1060, %v1048
  %v1457 = vpack.c.b16 %v1061, %v1049
  %v1458 = vpack.c.b16 %v1062, %v1050
  %v1459 = vpack.c.b16 %v1063, %v1051
  %v1460 = vpack.c.b16 %v1064, %v1052
  %v1461 = vpack.c.b16 %v1065, %v1053
  %v1462 = vpack.c.b16 %v1066, %v1054
  %v1463 = vpack.c.b16 %v1067, %v1055
  %v1464 = vpack.c.b16 %v1068, %v1056
  %v1465 = vpack.c.b16 %v1069, %v1057
  %v1466 = vpack.c.b16 %v1070, %v1058
  %v1467 = vpack.c.b16 %v1071, %v1059
  %v1468 = vpack.c.b16 %v1084, %v1072
  %v1469 = vpack.c.b16 %v1085, %v1073
  %v1470 = vpack.c.b16 %v1086, %v1074
  %v1471 = vpack.c.b16 %v1087, %v1075
  %v1472 = vpack.c.b16 %v1088, %v1076
  %v1473 = vpack.c.b16 %v1089, %v1077
  %v1474 = vpack.c.b16 %v1090, %v1078
  %v1475 = vpack.c.b16 %v1091, %v1079
  %v1476 = vpack.c.b16 %v1092, %v1080
  %v1477 = vpack.c.b16 %v1093, %v1081
  %v1478 = vpack.c.b16 %v1094, %v1082
  %v1479 = vpack.c.b16 %v1095, %v1083
  %v1480 = vpack.c.b16 %v1108, %v1096
  %v1481 = vpack.c.b16 %v1109, %v1097
  %v1482 = vpack.c.b16 %v1110, %v1098
  %v1483 = vpack.c.b16 %v1111, %v1099
  %v1484 = vpack.c.b16 %v1112, %v1100
  %v1485 = vpack.c.b16 %v1113, %v1101
  %v1486 = vpack.c.b16 %v1114, %v1102
  %v1487 = vpack.c.b16 %v1115, %v1103
  %v1488 = vpack.c.b16 %v1116, %v1104
  %v1489 = vpack.c.b16 %v1117, %v1105
  %v1490 = vpack.c.b16 %v1118, %v1106
  %v1491 = vpack.c.b16 %v1119, %v1107
  %v1492 = vpack.c.b16 %v1132, %v1120
  %v1493 = vpack.c.b16 %v1133, %v1121
  %v1494 = vpack.c.b16 %v1134, %v1122
  %v1495 = vpack.c.b16 %v1135, %v1123
  %v1496 = vpack.c.b16 %v1136, %v1124
  %v1497 = vpack.c.b16 %v1137, %v1125
  %v1498 = vpack.c.b16 %v1138, %v1126
  %v1499 = vpack.c.b16 %v1139, %v1127
  %v1500 = vpack.c.b16 %v1140, %v1128
  %v1501 = vpack.c.b16 %v1141, %v1129
  %v1502 = vpack.c.b16 %v1142, %v1130
  %v1503 = vpack.c.b16 %v1143, %v1131
  %v1504 = vpack.c.b16 %v1156, %v1144
  %v1505 = vpack.c.b16 %v1157, %v1145
  %v1506 = vpack.c.b16 %v1158, %v1146
  %v1507 = vpack.c.b16 %v1159, %v1147
  %v1508 = vpack.c.b16 %v1160, %v1148
  %v1509 = vpack.c.b16 %v1161, %v1149
  %v1510 = vpack.c.b16 %v1162, %v1150
  %v1511 = vpack.c.b16 %v1163, %v1151
  %v1512 = vpack.c.b16 %v1164, %v1152
  %v1513 = vpack.c.b16 %v1165, %v1153
  %v1514 = vpack.c.b16 %v1166, %v1154
  %v1515 = vpack.c.b16 %v1167, %v1155
  %v1516 = vpack.c.b16 %v1180, %v1168
  %v1517 = vpack.c.b16 %v1181, %v1169
  %v1518 = vpack.c.b16 %v1182, %v1170
  %v1519 = vpack.c.b16 %v1183, %v1171
  %v1520 = vpack.c.b16 %v1184, %v1172
  %v1521 = vpack.c.b16 %v1185, %v1173
  %v1522 = vpack.c.b16 %v1186, %v1174
  %v1523 = vpack.c.b16 %v1187, %v1175
  %v1524 = vpack.c.b16 %v1188, %v1176
  %v1525 = vpack.c.b16 %v1189, %v1177
  %v1526 = vpack.c.b16 %v1190, %v1178
  %v1527 = vpack.c.b16 %v1191, %v1179
  %v1528 = vpack.c.b16 %v1204, %v1192
  %v1529 = vpack.c.b16 %v1205, %v1193
  %v1530 = vpack.c.b16 %v1206, %v1194
  %v1531 = vpack.c.b16 %v1207, %v1195
  %v1532 = vpack.c.b16 %v1208, %v1196
  %v1533 = vpack.c.b16 %v1209, %v1197
  %v1534 = vpack.c.b16 %v1210, %v1198
  %v1535 = vpack.c.b16 %v1211, %v1199
  %v1536 = vpack.c.b16 %v1212, %v1200
  %v1537 = vpack.c.b16 %v1213, %v1201
  %v1538 = vpack.c.b16 %v1214, %v1202
  %v1539 = vpack.c.b16 %v1215, %v1203
  %v1540 = vpack.c.b16 %v1228, %v1216
  %v1541 = vpack.c.b16 %v1229, %v1217
  %v1542 = vpack.c.b16 %v1230, %v1218
  %v1543 = vpack.c.b16 %v1231, %v1219
  %v1544 = vpack.c.b16 %v1232, %v1220
  %v1545 = vpack.c.b16 %v1233, %v1221
  %v1546 = vpack.c.b16 %v1234, %v1222
  %v1547 = vpack.c.b16 %v1235, %v1223
  %v1548 = vpack.c.b16 %v1236, %v1224
  %v1549 = vpack.c.b16 %v1237, %v1225
  %v1550 = vpack.c.b16 %v1238, %v1226
  %v1551 = vpack.c.b16 %v1239, %v1227
  %v1552 = vpack.c.b16 %v1252, %v1240
  %v1553 = vpack.c.b16 %v1253, %v1241
  %v1554 = vpack.c.b16 %v1254, %v1242
  %v1555 = vpack.c.b16 %v1255, %v1243
  %v1556 = vpack.c.b16 %v1256, %v1244
  %v1557 = vpack.c.b16 %v1257, %v1245
  %v1558 = vpack.c.b16 %v1258, %v1246
  %v1559 = vpack.c.b16 %v1259, %v1247
  %v1560 = vpack.c.b16 %v1260, %v1248
  %v1561 = vpack.c.b16 %v1261, %v1249
  %v1562 = vpack.c.b16 %v1262, %v1250
  %v1563 = vpack.c.b16 %v1263, %v1251
  %vm1864 = vcmask 130048
  %v1866 = vsel %vm1864, %v353, 0
  %v1869 = vsel %vm1864, %v357, 0
  %1871 = vmatpush.bf16.msra.mxu0 %v1348
  %1872 = vmatpush.bf16.msra.mxu0 %v1336
  %1873 = vmatpush.bf16.msra.mxu0 %v1324
  %1874 = vmatpush.bf16.msra.mxu0 %v1312
  %1875 = vmatpush.bf16.msra.mxu0 %v1300
  %1876 = vmatpush.bf16.msra.mxu0 %v1288
  %1877 = vmatpush.bf16.msra.mxu0 %v1276
  %1878 = vmatpush.bf16.msra.mxu0 %v1264
  %1879 = vmatmul.bf16.gmra.mxu0 %v350
  %v1880 = vpop.f32.mrf.mxu0
  %v1881 = vadd.f32 0.0, %v1880
  %v1882 = vpop.f32.mrf.mxu0
  %v1883 = vadd.f32 0.0, %v1882
  %1884 = vmatmul.bf16.gmra.mxu0 %v354
  %v1885 = vpop.f32.mrf.mxu0
  %v1886 = vadd.f32 0.0, %v1885
  %v1887 = vpop.f32.mrf.mxu0
  %v1888 = vadd.f32 0.0, %v1887
  %1889 = vdwg.mxu0
  %1890 = vmatpush.bf16.msra.mxu0 %v1444
  %1891 = vmatpush.bf16.msra.mxu0 %v1432
  %1892 = vmatpush.bf16.msra.mxu0 %v1420
  %1893 = vmatpush.bf16.msra.mxu0 %v1408
  %1894 = vmatpush.bf16.msra.mxu0 %v1396
  %1895 = vmatpush.bf16.msra.mxu0 %v1384
  %1896 = vmatpush.bf16.msra.mxu0 %v1372
  %1897 = vmatpush.bf16.msra.mxu0 %v1360
  %1898 = vmatmul.bf16.gmra.mxu0 %v351
  %v1899 = vpop.f32.mrf.mxu0
  %v1900 = vadd.f32 %v1881, %v1899
  %v1901 = vpop.f32.mrf.mxu0
  %v1902 = vadd.f32 %v1883, %v1901
  %1903 = vmatmul.bf16.gmra.mxu0 %v355
  %v1904 = vpop.f32.mrf.mxu0
  %v1905 = vadd.f32 %v1886, %v1904
  %v1906 = vpop.f32.mrf.mxu0
  %v1907 = vadd.f32 %v1888, %v1906
  %1908 = vdwg.mxu0
  %1909 = vmatpush.bf16.msra.mxu0 %v1540
  %1910 = vmatpush.bf16.msra.mxu0 %v1528
  %1911 = vmatpush.bf16.msra.mxu0 %v1516
  %1912 = vmatpush.bf16.msra.mxu0 %v1504
  %1913 = vmatpush.bf16.msra.mxu0 %v1492
  %1914 = vmatpush.bf16.msra.mxu0 %v1480
  %1915 = vmatpush.bf16.msra.mxu0 %v1468
  %1916 = vmatpush.bf16.msra.mxu0 %v1456
  %1917 = vmatmul.bf16.gmra.mxu0 %v352
  %v1918 = vpop.f32.mrf.mxu0
  %v1919 = vadd.f32 %v1900, %v1918
  %v1920 = vpop.f32.mrf.mxu0
  %v1921 = vadd.f32 %v1902, %v1920
  %1922 = vmatmul.bf16.gmra.mxu0 %v356
  %v1923 = vpop.f32.mrf.mxu0
  %v1924 = vadd.f32 %v1905, %v1923
  %v1925 = vpop.f32.mrf.mxu0
  %v1926 = vadd.f32 %v1907, %v1925
  %1927 = vdwg.mxu0
  %1928 = vmatpush.bf16.msra.mxu0 0
  %1929 = vmatpush.bf16.msra.mxu0 0
  %1930 = vmatpush.bf16.msra.mxu0 0
  %1931 = vmatpush.bf16.msra.mxu0 0
  %1932 = vmatpush.bf16.msra.mxu0 0
  %1933 = vmatpush.bf16.msra.mxu0 0
  %1934 = vmatpush.bf16.msra.mxu0 0
  %1935 = vmatpush.bf16.msra.mxu0 %v1552
  %1936 = vmatmul.bf16.gmra.mxu0 %v1866
  %v1937 = vpop.f32.mrf.mxu0
  %v1938 = vadd.f32 %v1919, %v1937
  %v1939 = vpop.f32.mrf.mxu0
  %v1940 = vadd.f32 %v1921, %v1939
  %1941 = vmatmul.bf16.gmra.mxu0 %v1869
  %v1942 = vpop.f32.mrf.mxu0
  %v1943 = vadd.f32 %v1924, %v1942
  %v1944 = vpop.f32.mrf.mxu0
  %v1945 = vadd.f32 %v1926, %v1944
  %1946 = vdwg.mxu0
  %1947 = vmatpush.bf16.msra.mxu0 %v1349
  %1948 = vmatpush.bf16.msra.mxu0 %v1337
  %1949 = vmatpush.bf16.msra.mxu0 %v1325
  %1950 = vmatpush.bf16.msra.mxu0 %v1313
  %1951 = vmatpush.bf16.msra.mxu0 %v1301
  %1952 = vmatpush.bf16.msra.mxu0 %v1289
  %1953 = vmatpush.bf16.msra.mxu0 %v1277
  %1954 = vmatpush.bf16.msra.mxu0 %v1265
  %1955 = vmatmul.bf16.gmra.mxu0 %v350
  %v1956 = vpop.f32.mrf.mxu0
  %v1957 = vadd.f32 0.0, %v1956
  %v1958 = vpop.f32.mrf.mxu0
  %v1959 = vadd.f32 0.0, %v1958
  %1960 = vmatmul.bf16.gmra.mxu0 %v354
  %v1961 = vpop.f32.mrf.mxu0
  %v1962 = vadd.f32 0.0, %v1961
  %v1963 = vpop.f32.mrf.mxu0
  %v1964 = vadd.f32 0.0, %v1963
  %1965 = vdwg.mxu0
  %1966 = vmatpush.bf16.msra.mxu0 %v1445
  %1967 = vmatpush.bf16.msra.mxu0 %v1433
  %1968 = vmatpush.bf16.msra.mxu0 %v1421
  %1969 = vmatpush.bf16.msra.mxu0 %v1409
  %1970 = vmatpush.bf16.msra.mxu0 %v1397
  %1971 = vmatpush.bf16.msra.mxu0 %v1385
  %1972 = vmatpush.bf16.msra.mxu0 %v1373
  %1973 = vmatpush.bf16.msra.mxu0 %v1361
  %1974 = vmatmul.bf16.gmra.mxu0 %v351
  %v1975 = vpop.f32.mrf.mxu0
  %v1976 = vadd.f32 %v1957, %v1975
  %v1977 = vpop.f32.mrf.mxu0
  %v1978 = vadd.f32 %v1959, %v1977
  %1979 = vmatmul.bf16.gmra.mxu0 %v355
  %v1980 = vpop.f32.mrf.mxu0
  %v1981 = vadd.f32 %v1962, %v1980
  %v1982 = vpop.f32.mrf.mxu0
  %v1983 = vadd.f32 %v1964, %v1982
  %1984 = vdwg.mxu0
  %1985 = vmatpush.bf16.msra.mxu0 %v1541
  %1986 = vmatpush.bf16.msra.mxu0 %v1529
  %1987 = vmatpush.bf16.msra.mxu0 %v1517
  %1988 = vmatpush.bf16.msra.mxu0 %v1505
  %1989 = vmatpush.bf16.msra.mxu0 %v1493
  %1990 = vmatpush.bf16.msra.mxu0 %v1481
  %1991 = vmatpush.bf16.msra.mxu0 %v1469
  %1992 = vmatpush.bf16.msra.mxu0 %v1457
  %1993 = vmatmul.bf16.gmra.mxu0 %v352
  %v1994 = vpop.f32.mrf.mxu0
  %v1995 = vadd.f32 %v1976, %v1994
  %v1996 = vpop.f32.mrf.mxu0
  %v1997 = vadd.f32 %v1978, %v1996
  %1998 = vmatmul.bf16.gmra.mxu0 %v356
  %v1999 = vpop.f32.mrf.mxu0
  %v2000 = vadd.f32 %v1981, %v1999
  %v2001 = vpop.f32.mrf.mxu0
  %v2002 = vadd.f32 %v1983, %v2001
  %2003 = vdwg.mxu0
  %2004 = vmatpush.bf16.msra.mxu0 0
  %2005 = vmatpush.bf16.msra.mxu0 0
  %2006 = vmatpush.bf16.msra.mxu0 0
  %2007 = vmatpush.bf16.msra.mxu0 0
  %2008 = vmatpush.bf16.msra.mxu0 0
  %2009 = vmatpush.bf16.msra.mxu0 0
  %2010 = vmatpush.bf16.msra.mxu0 0
  %2011 = vmatpush.bf16.msra.mxu0 %v1553
  %2012 = vmatmul.bf16.gmra.mxu0 %v1866
  %v2013 = vpop.f32.mrf.mxu0
  %v2014 = vadd.f32 %v1995, %v2013
  %v2015 = vpop.f32.mrf.mxu0
  %v2016 = vadd.f32 %v1997, %v2015
  %2017 = vmatmul.bf16.gmra.mxu0 %v1869
  %v2018 = vpop.f32.mrf.mxu0
  %v2019 = vadd.f32 %v2000, %v2018
  %v2020 = vpop.f32.mrf.mxu0
  %v2021 = vadd.f32 %v2002, %v2020
  %2022 = vdwg.mxu0
  %2023 = vmatpush.bf16.msra.mxu0 %v1350
  %2024 = vmatpush.bf16.msra.mxu0 %v1338
  %2025 = vmatpush.bf16.msra.mxu0 %v1326
  %2026 = vmatpush.bf16.msra.mxu0 %v1314
  %2027 = vmatpush.bf16.msra.mxu0 %v1302
  %2028 = vmatpush.bf16.msra.mxu0 %v1290
  %2029 = vmatpush.bf16.msra.mxu0 %v1278
  %2030 = vmatpush.bf16.msra.mxu0 %v1266
  %2031 = vmatmul.bf16.gmra.mxu0 %v350
  %v2032 = vpop.f32.mrf.mxu0
  %v2033 = vadd.f32 0.0, %v2032
  %v2034 = vpop.f32.mrf.mxu0
  %v2035 = vadd.f32 0.0, %v2034
  %2036 = vmatmul.bf16.gmra.mxu0 %v354
  %v2037 = vpop.f32.mrf.mxu0
  %v2038 = vadd.f32 0.0, %v2037
  %v2039 = vpop.f32.mrf.mxu0
  %v2040 = vadd.f32 0.0, %v2039
  %2041 = vdwg.mxu0
  %2042 = vmatpush.bf16.msra.mxu0 %v1446
  %2043 = vmatpush.bf16.msra.mxu0 %v1434
  %2044 = vmatpush.bf16.msra.mxu0 %v1422
  %2045 = vmatpush.bf16.msra.mxu0 %v1410
  %2046 = vmatpush.bf16.msra.mxu0 %v1398
  %2047 = vmatpush.bf16.msra.mxu0 %v1386
  %2048 = vmatpush.bf16.msra.mxu0 %v1374
  %2049 = vmatpush.bf16.msra.mxu0 %v1362
  %2050 = vmatmul.bf16.gmra.mxu0 %v351
  %v2051 = vpop.f32.mrf.mxu0
  %v2052 = vadd.f32 %v2033, %v2051
  %v2053 = vpop.f32.mrf.mxu0
  %v2054 = vadd.f32 %v2035, %v2053
  %2055 = vmatmul.bf16.gmra.mxu0 %v355
  %v2056 = vpop.f32.mrf.mxu0
  %v2057 = vadd.f32 %v2038, %v2056
  %v2058 = vpop.f32.mrf.mxu0
  %v2059 = vadd.f32 %v2040, %v2058
  %2060 = vdwg.mxu0
  %2061 = vmatpush.bf16.msra.mxu0 %v1542
  %2062 = vmatpush.bf16.msra.mxu0 %v1530
  %2063 = vmatpush.bf16.msra.mxu0 %v1518
  %2064 = vmatpush.bf16.msra.mxu0 %v1506
  %2065 = vmatpush.bf16.msra.mxu0 %v1494
  %2066 = vmatpush.bf16.msra.mxu0 %v1482
  %2067 = vmatpush.bf16.msra.mxu0 %v1470
  %2068 = vmatpush.bf16.msra.mxu0 %v1458
  %2069 = vmatmul.bf16.gmra.mxu0 %v352
  %v2070 = vpop.f32.mrf.mxu0
  %v2071 = vadd.f32 %v2052, %v2070
  %v2072 = vpop.f32.mrf.mxu0
  %v2073 = vadd.f32 %v2054, %v2072
  %2074 = vmatmul.bf16.gmra.mxu0 %v356
  %v2075 = vpop.f32.mrf.mxu0
  %v2076 = vadd.f32 %v2057, %v2075
  %v2077 = vpop.f32.mrf.mxu0
  %v2078 = vadd.f32 %v2059, %v2077
  %2079 = vdwg.mxu0
  %2080 = vmatpush.bf16.msra.mxu0 0
  %2081 = vmatpush.bf16.msra.mxu0 0
  %2082 = vmatpush.bf16.msra.mxu0 0
  %2083 = vmatpush.bf16.msra.mxu0 0
  %2084 = vmatpush.bf16.msra.mxu0 0
  %2085 = vmatpush.bf16.msra.mxu0 0
  %2086 = vmatpush.bf16.msra.mxu0 0
  %2087 = vmatpush.bf16.msra.mxu0 %v1554
  %2088 = vmatmul.bf16.gmra.mxu0 %v1866
  %v2089 = vpop.f32.mrf.mxu0
  %v2090 = vadd.f32 %v2071, %v2089
  %v2091 = vpop.f32.mrf.mxu0
  %v2092 = vadd.f32 %v2073, %v2091
  %2093 = vmatmul.bf16.gmra.mxu0 %v1869
  %v2094 = vpop.f32.mrf.mxu0
  %v2095 = vadd.f32 %v2076, %v2094
  %v2096 = vpop.f32.mrf.mxu0
  %v2097 = vadd.f32 %v2078, %v2096
  %2098 = vdwg.mxu0
  %2099 = vmatpush.bf16.msra.mxu0 %v1351
  %2100 = vmatpush.bf16.msra.mxu0 %v1339
  %2101 = vmatpush.bf16.msra.mxu0 %v1327
  %2102 = vmatpush.bf16.msra.mxu0 %v1315
  %2103 = vmatpush.bf16.msra.mxu0 %v1303
  %2104 = vmatpush.bf16.msra.mxu0 %v1291
  %2105 = vmatpush.bf16.msra.mxu0 %v1279
  %2106 = vmatpush.bf16.msra.mxu0 %v1267
  %2107 = vmatmul.bf16.gmra.mxu0 %v350
  %v2108 = vpop.f32.mrf.mxu0
  %v2109 = vadd.f32 0.0, %v2108
  %v2110 = vpop.f32.mrf.mxu0
  %v2111 = vadd.f32 0.0, %v2110
  %2112 = vmatmul.bf16.gmra.mxu0 %v354
  %v2113 = vpop.f32.mrf.mxu0
  %v2114 = vadd.f32 0.0, %v2113
  %v2115 = vpop.f32.mrf.mxu0
  %v2116 = vadd.f32 0.0, %v2115
  %2117 = vdwg.mxu0
  %2118 = vmatpush.bf16.msra.mxu0 %v1447
  %2119 = vmatpush.bf16.msra.mxu0 %v1435
  %2120 = vmatpush.bf16.msra.mxu0 %v1423
  %2121 = vmatpush.bf16.msra.mxu0 %v1411
  %2122 = vmatpush.bf16.msra.mxu0 %v1399
  %2123 = vmatpush.bf16.msra.mxu0 %v1387
  %2124 = vmatpush.bf16.msra.mxu0 %v1375
  %2125 = vmatpush.bf16.msra.mxu0 %v1363
  %2126 = vmatmul.bf16.gmra.mxu0 %v351
  %v2127 = vpop.f32.mrf.mxu0
  %v2128 = vadd.f32 %v2109, %v2127
  %v2129 = vpop.f32.mrf.mxu0
  %v2130 = vadd.f32 %v2111, %v2129
  %2131 = vmatmul.bf16.gmra.mxu0 %v355
  %v2132 = vpop.f32.mrf.mxu0
  %v2133 = vadd.f32 %v2114, %v2132
  %v2134 = vpop.f32.mrf.mxu0
  %v2135 = vadd.f32 %v2116, %v2134
  %2136 = vdwg.mxu0
  %2137 = vmatpush.bf16.msra.mxu0 %v1543
  %2138 = vmatpush.bf16.msra.mxu0 %v1531
  %2139 = vmatpush.bf16.msra.mxu0 %v1519
  %2140 = vmatpush.bf16.msra.mxu0 %v1507
  %2141 = vmatpush.bf16.msra.mxu0 %v1495
  %2142 = vmatpush.bf16.msra.mxu0 %v1483
  %2143 = vmatpush.bf16.msra.mxu0 %v1471
  %2144 = vmatpush.bf16.msra.mxu0 %v1459
  %2145 = vmatmul.bf16.gmra.mxu0 %v352
  %v2146 = vpop.f32.mrf.mxu0
  %v2147 = vadd.f32 %v2128, %v2146
  %v2148 = vpop.f32.mrf.mxu0
  %v2149 = vadd.f32 %v2130, %v2148
  %2150 = vmatmul.bf16.gmra.mxu0 %v356
  %v2151 = vpop.f32.mrf.mxu0
  %v2152 = vadd.f32 %v2133, %v2151
  %v2153 = vpop.f32.mrf.mxu0
  %v2154 = vadd.f32 %v2135, %v2153
  %2155 = vdwg.mxu0
  %2156 = vmatpush.bf16.msra.mxu0 0
  %2157 = vmatpush.bf16.msra.mxu0 0
  %2158 = vmatpush.bf16.msra.mxu0 0
  %2159 = vmatpush.bf16.msra.mxu0 0
  %2160 = vmatpush.bf16.msra.mxu0 0
  %2161 = vmatpush.bf16.msra.mxu0 0
  %2162 = vmatpush.bf16.msra.mxu0 0
  %2163 = vmatpush.bf16.msra.mxu0 %v1555
  %2164 = vmatmul.bf16.gmra.mxu0 %v1866
  %v2165 = vpop.f32.mrf.mxu0
  %v2166 = vadd.f32 %v2147, %v2165
  %v2167 = vpop.f32.mrf.mxu0
  %v2168 = vadd.f32 %v2149, %v2167
  %2169 = vmatmul.bf16.gmra.mxu0 %v1869
  %v2170 = vpop.f32.mrf.mxu0
  %v2171 = vadd.f32 %v2152, %v2170
  %v2172 = vpop.f32.mrf.mxu0
  %v2173 = vadd.f32 %v2154, %v2172
  %2174 = vdwg.mxu0
  %2175 = vmatpush.bf16.msra.mxu0 %v1352
  %2176 = vmatpush.bf16.msra.mxu0 %v1340
  %2177 = vmatpush.bf16.msra.mxu0 %v1328
  %2178 = vmatpush.bf16.msra.mxu0 %v1316
  %2179 = vmatpush.bf16.msra.mxu0 %v1304
  %2180 = vmatpush.bf16.msra.mxu0 %v1292
  %2181 = vmatpush.bf16.msra.mxu0 %v1280
  %2182 = vmatpush.bf16.msra.mxu0 %v1268
  %2183 = vmatmul.bf16.gmra.mxu0 %v350
  %v2184 = vpop.f32.mrf.mxu0
  %v2185 = vadd.f32 0.0, %v2184
  %v2186 = vpop.f32.mrf.mxu0
  %v2187 = vadd.f32 0.0, %v2186
  %2188 = vmatmul.bf16.gmra.mxu0 %v354
  %v2189 = vpop.f32.mrf.mxu0
  %v2190 = vadd.f32 0.0, %v2189
  %v2191 = vpop.f32.mrf.mxu0
  %v2192 = vadd.f32 0.0, %v2191
  %2193 = vdwg.mxu0
  %2194 = vmatpush.bf16.msra.mxu0 %v1448
  %2195 = vmatpush.bf16.msra.mxu0 %v1436
  %2196 = vmatpush.bf16.msra.mxu0 %v1424
  %2197 = vmatpush.bf16.msra.mxu0 %v1412
  %2198 = vmatpush.bf16.msra.mxu0 %v1400
  %2199 = vmatpush.bf16.msra.mxu0 %v1388
  %2200 = vmatpush.bf16.msra.mxu0 %v1376
  %2201 = vmatpush.bf16.msra.mxu0 %v1364
  %2202 = vmatmul.bf16.gmra.mxu0 %v351
  %v2203 = vpop.f32.mrf.mxu0
  %v2204 = vadd.f32 %v2185, %v2203
  %v2205 = vpop.f32.mrf.mxu0
  %v2206 = vadd.f32 %v2187, %v2205
  %2207 = vmatmul.bf16.gmra.mxu0 %v355
  %v2208 = vpop.f32.mrf.mxu0
  %v2209 = vadd.f32 %v2190, %v2208
  %v2210 = vpop.f32.mrf.mxu0
  %v2211 = vadd.f32 %v2192, %v2210
  %2212 = vdwg.mxu0
  %2213 = vmatpush.bf16.msra.mxu0 %v1544
  %2214 = vmatpush.bf16.msra.mxu0 %v1532
  %2215 = vmatpush.bf16.msra.mxu0 %v1520
  %2216 = vmatpush.bf16.msra.mxu0 %v1508
  %2217 = vmatpush.bf16.msra.mxu0 %v1496
  %2218 = vmatpush.bf16.msra.mxu0 %v1484
  %2219 = vmatpush.bf16.msra.mxu0 %v1472
  %2220 = vmatpush.bf16.msra.mxu0 %v1460
  %2221 = vmatmul.bf16.gmra.mxu0 %v352
  %v2222 = vpop.f32.mrf.mxu0
  %v2223 = vadd.f32 %v2204, %v2222
  %v2224 = vpop.f32.mrf.mxu0
  %v2225 = vadd.f32 %v2206, %v2224
  %2226 = vmatmul.bf16.gmra.mxu0 %v356
  %v2227 = vpop.f32.mrf.mxu0
  %v2228 = vadd.f32 %v2209, %v2227
  %v2229 = vpop.f32.mrf.mxu0
  %v2230 = vadd.f32 %v2211, %v2229
  %2231 = vdwg.mxu0
  %2232 = vmatpush.bf16.msra.mxu0 0
  %2233 = vmatpush.bf16.msra.mxu0 0
  %2234 = vmatpush.bf16.msra.mxu0 0
  %2235 = vmatpush.bf16.msra.mxu0 0
  %2236 = vmatpush.bf16.msra.mxu0 0
  %2237 = vmatpush.bf16.msra.mxu0 0
  %2238 = vmatpush.bf16.msra.mxu0 0
  %2239 = vmatpush.bf16.msra.mxu0 %v1556
  %2240 = vmatmul.bf16.gmra.mxu0 %v1866
  %v2241 = vpop.f32.mrf.mxu0
  %v2242 = vadd.f32 %v2223, %v2241
  %v2243 = vpop.f32.mrf.mxu0
  %v2244 = vadd.f32 %v2225, %v2243
  %2245 = vmatmul.bf16.gmra.mxu0 %v1869
  %v2246 = vpop.f32.mrf.mxu0
  %v2247 = vadd.f32 %v2228, %v2246
  %v2248 = vpop.f32.mrf.mxu0
  %v2249 = vadd.f32 %v2230, %v2248
  %2250 = vdwg.mxu0
  %2251 = vmatpush.bf16.msra.mxu0 %v1353
  %2252 = vmatpush.bf16.msra.mxu0 %v1341
  %2253 = vmatpush.bf16.msra.mxu0 %v1329
  %2254 = vmatpush.bf16.msra.mxu0 %v1317
  %2255 = vmatpush.bf16.msra.mxu0 %v1305
  %2256 = vmatpush.bf16.msra.mxu0 %v1293
  %2257 = vmatpush.bf16.msra.mxu0 %v1281
  %2258 = vmatpush.bf16.msra.mxu0 %v1269
  %2259 = vmatmul.bf16.gmra.mxu0 %v350
  %v2260 = vpop.f32.mrf.mxu0
  %v2261 = vadd.f32 0.0, %v2260
  %v2262 = vpop.f32.mrf.mxu0
  %v2263 = vadd.f32 0.0, %v2262
  %2264 = vmatmul.bf16.gmra.mxu0 %v354
  %v2265 = vpop.f32.mrf.mxu0
  %v2266 = vadd.f32 0.0, %v2265
  %v2267 = vpop.f32.mrf.mxu0
  %v2268 = vadd.f32 0.0, %v2267
  %2269 = vdwg.mxu0
  %2270 = vmatpush.bf16.msra.mxu0 %v1449
  %2271 = vmatpush.bf16.msra.mxu0 %v1437
  %2272 = vmatpush.bf16.msra.mxu0 %v1425
  %2273 = vmatpush.bf16.msra.mxu0 %v1413
  %2274 = vmatpush.bf16.msra.mxu0 %v1401
  %2275 = vmatpush.bf16.msra.mxu0 %v1389
  %2276 = vmatpush.bf16.msra.mxu0 %v1377
  %2277 = vmatpush.bf16.msra.mxu0 %v1365
  %2278 = vmatmul.bf16.gmra.mxu0 %v351
  %v2279 = vpop.f32.mrf.mxu0
  %v2280 = vadd.f32 %v2261, %v2279
  %v2281 = vpop.f32.mrf.mxu0
  %v2282 = vadd.f32 %v2263, %v2281
  %2283 = vmatmul.bf16.gmra.mxu0 %v355
  %v2284 = vpop.f32.mrf.mxu0
  %v2285 = vadd.f32 %v2266, %v2284
  %v2286 = vpop.f32.mrf.mxu0
  %v2287 = vadd.f32 %v2268, %v2286
  %2288 = vdwg.mxu0
  %2289 = vmatpush.bf16.msra.mxu0 %v1545
  %2290 = vmatpush.bf16.msra.mxu0 %v1533
  %2291 = vmatpush.bf16.msra.mxu0 %v1521
  %2292 = vmatpush.bf16.msra.mxu0 %v1509
  %2293 = vmatpush.bf16.msra.mxu0 %v1497
  %2294 = vmatpush.bf16.msra.mxu0 %v1485
  %2295 = vmatpush.bf16.msra.mxu0 %v1473
  %2296 = vmatpush.bf16.msra.mxu0 %v1461
  %2297 = vmatmul.bf16.gmra.mxu0 %v352
  %v2298 = vpop.f32.mrf.mxu0
  %v2299 = vadd.f32 %v2280, %v2298
  %v2300 = vpop.f32.mrf.mxu0
  %v2301 = vadd.f32 %v2282, %v2300
  %2302 = vmatmul.bf16.gmra.mxu0 %v356
  %v2303 = vpop.f32.mrf.mxu0
  %v2304 = vadd.f32 %v2285, %v2303
  %v2305 = vpop.f32.mrf.mxu0
  %v2306 = vadd.f32 %v2287, %v2305
  %2307 = vdwg.mxu0
  %2308 = vmatpush.bf16.msra.mxu0 0
  %2309 = vmatpush.bf16.msra.mxu0 0
  %2310 = vmatpush.bf16.msra.mxu0 0
  %2311 = vmatpush.bf16.msra.mxu0 0
  %2312 = vmatpush.bf16.msra.mxu0 0
  %2313 = vmatpush.bf16.msra.mxu0 0
  %2314 = vmatpush.bf16.msra.mxu0 0
  %2315 = vmatpush.bf16.msra.mxu0 %v1557
  %2316 = vmatmul.bf16.gmra.mxu0 %v1866
  %v2317 = vpop.f32.mrf.mxu0
  %v2318 = vadd.f32 %v2299, %v2317
  %v2319 = vpop.f32.mrf.mxu0
  %v2320 = vadd.f32 %v2301, %v2319
  %2321 = vmatmul.bf16.gmra.mxu0 %v1869
  %v2322 = vpop.f32.mrf.mxu0
  %v2323 = vadd.f32 %v2304, %v2322
  %v2324 = vpop.f32.mrf.mxu0
  %v2325 = vadd.f32 %v2306, %v2324
  %2326 = vdwg.mxu0
  %2327 = vmatpush.bf16.msra.mxu0 %v1354
  %2328 = vmatpush.bf16.msra.mxu0 %v1342
  %2329 = vmatpush.bf16.msra.mxu0 %v1330
  %2330 = vmatpush.bf16.msra.mxu0 %v1318
  %2331 = vmatpush.bf16.msra.mxu0 %v1306
  %2332 = vmatpush.bf16.msra.mxu0 %v1294
  %2333 = vmatpush.bf16.msra.mxu0 %v1282
  %2334 = vmatpush.bf16.msra.mxu0 %v1270
  %2335 = vmatmul.bf16.gmra.mxu0 %v350
  %v2336 = vpop.f32.mrf.mxu0
  %v2337 = vadd.f32 0.0, %v2336
  %v2338 = vpop.f32.mrf.mxu0
  %v2339 = vadd.f32 0.0, %v2338
  %2340 = vmatmul.bf16.gmra.mxu0 %v354
  %v2341 = vpop.f32.mrf.mxu0
  %v2342 = vadd.f32 0.0, %v2341
  %v2343 = vpop.f32.mrf.mxu0
  %v2344 = vadd.f32 0.0, %v2343
  %2345 = vdwg.mxu0
  %2346 = vmatpush.bf16.msra.mxu0 %v1450
  %2347 = vmatpush.bf16.msra.mxu0 %v1438
  %2348 = vmatpush.bf16.msra.mxu0 %v1426
  %2349 = vmatpush.bf16.msra.mxu0 %v1414
  %2350 = vmatpush.bf16.msra.mxu0 %v1402
  %2351 = vmatpush.bf16.msra.mxu0 %v1390
  %2352 = vmatpush.bf16.msra.mxu0 %v1378
  %2353 = vmatpush.bf16.msra.mxu0 %v1366
  %2354 = vmatmul.bf16.gmra.mxu0 %v351
  %v2355 = vpop.f32.mrf.mxu0
  %v2356 = vadd.f32 %v2337, %v2355
  %v2357 = vpop.f32.mrf.mxu0
  %v2358 = vadd.f32 %v2339, %v2357
  %2359 = vmatmul.bf16.gmra.mxu0 %v355
  %v2360 = vpop.f32.mrf.mxu0
  %v2361 = vadd.f32 %v2342, %v2360
  %v2362 = vpop.f32.mrf.mxu0
  %v2363 = vadd.f32 %v2344, %v2362
  %2364 = vdwg.mxu0
  %2365 = vmatpush.bf16.msra.mxu0 %v1546
  %2366 = vmatpush.bf16.msra.mxu0 %v1534
  %2367 = vmatpush.bf16.msra.mxu0 %v1522
  %2368 = vmatpush.bf16.msra.mxu0 %v1510
  %2369 = vmatpush.bf16.msra.mxu0 %v1498
  %2370 = vmatpush.bf16.msra.mxu0 %v1486
  %2371 = vmatpush.bf16.msra.mxu0 %v1474
  %2372 = vmatpush.bf16.msra.mxu0 %v1462
  %2373 = vmatmul.bf16.gmra.mxu0 %v352
  %v2374 = vpop.f32.mrf.mxu0
  %v2375 = vadd.f32 %v2356, %v2374
  %v2376 = vpop.f32.mrf.mxu0
  %v2377 = vadd.f32 %v2358, %v2376
  %2378 = vmatmul.bf16.gmra.mxu0 %v356
  %v2379 = vpop.f32.mrf.mxu0
  %v2380 = vadd.f32 %v2361, %v2379
  %v2381 = vpop.f32.mrf.mxu0
  %v2382 = vadd.f32 %v2363, %v2381
  %2383 = vdwg.mxu0
  %2384 = vmatpush.bf16.msra.mxu0 0
  %2385 = vmatpush.bf16.msra.mxu0 0
  %2386 = vmatpush.bf16.msra.mxu0 0
  %2387 = vmatpush.bf16.msra.mxu0 0
  %2388 = vmatpush.bf16.msra.mxu0 0
  %2389 = vmatpush.bf16.msra.mxu0 0
  %2390 = vmatpush.bf16.msra.mxu0 0
  %2391 = vmatpush.bf16.msra.mxu0 %v1558
  %2392 = vmatmul.bf16.gmra.mxu0 %v1866
  %v2393 = vpop.f32.mrf.mxu0
  %v2394 = vadd.f32 %v2375, %v2393
  %v2395 = vpop.f32.mrf.mxu0
  %v2396 = vadd.f32 %v2377, %v2395
  %2397 = vmatmul.bf16.gmra.mxu0 %v1869
  %v2398 = vpop.f32.mrf.mxu0
  %v2399 = vadd.f32 %v2380, %v2398
  %v2400 = vpop.f32.mrf.mxu0
  %v2401 = vadd.f32 %v2382, %v2400
  %2402 = vdwg.mxu0
  %2403 = vmatpush.bf16.msra.mxu0 %v1355
  %2404 = vmatpush.bf16.msra.mxu0 %v1343
  %2405 = vmatpush.bf16.msra.mxu0 %v1331
  %2406 = vmatpush.bf16.msra.mxu0 %v1319
  %2407 = vmatpush.bf16.msra.mxu0 %v1307
  %2408 = vmatpush.bf16.msra.mxu0 %v1295
  %2409 = vmatpush.bf16.msra.mxu0 %v1283
  %2410 = vmatpush.bf16.msra.mxu0 %v1271
  %2411 = vmatmul.bf16.gmra.mxu0 %v350
  %v2412 = vpop.f32.mrf.mxu0
  %v2413 = vadd.f32 0.0, %v2412
  %v2414 = vpop.f32.mrf.mxu0
  %v2415 = vadd.f32 0.0, %v2414
  %2416 = vmatmul.bf16.gmra.mxu0 %v354
  %v2417 = vpop.f32.mrf.mxu0
  %v2418 = vadd.f32 0.0, %v2417
  %v2419 = vpop.f32.mrf.mxu0
  %v2420 = vadd.f32 0.0, %v2419
  %2421 = vdwg.mxu0
  %2422 = vmatpush.bf16.msra.mxu0 %v1451
  %2423 = vmatpush.bf16.msra.mxu0 %v1439
  %2424 = vmatpush.bf16.msra.mxu0 %v1427
  %2425 = vmatpush.bf16.msra.mxu0 %v1415
  %2426 = vmatpush.bf16.msra.mxu0 %v1403
  %2427 = vmatpush.bf16.msra.mxu0 %v1391
  %2428 = vmatpush.bf16.msra.mxu0 %v1379
  %2429 = vmatpush.bf16.msra.mxu0 %v1367
  %2430 = vmatmul.bf16.gmra.mxu0 %v351
  %v2431 = vpop.f32.mrf.mxu0
  %v2432 = vadd.f32 %v2413, %v2431
  %v2433 = vpop.f32.mrf.mxu0
  %v2434 = vadd.f32 %v2415, %v2433
  %2435 = vmatmul.bf16.gmra.mxu0 %v355
  %v2436 = vpop.f32.mrf.mxu0
  %v2437 = vadd.f32 %v2418, %v2436
  %v2438 = vpop.f32.mrf.mxu0
  %v2439 = vadd.f32 %v2420, %v2438
  %2440 = vdwg.mxu0
  %2441 = vmatpush.bf16.msra.mxu0 %v1547
  %2442 = vmatpush.bf16.msra.mxu0 %v1535
  %2443 = vmatpush.bf16.msra.mxu0 %v1523
  %2444 = vmatpush.bf16.msra.mxu0 %v1511
  %2445 = vmatpush.bf16.msra.mxu0 %v1499
  %2446 = vmatpush.bf16.msra.mxu0 %v1487
  %2447 = vmatpush.bf16.msra.mxu0 %v1475
  %2448 = vmatpush.bf16.msra.mxu0 %v1463
  %2449 = vmatmul.bf16.gmra.mxu0 %v352
  %v2450 = vpop.f32.mrf.mxu0
  %v2451 = vadd.f32 %v2432, %v2450
  %v2452 = vpop.f32.mrf.mxu0
  %v2453 = vadd.f32 %v2434, %v2452
  %2454 = vmatmul.bf16.gmra.mxu0 %v356
  %v2455 = vpop.f32.mrf.mxu0
  %v2456 = vadd.f32 %v2437, %v2455
  %v2457 = vpop.f32.mrf.mxu0
  %v2458 = vadd.f32 %v2439, %v2457
  %2459 = vdwg.mxu0
  %2460 = vmatpush.bf16.msra.mxu0 0
  %2461 = vmatpush.bf16.msra.mxu0 0
  %2462 = vmatpush.bf16.msra.mxu0 0
  %2463 = vmatpush.bf16.msra.mxu0 0
  %2464 = vmatpush.bf16.msra.mxu0 0
  %2465 = vmatpush.bf16.msra.mxu0 0
  %2466 = vmatpush.bf16.msra.mxu0 0
  %2467 = vmatpush.bf16.msra.mxu0 %v1559
  %2468 = vmatmul.bf16.gmra.mxu0 %v1866
  %v2469 = vpop.f32.mrf.mxu0
  %v2470 = vadd.f32 %v2451, %v2469
  %v2471 = vpop.f32.mrf.mxu0
  %v2472 = vadd.f32 %v2453, %v2471
  %2473 = vmatmul.bf16.gmra.mxu0 %v1869
  %v2474 = vpop.f32.mrf.mxu0
  %v2475 = vadd.f32 %v2456, %v2474
  %v2476 = vpop.f32.mrf.mxu0
  %v2477 = vadd.f32 %v2458, %v2476
  %2478 = vdwg.mxu0
  %2479 = vmatpush.bf16.msra.mxu0 %v1356
  %2480 = vmatpush.bf16.msra.mxu0 %v1344
  %2481 = vmatpush.bf16.msra.mxu0 %v1332
  %2482 = vmatpush.bf16.msra.mxu0 %v1320
  %2483 = vmatpush.bf16.msra.mxu0 %v1308
  %2484 = vmatpush.bf16.msra.mxu0 %v1296
  %2485 = vmatpush.bf16.msra.mxu0 %v1284
  %2486 = vmatpush.bf16.msra.mxu0 %v1272
  %2487 = vmatmul.bf16.gmra.mxu0 %v350
  %v2488 = vpop.f32.mrf.mxu0
  %v2489 = vadd.f32 0.0, %v2488
  %v2490 = vpop.f32.mrf.mxu0
  %v2491 = vadd.f32 0.0, %v2490
  %2492 = vmatmul.bf16.gmra.mxu0 %v354
  %v2493 = vpop.f32.mrf.mxu0
  %v2494 = vadd.f32 0.0, %v2493
  %v2495 = vpop.f32.mrf.mxu0
  %v2496 = vadd.f32 0.0, %v2495
  %2497 = vdwg.mxu0
  %2498 = vmatpush.bf16.msra.mxu0 %v1452
  %2499 = vmatpush.bf16.msra.mxu0 %v1440
  %2500 = vmatpush.bf16.msra.mxu0 %v1428
  %2501 = vmatpush.bf16.msra.mxu0 %v1416
  %2502 = vmatpush.bf16.msra.mxu0 %v1404
  %2503 = vmatpush.bf16.msra.mxu0 %v1392
  %2504 = vmatpush.bf16.msra.mxu0 %v1380
  %2505 = vmatpush.bf16.msra.mxu0 %v1368
  %2506 = vmatmul.bf16.gmra.mxu0 %v351
  %v2507 = vpop.f32.mrf.mxu0
  %v2508 = vadd.f32 %v2489, %v2507
  %v2509 = vpop.f32.mrf.mxu0
  %v2510 = vadd.f32 %v2491, %v2509
  %2511 = vmatmul.bf16.gmra.mxu0 %v355
  %v2512 = vpop.f32.mrf.mxu0
  %v2513 = vadd.f32 %v2494, %v2512
  %v2514 = vpop.f32.mrf.mxu0
  %v2515 = vadd.f32 %v2496, %v2514
  %2516 = vdwg.mxu0
  %2517 = vmatpush.bf16.msra.mxu0 %v1548
  %2518 = vmatpush.bf16.msra.mxu0 %v1536
  %2519 = vmatpush.bf16.msra.mxu0 %v1524
  %2520 = vmatpush.bf16.msra.mxu0 %v1512
  %2521 = vmatpush.bf16.msra.mxu0 %v1500
  %2522 = vmatpush.bf16.msra.mxu0 %v1488
  %2523 = vmatpush.bf16.msra.mxu0 %v1476
  %2524 = vmatpush.bf16.msra.mxu0 %v1464
  %2525 = vmatmul.bf16.gmra.mxu0 %v352
  %v2526 = vpop.f32.mrf.mxu0
  %v2527 = vadd.f32 %v2508, %v2526
  %v2528 = vpop.f32.mrf.mxu0
  %v2529 = vadd.f32 %v2510, %v2528
  %2530 = vmatmul.bf16.gmra.mxu0 %v356
  %v2531 = vpop.f32.mrf.mxu0
  %v2532 = vadd.f32 %v2513, %v2531
  %v2533 = vpop.f32.mrf.mxu0
  %v2534 = vadd.f32 %v2515, %v2533
  %2535 = vdwg.mxu0
  %2536 = vmatpush.bf16.msra.mxu0 0
  %2537 = vmatpush.bf16.msra.mxu0 0
  %2538 = vmatpush.bf16.msra.mxu0 0
  %2539 = vmatpush.bf16.msra.mxu0 0
  %2540 = vmatpush.bf16.msra.mxu0 0
  %2541 = vmatpush.bf16.msra.mxu0 0
  %2542 = vmatpush.bf16.msra.mxu0 0
  %2543 = vmatpush.bf16.msra.mxu0 %v1560
  %2544 = vmatmul.bf16.gmra.mxu0 %v1866
  %v2545 = vpop.f32.mrf.mxu0
  %v2546 = vadd.f32 %v2527, %v2545
  %v2547 = vpop.f32.mrf.mxu0
  %v2548 = vadd.f32 %v2529, %v2547
  %2549 = vmatmul.bf16.gmra.mxu0 %v1869
  %v2550 = vpop.f32.mrf.mxu0
  %v2551 = vadd.f32 %v2532, %v2550
  %v2552 = vpop.f32.mrf.mxu0
  %v2553 = vadd.f32 %v2534, %v2552
  %2554 = vdwg.mxu0
  %2555 = vmatpush.bf16.msra.mxu0 %v1357
  %2556 = vmatpush.bf16.msra.mxu0 %v1345
  %2557 = vmatpush.bf16.msra.mxu0 %v1333
  %2558 = vmatpush.bf16.msra.mxu0 %v1321
  %2559 = vmatpush.bf16.msra.mxu0 %v1309
  %2560 = vmatpush.bf16.msra.mxu0 %v1297
  %2561 = vmatpush.bf16.msra.mxu0 %v1285
  %2562 = vmatpush.bf16.msra.mxu0 %v1273
  %2563 = vmatmul.bf16.gmra.mxu0 %v350
  %v2564 = vpop.f32.mrf.mxu0
  %v2565 = vadd.f32 0.0, %v2564
  %v2566 = vpop.f32.mrf.mxu0
  %v2567 = vadd.f32 0.0, %v2566
  %2568 = vmatmul.bf16.gmra.mxu0 %v354
  %v2569 = vpop.f32.mrf.mxu0
  %v2570 = vadd.f32 0.0, %v2569
  %v2571 = vpop.f32.mrf.mxu0
  %v2572 = vadd.f32 0.0, %v2571
  %2573 = vdwg.mxu0
  %2574 = vmatpush.bf16.msra.mxu0 %v1453
  %2575 = vmatpush.bf16.msra.mxu0 %v1441
  %2576 = vmatpush.bf16.msra.mxu0 %v1429
  %2577 = vmatpush.bf16.msra.mxu0 %v1417
  %2578 = vmatpush.bf16.msra.mxu0 %v1405
  %2579 = vmatpush.bf16.msra.mxu0 %v1393
  %2580 = vmatpush.bf16.msra.mxu0 %v1381
  %2581 = vmatpush.bf16.msra.mxu0 %v1369
  %2582 = vmatmul.bf16.gmra.mxu0 %v351
  %v2583 = vpop.f32.mrf.mxu0
  %v2584 = vadd.f32 %v2565, %v2583
  %v2585 = vpop.f32.mrf.mxu0
  %v2586 = vadd.f32 %v2567, %v2585
  %2587 = vmatmul.bf16.gmra.mxu0 %v355
  %v2588 = vpop.f32.mrf.mxu0
  %v2589 = vadd.f32 %v2570, %v2588
  %v2590 = vpop.f32.mrf.mxu0
  %v2591 = vadd.f32 %v2572, %v2590
  %2592 = vdwg.mxu0
  %2593 = vmatpush.bf16.msra.mxu0 %v1549
  %2594 = vmatpush.bf16.msra.mxu0 %v1537
  %2595 = vmatpush.bf16.msra.mxu0 %v1525
  %2596 = vmatpush.bf16.msra.mxu0 %v1513
  %2597 = vmatpush.bf16.msra.mxu0 %v1501
  %2598 = vmatpush.bf16.msra.mxu0 %v1489
  %2599 = vmatpush.bf16.msra.mxu0 %v1477
  %2600 = vmatpush.bf16.msra.mxu0 %v1465
  %2601 = vmatmul.bf16.gmra.mxu0 %v352
  %v2602 = vpop.f32.mrf.mxu0
  %v2603 = vadd.f32 %v2584, %v2602
  %v2604 = vpop.f32.mrf.mxu0
  %v2605 = vadd.f32 %v2586, %v2604
  %2606 = vmatmul.bf16.gmra.mxu0 %v356
  %v2607 = vpop.f32.mrf.mxu0
  %v2608 = vadd.f32 %v2589, %v2607
  %v2609 = vpop.f32.mrf.mxu0
  %v2610 = vadd.f32 %v2591, %v2609
  %2611 = vdwg.mxu0
  %2612 = vmatpush.bf16.msra.mxu0 0
  %2613 = vmatpush.bf16.msra.mxu0 0
  %2614 = vmatpush.bf16.msra.mxu0 0
  %2615 = vmatpush.bf16.msra.mxu0 0
  %2616 = vmatpush.bf16.msra.mxu0 0
  %2617 = vmatpush.bf16.msra.mxu0 0
  %2618 = vmatpush.bf16.msra.mxu0 0
  %2619 = vmatpush.bf16.msra.mxu0 %v1561
  %2620 = vmatmul.bf16.gmra.mxu0 %v1866
  %v2621 = vpop.f32.mrf.mxu0
  %v2622 = vadd.f32 %v2603, %v2621
  %v2623 = vpop.f32.mrf.mxu0
  %v2624 = vadd.f32 %v2605, %v2623
  %2625 = vmatmul.bf16.gmra.mxu0 %v1869
  %v2626 = vpop.f32.mrf.mxu0
  %v2627 = vadd.f32 %v2608, %v2626
  %v2628 = vpop.f32.mrf.mxu0
  %v2629 = vadd.f32 %v2610, %v2628
  %2630 = vdwg.mxu0
  %2631 = vmatpush.bf16.msra.mxu0 %v1358
  %2632 = vmatpush.bf16.msra.mxu0 %v1346
  %2633 = vmatpush.bf16.msra.mxu0 %v1334
  %2634 = vmatpush.bf16.msra.mxu0 %v1322
  %2635 = vmatpush.bf16.msra.mxu0 %v1310
  %2636 = vmatpush.bf16.msra.mxu0 %v1298
  %2637 = vmatpush.bf16.msra.mxu0 %v1286
  %2638 = vmatpush.bf16.msra.mxu0 %v1274
  %2639 = vmatmul.bf16.gmra.mxu0 %v350
  %v2640 = vpop.f32.mrf.mxu0
  %v2641 = vadd.f32 0.0, %v2640
  %v2642 = vpop.f32.mrf.mxu0
  %v2643 = vadd.f32 0.0, %v2642
  %2644 = vmatmul.bf16.gmra.mxu0 %v354
  %v2645 = vpop.f32.mrf.mxu0
  %v2646 = vadd.f32 0.0, %v2645
  %v2647 = vpop.f32.mrf.mxu0
  %v2648 = vadd.f32 0.0, %v2647
  %2649 = vdwg.mxu0
  %2650 = vmatpush.bf16.msra.mxu0 %v1454
  %2651 = vmatpush.bf16.msra.mxu0 %v1442
  %2652 = vmatpush.bf16.msra.mxu0 %v1430
  %2653 = vmatpush.bf16.msra.mxu0 %v1418
  %2654 = vmatpush.bf16.msra.mxu0 %v1406
  %2655 = vmatpush.bf16.msra.mxu0 %v1394
  %2656 = vmatpush.bf16.msra.mxu0 %v1382
  %2657 = vmatpush.bf16.msra.mxu0 %v1370
  %2658 = vmatmul.bf16.gmra.mxu0 %v351
  %v2659 = vpop.f32.mrf.mxu0
  %v2660 = vadd.f32 %v2641, %v2659
  %v2661 = vpop.f32.mrf.mxu0
  %v2662 = vadd.f32 %v2643, %v2661
  %2663 = vmatmul.bf16.gmra.mxu0 %v355
  %v2664 = vpop.f32.mrf.mxu0
  %v2665 = vadd.f32 %v2646, %v2664
  %v2666 = vpop.f32.mrf.mxu0
  %v2667 = vadd.f32 %v2648, %v2666
  %2668 = vdwg.mxu0
  %2669 = vmatpush.bf16.msra.mxu0 %v1550
  %2670 = vmatpush.bf16.msra.mxu0 %v1538
  %2671 = vmatpush.bf16.msra.mxu0 %v1526
  %2672 = vmatpush.bf16.msra.mxu0 %v1514
  %2673 = vmatpush.bf16.msra.mxu0 %v1502
  %2674 = vmatpush.bf16.msra.mxu0 %v1490
  %2675 = vmatpush.bf16.msra.mxu0 %v1478
  %2676 = vmatpush.bf16.msra.mxu0 %v1466
  %2677 = vmatmul.bf16.gmra.mxu0 %v352
  %v2678 = vpop.f32.mrf.mxu0
  %v2679 = vadd.f32 %v2660, %v2678
  %v2680 = vpop.f32.mrf.mxu0
  %v2681 = vadd.f32 %v2662, %v2680
  %2682 = vmatmul.bf16.gmra.mxu0 %v356
  %v2683 = vpop.f32.mrf.mxu0
  %v2684 = vadd.f32 %v2665, %v2683
  %v2685 = vpop.f32.mrf.mxu0
  %v2686 = vadd.f32 %v2667, %v2685
  %2687 = vdwg.mxu0
  %2688 = vmatpush.bf16.msra.mxu0 0
  %2689 = vmatpush.bf16.msra.mxu0 0
  %2690 = vmatpush.bf16.msra.mxu0 0
  %2691 = vmatpush.bf16.msra.mxu0 0
  %2692 = vmatpush.bf16.msra.mxu0 0
  %2693 = vmatpush.bf16.msra.mxu0 0
  %2694 = vmatpush.bf16.msra.mxu0 0
  %2695 = vmatpush.bf16.msra.mxu0 %v1562
  %2696 = vmatmul.bf16.gmra.mxu0 %v1866
  %v2697 = vpop.f32.mrf.mxu0
  %v2698 = vadd.f32 %v2679, %v2697
  %v2699 = vpop.f32.mrf.mxu0
  %v2700 = vadd.f32 %v2681, %v2699
  %2701 = vmatmul.bf16.gmra.mxu0 %v1869
  %v2702 = vpop.f32.mrf.mxu0
  %v2703 = vadd.f32 %v2684, %v2702
  %v2704 = vpop.f32.mrf.mxu0
  %v2705 = vadd.f32 %v2686, %v2704
  %2706 = vdwg.mxu0
  %2707 = vmatpush.bf16.msra.mxu0 %v1359
  %2708 = vmatpush.bf16.msra.mxu0 %v1347
  %2709 = vmatpush.bf16.msra.mxu0 %v1335
  %2710 = vmatpush.bf16.msra.mxu0 %v1323
  %2711 = vmatpush.bf16.msra.mxu0 %v1311
  %2712 = vmatpush.bf16.msra.mxu0 %v1299
  %2713 = vmatpush.bf16.msra.mxu0 %v1287
  %2714 = vmatpush.bf16.msra.mxu0 %v1275
  %2715 = vmatmul.bf16.gmra.mxu0 %v350
  %v2716 = vpop.f32.mrf.mxu0
  %v2717 = vadd.f32 0.0, %v2716
  %v2718 = vpop.f32.mrf.mxu0
  %v2719 = vadd.f32 0.0, %v2718
  %2720 = vmatmul.bf16.gmra.mxu0 %v354
  %v2721 = vpop.f32.mrf.mxu0
  %v2722 = vadd.f32 0.0, %v2721
  %v2723 = vpop.f32.mrf.mxu0
  %v2724 = vadd.f32 0.0, %v2723
  %2725 = vdwg.mxu0
  %2726 = vmatpush.bf16.msra.mxu0 %v1455
  %2727 = vmatpush.bf16.msra.mxu0 %v1443
  %2728 = vmatpush.bf16.msra.mxu0 %v1431
  %2729 = vmatpush.bf16.msra.mxu0 %v1419
  %2730 = vmatpush.bf16.msra.mxu0 %v1407
  %2731 = vmatpush.bf16.msra.mxu0 %v1395
  %2732 = vmatpush.bf16.msra.mxu0 %v1383
  %2733 = vmatpush.bf16.msra.mxu0 %v1371
  %2734 = vmatmul.bf16.gmra.mxu0 %v351
  %v2735 = vpop.f32.mrf.mxu0
  %v2736 = vadd.f32 %v2717, %v2735
  %v2737 = vpop.f32.mrf.mxu0
  %v2738 = vadd.f32 %v2719, %v2737
  %2739 = vmatmul.bf16.gmra.mxu0 %v355
  %v2740 = vpop.f32.mrf.mxu0
  %v2741 = vadd.f32 %v2722, %v2740
  %v2742 = vpop.f32.mrf.mxu0
  %v2743 = vadd.f32 %v2724, %v2742
  %2744 = vdwg.mxu0
  %2745 = vmatpush.bf16.msra.mxu0 %v1551
  %2746 = vmatpush.bf16.msra.mxu0 %v1539
  %2747 = vmatpush.bf16.msra.mxu0 %v1527
  %2748 = vmatpush.bf16.msra.mxu0 %v1515
  %2749 = vmatpush.bf16.msra.mxu0 %v1503
  %2750 = vmatpush.bf16.msra.mxu0 %v1491
  %2751 = vmatpush.bf16.msra.mxu0 %v1479
  %2752 = vmatpush.bf16.msra.mxu0 %v1467
  %2753 = vmatmul.bf16.gmra.mxu0 %v352
  %v2754 = vpop.f32.mrf.mxu0
  %v2755 = vadd.f32 %v2736, %v2754
  %v2756 = vpop.f32.mrf.mxu0
  %v2757 = vadd.f32 %v2738, %v2756
  %2758 = vmatmul.bf16.gmra.mxu0 %v356
  %v2759 = vpop.f32.mrf.mxu0
  %v2760 = vadd.f32 %v2741, %v2759
  %v2761 = vpop.f32.mrf.mxu0
  %v2762 = vadd.f32 %v2743, %v2761
  %2763 = vdwg.mxu0
  %2764 = vmatpush.bf16.msra.mxu0 0
  %2765 = vmatpush.bf16.msra.mxu0 0
  %2766 = vmatpush.bf16.msra.mxu0 0
  %2767 = vmatpush.bf16.msra.mxu0 0
  %2768 = vmatpush.bf16.msra.mxu0 0
  %2769 = vmatpush.bf16.msra.mxu0 0
  %2770 = vmatpush.bf16.msra.mxu0 0
  %2771 = vmatpush.bf16.msra.mxu0 %v1563
  %2772 = vmatmul.bf16.gmra.mxu0 %v1866
  %v2773 = vpop.f32.mrf.mxu0
  %v2774 = vadd.f32 %v2755, %v2773
  %v2775 = vpop.f32.mrf.mxu0
  %v2776 = vadd.f32 %v2757, %v2775
  %2777 = vmatmul.bf16.gmra.mxu0 %v1869
  %v2778 = vpop.f32.mrf.mxu0
  %v2779 = vadd.f32 %v2760, %v2778
  %v2780 = vpop.f32.mrf.mxu0
  %v2781 = vadd.f32 %v2762, %v2780
  %2782 = vdwg.mxu0
  %v2783 = vld [vmem:[%s2] sm:$0xff]
  %v2784 = vld [vmem:[%s2 + $0x8] sm:$0xff]
  %v2785 = vld [vmem:[%s2 + $0x10] sm:$0xff]
  %v2786 = vld [vmem:[%s2 + $0x18] sm:$0xff]
  %2788 = vset.pattern.permute.xlu0 0
  %2789 = vperm.xlu0 %2788, %v2783
  %v2790 = vpop.permute.xlu0 %2789
  %2793 = vset.pattern.permute.xlu0 0
  %2794 = vperm.xlu0 %2793, %v2784
  %v2795 = vpop.permute.xlu0 %2794
  %2798 = vset.pattern.permute.xlu0 0
  %2799 = vperm.xlu0 %2798, %v2785
  %v2800 = vpop.permute.xlu0 %2799
  %2803 = vset.pattern.permute.xlu0 0
  %2804 = vperm.xlu0 %2803, %v2786
  %v2805 = vpop.permute.xlu0 %2804
  %v2807 = vmul.f32 %v1938, %v2790
  %v2808 = vmul.f32 %v2014, %v2790
  %v2809 = vmul.f32 %v2090, %v2790
  %v2810 = vmul.f32 %v2166, %v2790
  %v2811 = vmul.f32 %v2242, %v2790
  %v2812 = vmul.f32 %v2318, %v2790
  %v2813 = vmul.f32 %v2394, %v2790
  %v2814 = vmul.f32 %v2470, %v2790
  %v2815 = vmul.f32 %v2546, %v2790
  %v2816 = vmul.f32 %v2622, %v2790
  %v2817 = vmul.f32 %v2698, %v2790
  %v2818 = vmul.f32 %v2774, %v2790
  %v2819 = vmul.f32 %v1940, %v2795
  %v2820 = vmul.f32 %v2016, %v2795
  %v2821 = vmul.f32 %v2092, %v2795
  %v2822 = vmul.f32 %v2168, %v2795
  %v2823 = vmul.f32 %v2244, %v2795
  %v2824 = vmul.f32 %v2320, %v2795
  %v2825 = vmul.f32 %v2396, %v2795
  %v2826 = vmul.f32 %v2472, %v2795
  %v2827 = vmul.f32 %v2548, %v2795
  %v2828 = vmul.f32 %v2624, %v2795
  %v2829 = vmul.f32 %v2700, %v2795
  %v2830 = vmul.f32 %v2776, %v2795
  %v2831 = vmul.f32 %v1943, %v2800
  %v2832 = vmul.f32 %v2019, %v2800
  %v2833 = vmul.f32 %v2095, %v2800
  %v2834 = vmul.f32 %v2171, %v2800
  %v2835 = vmul.f32 %v2247, %v2800
  %v2836 = vmul.f32 %v2323, %v2800
  %v2837 = vmul.f32 %v2399, %v2800
  %v2838 = vmul.f32 %v2475, %v2800
  %v2839 = vmul.f32 %v2551, %v2800
  %v2840 = vmul.f32 %v2627, %v2800
  %v2841 = vmul.f32 %v2703, %v2800
  %v2842 = vmul.f32 %v2779, %v2800
  %v2843 = vmul.f32 %v1945, %v2805
  %v2844 = vmul.f32 %v2021, %v2805
  %v2845 = vmul.f32 %v2097, %v2805
  %v2846 = vmul.f32 %v2173, %v2805
  %v2847 = vmul.f32 %v2249, %v2805
  %v2848 = vmul.f32 %v2325, %v2805
  %v2849 = vmul.f32 %v2401, %v2805
  %v2850 = vmul.f32 %v2477, %v2805
  %v2851 = vmul.f32 %v2553, %v2805
  %v2852 = vmul.f32 %v2629, %v2805
  %v2853 = vmul.f32 %v2705, %v2805
  %v2854 = vmul.f32 %v2781, %v2805
  %v2855 = vld [vmem:[%s3] sm:$0xff]
  %v2856 = vld [vmem:[%s3 + $0x8] sm:$0xff]
  %v2857 = vld [vmem:[%s3 + $0x10] sm:$0xff]
  %v2858 = vld [vmem:[%s3 + $0x18] sm:$0xff]
  %2860 = vset.pattern.permute.xlu0 0
  %2861 = vperm.xlu0 %2860, %v2855
  %v2862 = vpop.permute.xlu0 %2861
  %2865 = vset.pattern.permute.xlu0 0
  %2866 = vperm.xlu0 %2865, %v2856
  %v2867 = vpop.permute.xlu0 %2866
  %2870 = vset.pattern.permute.xlu0 0
  %2871 = vperm.xlu0 %2870, %v2857
  %v2872 = vpop.permute.xlu0 %2871
  %2875 = vset.pattern.permute.xlu0 0
  %2876 = vperm.xlu0 %2875, %v2858
  %v2877 = vpop.permute.xlu0 %2876
  %v2879 = vadd.f32 %v2807, %v2862
  %v2880 = vadd.f32 %v2808, %v2862
  %v2881 = vadd.f32 %v2809, %v2862
  %v2882 = vadd.f32 %v2810, %v2862
  %v2883 = vadd.f32 %v2811, %v2862
  %v2884 = vadd.f32 %v2812, %v2862
  %v2885 = vadd.f32 %v2813, %v2862
  %v2886 = vadd.f32 %v2814, %v2862
  %v2887 = vadd.f32 %v2815, %v2862
  %v2888 = vadd.f32 %v2816, %v2862
  %v2889 = vadd.f32 %v2817, %v2862
  %v2890 = vadd.f32 %v2818, %v2862
  %v2891 = vadd.f32 %v2819, %v2867
  %v2892 = vadd.f32 %v2820, %v2867
  %v2893 = vadd.f32 %v2821, %v2867
  %v2894 = vadd.f32 %v2822, %v2867
  %v2895 = vadd.f32 %v2823, %v2867
  %v2896 = vadd.f32 %v2824, %v2867
  %v2897 = vadd.f32 %v2825, %v2867
  %v2898 = vadd.f32 %v2826, %v2867
  %v2899 = vadd.f32 %v2827, %v2867
  %v2900 = vadd.f32 %v2828, %v2867
  %v2901 = vadd.f32 %v2829, %v2867
  %v2902 = vadd.f32 %v2830, %v2867
  %v2903 = vadd.f32 %v2831, %v2872
  %v2904 = vadd.f32 %v2832, %v2872
  %v2905 = vadd.f32 %v2833, %v2872
  %v2906 = vadd.f32 %v2834, %v2872
  %v2907 = vadd.f32 %v2835, %v2872
  %v2908 = vadd.f32 %v2836, %v2872
  %v2909 = vadd.f32 %v2837, %v2872
  %v2910 = vadd.f32 %v2838, %v2872
  %v2911 = vadd.f32 %v2839, %v2872
  %v2912 = vadd.f32 %v2840, %v2872
  %v2913 = vadd.f32 %v2841, %v2872
  %v2914 = vadd.f32 %v2842, %v2872
  %v2915 = vadd.f32 %v2843, %v2877
  %v2916 = vadd.f32 %v2844, %v2877
  %v2917 = vadd.f32 %v2845, %v2877
  %v2918 = vadd.f32 %v2846, %v2877
  %v2919 = vadd.f32 %v2847, %v2877
  %v2920 = vadd.f32 %v2848, %v2877
  %v2921 = vadd.f32 %v2849, %v2877
  %v2922 = vadd.f32 %v2850, %v2877
  %v2923 = vadd.f32 %v2851, %v2877
  %v2924 = vadd.f32 %v2852, %v2877
  %v2925 = vadd.f32 %v2853, %v2877
  %v2926 = vadd.f32 %v2854, %v2877
  %v2927 = vmax.f32 %v2879, 0.0
  %v2928 = vmax.f32 %v2880, 0.0
  %v2929 = vmax.f32 %v2881, 0.0
  %v2930 = vmax.f32 %v2882, 0.0
  %v2931 = vmax.f32 %v2883, 0.0
  %v2932 = vmax.f32 %v2884, 0.0
  %v2933 = vmax.f32 %v2885, 0.0
  %v2934 = vmax.f32 %v2886, 0.0
  %v2935 = vmax.f32 %v2887, 0.0
  %v2936 = vmax.f32 %v2888, 0.0
  %v2937 = vmax.f32 %v2889, 0.0
  %v2938 = vmax.f32 %v2890, 0.0
  %v2939 = vmax.f32 %v2891, 0.0
  %v2940 = vmax.f32 %v2892, 0.0
  %v2941 = vmax.f32 %v2893, 0.0
  %v2942 = vmax.f32 %v2894, 0.0
  %v2943 = vmax.f32 %v2895, 0.0
  %v2944 = vmax.f32 %v2896, 0.0
  %v2945 = vmax.f32 %v2897, 0.0
  %v2946 = vmax.f32 %v2898, 0.0
  %v2947 = vmax.f32 %v2899, 0.0
  %v2948 = vmax.f32 %v2900, 0.0
  %v2949 = vmax.f32 %v2901, 0.0
  %v2950 = vmax.f32 %v2902, 0.0
  %v2951 = vmax.f32 %v2903, 0.0
  %v2952 = vmax.f32 %v2904, 0.0
  %v2953 = vmax.f32 %v2905, 0.0
  %v2954 = vmax.f32 %v2906, 0.0
  %v2955 = vmax.f32 %v2907, 0.0
  %v2956 = vmax.f32 %v2908, 0.0
  %v2957 = vmax.f32 %v2909, 0.0
  %v2958 = vmax.f32 %v2910, 0.0
  %v2959 = vmax.f32 %v2911, 0.0
  %v2960 = vmax.f32 %v2912, 0.0
  %v2961 = vmax.f32 %v2913, 0.0
  %v2962 = vmax.f32 %v2914, 0.0
  %v2963 = vmax.f32 %v2915, 0.0
  %v2964 = vmax.f32 %v2916, 0.0
  %v2965 = vmax.f32 %v2917, 0.0
  %v2966 = vmax.f32 %v2918, 0.0
  %v2967 = vmax.f32 %v2919, 0.0
  %v2968 = vmax.f32 %v2920, 0.0
  %v2969 = vmax.f32 %v2921, 0.0
  %v2970 = vmax.f32 %v2922, 0.0
  %v2971 = vmax.f32 %v2923, 0.0
  %v2972 = vmax.f32 %v2924, 0.0
  %v2973 = vmax.f32 %v2925, 0.0
  %v2974 = vmax.f32 %v2926, 0.0
  %v2975 = vpack.c.bf16 %v2928, %v2927
  %v2976 = vpack.c.bf16 %v2930, %v2929
  %v2977 = vpack.c.bf16 %v2932, %v2931
  %v2978 = vpack.c.bf16 %v2934, %v2933
  %v2979 = vpack.c.bf16 %v2936, %v2935
  %v2980 = vpack.c.bf16 %v2938, %v2937
  %v2981 = vpack.c.bf16 %v2940, %v2939
  %v2982 = vpack.c.bf16 %v2942, %v2941
  %v2983 = vpack.c.bf16 %v2944, %v2943
  %v2984 = vpack.c.bf16 %v2946, %v2945
  %v2985 = vpack.c.bf16 %v2948, %v2947
  %v2986 = vpack.c.bf16 %v2950, %v2949
  %v2987 = vpack.c.bf16 %v2952, %v2951
  %v2988 = vpack.c.bf16 %v2954, %v2953
  %v2989 = vpack.c.bf16 %v2956, %v2955
  %v2990 = vpack.c.bf16 %v2958, %v2957
  %v2991 = vpack.c.bf16 %v2960, %v2959
  %v2992 = vpack.c.bf16 %v2962, %v2961
  %v2993 = vpack.c.bf16 %v2964, %v2963
  %v2994 = vpack.c.bf16 %v2966, %v2965
  %v2995 = vpack.c.bf16 %v2968, %v2967
  %v2996 = vpack.c.bf16 %v2970, %v2969
  %v2997 = vpack.c.bf16 %v2972, %v2971
  %v2998 = vpack.c.bf16 %v2974, %v2973
  %2999 = vst [vmem:[%s4] sm:$0xff] %v2975
  %3000 = vst [vmem:[%s4 + $0x8] sm:$0xff] %v2976
  %3001 = vst [vmem:[%s4 + $0x10] sm:$0xff] %v2977
  %3002 = vst [vmem:[%s4 + $0x18] sm:$0xff] %v2978
  %3003 = vst [vmem:[%s4 + $0x20] sm:$0xff] %v2979
  %3004 = vst [vmem:[%s4 + $0x28] sm:$0xff] %v2980
  %3005 = vst [vmem:[%s4 + $0x30] sm:$0xff] %v2981
  %3006 = vst [vmem:[%s4 + $0x38] sm:$0xff] %v2982
  %3007 = vst [vmem:[%s4 + $0x40] sm:$0xff] %v2983
  %3008 = vst [vmem:[%s4 + $0x48] sm:$0xff] %v2984
  %3009 = vst [vmem:[%s4 + $0x50] sm:$0xff] %v2985
  %3010 = vst [vmem:[%s4 + $0x58] sm:$0xff] %v2986
  %3011 = vst [vmem:[%s4 + $0x60] sm:$0xff] %v2987
  %3012 = vst [vmem:[%s4 + $0x68] sm:$0xff] %v2988
  %3013 = vst [vmem:[%s4 + $0x70] sm:$0xff] %v2989
  %3014 = vst [vmem:[%s4 + $0x78] sm:$0xff] %v2990
  %3015 = vst [vmem:[%s4 + $0x80] sm:$0xff] %v2991
  %3016 = vst [vmem:[%s4 + $0x88] sm:$0xff] %v2992
  %3017 = vst [vmem:[%s4 + $0x90] sm:$0xff] %v2993
  %3018 = vst [vmem:[%s4 + $0x98] sm:$0xff] %v2994
  %3019 = vst [vmem:[%s4 + $0xa0] sm:$0xff] %v2995
  %3020 = vst [vmem:[%s4 + $0xa8] sm:$0xff] %v2996
  %3021 = vst [vmem:[%s4 + $0xb0] sm:$0xff] %v2997
  %3022 = vst [vmem:[%s4 + $0xb8] sm:$0xff] %v2998
  // Predicated region
  $region18: #{cat_dog_cnn_forward.9} parent=0 // pred_check
    _
  $region19: #{cat_dog_cnn_forward.9} parent=0 // pred_check_branch
    %3024 = sbr.rel (0) target = $region21
  $region20: #{cat_dog_cnn_forward.9} parent=0 // pred_region
    _
  $region21: #{cat_dog_cnn_forward.9} parent=0 // pred_fallthru
    _
  // Predicated region
  $region22: #{cat_dog_cnn_forward.9} parent=0 // pred_check
    _
  $region23: #{cat_dog_cnn_forward.9} parent=0 // pred_check_branch
    %3026 = sbr.rel (0) target = $region25
  $region24: #{cat_dog_cnn_forward.9} parent=0 // pred_region
    _
  $region25: #{cat_dog_cnn_forward.9} parent=0 // pred_fallthru
    _

// kernel: cat_dog_cnn_forward.10
$region0: #{cat_dog_cnn_forward.10}
  #allocation0 [shape = 'u32[]', space=smem, size = 0x4, offset = 0x4, fixed_abs, tag = 'smem constant byte address 0x4 - core index']
  #allocation1 [shape = 'u32[72,128]{1,0:T(1,128)}', space=vmem, size = 0x9000, scoped, tag = 'internal scratch']
  %s0 = inlined_call_operand.vmem [shape: bf16[64,169], index: 0, kind: input, shape index: {}]
  %s1 = inlined_call_operand.vmem [shape: bf16[64,169], index: 1, kind: input, shape index: {}]
  %s2 = inlined_call_operand.vmem [shape: bf16[64,169], index: 2, kind: input, shape index: {}]
  %s3 = inlined_call_operand.vmem [shape: bf16[64,169], index: 3, kind: input, shape index: {}]
  %s4 = inlined_call_operand.vmem [shape: bf16[64,169], index: 4, kind: output, shape index: {}]
  %s5 = sld [smem:[#allocation0]]
  $region26: #{cat_dog_cnn_forward.10} parent=0
    _
  %s7 = ssub.s32 1, %s5
  %s8 = scalar_select 0, %s7, %s5
  // Predicated region
  $region2: #{cat_dog_cnn_forward.10} parent=0 // pred_check
    _
  $region3: #{cat_dog_cnn_forward.10} parent=0 // pred_check_branch
    %10 = sbr.rel (0) target = $region5
  $region4: #{cat_dog_cnn_forward.10} parent=0 // pred_region
    _
  $region5: #{cat_dog_cnn_forward.10} parent=0 // pred_fallthru
    _
  // Predicated region
  $region6: #{cat_dog_cnn_forward.10} parent=0 // pred_check
    _
  $region7: #{cat_dog_cnn_forward.10} parent=0 // pred_check_branch
    %12 = sbr.rel (0) target = $region9
  $region8: #{cat_dog_cnn_forward.10} parent=0 // pred_region
    _
  $region9: #{cat_dog_cnn_forward.10} parent=0 // pred_fallthru
    _
  // Predicated region
  $region10: #{cat_dog_cnn_forward.10} parent=0 // pred_check
    _
  $region11: #{cat_dog_cnn_forward.10} parent=0 // pred_check_branch
    %14 = sbr.rel (0) target = $region13
  $region12: #{cat_dog_cnn_forward.10} parent=0 // pred_region
    _
  $region13: #{cat_dog_cnn_forward.10} parent=0 // pred_fallthru
    _
  // Predicated region
  $region14: #{cat_dog_cnn_forward.10} parent=0 // pred_check
    _
  $region15: #{cat_dog_cnn_forward.10} parent=0 // pred_check_branch
    %16 = sbr.rel (0) target = $region17
  $region16: #{cat_dog_cnn_forward.10} parent=0 // pred_region
    _
  $region17: #{cat_dog_cnn_forward.10} parent=0 // pred_fallthru
    _
  %v17 = vld [vmem:[%s0] sm:$0xff]
  %v18 = vld [vmem:[%s0 + $0x8] sm:$0xff]
  %v19 = vld [vmem:[%s0 + $0x10] sm:$0xff]
  %v20 = vld [vmem:[%s0 + $0x18] sm:$0xff]
  %v21 = vld [vmem:[%s0 + $0x20] sm:$0xff]
  %v22 = vld [vmem:[%s0 + $0x28] sm:$0xff]
  %v23 = vld [vmem:[%s0 + $0x30] sm:$0xff]
  %v24 = vld [vmem:[%s0 + $0x38] sm:$0xff]
  %v25 = vld [vmem:[%s1] sm:$0xff]
  %v26 = vld [vmem:[%s1 + $0x8] sm:$0xff]
  %v27 = vld [vmem:[%s1 + $0x10] sm:$0xff]
  %v28 = vld [vmem:[%s1 + $0x18] sm:$0xff]
  %v29 = vld [vmem:[%s1 + $0x20] sm:$0xff]
  %v30 = vld [vmem:[%s1 + $0x28] sm:$0xff]
  %v31 = vld [vmem:[%s1 + $0x30] sm:$0xff]
  %v32 = vld [vmem:[%s1 + $0x38] sm:$0xff]
  %v33 = vunpack.c.l.bf16 %v17
  %v34 = vunpack.c.h.bf16 %v17
  %v35 = vunpack.c.l.bf16 %v18
  %v36 = vunpack.c.h.bf16 %v18
  %v37 = vunpack.c.l.bf16 %v19
  %v38 = vunpack.c.h.bf16 %v19
  %v39 = vunpack.c.l.bf16 %v20
  %v40 = vunpack.c.h.bf16 %v20
  %v41 = vunpack.c.l.bf16 %v21
  %v42 = vunpack.c.h.bf16 %v21
  %v43 = vunpack.c.l.bf16 %v22
  %v44 = vunpack.c.h.bf16 %v22
  %v45 = vunpack.c.l.bf16 %v23
  %v46 = vunpack.c.h.bf16 %v23
  %v47 = vunpack.c.l.bf16 %v24
  %v48 = vunpack.c.h.bf16 %v24
  %v49 = vunpack.c.l.bf16 %v25
  %v50 = vunpack.c.h.bf16 %v25
  %v51 = vunpack.c.l.bf16 %v26
  %v52 = vunpack.c.h.bf16 %v26
  %v53 = vunpack.c.l.bf16 %v27
  %v54 = vunpack.c.h.bf16 %v27
  %v55 = vunpack.c.l.bf16 %v28
  %v56 = vunpack.c.h.bf16 %v28
  %v57 = vunpack.c.l.bf16 %v29
  %v58 = vunpack.c.h.bf16 %v29
  %v59 = vunpack.c.l.bf16 %v30
  %v60 = vunpack.c.h.bf16 %v30
  %v61 = vunpack.c.l.bf16 %v31
  %v62 = vunpack.c.h.bf16 %v31
  %v63 = vunpack.c.l.bf16 %v32
  %v64 = vunpack.c.h.bf16 %v32
  %v65 = vmax.f32 %v33, %v49
  %v66 = vmax.f32 %v34, %v50
  %v67 = vmax.f32 %v35, %v51
  %v68 = vmax.f32 %v36, %v52
  %v69 = vmax.f32 %v37, %v53
  %v70 = vmax.f32 %v38, %v54
  %v71 = vmax.f32 %v39, %v55
  %v72 = vmax.f32 %v40, %v56
  %v73 = vmax.f32 %v41, %v57
  %v74 = vmax.f32 %v42, %v58
  %v75 = vmax.f32 %v43, %v59
  %v76 = vmax.f32 %v44, %v60
  %v77 = vmax.f32 %v45, %v61
  %v78 = vmax.f32 %v46, %v62
  %v79 = vmax.f32 %v47, %v63
  %v80 = vmax.f32 %v48, %v64
  %v81 = vpack.c.bf16 %v66, %v65
  %v82 = vpack.c.bf16 %v68, %v67
  %v83 = vpack.c.bf16 %v70, %v69
  %v84 = vpack.c.bf16 %v72, %v71
  %v85 = vpack.c.bf16 %v74, %v73
  %v86 = vpack.c.bf16 %v76, %v75
  %v87 = vpack.c.bf16 %v78, %v77
  %v88 = vpack.c.bf16 %v80, %v79
  %v89 = vld [vmem:[%s2] sm:$0xff]
  %v90 = vld [vmem:[%s2 + $0x8] sm:$0xff]
  %v91 = vld [vmem:[%s2 + $0x10] sm:$0xff]
  %v92 = vld [vmem:[%s2 + $0x18] sm:$0xff]
  %v93 = vld [vmem:[%s2 + $0x20] sm:$0xff]
  %v94 = vld [vmem:[%s2 + $0x28] sm:$0xff]
  %v95 = vld [vmem:[%s2 + $0x30] sm:$0xff]
  %v96 = vld [vmem:[%s2 + $0x38] sm:$0xff]
  %v97 = vld [vmem:[%s3] sm:$0xff]
  %v98 = vld [vmem:[%s3 + $0x8] sm:$0xff]
  %v99 = vld [vmem:[%s3 + $0x10] sm:$0xff]
  %v100 = vld [vmem:[%s3 + $0x18] sm:$0xff]
  %v101 = vld [vmem:[%s3 + $0x20] sm:$0xff]
  %v102 = vld [vmem:[%s3 + $0x28] sm:$0xff]
  %v103 = vld [vmem:[%s3 + $0x30] sm:$0xff]
  %v104 = vld [vmem:[%s3 + $0x38] sm:$0xff]
  %v105 = vunpack.c.l.bf16 %v89
  %v106 = vunpack.c.h.bf16 %v89
  %v107 = vunpack.c.l.bf16 %v90
  %v108 = vunpack.c.h.bf16 %v90
  %v109 = vunpack.c.l.bf16 %v91
  %v110 = vunpack.c.h.bf16 %v91
  %v111 = vunpack.c.l.bf16 %v92
  %v112 = vunpack.c.h.bf16 %v92
  %v113 = vunpack.c.l.bf16 %v93
  %v114 = vunpack.c.h.bf16 %v93
  %v115 = vunpack.c.l.bf16 %v94
  %v116 = vunpack.c.h.bf16 %v94
  %v117 = vunpack.c.l.bf16 %v95
  %v118 = vunpack.c.h.bf16 %v95
  %v119 = vunpack.c.l.bf16 %v96
  %v120 = vunpack.c.h.bf16 %v96
  %v121 = vunpack.c.l.bf16 %v97
  %v122 = vunpack.c.h.bf16 %v97
  %v123 = vunpack.c.l.bf16 %v98
  %v124 = vunpack.c.h.bf16 %v98
  %v125 = vunpack.c.l.bf16 %v99
  %v126 = vunpack.c.h.bf16 %v99
  %v127 = vunpack.c.l.bf16 %v100
  %v128 = vunpack.c.h.bf16 %v100
  %v129 = vunpack.c.l.bf16 %v101
  %v130 = vunpack.c.h.bf16 %v101
  %v131 = vunpack.c.l.bf16 %v102
  %v132 = vunpack.c.h.bf16 %v102
  %v133 = vunpack.c.l.bf16 %v103
  %v134 = vunpack.c.h.bf16 %v103
  %v135 = vunpack.c.l.bf16 %v104
  %v136 = vunpack.c.h.bf16 %v104
  %v137 = vmax.f32 %v105, %v121
  %v138 = vmax.f32 %v106, %v122
  %v139 = vmax.f32 %v107, %v123
  %v140 = vmax.f32 %v108, %v124
  %v141 = vmax.f32 %v109, %v125
  %v142 = vmax.f32 %v110, %v126
  %v143 = vmax.f32 %v111, %v127
  %v144 = vmax.f32 %v112, %v128
  %v145 = vmax.f32 %v113, %v129
  %v146 = vmax.f32 %v114, %v130
  %v147 = vmax.f32 %v115, %v131
  %v148 = vmax.f32 %v116, %v132
  %v149 = vmax.f32 %v117, %v133
  %v150 = vmax.f32 %v118, %v134
  %v151 = vmax.f32 %v119, %v135
  %v152 = vmax.f32 %v120, %v136
  %v153 = vpack.c.bf16 %v138, %v137
  %v154 = vpack.c.bf16 %v140, %v139
  %v155 = vpack.c.bf16 %v142, %v141
  %v156 = vpack.c.bf16 %v144, %v143
  %v157 = vpack.c.bf16 %v146, %v145
  %v158 = vpack.c.bf16 %v148, %v147
  %v159 = vpack.c.bf16 %v150, %v149
  %v160 = vpack.c.bf16 %v152, %v151
  %v161 = vunpack.c.l.bf16 %v81
  %v162 = vunpack.c.h.bf16 %v81
  %v163 = vunpack.c.l.bf16 %v82
  %v164 = vunpack.c.h.bf16 %v82
  %v165 = vunpack.c.l.bf16 %v83
  %v166 = vunpack.c.h.bf16 %v83
  %v167 = vunpack.c.l.bf16 %v84
  %v168 = vunpack.c.h.bf16 %v84
  %v169 = vunpack.c.l.bf16 %v85
  %v170 = vunpack.c.h.bf16 %v85
  %v171 = vunpack.c.l.bf16 %v86
  %v172 = vunpack.c.h.bf16 %v86
  %v173 = vunpack.c.l.bf16 %v87
  %v174 = vunpack.c.h.bf16 %v87
  %v175 = vunpack.c.l.bf16 %v88
  %v176 = vunpack.c.h.bf16 %v88
  %v177 = vunpack.c.l.bf16 %v153
  %v178 = vunpack.c.h.bf16 %v153
  %v179 = vunpack.c.l.bf16 %v154
  %v180 = vunpack.c.h.bf16 %v154
  %v181 = vunpack.c.l.bf16 %v155
  %v182 = vunpack.c.h.bf16 %v155
  %v183 = vunpack.c.l.bf16 %v156
  %v184 = vunpack.c.h.bf16 %v156
  %v185 = vunpack.c.l.bf16 %v157
  %v186 = vunpack.c.h.bf16 %v157
  %v187 = vunpack.c.l.bf16 %v158
  %v188 = vunpack.c.h.bf16 %v158
  %v189 = vunpack.c.l.bf16 %v159
  %v190 = vunpack.c.h.bf16 %v159
  %v191 = vunpack.c.l.bf16 %v160
  %v192 = vunpack.c.h.bf16 %v160
  %v193 = vmax.f32 %v161, %v177
  %v194 = vmax.f32 %v162, %v178
  %v195 = vmax.f32 %v163, %v179
  %v196 = vmax.f32 %v164, %v180
  %v197 = vmax.f32 %v165, %v181
  %v198 = vmax.f32 %v166, %v182
  %v199 = vmax.f32 %v167, %v183
  %v200 = vmax.f32 %v168, %v184
  %v201 = vmax.f32 %v169, %v185
  %v202 = vmax.f32 %v170, %v186
  %v203 = vmax.f32 %v171, %v187
  %v204 = vmax.f32 %v172, %v188
  %v205 = vmax.f32 %v173, %v189
  %v206 = vmax.f32 %v174, %v190
  %v207 = vmax.f32 %v175, %v191
  %v208 = vmax.f32 %v176, %v192
  %v209 = vpack.c.bf16 %v194, %v193
  %v210 = vpack.c.bf16 %v196, %v195
  %v211 = vpack.c.bf16 %v198, %v197
  %v212 = vpack.c.bf16 %v200, %v199
  %v213 = vpack.c.bf16 %v202, %v201
  %v214 = vpack.c.bf16 %v204, %v203
  %v215 = vpack.c.bf16 %v206, %v205
  %v216 = vpack.c.bf16 %v208, %v207
  %vm217 = vcmask 1043456
  %vm218 = vcmask 334852
  %vm219 = vmor %vm218, %vm217
  %220 = vst.msk [vmem:[%s4] sm:$0xff] %vm219, %v209
  %221 = vst.msk [vmem:[%s4 + $0x8] sm:$0xff] %vm219, %v210
  %222 = vst.msk [vmem:[%s4 + $0x10] sm:$0xff] %vm219, %v211
  %223 = vst.msk [vmem:[%s4 + $0x18] sm:$0xff] %vm219, %v212
  %224 = vst.msk [vmem:[%s4 + $0x20] sm:$0xff] %vm219, %v213
  %225 = vst.msk [vmem:[%s4 + $0x28] sm:$0xff] %vm219, %v214
  %226 = vst.msk [vmem:[%s4 + $0x30] sm:$0xff] %vm219, %v215
  %227 = vst.msk [vmem:[%s4 + $0x38] sm:$0xff] %vm219, %v216
  // Predicated region
  $region18: #{cat_dog_cnn_forward.10} parent=0 // pred_check
    _
  $region19: #{cat_dog_cnn_forward.10} parent=0 // pred_check_branch
    %229 = sbr.rel (0) target = $region21
  $region20: #{cat_dog_cnn_forward.10} parent=0 // pred_region
    _
  $region21: #{cat_dog_cnn_forward.10} parent=0 // pred_fallthru
    _
  // Predicated region
  $region22: #{cat_dog_cnn_forward.10} parent=0 // pred_check
    _
  $region23: #{cat_dog_cnn_forward.10} parent=0 // pred_check_branch
    %231 = sbr.rel (0) target = $region25
  $region24: #{cat_dog_cnn_forward.10} parent=0 // pred_region
    _
  $region25: #{cat_dog_cnn_forward.10} parent=0 // pred_fallthru
    _

// kernel: cat_dog_cnn_forward.11
$region0: #{cat_dog_cnn_forward.11}
  #allocation0 [shape = 'u32[]', space=smem, size = 0x4, offset = 0x4, fixed_abs, tag = 'smem constant byte address 0x4 - core index']
  #allocation1 [shape = 'u32[72,128]{1,0:T(1,128)}', space=vmem, size = 0x9000, scoped, tag = 'internal scratch']
  %s0 = inlined_call_operand.vmem [shape: bf16[64,288], index: 0, kind: input, shape index: {}]
  %s1 = inlined_call_operand.vmem [shape: bf16[288,384], index: 1, kind: input, shape index: {}]
  %s2 = inlined_call_operand.vmem [shape: f32[64,1], index: 2, kind: input, shape index: {}]
  %s3 = inlined_call_operand.vmem [shape: f32[64,1], index: 3, kind: input, shape index: {}]
  %s4 = inlined_call_operand.vmem [shape: bf16[64,384], index: 4, kind: output, shape index: {}]
  %s5 = sld [smem:[#allocation0]]
  $region26: #{cat_dog_cnn_forward.11} parent=0
    _
  %s7 = ssub.s32 1, %s5
  %s8 = scalar_select 0, %s7, %s5
  // Predicated region
  $region2: #{cat_dog_cnn_forward.11} parent=0 // pred_check
    _
  $region3: #{cat_dog_cnn_forward.11} parent=0 // pred_check_branch
    %10 = sbr.rel (0) target = $region5
  $region4: #{cat_dog_cnn_forward.11} parent=0 // pred_region
    _
  $region5: #{cat_dog_cnn_forward.11} parent=0 // pred_fallthru
    _
  // Predicated region
  $region6: #{cat_dog_cnn_forward.11} parent=0 // pred_check
    _
  $region7: #{cat_dog_cnn_forward.11} parent=0 // pred_check_branch
    %12 = sbr.rel (0) target = $region9
  $region8: #{cat_dog_cnn_forward.11} parent=0 // pred_region
    _
  $region9: #{cat_dog_cnn_forward.11} parent=0 // pred_fallthru
    _
  // Predicated region
  $region10: #{cat_dog_cnn_forward.11} parent=0 // pred_check
    _
  $region11: #{cat_dog_cnn_forward.11} parent=0 // pred_check_branch
    %14 = sbr.rel (0) target = $region13
  $region12: #{cat_dog_cnn_forward.11} parent=0 // pred_region
    _
  $region13: #{cat_dog_cnn_forward.11} parent=0 // pred_fallthru
    _
  // Predicated region
  $region14: #{cat_dog_cnn_forward.11} parent=0 // pred_check
    _
  $region15: #{cat_dog_cnn_forward.11} parent=0 // pred_check_branch
    %16 = sbr.rel (0) target = $region17
  $region16: #{cat_dog_cnn_forward.11} parent=0 // pred_region
    _
  $region17: #{cat_dog_cnn_forward.11} parent=0 // pred_fallthru
    _
  %v18 = vld [vmem:[%s0] sm:$0xff]
  %v19 = vld [vmem:[%s0 + $0x8] sm:$0xf]
  %v20 = vld [vmem:[%s0 + $0xc] sm:$0xff]
  %v21 = vld [vmem:[%s0 + $0x14] sm:$0xf]
  %v22 = vld [vmem:[%s0 + $0x18] sm:$0xff]
  %v23 = vld [vmem:[%s0 + $0x20] sm:$0xf]
  %v24 = vld [vmem:[%s0 + $0x24] sm:$0xff]
  %v25 = vld [vmem:[%s0 + $0x2c] sm:$0xf]
  %v26 = vld [vmem:[%s0 + $0x30] sm:$0xff]
  %v27 = vld [vmem:[%s0 + $0x38] sm:$0xf]
  %v28 = vld [vmem:[%s0 + $0x3c] sm:$0xff]
  %v29 = vld [vmem:[%s0 + $0x44] sm:$0xf]
  %v30 = vld [vmem:[%s0 + $0x48] sm:$0xff]
  %v31 = vld [vmem:[%s0 + $0x50] sm:$0xf]
  %v32 = vld [vmem:[%s0 + $0x54] sm:$0xff]
  %v33 = vld [vmem:[%s0 + $0x5c] sm:$0xf]
  %v34 = vld [vmem:[%s1] sm:$0xff]
  %v35 = vld [vmem:[%s1 + $0x8] sm:$0xf]
  %v36 = vld [vmem:[%s1 + $0xc] sm:$0xff]
  %v37 = vld [vmem:[%s1 + $0x14] sm:$0xf]
  %v38 = vld [vmem:[%s1 + $0x18] sm:$0xff]
  %v39 = vld [vmem:[%s1 + $0x20] sm:$0xf]
  %v40 = vld [vmem:[%s1 + $0x24] sm:$0xff]
  %v41 = vld [vmem:[%s1 + $0x2c] sm:$0xf]
  %v42 = vld [vmem:[%s1 + $0x30] sm:$0xff]
  %v43 = vld [vmem:[%s1 + $0x38] sm:$0xf]
  %v44 = vld [vmem:[%s1 + $0x3c] sm:$0xff]
  %v45 = vld [vmem:[%s1 + $0x44] sm:$0xf]
  %v46 = vld [vmem:[%s1 + $0x48] sm:$0xff]
  %v47 = vld [vmem:[%s1 + $0x50] sm:$0xf]
  %v48 = vld [vmem:[%s1 + $0x54] sm:$0xff]
  %v49 = vld [vmem:[%s1 + $0x5c] sm:$0xf]
  %v50 = vld [vmem:[%s1 + $0x60] sm:$0xff]
  %v51 = vld [vmem:[%s1 + $0x68] sm:$0xf]
  %v52 = vld [vmem:[%s1 + $0x6c] sm:$0xff]
  %v53 = vld [vmem:[%s1 + $0x74] sm:$0xf]
  %v54 = vld [vmem:[%s1 + $0x78] sm:$0xff]
  %v55 = vld [vmem:[%s1 + $0x80] sm:$0xf]
  %v56 = vld [vmem:[%s1 + $0x84] sm:$0xff]
  %v57 = vld [vmem:[%s1 + $0x8c] sm:$0xf]
  %v58 = vld [vmem:[%s1 + $0x90] sm:$0xff]
  %v59 = vld [vmem:[%s1 + $0x98] sm:$0xf]
  %v60 = vld [vmem:[%s1 + $0x9c] sm:$0xff]
  %v61 = vld [vmem:[%s1 + $0xa4] sm:$0xf]
  %v62 = vld [vmem:[%s1 + $0xa8] sm:$0xff]
  %v63 = vld [vmem:[%s1 + $0xb0] sm:$0xf]
  %v64 = vld [vmem:[%s1 + $0xb4] sm:$0xff]
  %v65 = vld [vmem:[%s1 + $0xbc] sm:$0xf]
  %v66 = vld [vmem:[%s1 + $0xc0] sm:$0xff]
  %v67 = vld [vmem:[%s1 + $0xc8] sm:$0xf]
  %v68 = vld [vmem:[%s1 + $0xcc] sm:$0xff]
  %v69 = vld [vmem:[%s1 + $0xd4] sm:$0xf]
  %v70 = vld [vmem:[%s1 + $0xd8] sm:$0xff]
  %v71 = vld [vmem:[%s1 + $0xe0] sm:$0xf]
  %v72 = vld [vmem:[%s1 + $0xe4] sm:$0xff]
  %v73 = vld [vmem:[%s1 + $0xec] sm:$0xf]
  %v74 = vld [vmem:[%s1 + $0xf0] sm:$0xff]
  %v75 = vld [vmem:[%s1 + $0xf8] sm:$0xf]
  %v76 = vld [vmem:[%s1 + $0xfc] sm:$0xff]
  %v77 = vld [vmem:[%s1 + $0x104] sm:$0xf]
  %v78 = vld [vmem:[%s1 + $0x108] sm:$0xff]
  %v79 = vld [vmem:[%s1 + $0x110] sm:$0xf]
  %v80 = vld [vmem:[%s1 + $0x114] sm:$0xff]
  %v81 = vld [vmem:[%s1 + $0x11c] sm:$0xf]
  %v82 = vld [vmem:[%s1 + $0x120] sm:$0xff]
  %v83 = vld [vmem:[%s1 + $0x128] sm:$0xf]
  %v84 = vld [vmem:[%s1 + $0x12c] sm:$0xff]
  %v85 = vld [vmem:[%s1 + $0x134] sm:$0xf]
  %v86 = vld [vmem:[%s1 + $0x138] sm:$0xff]
  %v87 = vld [vmem:[%s1 + $0x140] sm:$0xf]
  %v88 = vld [vmem:[%s1 + $0x144] sm:$0xff]
  %v89 = vld [vmem:[%s1 + $0x14c] sm:$0xf]
  %v90 = vld [vmem:[%s1 + $0x150] sm:$0xff]
  %v91 = vld [vmem:[%s1 + $0x158] sm:$0xf]
  %v92 = vld [vmem:[%s1 + $0x15c] sm:$0xff]
  %v93 = vld [vmem:[%s1 + $0x164] sm:$0xf]
  %v94 = vld [vmem:[%s1 + $0x168] sm:$0xff]
  %v95 = vld [vmem:[%s1 + $0x170] sm:$0xf]
  %v96 = vld [vmem:[%s1 + $0x174] sm:$0xff]
  %v97 = vld [vmem:[%s1 + $0x17c] sm:$0xf]
  %v98 = vld [vmem:[%s1 + $0x180] sm:$0xff]
  %v99 = vld [vmem:[%s1 + $0x188] sm:$0xf]
  %v100 = vld [vmem:[%s1 + $0x18c] sm:$0xff]
  %v101 = vld [vmem:[%s1 + $0x194] sm:$0xf]
  %v102 = vld [vmem:[%s1 + $0x198] sm:$0xff]
  %v103 = vld [vmem:[%s1 + $0x1a0] sm:$0xf]
  %v104 = vld [vmem:[%s1 + $0x1a4] sm:$0xff]
  %v105 = vld [vmem:[%s1 + $0x1ac] sm:$0xf]
  %v122 = vunpack.c.l.b16 %v18
  %v123 = vunpack.c.h.b16 %v18
  %v124 = vunpack.c.l.b16 %v19
  %v125 = vunpack.c.l.b16 %v20
  %v126 = vunpack.c.h.b16 %v20
  %v127 = vunpack.c.l.b16 %v21
  %v128 = vunpack.c.l.b16 %v22
  %v129 = vunpack.c.h.b16 %v22
  %v130 = vunpack.c.l.b16 %v23
  %v131 = vunpack.c.l.b16 %v24
  %v132 = vunpack.c.h.b16 %v24
  %v133 = vunpack.c.l.b16 %v25
  %v134 = vunpack.c.l.b16 %v26
  %v135 = vunpack.c.h.b16 %v26
  %v136 = vunpack.c.l.b16 %v27
  %v137 = vunpack.c.l.b16 %v28
  %v138 = vunpack.c.h.b16 %v28
  %v139 = vunpack.c.l.b16 %v29
  %v140 = vunpack.c.l.b16 %v30
  %v141 = vunpack.c.h.b16 %v30
  %v142 = vunpack.c.l.b16 %v31
  %v143 = vunpack.c.l.b16 %v32
  %v144 = vunpack.c.h.b16 %v32
  %v145 = vunpack.c.l.b16 %v33
  %v146 = vpack.c.b16 %v125, %v122
  %v147 = vpack.c.b16 %v126, %v123
  %v148 = vpack.c.b16 %v127, %v124
  %v149 = vpack.c.b16 %v131, %v128
  %v150 = vpack.c.b16 %v132, %v129
  %v151 = vpack.c.b16 %v133, %v130
  %v152 = vpack.c.b16 %v137, %v134
  %v153 = vpack.c.b16 %v138, %v135
  %v154 = vpack.c.b16 %v139, %v136
  %v155 = vpack.c.b16 %v143, %v140
  %v156 = vpack.c.b16 %v144, %v141
  %v157 = vpack.c.b16 %v145, %v142
  %v238 = vunpack.c.l.b16 %v34
  %v239 = vunpack.c.h.b16 %v34
  %v240 = vunpack.c.l.b16 %v35
  %v241 = vunpack.c.l.b16 %v36
  %v242 = vunpack.c.h.b16 %v36
  %v243 = vunpack.c.l.b16 %v37
  %v244 = vunpack.c.l.b16 %v38
  %v245 = vunpack.c.h.b16 %v38
  %v246 = vunpack.c.l.b16 %v39
  %v247 = vunpack.c.l.b16 %v40
  %v248 = vunpack.c.h.b16 %v40
  %v249 = vunpack.c.l.b16 %v41
  %v250 = vunpack.c.l.b16 %v42
  %v251 = vunpack.c.h.b16 %v42
  %v252 = vunpack.c.l.b16 %v43
  %v253 = vunpack.c.l.b16 %v44
  %v254 = vunpack.c.h.b16 %v44
  %v255 = vunpack.c.l.b16 %v45
  %v256 = vunpack.c.l.b16 %v46
  %v257 = vunpack.c.h.b16 %v46
  %v258 = vunpack.c.l.b16 %v47
  %v259 = vunpack.c.l.b16 %v48
  %v260 = vunpack.c.h.b16 %v48
  %v261 = vunpack.c.l.b16 %v49
  %v262 = vunpack.c.l.b16 %v50
  %v263 = vunpack.c.h.b16 %v50
  %v264 = vunpack.c.l.b16 %v51
  %v265 = vunpack.c.l.b16 %v52
  %v266 = vunpack.c.h.b16 %v52
  %v267 = vunpack.c.l.b16 %v53
  %v268 = vunpack.c.l.b16 %v54
  %v269 = vunpack.c.h.b16 %v54
  %v270 = vunpack.c.l.b16 %v55
  %v271 = vunpack.c.l.b16 %v56
  %v272 = vunpack.c.h.b16 %v56
  %v273 = vunpack.c.l.b16 %v57
  %v274 = vunpack.c.l.b16 %v58
  %v275 = vunpack.c.h.b16 %v58
  %v276 = vunpack.c.l.b16 %v59
  %v277 = vunpack.c.l.b16 %v60
  %v278 = vunpack.c.h.b16 %v60
  %v279 = vunpack.c.l.b16 %v61
  %v280 = vunpack.c.l.b16 %v62
  %v281 = vunpack.c.h.b16 %v62
  %v282 = vunpack.c.l.b16 %v63
  %v283 = vunpack.c.l.b16 %v64
  %v284 = vunpack.c.h.b16 %v64
  %v285 = vunpack.c.l.b16 %v65
  %v286 = vunpack.c.l.b16 %v66
  %v287 = vunpack.c.h.b16 %v66
  %v288 = vunpack.c.l.b16 %v67
  %v289 = vunpack.c.l.b16 %v68
  %v290 = vunpack.c.h.b16 %v68
  %v291 = vunpack.c.l.b16 %v69
  %v292 = vunpack.c.l.b16 %v70
  %v293 = vunpack.c.h.b16 %v70
  %v294 = vunpack.c.l.b16 %v71
  %v295 = vunpack.c.l.b16 %v72
  %v296 = vunpack.c.h.b16 %v72
  %v297 = vunpack.c.l.b16 %v73
  %v298 = vunpack.c.l.b16 %v74
  %v299 = vunpack.c.h.b16 %v74
  %v300 = vunpack.c.l.b16 %v75
  %v301 = vunpack.c.l.b16 %v76
  %v302 = vunpack.c.h.b16 %v76
  %v303 = vunpack.c.l.b16 %v77
  %v304 = vunpack.c.l.b16 %v78
  %v305 = vunpack.c.h.b16 %v78
  %v306 = vunpack.c.l.b16 %v79
  %v307 = vunpack.c.l.b16 %v80
  %v308 = vunpack.c.h.b16 %v80
  %v309 = vunpack.c.l.b16 %v81
  %v310 = vunpack.c.l.b16 %v82
  %v311 = vunpack.c.h.b16 %v82
  %v312 = vunpack.c.l.b16 %v83
  %v313 = vunpack.c.l.b16 %v84
  %v314 = vunpack.c.h.b16 %v84
  %v315 = vunpack.c.l.b16 %v85
  %v316 = vunpack.c.l.b16 %v86
  %v317 = vunpack.c.h.b16 %v86
  %v318 = vunpack.c.l.b16 %v87
  %v319 = vunpack.c.l.b16 %v88
  %v320 = vunpack.c.h.b16 %v88
  %v321 = vunpack.c.l.b16 %v89
  %v322 = vunpack.c.l.b16 %v90
  %v323 = vunpack.c.h.b16 %v90
  %v324 = vunpack.c.l.b16 %v91
  %v325 = vunpack.c.l.b16 %v92
  %v326 = vunpack.c.h.b16 %v92
  %v327 = vunpack.c.l.b16 %v93
  %v328 = vunpack.c.l.b16 %v94
  %v329 = vunpack.c.h.b16 %v94
  %v330 = vunpack.c.l.b16 %v95
  %v331 = vunpack.c.l.b16 %v96
  %v332 = vunpack.c.h.b16 %v96
  %v333 = vunpack.c.l.b16 %v97
  %v334 = vunpack.c.l.b16 %v98
  %v335 = vunpack.c.h.b16 %v98
  %v336 = vunpack.c.l.b16 %v99
  %v337 = vunpack.c.l.b16 %v100
  %v338 = vunpack.c.h.b16 %v100
  %v339 = vunpack.c.l.b16 %v101
  %v340 = vunpack.c.l.b16 %v102
  %v341 = vunpack.c.h.b16 %v102
  %v342 = vunpack.c.l.b16 %v103
  %v343 = vunpack.c.l.b16 %v104
  %v344 = vunpack.c.h.b16 %v104
  %v345 = vunpack.c.l.b16 %v105
  %v346 = vpack.c.b16 %v241, %v238
  %v347 = vpack.c.b16 %v242, %v239
  %v348 = vpack.c.b16 %v243, %v240
  %v349 = vpack.c.b16 %v247, %v244
  %v350 = vpack.c.b16 %v248, %v245
  %v351 = vpack.c.b16 %v249, %v246
  %v352 = vpack.c.b16 %v253, %v250
  %v353 = vpack.c.b16 %v254, %v251
  %v354 = vpack.c.b16 %v255, %v252
  %v355 = vpack.c.b16 %v259, %v256
  %v356 = vpack.c.b16 %v260, %v257
  %v357 = vpack.c.b16 %v261, %v258
  %v358 = vpack.c.b16 %v265, %v262
  %v359 = vpack.c.b16 %v266, %v263
  %v360 = vpack.c.b16 %v267, %v264
  %v361 = vpack.c.b16 %v271, %v268
  %v362 = vpack.c.b16 %v272, %v269
  %v363 = vpack.c.b16 %v273, %v270
  %v364 = vpack.c.b16 %v277, %v274
  %v365 = vpack.c.b16 %v278, %v275
  %v366 = vpack.c.b16 %v279, %v276
  %v367 = vpack.c.b16 %v283, %v280
  %v368 = vpack.c.b16 %v284, %v281
  %v369 = vpack.c.b16 %v285, %v282
  %v370 = vpack.c.b16 %v289, %v286
  %v371 = vpack.c.b16 %v290, %v287
  %v372 = vpack.c.b16 %v291, %v288
  %v373 = vpack.c.b16 %v295, %v292
  %v374 = vpack.c.b16 %v296, %v293
  %v375 = vpack.c.b16 %v297, %v294
  %v376 = vpack.c.b16 %v301, %v298
  %v377 = vpack.c.b16 %v302, %v299
  %v378 = vpack.c.b16 %v303, %v300
  %v379 = vpack.c.b16 %v307, %v304
  %v380 = vpack.c.b16 %v308, %v305
  %v381 = vpack.c.b16 %v309, %v306
  %v382 = vpack.c.b16 %v313, %v310
  %v383 = vpack.c.b16 %v314, %v311
  %v384 = vpack.c.b16 %v315, %v312
  %v385 = vpack.c.b16 %v319, %v316
  %v386 = vpack.c.b16 %v320, %v317
  %v387 = vpack.c.b16 %v321, %v318
  %v388 = vpack.c.b16 %v325, %v322
  %v389 = vpack.c.b16 %v326, %v323
  %v390 = vpack.c.b16 %v327, %v324
  %v391 = vpack.c.b16 %v331, %v328
  %v392 = vpack.c.b16 %v332, %v329
  %v393 = vpack.c.b16 %v333, %v330
  %v394 = vpack.c.b16 %v337, %v334
  %v395 = vpack.c.b16 %v338, %v335
  %v396 = vpack.c.b16 %v339, %v336
  %v397 = vpack.c.b16 %v343, %v340
  %v398 = vpack.c.b16 %v344, %v341
  %v399 = vpack.c.b16 %v345, %v342
  %vm454 = vcmask 261120
  %v456 = vsel %vm454, %v148, 0
  %v459 = vsel %vm454, %v151, 0
  %v462 = vsel %vm454, %v154, 0
  %v465 = vsel %vm454, %v157, 0
  %467 = vmatpush.bf16.msra.mxu0 %v367
  %468 = vmatpush.bf16.msra.mxu0 %v364
  %469 = vmatpush.bf16.msra.mxu0 %v361
  %470 = vmatpush.bf16.msra.mxu0 %v358
  %471 = vmatpush.bf16.msra.mxu0 %v355
  %472 = vmatpush.bf16.msra.mxu0 %v352
  %473 = vmatpush.bf16.msra.mxu0 %v349
  %474 = vmatpush.bf16.msra.mxu0 %v346
  %475 = vmatmul.bf16.gmra.mxu0 %v146
  %v476 = vpop.f32.mrf.mxu0
  %v477 = vadd.f32 0.0, %v476
  %v478 = vpop.f32.mrf.mxu0
  %v479 = vadd.f32 0.0, %v478
  %480 = vmatmul.bf16.gmra.mxu0 %v149
  %v481 = vpop.f32.mrf.mxu0
  %v482 = vadd.f32 0.0, %v481
  %v483 = vpop.f32.mrf.mxu0
  %v484 = vadd.f32 0.0, %v483
  %485 = vmatmul.bf16.gmra.mxu0 %v152
  %v486 = vpop.f32.mrf.mxu0
  %v487 = vadd.f32 0.0, %v486
  %v488 = vpop.f32.mrf.mxu0
  %v489 = vadd.f32 0.0, %v488
  %490 = vmatmul.bf16.gmra.mxu0 %v155
  %v491 = vpop.f32.mrf.mxu0
  %v492 = vadd.f32 0.0, %v491
  %v493 = vpop.f32.mrf.mxu0
  %v494 = vadd.f32 0.0, %v493
  %495 = vdwg.mxu0
  %496 = vmatpush.bf16.msra.mxu0 %v391
  %497 = vmatpush.bf16.msra.mxu0 %v388
  %498 = vmatpush.bf16.msra.mxu0 %v385
  %499 = vmatpush.bf16.msra.mxu0 %v382
  %500 = vmatpush.bf16.msra.mxu0 %v379
  %501 = vmatpush.bf16.msra.mxu0 %v376
  %502 = vmatpush.bf16.msra.mxu0 %v373
  %503 = vmatpush.bf16.msra.mxu0 %v370
  %504 = vmatmul.bf16.gmra.mxu0 %v147
  %v505 = vpop.f32.mrf.mxu0
  %v506 = vadd.f32 %v477, %v505
  %v507 = vpop.f32.mrf.mxu0
  %v508 = vadd.f32 %v479, %v507
  %509 = vmatmul.bf16.gmra.mxu0 %v150
  %v510 = vpop.f32.mrf.mxu0
  %v511 = vadd.f32 %v482, %v510
  %v512 = vpop.f32.mrf.mxu0
  %v513 = vadd.f32 %v484, %v512
  %514 = vmatmul.bf16.gmra.mxu0 %v153
  %v515 = vpop.f32.mrf.mxu0
  %v516 = vadd.f32 %v487, %v515
  %v517 = vpop.f32.mrf.mxu0
  %v518 = vadd.f32 %v489, %v517
  %519 = vmatmul.bf16.gmra.mxu0 %v156
  %v520 = vpop.f32.mrf.mxu0
  %v521 = vadd.f32 %v492, %v520
  %v522 = vpop.f32.mrf.mxu0
  %v523 = vadd.f32 %v494, %v522
  %524 = vdwg.mxu0
  %525 = vmatpush.bf16.msra.mxu0 0
  %526 = vmatpush.bf16.msra.mxu0 0
  %527 = vmatpush.bf16.msra.mxu0 0
  %528 = vmatpush.bf16.msra.mxu0 0
  %529 = vmatpush.bf16.msra.mxu0 0
  %530 = vmatpush.bf16.msra.mxu0 0
  %531 = vmatpush.bf16.msra.mxu0 %v397
  %532 = vmatpush.bf16.msra.mxu0 %v394
  %533 = vmatmul.bf16.gmra.mxu0 %v456
  %v534 = vpop.f32.mrf.mxu0
  %v535 = vadd.f32 %v506, %v534
  %v536 = vpop.f32.mrf.mxu0
  %v537 = vadd.f32 %v508, %v536
  %538 = vmatmul.bf16.gmra.mxu0 %v459
  %v539 = vpop.f32.mrf.mxu0
  %v540 = vadd.f32 %v511, %v539
  %v541 = vpop.f32.mrf.mxu0
  %v542 = vadd.f32 %v513, %v541
  %543 = vmatmul.bf16.gmra.mxu0 %v462
  %v544 = vpop.f32.mrf.mxu0
  %v545 = vadd.f32 %v516, %v544
  %v546 = vpop.f32.mrf.mxu0
  %v547 = vadd.f32 %v518, %v546
  %548 = vmatmul.bf16.gmra.mxu0 %v465
  %v549 = vpop.f32.mrf.mxu0
  %v550 = vadd.f32 %v521, %v549
  %v551 = vpop.f32.mrf.mxu0
  %v552 = vadd.f32 %v523, %v551
  %553 = vdwg.mxu0
  %554 = vmatpush.bf16.msra.mxu0 %v368
  %555 = vmatpush.bf16.msra.mxu0 %v365
  %556 = vmatpush.bf16.msra.mxu0 %v362
  %557 = vmatpush.bf16.msra.mxu0 %v359
  %558 = vmatpush.bf16.msra.mxu0 %v356
  %559 = vmatpush.bf16.msra.mxu0 %v353
  %560 = vmatpush.bf16.msra.mxu0 %v350
  %561 = vmatpush.bf16.msra.mxu0 %v347
  %562 = vmatmul.bf16.gmra.mxu0 %v146
  %v563 = vpop.f32.mrf.mxu0
  %v564 = vadd.f32 0.0, %v563
  %v565 = vpop.f32.mrf.mxu0
  %v566 = vadd.f32 0.0, %v565
  %567 = vmatmul.bf16.gmra.mxu0 %v149
  %v568 = vpop.f32.mrf.mxu0
  %v569 = vadd.f32 0.0, %v568
  %v570 = vpop.f32.mrf.mxu0
  %v571 = vadd.f32 0.0, %v570
  %572 = vmatmul.bf16.gmra.mxu0 %v152
  %v573 = vpop.f32.mrf.mxu0
  %v574 = vadd.f32 0.0, %v573
  %v575 = vpop.f32.mrf.mxu0
  %v576 = vadd.f32 0.0, %v575
  %577 = vmatmul.bf16.gmra.mxu0 %v155
  %v578 = vpop.f32.mrf.mxu0
  %v579 = vadd.f32 0.0, %v578
  %v580 = vpop.f32.mrf.mxu0
  %v581 = vadd.f32 0.0, %v580
  %582 = vdwg.mxu0
  %583 = vmatpush.bf16.msra.mxu0 %v392
  %584 = vmatpush.bf16.msra.mxu0 %v389
  %585 = vmatpush.bf16.msra.mxu0 %v386
  %586 = vmatpush.bf16.msra.mxu0 %v383
  %587 = vmatpush.bf16.msra.mxu0 %v380
  %588 = vmatpush.bf16.msra.mxu0 %v377
  %589 = vmatpush.bf16.msra.mxu0 %v374
  %590 = vmatpush.bf16.msra.mxu0 %v371
  %591 = vmatmul.bf16.gmra.mxu0 %v147
  %v592 = vpop.f32.mrf.mxu0
  %v593 = vadd.f32 %v564, %v592
  %v594 = vpop.f32.mrf.mxu0
  %v595 = vadd.f32 %v566, %v594
  %596 = vmatmul.bf16.gmra.mxu0 %v150
  %v597 = vpop.f32.mrf.mxu0
  %v598 = vadd.f32 %v569, %v597
  %v599 = vpop.f32.mrf.mxu0
  %v600 = vadd.f32 %v571, %v599
  %601 = vmatmul.bf16.gmra.mxu0 %v153
  %v602 = vpop.f32.mrf.mxu0
  %v603 = vadd.f32 %v574, %v602
  %v604 = vpop.f32.mrf.mxu0
  %v605 = vadd.f32 %v576, %v604
  %606 = vmatmul.bf16.gmra.mxu0 %v156
  %v607 = vpop.f32.mrf.mxu0
  %v608 = vadd.f32 %v579, %v607
  %v609 = vpop.f32.mrf.mxu0
  %v610 = vadd.f32 %v581, %v609
  %611 = vdwg.mxu0
  %612 = vmatpush.bf16.msra.mxu0 0
  %613 = vmatpush.bf16.msra.mxu0 0
  %614 = vmatpush.bf16.msra.mxu0 0
  %615 = vmatpush.bf16.msra.mxu0 0
  %616 = vmatpush.bf16.msra.mxu0 0
  %617 = vmatpush.bf16.msra.mxu0 0
  %618 = vmatpush.bf16.msra.mxu0 %v398
  %619 = vmatpush.bf16.msra.mxu0 %v395
  %620 = vmatmul.bf16.gmra.mxu0 %v456
  %v621 = vpop.f32.mrf.mxu0
  %v622 = vadd.f32 %v593, %v621
  %v623 = vpop.f32.mrf.mxu0
  %v624 = vadd.f32 %v595, %v623
  %625 = vmatmul.bf16.gmra.mxu0 %v459
  %v626 = vpop.f32.mrf.mxu0
  %v627 = vadd.f32 %v598, %v626
  %v628 = vpop.f32.mrf.mxu0
  %v629 = vadd.f32 %v600, %v628
  %630 = vmatmul.bf16.gmra.mxu0 %v462
  %v631 = vpop.f32.mrf.mxu0
  %v632 = vadd.f32 %v603, %v631
  %v633 = vpop.f32.mrf.mxu0
  %v634 = vadd.f32 %v605, %v633
  %635 = vmatmul.bf16.gmra.mxu0 %v465
  %v636 = vpop.f32.mrf.mxu0
  %v637 = vadd.f32 %v608, %v636
  %v638 = vpop.f32.mrf.mxu0
  %v639 = vadd.f32 %v610, %v638
  %640 = vdwg.mxu0
  %641 = vmatpush.bf16.msra.mxu0 %v369
  %642 = vmatpush.bf16.msra.mxu0 %v366
  %643 = vmatpush.bf16.msra.mxu0 %v363
  %644 = vmatpush.bf16.msra.mxu0 %v360
  %645 = vmatpush.bf16.msra.mxu0 %v357
  %646 = vmatpush.bf16.msra.mxu0 %v354
  %647 = vmatpush.bf16.msra.mxu0 %v351
  %648 = vmatpush.bf16.msra.mxu0 %v348
  %649 = vmatmul.bf16.gmra.mxu0 %v146
  %v650 = vpop.f32.mrf.mxu0
  %v651 = vadd.f32 0.0, %v650
  %v652 = vpop.f32.mrf.mxu0
  %v653 = vadd.f32 0.0, %v652
  %654 = vmatmul.bf16.gmra.mxu0 %v149
  %v655 = vpop.f32.mrf.mxu0
  %v656 = vadd.f32 0.0, %v655
  %v657 = vpop.f32.mrf.mxu0
  %v658 = vadd.f32 0.0, %v657
  %659 = vmatmul.bf16.gmra.mxu0 %v152
  %v660 = vpop.f32.mrf.mxu0
  %v661 = vadd.f32 0.0, %v660
  %v662 = vpop.f32.mrf.mxu0
  %v663 = vadd.f32 0.0, %v662
  %664 = vmatmul.bf16.gmra.mxu0 %v155
  %v665 = vpop.f32.mrf.mxu0
  %v666 = vadd.f32 0.0, %v665
  %v667 = vpop.f32.mrf.mxu0
  %v668 = vadd.f32 0.0, %v667
  %669 = vdwg.mxu0
  %670 = vmatpush.bf16.msra.mxu0 %v393
  %671 = vmatpush.bf16.msra.mxu0 %v390
  %672 = vmatpush.bf16.msra.mxu0 %v387
  %673 = vmatpush.bf16.msra.mxu0 %v384
  %674 = vmatpush.bf16.msra.mxu0 %v381
  %675 = vmatpush.bf16.msra.mxu0 %v378
  %676 = vmatpush.bf16.msra.mxu0 %v375
  %677 = vmatpush.bf16.msra.mxu0 %v372
  %678 = vmatmul.bf16.gmra.mxu0 %v147
  %v679 = vpop.f32.mrf.mxu0
  %v680 = vadd.f32 %v651, %v679
  %v681 = vpop.f32.mrf.mxu0
  %v682 = vadd.f32 %v653, %v681
  %683 = vmatmul.bf16.gmra.mxu0 %v150
  %v684 = vpop.f32.mrf.mxu0
  %v685 = vadd.f32 %v656, %v684
  %v686 = vpop.f32.mrf.mxu0
  %v687 = vadd.f32 %v658, %v686
  %688 = vmatmul.bf16.gmra.mxu0 %v153
  %v689 = vpop.f32.mrf.mxu0
  %v690 = vadd.f32 %v661, %v689
  %v691 = vpop.f32.mrf.mxu0
  %v692 = vadd.f32 %v663, %v691
  %693 = vmatmul.bf16.gmra.mxu0 %v156
  %v694 = vpop.f32.mrf.mxu0
  %v695 = vadd.f32 %v666, %v694
  %v696 = vpop.f32.mrf.mxu0
  %v697 = vadd.f32 %v668, %v696
  %698 = vdwg.mxu0
  %699 = vmatpush.bf16.msra.mxu0 0
  %700 = vmatpush.bf16.msra.mxu0 0
  %701 = vmatpush.bf16.msra.mxu0 0
  %702 = vmatpush.bf16.msra.mxu0 0
  %703 = vmatpush.bf16.msra.mxu0 0
  %704 = vmatpush.bf16.msra.mxu0 0
  %705 = vmatpush.bf16.msra.mxu0 %v399
  %706 = vmatpush.bf16.msra.mxu0 %v396
  %707 = vmatmul.bf16.gmra.mxu0 %v456
  %v708 = vpop.f32.mrf.mxu0
  %v709 = vadd.f32 %v680, %v708
  %v710 = vpop.f32.mrf.mxu0
  %v711 = vadd.f32 %v682, %v710
  %712 = vmatmul.bf16.gmra.mxu0 %v459
  %v713 = vpop.f32.mrf.mxu0
  %v714 = vadd.f32 %v685, %v713
  %v715 = vpop.f32.mrf.mxu0
  %v716 = vadd.f32 %v687, %v715
  %717 = vmatmul.bf16.gmra.mxu0 %v462
  %v718 = vpop.f32.mrf.mxu0
  %v719 = vadd.f32 %v690, %v718
  %v720 = vpop.f32.mrf.mxu0
  %v721 = vadd.f32 %v692, %v720
  %722 = vmatmul.bf16.gmra.mxu0 %v465
  %v723 = vpop.f32.mrf.mxu0
  %v724 = vadd.f32 %v695, %v723
  %v725 = vpop.f32.mrf.mxu0
  %v726 = vadd.f32 %v697, %v725
  %727 = vdwg.mxu0
  %v728 = vld [vmem:[%s2] sm:$0xff]
  %v729 = vld [vmem:[%s2 + $0x8] sm:$0xff]
  %v730 = vld [vmem:[%s2 + $0x10] sm:$0xff]
  %v731 = vld [vmem:[%s2 + $0x18] sm:$0xff]
  %v732 = vld [vmem:[%s2 + $0x20] sm:$0xff]
  %v733 = vld [vmem:[%s2 + $0x28] sm:$0xff]
  %v734 = vld [vmem:[%s2 + $0x30] sm:$0xff]
  %v735 = vld [vmem:[%s2 + $0x38] sm:$0xff]
  %737 = vset.pattern.permute.xlu0 0
  %738 = vperm.xlu0 %737, %v728
  %v739 = vpop.permute.xlu0 %738
  %742 = vset.pattern.permute.xlu0 0
  %743 = vperm.xlu0 %742, %v729
  %v744 = vpop.permute.xlu0 %743
  %747 = vset.pattern.permute.xlu0 0
  %748 = vperm.xlu0 %747, %v730
  %v749 = vpop.permute.xlu0 %748
  %752 = vset.pattern.permute.xlu0 0
  %753 = vperm.xlu0 %752, %v731
  %v754 = vpop.permute.xlu0 %753
  %757 = vset.pattern.permute.xlu0 0
  %758 = vperm.xlu0 %757, %v732
  %v759 = vpop.permute.xlu0 %758
  %762 = vset.pattern.permute.xlu0 0
  %763 = vperm.xlu0 %762, %v733
  %v764 = vpop.permute.xlu0 %763
  %767 = vset.pattern.permute.xlu0 0
  %768 = vperm.xlu0 %767, %v734
  %v769 = vpop.permute.xlu0 %768
  %772 = vset.pattern.permute.xlu0 0
  %773 = vperm.xlu0 %772, %v735
  %v774 = vpop.permute.xlu0 %773
  %v776 = vmul.f32 %v535, %v739
  %v777 = vmul.f32 %v622, %v739
  %v778 = vmul.f32 %v709, %v739
  %v779 = vmul.f32 %v537, %v744
  %v780 = vmul.f32 %v624, %v744
  %v781 = vmul.f32 %v711, %v744
  %v782 = vmul.f32 %v540, %v749
  %v783 = vmul.f32 %v627, %v749
  %v784 = vmul.f32 %v714, %v749
  %v785 = vmul.f32 %v542, %v754
  %v786 = vmul.f32 %v629, %v754
  %v787 = vmul.f32 %v716, %v754
  %v788 = vmul.f32 %v545, %v759
  %v789 = vmul.f32 %v632, %v759
  %v790 = vmul.f32 %v719, %v759
  %v791 = vmul.f32 %v547, %v764
  %v792 = vmul.f32 %v634, %v764
  %v793 = vmul.f32 %v721, %v764
  %v794 = vmul.f32 %v550, %v769
  %v795 = vmul.f32 %v637, %v769
  %v796 = vmul.f32 %v724, %v769
  %v797 = vmul.f32 %v552, %v774
  %v798 = vmul.f32 %v639, %v774
  %v799 = vmul.f32 %v726, %v774
  %v800 = vld [vmem:[%s3] sm:$0xff]
  %v801 = vld [vmem:[%s3 + $0x8] sm:$0xff]
  %v802 = vld [vmem:[%s3 + $0x10] sm:$0xff]
  %v803 = vld [vmem:[%s3 + $0x18] sm:$0xff]
  %v804 = vld [vmem:[%s3 + $0x20] sm:$0xff]
  %v805 = vld [vmem:[%s3 + $0x28] sm:$0xff]
  %v806 = vld [vmem:[%s3 + $0x30] sm:$0xff]
  %v807 = vld [vmem:[%s3 + $0x38] sm:$0xff]
  %809 = vset.pattern.permute.xlu0 0
  %810 = vperm.xlu0 %809, %v800
  %v811 = vpop.permute.xlu0 %810
  %814 = vset.pattern.permute.xlu0 0
  %815 = vperm.xlu0 %814, %v801
  %v816 = vpop.permute.xlu0 %815
  %819 = vset.pattern.permute.xlu0 0
  %820 = vperm.xlu0 %819, %v802
  %v821 = vpop.permute.xlu0 %820
  %824 = vset.pattern.permute.xlu0 0
  %825 = vperm.xlu0 %824, %v803
  %v826 = vpop.permute.xlu0 %825
  %829 = vset.pattern.permute.xlu0 0
  %830 = vperm.xlu0 %829, %v804
  %v831 = vpop.permute.xlu0 %830
  %834 = vset.pattern.permute.xlu0 0
  %835 = vperm.xlu0 %834, %v805
  %v836 = vpop.permute.xlu0 %835
  %839 = vset.pattern.permute.xlu0 0
  %840 = vperm.xlu0 %839, %v806
  %v841 = vpop.permute.xlu0 %840
  %844 = vset.pattern.permute.xlu0 0
  %845 = vperm.xlu0 %844, %v807
  %v846 = vpop.permute.xlu0 %845
  %v848 = vadd.f32 %v776, %v811
  %v849 = vadd.f32 %v777, %v811
  %v850 = vadd.f32 %v778, %v811
  %v851 = vadd.f32 %v779, %v816
  %v852 = vadd.f32 %v780, %v816
  %v853 = vadd.f32 %v781, %v816
  %v854 = vadd.f32 %v782, %v821
  %v855 = vadd.f32 %v783, %v821
  %v856 = vadd.f32 %v784, %v821
  %v857 = vadd.f32 %v785, %v826
  %v858 = vadd.f32 %v786, %v826
  %v859 = vadd.f32 %v787, %v826
  %v860 = vadd.f32 %v788, %v831
  %v861 = vadd.f32 %v789, %v831
  %v862 = vadd.f32 %v790, %v831
  %v863 = vadd.f32 %v791, %v836
  %v864 = vadd.f32 %v792, %v836
  %v865 = vadd.f32 %v793, %v836
  %v866 = vadd.f32 %v794, %v841
  %v867 = vadd.f32 %v795, %v841
  %v868 = vadd.f32 %v796, %v841
  %v869 = vadd.f32 %v797, %v846
  %v870 = vadd.f32 %v798, %v846
  %v871 = vadd.f32 %v799, %v846
  %v872 = vmax.f32 %v848, 0.0
  %v873 = vmax.f32 %v849, 0.0
  %v874 = vmax.f32 %v850, 0.0
  %v875 = vmax.f32 %v851, 0.0
  %v876 = vmax.f32 %v852, 0.0
  %v877 = vmax.f32 %v853, 0.0
  %v878 = vmax.f32 %v854, 0.0
  %v879 = vmax.f32 %v855, 0.0
  %v880 = vmax.f32 %v856, 0.0
  %v881 = vmax.f32 %v857, 0.0
  %v882 = vmax.f32 %v858, 0.0
  %v883 = vmax.f32 %v859, 0.0
  %v884 = vmax.f32 %v860, 0.0
  %v885 = vmax.f32 %v861, 0.0
  %v886 = vmax.f32 %v862, 0.0
  %v887 = vmax.f32 %v863, 0.0
  %v888 = vmax.f32 %v864, 0.0
  %v889 = vmax.f32 %v865, 0.0
  %v890 = vmax.f32 %v866, 0.0
  %v891 = vmax.f32 %v867, 0.0
  %v892 = vmax.f32 %v868, 0.0
  %v893 = vmax.f32 %v869, 0.0
  %v894 = vmax.f32 %v870, 0.0
  %v895 = vmax.f32 %v871, 0.0
  %v896 = vpack.c.bf16 %v873, %v872
  %v897 = vpack.c.bf16 %v874, %v874
  %v898 = vpack.c.bf16 %v876, %v875
  %v899 = vpack.c.bf16 %v877, %v877
  %v900 = vpack.c.bf16 %v879, %v878
  %v901 = vpack.c.bf16 %v880, %v880
  %v902 = vpack.c.bf16 %v882, %v881
  %v903 = vpack.c.bf16 %v883, %v883
  %v904 = vpack.c.bf16 %v885, %v884
  %v905 = vpack.c.bf16 %v886, %v886
  %v906 = vpack.c.bf16 %v888, %v887
  %v907 = vpack.c.bf16 %v889, %v889
  %v908 = vpack.c.bf16 %v891, %v890
  %v909 = vpack.c.bf16 %v892, %v892
  %v910 = vpack.c.bf16 %v894, %v893
  %v911 = vpack.c.bf16 %v895, %v895
  %912 = vst [vmem:[%s4] sm:$0xff] %v896
  %913 = vst [vmem:[%s4 + $0x8] sm:$0xf] %v897
  %914 = vst [vmem:[%s4 + $0xc] sm:$0xff] %v898
  %915 = vst [vmem:[%s4 + $0x14] sm:$0xf] %v899
  %916 = vst [vmem:[%s4 + $0x18] sm:$0xff] %v900
  %917 = vst [vmem:[%s4 + $0x20] sm:$0xf] %v901
  %918 = vst [vmem:[%s4 + $0x24] sm:$0xff] %v902
  %919 = vst [vmem:[%s4 + $0x2c] sm:$0xf] %v903
  %920 = vst [vmem:[%s4 + $0x30] sm:$0xff] %v904
  %921 = vst [vmem:[%s4 + $0x38] sm:$0xf] %v905
  %922 = vst [vmem:[%s4 + $0x3c] sm:$0xff] %v906
  %923 = vst [vmem:[%s4 + $0x44] sm:$0xf] %v907
  %924 = vst [vmem:[%s4 + $0x48] sm:$0xff] %v908
  %925 = vst [vmem:[%s4 + $0x50] sm:$0xf] %v909
  %926 = vst [vmem:[%s4 + $0x54] sm:$0xff] %v910
  %927 = vst [vmem:[%s4 + $0x5c] sm:$0xf] %v911
  // Predicated region
  $region18: #{cat_dog_cnn_forward.11} parent=0 // pred_check
    _
  $region19: #{cat_dog_cnn_forward.11} parent=0 // pred_check_branch
    %929 = sbr.rel (0) target = $region21
  $region20: #{cat_dog_cnn_forward.11} parent=0 // pred_region
    _
  $region21: #{cat_dog_cnn_forward.11} parent=0 // pred_fallthru
    _
  // Predicated region
  $region22: #{cat_dog_cnn_forward.11} parent=0 // pred_check
    _
  $region23: #{cat_dog_cnn_forward.11} parent=0 // pred_check_branch
    %931 = sbr.rel (0) target = $region25
  $region24: #{cat_dog_cnn_forward.11} parent=0 // pred_region
    _
  $region25: #{cat_dog_cnn_forward.11} parent=0 // pred_fallthru
    _

// kernel: cat_dog_cnn_forward.12
$region0: #{cat_dog_cnn_forward.12}
  #allocation0 [shape = 'u32[]', space=smem, size = 0x4, offset = 0x4, fixed_abs, tag = 'smem constant byte address 0x4 - core index']
  #allocation1 [shape = 'u32[72,128]{1,0:T(1,128)}', space=vmem, size = 0x9000, scoped, tag = 'internal scratch']
  %s0 = inlined_call_operand.vmem [shape: bf16[128,36], index: 0, kind: input, shape index: {}]
  %s1 = inlined_call_operand.vmem [shape: bf16[128,36], index: 1, kind: input, shape index: {}]
  %s2 = inlined_call_operand.vmem [shape: bf16[128,36], index: 2, kind: input, shape index: {}]
  %s3 = inlined_call_operand.vmem [shape: bf16[128,36], index: 3, kind: input, shape index: {}]
  %s4 = inlined_call_operand.vmem [shape: bf16[128,36], index: 4, kind: output, shape index: {}]
  %s5 = sld [smem:[#allocation0]]
  $region26: #{cat_dog_cnn_forward.12} parent=0
    _
  %s7 = ssub.s32 1, %s5
  %s8 = scalar_select 0, %s7, %s5
  // Predicated region
  $region2: #{cat_dog_cnn_forward.12} parent=0 // pred_check
    _
  $region3: #{cat_dog_cnn_forward.12} parent=0 // pred_check_branch
    %10 = sbr.rel (0) target = $region5
  $region4: #{cat_dog_cnn_forward.12} parent=0 // pred_region
    _
  $region5: #{cat_dog_cnn_forward.12} parent=0 // pred_fallthru
    _
  // Predicated region
  $region6: #{cat_dog_cnn_forward.12} parent=0 // pred_check
    _
  $region7: #{cat_dog_cnn_forward.12} parent=0 // pred_check_branch
    %12 = sbr.rel (0) target = $region9
  $region8: #{cat_dog_cnn_forward.12} parent=0 // pred_region
    _
  $region9: #{cat_dog_cnn_forward.12} parent=0 // pred_fallthru
    _
  // Predicated region
  $region10: #{cat_dog_cnn_forward.12} parent=0 // pred_check
    _
  $region11: #{cat_dog_cnn_forward.12} parent=0 // pred_check_branch
    %14 = sbr.rel (0) target = $region13
  $region12: #{cat_dog_cnn_forward.12} parent=0 // pred_region
    _
  $region13: #{cat_dog_cnn_forward.12} parent=0 // pred_fallthru
    _
  // Predicated region
  $region14: #{cat_dog_cnn_forward.12} parent=0 // pred_check
    _
  $region15: #{cat_dog_cnn_forward.12} parent=0 // pred_check_branch
    %16 = sbr.rel (0) target = $region17
  $region16: #{cat_dog_cnn_forward.12} parent=0 // pred_region
    _
  $region17: #{cat_dog_cnn_forward.12} parent=0 // pred_fallthru
    _
  %v17 = vld [vmem:[%s0] sm:$0xf]
  %v18 = vld [vmem:[%s0 + $0x4] sm:$0xf]
  %v19 = vld [vmem:[%s0 + $0x8] sm:$0xf]
  %v20 = vld [vmem:[%s0 + $0xc] sm:$0xf]
  %v21 = vld [vmem:[%s0 + $0x10] sm:$0xf]
  %v22 = vld [vmem:[%s0 + $0x14] sm:$0xf]
  %v23 = vld [vmem:[%s0 + $0x18] sm:$0xf]
  %v24 = vld [vmem:[%s0 + $0x1c] sm:$0xf]
  %v25 = vld [vmem:[%s0 + $0x20] sm:$0xf]
  %v26 = vld [vmem:[%s0 + $0x24] sm:$0xf]
  %v27 = vld [vmem:[%s0 + $0x28] sm:$0xf]
  %v28 = vld [vmem:[%s0 + $0x2c] sm:$0xf]
  %v29 = vld [vmem:[%s0 + $0x30] sm:$0xf]
  %v30 = vld [vmem:[%s0 + $0x34] sm:$0xf]
  %v31 = vld [vmem:[%s0 + $0x38] sm:$0xf]
  %v32 = vld [vmem:[%s0 + $0x3c] sm:$0xf]
  %v33 = vld [vmem:[%s1] sm:$0xf]
  %v34 = vld [vmem:[%s1 + $0x4] sm:$0xf]
  %v35 = vld [vmem:[%s1 + $0x8] sm:$0xf]
  %v36 = vld [vmem:[%s1 + $0xc] sm:$0xf]
  %v37 = vld [vmem:[%s1 + $0x10] sm:$0xf]
  %v38 = vld [vmem:[%s1 + $0x14] sm:$0xf]
  %v39 = vld [vmem:[%s1 + $0x18] sm:$0xf]
  %v40 = vld [vmem:[%s1 + $0x1c] sm:$0xf]
  %v41 = vld [vmem:[%s1 + $0x20] sm:$0xf]
  %v42 = vld [vmem:[%s1 + $0x24] sm:$0xf]
  %v43 = vld [vmem:[%s1 + $0x28] sm:$0xf]
  %v44 = vld [vmem:[%s1 + $0x2c] sm:$0xf]
  %v45 = vld [vmem:[%s1 + $0x30] sm:$0xf]
  %v46 = vld [vmem:[%s1 + $0x34] sm:$0xf]
  %v47 = vld [vmem:[%s1 + $0x38] sm:$0xf]
  %v48 = vld [vmem:[%s1 + $0x3c] sm:$0xf]
  %v49 = vunpack.c.l.bf16 %v17
  %v50 = vunpack.c.l.bf16 %v18
  %v51 = vunpack.c.l.bf16 %v19
  %v52 = vunpack.c.l.bf16 %v20
  %v53 = vunpack.c.l.bf16 %v21
  %v54 = vunpack.c.l.bf16 %v22
  %v55 = vunpack.c.l.bf16 %v23
  %v56 = vunpack.c.l.bf16 %v24
  %v57 = vunpack.c.l.bf16 %v25
  %v58 = vunpack.c.l.bf16 %v26
  %v59 = vunpack.c.l.bf16 %v27
  %v60 = vunpack.c.l.bf16 %v28
  %v61 = vunpack.c.l.bf16 %v29
  %v62 = vunpack.c.l.bf16 %v30
  %v63 = vunpack.c.l.bf16 %v31
  %v64 = vunpack.c.l.bf16 %v32
  %v65 = vunpack.c.l.bf16 %v33
  %v66 = vunpack.c.l.bf16 %v34
  %v67 = vunpack.c.l.bf16 %v35
  %v68 = vunpack.c.l.bf16 %v36
  %v69 = vunpack.c.l.bf16 %v37
  %v70 = vunpack.c.l.bf16 %v38
  %v71 = vunpack.c.l.bf16 %v39
  %v72 = vunpack.c.l.bf16 %v40
  %v73 = vunpack.c.l.bf16 %v41
  %v74 = vunpack.c.l.bf16 %v42
  %v75 = vunpack.c.l.bf16 %v43
  %v76 = vunpack.c.l.bf16 %v44
  %v77 = vunpack.c.l.bf16 %v45
  %v78 = vunpack.c.l.bf16 %v46
  %v79 = vunpack.c.l.bf16 %v47
  %v80 = vunpack.c.l.bf16 %v48
  %v81 = vmax.f32 %v49, %v65
  %v82 = vmax.f32 %v50, %v66
  %v83 = vmax.f32 %v51, %v67
  %v84 = vmax.f32 %v52, %v68
  %v85 = vmax.f32 %v53, %v69
  %v86 = vmax.f32 %v54, %v70
  %v87 = vmax.f32 %v55, %v71
  %v88 = vmax.f32 %v56, %v72
  %v89 = vmax.f32 %v57, %v73
  %v90 = vmax.f32 %v58, %v74
  %v91 = vmax.f32 %v59, %v75
  %v92 = vmax.f32 %v60, %v76
  %v93 = vmax.f32 %v61, %v77
  %v94 = vmax.f32 %v62, %v78
  %v95 = vmax.f32 %v63, %v79
  %v96 = vmax.f32 %v64, %v80
  %v97 = vpack.c.bf16 %v81, %v81
  %v98 = vpack.c.bf16 %v82, %v82
  %v99 = vpack.c.bf16 %v83, %v83
  %v100 = vpack.c.bf16 %v84, %v84
  %v101 = vpack.c.bf16 %v85, %v85
  %v102 = vpack.c.bf16 %v86, %v86
  %v103 = vpack.c.bf16 %v87, %v87
  %v104 = vpack.c.bf16 %v88, %v88
  %v105 = vpack.c.bf16 %v89, %v89
  %v106 = vpack.c.bf16 %v90, %v90
  %v107 = vpack.c.bf16 %v91, %v91
  %v108 = vpack.c.bf16 %v92, %v92
  %v109 = vpack.c.bf16 %v93, %v93
  %v110 = vpack.c.bf16 %v94, %v94
  %v111 = vpack.c.bf16 %v95, %v95
  %v112 = vpack.c.bf16 %v96, %v96
  %v113 = vld [vmem:[%s2] sm:$0xf]
  %v114 = vld [vmem:[%s2 + $0x4] sm:$0xf]
  %v115 = vld [vmem:[%s2 + $0x8] sm:$0xf]
  %v116 = vld [vmem:[%s2 + $0xc] sm:$0xf]
  %v117 = vld [vmem:[%s2 + $0x10] sm:$0xf]
  %v118 = vld [vmem:[%s2 + $0x14] sm:$0xf]
  %v119 = vld [vmem:[%s2 + $0x18] sm:$0xf]
  %v120 = vld [vmem:[%s2 + $0x1c] sm:$0xf]
  %v121 = vld [vmem:[%s2 + $0x20] sm:$0xf]
  %v122 = vld [vmem:[%s2 + $0x24] sm:$0xf]
  %v123 = vld [vmem:[%s2 + $0x28] sm:$0xf]
  %v124 = vld [vmem:[%s2 + $0x2c] sm:$0xf]
  %v125 = vld [vmem:[%s2 + $0x30] sm:$0xf]
  %v126 = vld [vmem:[%s2 + $0x34] sm:$0xf]
  %v127 = vld [vmem:[%s2 + $0x38] sm:$0xf]
  %v128 = vld [vmem:[%s2 + $0x3c] sm:$0xf]
  %v129 = vld [vmem:[%s3] sm:$0xf]
  %v130 = vld [vmem:[%s3 + $0x4] sm:$0xf]
  %v131 = vld [vmem:[%s3 + $0x8] sm:$0xf]
  %v132 = vld [vmem:[%s3 + $0xc] sm:$0xf]
  %v133 = vld [vmem:[%s3 + $0x10] sm:$0xf]
  %v134 = vld [vmem:[%s3 + $0x14] sm:$0xf]
  %v135 = vld [vmem:[%s3 + $0x18] sm:$0xf]
  %v136 = vld [vmem:[%s3 + $0x1c] sm:$0xf]
  %v137 = vld [vmem:[%s3 + $0x20] sm:$0xf]
  %v138 = vld [vmem:[%s3 + $0x24] sm:$0xf]
  %v139 = vld [vmem:[%s3 + $0x28] sm:$0xf]
  %v140 = vld [vmem:[%s3 + $0x2c] sm:$0xf]
  %v141 = vld [vmem:[%s3 + $0x30] sm:$0xf]
  %v142 = vld [vmem:[%s3 + $0x34] sm:$0xf]
  %v143 = vld [vmem:[%s3 + $0x38] sm:$0xf]
  %v144 = vld [vmem:[%s3 + $0x3c] sm:$0xf]
  %v145 = vunpack.c.l.bf16 %v113
  %v146 = vunpack.c.l.bf16 %v114
  %v147 = vunpack.c.l.bf16 %v115
  %v148 = vunpack.c.l.bf16 %v116
  %v149 = vunpack.c.l.bf16 %v117
  %v150 = vunpack.c.l.bf16 %v118
  %v151 = vunpack.c.l.bf16 %v119
  %v152 = vunpack.c.l.bf16 %v120
  %v153 = vunpack.c.l.bf16 %v121
  %v154 = vunpack.c.l.bf16 %v122
  %v155 = vunpack.c.l.bf16 %v123
  %v156 = vunpack.c.l.bf16 %v124
  %v157 = vunpack.c.l.bf16 %v125
  %v158 = vunpack.c.l.bf16 %v126
  %v159 = vunpack.c.l.bf16 %v127
  %v160 = vunpack.c.l.bf16 %v128
  %v161 = vunpack.c.l.bf16 %v129
  %v162 = vunpack.c.l.bf16 %v130
  %v163 = vunpack.c.l.bf16 %v131
  %v164 = vunpack.c.l.bf16 %v132
  %v165 = vunpack.c.l.bf16 %v133
  %v166 = vunpack.c.l.bf16 %v134
  %v167 = vunpack.c.l.bf16 %v135
  %v168 = vunpack.c.l.bf16 %v136
  %v169 = vunpack.c.l.bf16 %v137
  %v170 = vunpack.c.l.bf16 %v138
  %v171 = vunpack.c.l.bf16 %v139
  %v172 = vunpack.c.l.bf16 %v140
  %v173 = vunpack.c.l.bf16 %v141
  %v174 = vunpack.c.l.bf16 %v142
  %v175 = vunpack.c.l.bf16 %v143
  %v176 = vunpack.c.l.bf16 %v144
  %v177 = vmax.f32 %v145, %v161
  %v178 = vmax.f32 %v146, %v162
  %v179 = vmax.f32 %v147, %v163
  %v180 = vmax.f32 %v148, %v164
  %v181 = vmax.f32 %v149, %v165
  %v182 = vmax.f32 %v150, %v166
  %v183 = vmax.f32 %v151, %v167
  %v184 = vmax.f32 %v152, %v168
  %v185 = vmax.f32 %v153, %v169
  %v186 = vmax.f32 %v154, %v170
  %v187 = vmax.f32 %v155, %v171
  %v188 = vmax.f32 %v156, %v172
  %v189 = vmax.f32 %v157, %v173
  %v190 = vmax.f32 %v158, %v174
  %v191 = vmax.f32 %v159, %v175
  %v192 = vmax.f32 %v160, %v176
  %v193 = vpack.c.bf16 %v177, %v177
  %v194 = vpack.c.bf16 %v178, %v178
  %v195 = vpack.c.bf16 %v179, %v179
  %v196 = vpack.c.bf16 %v180, %v180
  %v197 = vpack.c.bf16 %v181, %v181
  %v198 = vpack.c.bf16 %v182, %v182
  %v199 = vpack.c.bf16 %v183, %v183
  %v200 = vpack.c.bf16 %v184, %v184
  %v201 = vpack.c.bf16 %v185, %v185
  %v202 = vpack.c.bf16 %v186, %v186
  %v203 = vpack.c.bf16 %v187, %v187
  %v204 = vpack.c.bf16 %v188, %v188
  %v205 = vpack.c.bf16 %v189, %v189
  %v206 = vpack.c.bf16 %v190, %v190
  %v207 = vpack.c.bf16 %v191, %v191
  %v208 = vpack.c.bf16 %v192, %v192
  %v209 = vunpack.c.l.bf16 %v97
  %v210 = vunpack.c.l.bf16 %v98
  %v211 = vunpack.c.l.bf16 %v99
  %v212 = vunpack.c.l.bf16 %v100
  %v213 = vunpack.c.l.bf16 %v101
  %v214 = vunpack.c.l.bf16 %v102
  %v215 = vunpack.c.l.bf16 %v103
  %v216 = vunpack.c.l.bf16 %v104
  %v217 = vunpack.c.l.bf16 %v105
  %v218 = vunpack.c.l.bf16 %v106
  %v219 = vunpack.c.l.bf16 %v107
  %v220 = vunpack.c.l.bf16 %v108
  %v221 = vunpack.c.l.bf16 %v109
  %v222 = vunpack.c.l.bf16 %v110
  %v223 = vunpack.c.l.bf16 %v111
  %v224 = vunpack.c.l.bf16 %v112
  %v225 = vunpack.c.l.bf16 %v193
  %v226 = vunpack.c.l.bf16 %v194
  %v227 = vunpack.c.l.bf16 %v195
  %v228 = vunpack.c.l.bf16 %v196
  %v229 = vunpack.c.l.bf16 %v197
  %v230 = vunpack.c.l.bf16 %v198
  %v231 = vunpack.c.l.bf16 %v199
  %v232 = vunpack.c.l.bf16 %v200
  %v233 = vunpack.c.l.bf16 %v201
  %v234 = vunpack.c.l.bf16 %v202
  %v235 = vunpack.c.l.bf16 %v203
  %v236 = vunpack.c.l.bf16 %v204
  %v237 = vunpack.c.l.bf16 %v205
  %v238 = vunpack.c.l.bf16 %v206
  %v239 = vunpack.c.l.bf16 %v207
  %v240 = vunpack.c.l.bf16 %v208
  %v241 = vmax.f32 %v209, %v225
  %v242 = vmax.f32 %v210, %v226
  %v243 = vmax.f32 %v211, %v227
  %v244 = vmax.f32 %v212, %v228
  %v245 = vmax.f32 %v213, %v229
  %v246 = vmax.f32 %v214, %v230
  %v247 = vmax.f32 %v215, %v231
  %v248 = vmax.f32 %v216, %v232
  %v249 = vmax.f32 %v217, %v233
  %v250 = vmax.f32 %v218, %v234
  %v251 = vmax.f32 %v219, %v235
  %v252 = vmax.f32 %v220, %v236
  %v253 = vmax.f32 %v221, %v237
  %v254 = vmax.f32 %v222, %v238
  %v255 = vmax.f32 %v223, %v239
  %v256 = vmax.f32 %v224, %v240
  %v257 = vpack.c.bf16 %v241, %v241
  %v258 = vpack.c.bf16 %v242, %v242
  %v259 = vpack.c.bf16 %v243, %v243
  %v260 = vpack.c.bf16 %v244, %v244
  %v261 = vpack.c.bf16 %v245, %v245
  %v262 = vpack.c.bf16 %v246, %v246
  %v263 = vpack.c.bf16 %v247, %v247
  %v264 = vpack.c.bf16 %v248, %v248
  %v265 = vpack.c.bf16 %v249, %v249
  %v266 = vpack.c.bf16 %v250, %v250
  %v267 = vpack.c.bf16 %v251, %v251
  %v268 = vpack.c.bf16 %v252, %v252
  %v269 = vpack.c.bf16 %v253, %v253
  %v270 = vpack.c.bf16 %v254, %v254
  %v271 = vpack.c.bf16 %v255, %v255
  %v272 = vpack.c.bf16 %v256, %v256
  %vm273 = vcmask 289792
  %274 = vst.msk [vmem:[%s4] sm:$0xf] %vm273, %v257
  %275 = vst.msk [vmem:[%s4 + $0x4] sm:$0xf] %vm273, %v258
  %276 = vst.msk [vmem:[%s4 + $0x8] sm:$0xf] %vm273, %v259
  %277 = vst.msk [vmem:[%s4 + $0xc] sm:$0xf] %vm273, %v260
  %278 = vst.msk [vmem:[%s4 + $0x10] sm:$0xf] %vm273, %v261
  %279 = vst.msk [vmem:[%s4 + $0x14] sm:$0xf] %vm273, %v262
  %280 = vst.msk [vmem:[%s4 + $0x18] sm:$0xf] %vm273, %v263
  %281 = vst.msk [vmem:[%s4 + $0x1c] sm:$0xf] %vm273, %v264
  %282 = vst.msk [vmem:[%s4 + $0x20] sm:$0xf] %vm273, %v265
  %283 = vst.msk [vmem:[%s4 + $0x24] sm:$0xf] %vm273, %v266
  %284 = vst.msk [vmem:[%s4 + $0x28] sm:$0xf] %vm273, %v267
  %285 = vst.msk [vmem:[%s4 + $0x2c] sm:$0xf] %vm273, %v268
  %286 = vst.msk [vmem:[%s4 + $0x30] sm:$0xf] %vm273, %v269
  %287 = vst.msk [vmem:[%s4 + $0x34] sm:$0xf] %vm273, %v270
  %288 = vst.msk [vmem:[%s4 + $0x38] sm:$0xf] %vm273, %v271
  %289 = vst.msk [vmem:[%s4 + $0x3c] sm:$0xf] %vm273, %v272
  // Predicated region
  $region18: #{cat_dog_cnn_forward.12} parent=0 // pred_check
    _
  $region19: #{cat_dog_cnn_forward.12} parent=0 // pred_check_branch
    %291 = sbr.rel (0) target = $region21
  $region20: #{cat_dog_cnn_forward.12} parent=0 // pred_region
    _
  $region21: #{cat_dog_cnn_forward.12} parent=0 // pred_fallthru
    _
  // Predicated region
  $region22: #{cat_dog_cnn_forward.12} parent=0 // pred_check
    _
  $region23: #{cat_dog_cnn_forward.12} parent=0 // pred_check_branch
    %293 = sbr.rel (0) target = $region25
  $region24: #{cat_dog_cnn_forward.12} parent=0 // pred_region
    _
  $region25: #{cat_dog_cnn_forward.12} parent=0 // pred_fallthru
    _

// kernel: cat_dog_cnn_forward.13
$region0: #{cat_dog_cnn_forward.13}
  #allocation0 [shape = 'u32[]', space=smem, size = 0x4, offset = 0x4, fixed_abs, tag = 'smem constant byte address 0x4 - core index']
  #allocation1 [shape = 'u32[72,128]{1,0:T(1,128)}', space=vmem, size = 0x9000, scoped, tag = 'internal scratch']
  %s0 = inlined_call_operand.vmem [shape: bf16[2,2304], index: 0, kind: input, shape index: {}]
  %s1 = inlined_call_operand.vmem [shape: bf16[2304,500], index: 1, kind: input, shape index: {}]
  %s2 = inlined_call_operand.vmem [shape: f32[1,500], index: 2, kind: input, shape index: {}]
  %s3 = inlined_call_operand.vmem [shape: bf16[500,50], index: 3, kind: input, shape index: {}]
  %s4 = inlined_call_operand.vmem [shape: f32[1,50], index: 4, kind: input, shape index: {}]
  %s5 = inlined_call_operand.vmem [shape: bf16[50,2], index: 5, kind: input, shape index: {}]
  %s6 = inlined_call_operand.vmem [shape: f32[1,2], index: 6, kind: input, shape index: {}]
  %s7 = inlined_call_operand.hbm [shape: f32[2,2], index: 7, kind: output, shape index: {}]
  %s8 = sld [smem:[#allocation0]]
  $region38: #{cat_dog_cnn_forward.13} parent=0
    _
  %s10 = ssub.s32 1, %s8
  %s11 = scalar_select 0, %s10, %s8
  $region1: #{cat_dog_cnn_forward.13} parent=0
    #allocation2 [shape = 'u8[1024]{0}', space=vmem, size = 0x400, scoped, tag = 'output window, operand 0, single buffered']
    #allocation3 [shape = 's32[1]{0}', space=sflag, size = 0x4, scoped, tag = 'scoped memory for cat_dog_cnn_forward.13']
    %12 = vsyncpa [#allocation3], 0
    // Predicated region
    $region2: #{cat_dog_cnn_forward.13} parent=1 // pred_check
      _
    $region3: #{cat_dog_cnn_forward.13} parent=1 // pred_check_branch
      %14 = sbr.rel (0) target = $region5
    $region4: #{cat_dog_cnn_forward.13} parent=1 // pred_region
      _
    $region5: #{cat_dog_cnn_forward.13} parent=1 // pred_fallthru
      _
    // Predicated region
    $region6: #{cat_dog_cnn_forward.13} parent=1 // pred_check
      _
    $region7: #{cat_dog_cnn_forward.13} parent=1 // pred_check_branch
      %16 = sbr.rel (0) target = $region9
    $region8: #{cat_dog_cnn_forward.13} parent=1 // pred_region
      _
    $region9: #{cat_dog_cnn_forward.13} parent=1 // pred_fallthru
      _
    // Predicated region
    $region10: #{cat_dog_cnn_forward.13} parent=1 // pred_check
      _
    $region11: #{cat_dog_cnn_forward.13} parent=1 // pred_check_branch
      %18 = sbr.rel (0) target = $region13
    $region12: #{cat_dog_cnn_forward.13} parent=1 // pred_region
      _
    $region13: #{cat_dog_cnn_forward.13} parent=1 // pred_fallthru
      _
    // Predicated region
    $region14: #{cat_dog_cnn_forward.13} parent=1 // pred_check
      _
    $region15: #{cat_dog_cnn_forward.13} parent=1 // pred_check_branch
      %20 = sbr.rel (0) target = $region17
    $region16: #{cat_dog_cnn_forward.13} parent=1 // pred_region
      _
    $region17: #{cat_dog_cnn_forward.13} parent=1 // pred_fallthru
      _
    // Predicated region
    $region18: #{cat_dog_cnn_forward.13} parent=1 // pred_check
      _
    $region19: #{cat_dog_cnn_forward.13} parent=1 // pred_check_branch
      %22 = sbr.rel (0) target = $region21
    $region20: #{cat_dog_cnn_forward.13} parent=1 // pred_region
      _
    $region21: #{cat_dog_cnn_forward.13} parent=1 // pred_fallthru
      _
    // Predicated region
    $region22: #{cat_dog_cnn_forward.13} parent=1 // pred_check
      _
    $region23: #{cat_dog_cnn_forward.13} parent=1 // pred_check_branch
      %24 = sbr.rel (0) target = $region25
    $region24: #{cat_dog_cnn_forward.13} parent=1 // pred_region
      _
    $region25: #{cat_dog_cnn_forward.13} parent=1 // pred_fallthru
      _
    // Predicated region
    $region26: #{cat_dog_cnn_forward.13} parent=1 // pred_check
      _
    $region27: #{cat_dog_cnn_forward.13} parent=1 // pred_check_branch
      %26 = sbr.rel (0) target = $region29
    $region28: #{cat_dog_cnn_forward.13} parent=1 // pred_region
      _
    $region29: #{cat_dog_cnn_forward.13} parent=1 // pred_fallthru
      _
    %v28 = vld [vmem:[%s0] sm:$0xff]
    %v29 = vld [vmem:[%s0 + $0x8] sm:$0xff]
    %v30 = vld [vmem:[%s0 + $0x10] sm:$0x3]
    %v31 = vld [vmem:[%s1] sm:$0xff]
    %v32 = vld [vmem:[%s1 + $0x8] sm:$0xff]
    %v33 = vld [vmem:[%s1 + $0x10] sm:$0xff]
    %v34 = vld [vmem:[%s1 + $0x18] sm:$0xff]
    %v35 = vld [vmem:[%s1 + $0x20] sm:$0xff]
    %v36 = vld [vmem:[%s1 + $0x28] sm:$0xff]
    %v37 = vld [vmem:[%s1 + $0x30] sm:$0xff]
    %v38 = vld [vmem:[%s1 + $0x38] sm:$0xff]
    %v39 = vld [vmem:[%s1 + $0x40] sm:$0xff]
    %v40 = vld [vmem:[%s1 + $0x48] sm:$0xff]
    %v41 = vld [vmem:[%s1 + $0x50] sm:$0xff]
    %v42 = vld [vmem:[%s1 + $0x58] sm:$0xff]
    %v43 = vld [vmem:[%s1 + $0x60] sm:$0xff]
    %v44 = vld [vmem:[%s1 + $0x68] sm:$0xff]
    %v45 = vld [vmem:[%s1 + $0x70] sm:$0xff]
    %v46 = vld [vmem:[%s1 + $0x78] sm:$0xff]
    %v47 = vld [vmem:[%s1 + $0x80] sm:$0xff]
    %v48 = vld [vmem:[%s1 + $0x88] sm:$0xff]
    %v49 = vld [vmem:[%s1 + $0x90] sm:$0xff]
    %v50 = vld [vmem:[%s1 + $0x98] sm:$0xff]
    %v51 = vld [vmem:[%s1 + $0xa0] sm:$0xff]
    %v52 = vld [vmem:[%s1 + $0xa8] sm:$0xff]
    %v53 = vld [vmem:[%s1 + $0xb0] sm:$0xff]
    %v54 = vld [vmem:[%s1 + $0xb8] sm:$0xff]
    %v55 = vld [vmem:[%s1 + $0xc0] sm:$0xff]
    %v56 = vld [vmem:[%s1 + $0xc8] sm:$0xff]
    %v57 = vld [vmem:[%s1 + $0xd0] sm:$0xff]
    %v58 = vld [vmem:[%s1 + $0xd8] sm:$0xff]
    %v59 = vld [vmem:[%s1 + $0xe0] sm:$0xff]
    %v60 = vld [vmem:[%s1 + $0xe8] sm:$0xff]
    %v61 = vld [vmem:[%s1 + $0xf0] sm:$0xff]
    %v62 = vld [vmem:[%s1 + $0xf8] sm:$0xff]
    %v63 = vld [vmem:[%s1 + $0x100] sm:$0xff]
    %v64 = vld [vmem:[%s1 + $0x108] sm:$0xff]
    %v65 = vld [vmem:[%s1 + $0x110] sm:$0xff]
    %v66 = vld [vmem:[%s1 + $0x118] sm:$0xff]
    %v67 = vld [vmem:[%s1 + $0x120] sm:$0xff]
    %v68 = vld [vmem:[%s1 + $0x128] sm:$0xff]
    %v69 = vld [vmem:[%s1 + $0x130] sm:$0xff]
    %v70 = vld [vmem:[%s1 + $0x138] sm:$0xff]
    %v71 = vld [vmem:[%s1 + $0x140] sm:$0xff]
    %v72 = vld [vmem:[%s1 + $0x148] sm:$0xff]
    %v73 = vld [vmem:[%s1 + $0x150] sm:$0xff]
    %v74 = vld [vmem:[%s1 + $0x158] sm:$0xff]
    %v75 = vld [vmem:[%s1 + $0x160] sm:$0xff]
    %v76 = vld [vmem:[%s1 + $0x168] sm:$0xff]
    %v77 = vld [vmem:[%s1 + $0x170] sm:$0xff]
    %v78 = vld [vmem:[%s1 + $0x178] sm:$0xff]
    %v79 = vld [vmem:[%s1 + $0x180] sm:$0xff]
    %v80 = vld [vmem:[%s1 + $0x188] sm:$0xff]
    %v81 = vld [vmem:[%s1 + $0x190] sm:$0xff]
    %v82 = vld [vmem:[%s1 + $0x198] sm:$0xff]
    %v83 = vld [vmem:[%s1 + $0x1a0] sm:$0xff]
    %v84 = vld [vmem:[%s1 + $0x1a8] sm:$0xff]
    %v85 = vld [vmem:[%s1 + $0x1b0] sm:$0xff]
    %v86 = vld [vmem:[%s1 + $0x1b8] sm:$0xff]
    %v87 = vld [vmem:[%s1 + $0x1c0] sm:$0xff]
    %v88 = vld [vmem:[%s1 + $0x1c8] sm:$0xff]
    %v89 = vld [vmem:[%s1 + $0x1d0] sm:$0xff]
    %v90 = vld [vmem:[%s1 + $0x1d8] sm:$0xff]
    %v91 = vld [vmem:[%s1 + $0x1e0] sm:$0xff]
    %v92 = vld [vmem:[%s1 + $0x1e8] sm:$0xff]
    %v93 = vld [vmem:[%s1 + $0x1f0] sm:$0xff]
    %v94 = vld [vmem:[%s1 + $0x1f8] sm:$0xff]
    %v95 = vld [vmem:[%s1 + $0x200] sm:$0xff]
    %v96 = vld [vmem:[%s1 + $0x208] sm:$0xff]
    %v97 = vld [vmem:[%s1 + $0x210] sm:$0xff]
    %v98 = vld [vmem:[%s1 + $0x218] sm:$0xff]
    %v99 = vld [vmem:[%s1 + $0x220] sm:$0xff]
    %v100 = vld [vmem:[%s1 + $0x228] sm:$0xff]
    %v101 = vld [vmem:[%s1 + $0x230] sm:$0xff]
    %v102 = vld [vmem:[%s1 + $0x238] sm:$0xff]
    %v103 = vld [vmem:[%s1 + $0x240] sm:$0xff]
    %v104 = vld [vmem:[%s1 + $0x248] sm:$0xff]
    %v105 = vld [vmem:[%s1 + $0x250] sm:$0xff]
    %v106 = vld [vmem:[%s1 + $0x258] sm:$0xff]
    %v107 = vld [vmem:[%s1 + $0x260] sm:$0xff]
    %v108 = vld [vmem:[%s1 + $0x268] sm:$0xff]
    %v109 = vld [vmem:[%s1 + $0x270] sm:$0xff]
    %v110 = vld [vmem:[%s1 + $0x278] sm:$0xff]
    %v111 = vld [vmem:[%s1 + $0x280] sm:$0xff]
    %v112 = vld [vmem:[%s1 + $0x288] sm:$0xff]
    %v113 = vld [vmem:[%s1 + $0x290] sm:$0xff]
    %v114 = vld [vmem:[%s1 + $0x298] sm:$0xff]
    %v115 = vld [vmem:[%s1 + $0x2a0] sm:$0xff]
    %v116 = vld [vmem:[%s1 + $0x2a8] sm:$0xff]
    %v117 = vld [vmem:[%s1 + $0x2b0] sm:$0xff]
    %v118 = vld [vmem:[%s1 + $0x2b8] sm:$0xff]
    %v119 = vld [vmem:[%s1 + $0x2c0] sm:$0xff]
    %v120 = vld [vmem:[%s1 + $0x2c8] sm:$0xff]
    %v121 = vld [vmem:[%s1 + $0x2d0] sm:$0xff]
    %v122 = vld [vmem:[%s1 + $0x2d8] sm:$0xff]
    %v123 = vld [vmem:[%s1 + $0x2e0] sm:$0xff]
    %v124 = vld [vmem:[%s1 + $0x2e8] sm:$0xff]
    %v125 = vld [vmem:[%s1 + $0x2f0] sm:$0xff]
    %v126 = vld [vmem:[%s1 + $0x2f8] sm:$0xff]
    %v127 = vld [vmem:[%s1 + $0x300] sm:$0xff]
    %v128 = vld [vmem:[%s1 + $0x308] sm:$0xff]
    %v129 = vld [vmem:[%s1 + $0x310] sm:$0xff]
    %v130 = vld [vmem:[%s1 + $0x318] sm:$0xff]
    %v131 = vld [vmem:[%s1 + $0x320] sm:$0xff]
    %v132 = vld [vmem:[%s1 + $0x328] sm:$0xff]
    %v133 = vld [vmem:[%s1 + $0x330] sm:$0xff]
    %v134 = vld [vmem:[%s1 + $0x338] sm:$0xff]
    %v135 = vld [vmem:[%s1 + $0x340] sm:$0xff]
    %v136 = vld [vmem:[%s1 + $0x348] sm:$0xff]
    %v137 = vld [vmem:[%s1 + $0x350] sm:$0xff]
    %v138 = vld [vmem:[%s1 + $0x358] sm:$0xff]
    %v139 = vld [vmem:[%s1 + $0x360] sm:$0xff]
    %v140 = vld [vmem:[%s1 + $0x368] sm:$0xff]
    %v141 = vld [vmem:[%s1 + $0x370] sm:$0xff]
    %v142 = vld [vmem:[%s1 + $0x378] sm:$0xff]
    %v143 = vld [vmem:[%s1 + $0x380] sm:$0xff]
    %v144 = vld [vmem:[%s1 + $0x388] sm:$0xff]
    %v145 = vld [vmem:[%s1 + $0x390] sm:$0xff]
    %v146 = vld [vmem:[%s1 + $0x398] sm:$0xff]
    %v147 = vld [vmem:[%s1 + $0x3a0] sm:$0xff]
    %v148 = vld [vmem:[%s1 + $0x3a8] sm:$0xff]
    %v149 = vld [vmem:[%s1 + $0x3b0] sm:$0xff]
    %v150 = vld [vmem:[%s1 + $0x3b8] sm:$0xff]
    %v151 = vld [vmem:[%s1 + $0x3c0] sm:$0xff]
    %v152 = vld [vmem:[%s1 + $0x3c8] sm:$0xff]
    %v153 = vld [vmem:[%s1 + $0x3d0] sm:$0xff]
    %v154 = vld [vmem:[%s1 + $0x3d8] sm:$0xff]
    %v155 = vld [vmem:[%s1 + $0x3e0] sm:$0xff]
    %v156 = vld [vmem:[%s1 + $0x3e8] sm:$0xff]
    %v157 = vld [vmem:[%s1 + $0x3f0] sm:$0xff]
    %v158 = vld [vmem:[%s1 + $0x3f8] sm:$0xff]
    %v159 = vld [vmem:[%s1 + $0x400] sm:$0xff]
    %v160 = vld [vmem:[%s1 + $0x408] sm:$0xff]
    %v161 = vld [vmem:[%s1 + $0x410] sm:$0xff]
    %v162 = vld [vmem:[%s1 + $0x418] sm:$0xff]
    %v163 = vld [vmem:[%s1 + $0x420] sm:$0xff]
    %v164 = vld [vmem:[%s1 + $0x428] sm:$0xff]
    %v165 = vld [vmem:[%s1 + $0x430] sm:$0xff]
    %v166 = vld [vmem:[%s1 + $0x438] sm:$0xff]
    %v167 = vld [vmem:[%s1 + $0x440] sm:$0xff]
    %v168 = vld [vmem:[%s1 + $0x448] sm:$0xff]
    %v169 = vld [vmem:[%s1 + $0x450] sm:$0xff]
    %v170 = vld [vmem:[%s1 + $0x458] sm:$0xff]
    %v171 = vld [vmem:[%s1 + $0x460] sm:$0xff]
    %v172 = vld [vmem:[%s1 + $0x468] sm:$0xff]
    %v173 = vld [vmem:[%s1 + $0x470] sm:$0xff]
    %v174 = vld [vmem:[%s1 + $0x478] sm:$0xff]
    %v175 = vld [vmem:[%s1 + $0x480] sm:$0xff]
    %v176 = vld [vmem:[%s1 + $0x488] sm:$0xff]
    %v177 = vld [vmem:[%s1 + $0x490] sm:$0xff]
    %v178 = vld [vmem:[%s1 + $0x498] sm:$0xff]
    %v179 = vld [vmem:[%s1 + $0x4a0] sm:$0xff]
    %v180 = vld [vmem:[%s1 + $0x4a8] sm:$0xff]
    %v181 = vld [vmem:[%s1 + $0x4b0] sm:$0xff]
    %v182 = vld [vmem:[%s1 + $0x4b8] sm:$0xff]
    %v183 = vld [vmem:[%s1 + $0x4c0] sm:$0xff]
    %v184 = vld [vmem:[%s1 + $0x4c8] sm:$0xff]
    %v185 = vld [vmem:[%s1 + $0x4d0] sm:$0xff]
    %v186 = vld [vmem:[%s1 + $0x4d8] sm:$0xff]
    %v187 = vld [vmem:[%s1 + $0x4e0] sm:$0xff]
    %v188 = vld [vmem:[%s1 + $0x4e8] sm:$0xff]
    %v189 = vld [vmem:[%s1 + $0x4f0] sm:$0xff]
    %v190 = vld [vmem:[%s1 + $0x4f8] sm:$0xff]
    %v191 = vld [vmem:[%s1 + $0x500] sm:$0xff]
    %v192 = vld [vmem:[%s1 + $0x508] sm:$0xff]
    %v193 = vld [vmem:[%s1 + $0x510] sm:$0xff]
    %v194 = vld [vmem:[%s1 + $0x518] sm:$0xff]
    %v195 = vld [vmem:[%s1 + $0x520] sm:$0xff]
    %v196 = vld [vmem:[%s1 + $0x528] sm:$0xff]
    %v197 = vld [vmem:[%s1 + $0x530] sm:$0xff]
    %v198 = vld [vmem:[%s1 + $0x538] sm:$0xff]
    %v199 = vld [vmem:[%s1 + $0x540] sm:$0xff]
    %v200 = vld [vmem:[%s1 + $0x548] sm:$0xff]
    %v201 = vld [vmem:[%s1 + $0x550] sm:$0xff]
    %v202 = vld [vmem:[%s1 + $0x558] sm:$0xff]
    %v203 = vld [vmem:[%s1 + $0x560] sm:$0xff]
    %v204 = vld [vmem:[%s1 + $0x568] sm:$0xff]
    %v205 = vld [vmem:[%s1 + $0x570] sm:$0xff]
    %v206 = vld [vmem:[%s1 + $0x578] sm:$0xff]
    %v207 = vld [vmem:[%s1 + $0x580] sm:$0xff]
    %v208 = vld [vmem:[%s1 + $0x588] sm:$0xff]
    %v209 = vld [vmem:[%s1 + $0x590] sm:$0xff]
    %v210 = vld [vmem:[%s1 + $0x598] sm:$0xff]
    %v211 = vld [vmem:[%s1 + $0x5a0] sm:$0xff]
    %v212 = vld [vmem:[%s1 + $0x5a8] sm:$0xff]
    %v213 = vld [vmem:[%s1 + $0x5b0] sm:$0xff]
    %v214 = vld [vmem:[%s1 + $0x5b8] sm:$0xff]
    %v215 = vld [vmem:[%s1 + $0x5c0] sm:$0xff]
    %v216 = vld [vmem:[%s1 + $0x5c8] sm:$0xff]
    %v217 = vld [vmem:[%s1 + $0x5d0] sm:$0xff]
    %v218 = vld [vmem:[%s1 + $0x5d8] sm:$0xff]
    %v219 = vld [vmem:[%s1 + $0x5e0] sm:$0xff]
    %v220 = vld [vmem:[%s1 + $0x5e8] sm:$0xff]
    %v221 = vld [vmem:[%s1 + $0x5f0] sm:$0xff]
    %v222 = vld [vmem:[%s1 + $0x5f8] sm:$0xff]
    %v223 = vld [vmem:[%s1 + $0x600] sm:$0xff]
    %v224 = vld [vmem:[%s1 + $0x608] sm:$0xff]
    %v225 = vld [vmem:[%s1 + $0x610] sm:$0xff]
    %v226 = vld [vmem:[%s1 + $0x618] sm:$0xff]
    %v227 = vld [vmem:[%s1 + $0x620] sm:$0xff]
    %v228 = vld [vmem:[%s1 + $0x628] sm:$0xff]
    %v229 = vld [vmem:[%s1 + $0x630] sm:$0xff]
    %v230 = vld [vmem:[%s1 + $0x638] sm:$0xff]
    %v231 = vld [vmem:[%s1 + $0x640] sm:$0xff]
    %v232 = vld [vmem:[%s1 + $0x648] sm:$0xff]
    %v233 = vld [vmem:[%s1 + $0x650] sm:$0xff]
    %v234 = vld [vmem:[%s1 + $0x658] sm:$0xff]
    %v235 = vld [vmem:[%s1 + $0x660] sm:$0xff]
    %v236 = vld [vmem:[%s1 + $0x668] sm:$0xff]
    %v237 = vld [vmem:[%s1 + $0x670] sm:$0xff]
    %v238 = vld [vmem:[%s1 + $0x678] sm:$0xff]
    %v239 = vld [vmem:[%s1 + $0x680] sm:$0xff]
    %v240 = vld [vmem:[%s1 + $0x688] sm:$0xff]
    %v241 = vld [vmem:[%s1 + $0x690] sm:$0xff]
    %v242 = vld [vmem:[%s1 + $0x698] sm:$0xff]
    %v243 = vld [vmem:[%s1 + $0x6a0] sm:$0xff]
    %v244 = vld [vmem:[%s1 + $0x6a8] sm:$0xff]
    %v245 = vld [vmem:[%s1 + $0x6b0] sm:$0xff]
    %v246 = vld [vmem:[%s1 + $0x6b8] sm:$0xff]
    %v247 = vld [vmem:[%s1 + $0x6c0] sm:$0xff]
    %v248 = vld [vmem:[%s1 + $0x6c8] sm:$0xff]
    %v249 = vld [vmem:[%s1 + $0x6d0] sm:$0xff]
    %v250 = vld [vmem:[%s1 + $0x6d8] sm:$0xff]
    %v251 = vld [vmem:[%s1 + $0x6e0] sm:$0xff]
    %v252 = vld [vmem:[%s1 + $0x6e8] sm:$0xff]
    %v253 = vld [vmem:[%s1 + $0x6f0] sm:$0xff]
    %v254 = vld [vmem:[%s1 + $0x6f8] sm:$0xff]
    %v255 = vld [vmem:[%s1 + $0x700] sm:$0xff]
    %v256 = vld [vmem:[%s1 + $0x708] sm:$0xff]
    %v257 = vld [vmem:[%s1 + $0x710] sm:$0xff]
    %v258 = vld [vmem:[%s1 + $0x718] sm:$0xff]
    %v259 = vld [vmem:[%s1 + $0x720] sm:$0xff]
    %v260 = vld [vmem:[%s1 + $0x728] sm:$0xff]
    %v261 = vld [vmem:[%s1 + $0x730] sm:$0xff]
    %v262 = vld [vmem:[%s1 + $0x738] sm:$0xff]
    %v263 = vld [vmem:[%s1 + $0x740] sm:$0xff]
    %v264 = vld [vmem:[%s1 + $0x748] sm:$0xff]
    %v265 = vld [vmem:[%s1 + $0x750] sm:$0xff]
    %v266 = vld [vmem:[%s1 + $0x758] sm:$0xff]
    %v267 = vld [vmem:[%s1 + $0x760] sm:$0xff]
    %v268 = vld [vmem:[%s1 + $0x768] sm:$0xff]
    %v269 = vld [vmem:[%s1 + $0x770] sm:$0xff]
    %v270 = vld [vmem:[%s1 + $0x778] sm:$0xff]
    %v271 = vld [vmem:[%s1 + $0x780] sm:$0xff]
    %v272 = vld [vmem:[%s1 + $0x788] sm:$0xff]
    %v273 = vld [vmem:[%s1 + $0x790] sm:$0xff]
    %v274 = vld [vmem:[%s1 + $0x798] sm:$0xff]
    %v275 = vld [vmem:[%s1 + $0x7a0] sm:$0xff]
    %v276 = vld [vmem:[%s1 + $0x7a8] sm:$0xff]
    %v277 = vld [vmem:[%s1 + $0x7b0] sm:$0xff]
    %v278 = vld [vmem:[%s1 + $0x7b8] sm:$0xff]
    %v279 = vld [vmem:[%s1 + $0x7c0] sm:$0xff]
    %v280 = vld [vmem:[%s1 + $0x7c8] sm:$0xff]
    %v281 = vld [vmem:[%s1 + $0x7d0] sm:$0xff]
    %v282 = vld [vmem:[%s1 + $0x7d8] sm:$0xff]
    %v283 = vld [vmem:[%s1 + $0x7e0] sm:$0xff]
    %v284 = vld [vmem:[%s1 + $0x7e8] sm:$0xff]
    %v285 = vld [vmem:[%s1 + $0x7f0] sm:$0xff]
    %v286 = vld [vmem:[%s1 + $0x7f8] sm:$0xff]
    %v287 = vld [vmem:[%s1 + $0x800] sm:$0xff]
    %v288 = vld [vmem:[%s1 + $0x808] sm:$0xff]
    %v289 = vld [vmem:[%s1 + $0x810] sm:$0xff]
    %v290 = vld [vmem:[%s1 + $0x818] sm:$0xff]
    %v291 = vld [vmem:[%s1 + $0x820] sm:$0xff]
    %v292 = vld [vmem:[%s1 + $0x828] sm:$0xff]
    %v293 = vld [vmem:[%s1 + $0x830] sm:$0xff]
    %v294 = vld [vmem:[%s1 + $0x838] sm:$0xff]
    %v295 = vld [vmem:[%s1 + $0x840] sm:$0xff]
    %v296 = vld [vmem:[%s1 + $0x848] sm:$0xff]
    %v297 = vld [vmem:[%s1 + $0x850] sm:$0xff]
    %v298 = vld [vmem:[%s1 + $0x858] sm:$0xff]
    %v299 = vld [vmem:[%s1 + $0x860] sm:$0xff]
    %v300 = vld [vmem:[%s1 + $0x868] sm:$0xff]
    %v301 = vld [vmem:[%s1 + $0x870] sm:$0xff]
    %v302 = vld [vmem:[%s1 + $0x878] sm:$0xff]
    %v303 = vld [vmem:[%s1 + $0x880] sm:$0xff]
    %v304 = vld [vmem:[%s1 + $0x888] sm:$0xff]
    %v305 = vld [vmem:[%s1 + $0x890] sm:$0xff]
    %v306 = vld [vmem:[%s1 + $0x898] sm:$0xff]
    %v307 = vld [vmem:[%s1 + $0x8a0] sm:$0xff]
    %v308 = vld [vmem:[%s1 + $0x8a8] sm:$0xff]
    %v309 = vld [vmem:[%s1 + $0x8b0] sm:$0xff]
    %v310 = vld [vmem:[%s1 + $0x8b8] sm:$0xff]
    %v311 = vld [vmem:[%s1 + $0x8c0] sm:$0xff]
    %v312 = vld [vmem:[%s1 + $0x8c8] sm:$0xff]
    %v313 = vld [vmem:[%s1 + $0x8d0] sm:$0xff]
    %v314 = vld [vmem:[%s1 + $0x8d8] sm:$0xff]
    %v315 = vld [vmem:[%s1 + $0x8e0] sm:$0xff]
    %v316 = vld [vmem:[%s1 + $0x8e8] sm:$0xff]
    %v317 = vld [vmem:[%s1 + $0x8f0] sm:$0xff]
    %v318 = vld [vmem:[%s1 + $0x8f8] sm:$0xff]
    %v319 = vld [vmem:[%s1 + $0x900] sm:$0xff]
    %v320 = vld [vmem:[%s1 + $0x908] sm:$0xff]
    %v321 = vld [vmem:[%s1 + $0x910] sm:$0xff]
    %v322 = vld [vmem:[%s1 + $0x918] sm:$0xff]
    %v323 = vld [vmem:[%s1 + $0x920] sm:$0xff]
    %v324 = vld [vmem:[%s1 + $0x928] sm:$0xff]
    %v325 = vld [vmem:[%s1 + $0x930] sm:$0xff]
    %v326 = vld [vmem:[%s1 + $0x938] sm:$0xff]
    %v327 = vld [vmem:[%s1 + $0x940] sm:$0xff]
    %v328 = vld [vmem:[%s1 + $0x948] sm:$0xff]
    %v329 = vld [vmem:[%s1 + $0x950] sm:$0xff]
    %v330 = vld [vmem:[%s1 + $0x958] sm:$0xff]
    %v331 = vld [vmem:[%s1 + $0x960] sm:$0xff]
    %v332 = vld [vmem:[%s1 + $0x968] sm:$0xff]
    %v333 = vld [vmem:[%s1 + $0x970] sm:$0xff]
    %v334 = vld [vmem:[%s1 + $0x978] sm:$0xff]
    %v335 = vld [vmem:[%s1 + $0x980] sm:$0xff]
    %v336 = vld [vmem:[%s1 + $0x988] sm:$0xff]
    %v337 = vld [vmem:[%s1 + $0x990] sm:$0xff]
    %v338 = vld [vmem:[%s1 + $0x998] sm:$0xff]
    %v339 = vld [vmem:[%s1 + $0x9a0] sm:$0xff]
    %v340 = vld [vmem:[%s1 + $0x9a8] sm:$0xff]
    %v341 = vld [vmem:[%s1 + $0x9b0] sm:$0xff]
    %v342 = vld [vmem:[%s1 + $0x9b8] sm:$0xff]
    %v343 = vld [vmem:[%s1 + $0x9c0] sm:$0xff]
    %v344 = vld [vmem:[%s1 + $0x9c8] sm:$0xff]
    %v345 = vld [vmem:[%s1 + $0x9d0] sm:$0xff]
    %v346 = vld [vmem:[%s1 + $0x9d8] sm:$0xff]
    %v347 = vld [vmem:[%s1 + $0x9e0] sm:$0xff]
    %v348 = vld [vmem:[%s1 + $0x9e8] sm:$0xff]
    %v349 = vld [vmem:[%s1 + $0x9f0] sm:$0xff]
    %v350 = vld [vmem:[%s1 + $0x9f8] sm:$0xff]
    %v351 = vld [vmem:[%s1 + $0xa00] sm:$0xff]
    %v352 = vld [vmem:[%s1 + $0xa08] sm:$0xff]
    %v353 = vld [vmem:[%s1 + $0xa10] sm:$0xff]
    %v354 = vld [vmem:[%s1 + $0xa18] sm:$0xff]
    %v355 = vld [vmem:[%s1 + $0xa20] sm:$0xff]
    %v356 = vld [vmem:[%s1 + $0xa28] sm:$0xff]
    %v357 = vld [vmem:[%s1 + $0xa30] sm:$0xff]
    %v358 = vld [vmem:[%s1 + $0xa38] sm:$0xff]
    %v359 = vld [vmem:[%s1 + $0xa40] sm:$0xff]
    %v360 = vld [vmem:[%s1 + $0xa48] sm:$0xff]
    %v361 = vld [vmem:[%s1 + $0xa50] sm:$0xff]
    %v362 = vld [vmem:[%s1 + $0xa58] sm:$0xff]
    %v363 = vld [vmem:[%s1 + $0xa60] sm:$0xff]
    %v364 = vld [vmem:[%s1 + $0xa68] sm:$0xff]
    %v365 = vld [vmem:[%s1 + $0xa70] sm:$0xff]
    %v366 = vld [vmem:[%s1 + $0xa78] sm:$0xff]
    %v367 = vld [vmem:[%s1 + $0xa80] sm:$0xff]
    %v368 = vld [vmem:[%s1 + $0xa88] sm:$0xff]
    %v369 = vld [vmem:[%s1 + $0xa90] sm:$0xff]
    %v370 = vld [vmem:[%s1 + $0xa98] sm:$0xff]
    %v371 = vld [vmem:[%s1 + $0xaa0] sm:$0xff]
    %v372 = vld [vmem:[%s1 + $0xaa8] sm:$0xff]
    %v373 = vld [vmem:[%s1 + $0xab0] sm:$0xff]
    %v374 = vld [vmem:[%s1 + $0xab8] sm:$0xff]
    %v375 = vld [vmem:[%s1 + $0xac0] sm:$0xff]
    %v376 = vld [vmem:[%s1 + $0xac8] sm:$0xff]
    %v377 = vld [vmem:[%s1 + $0xad0] sm:$0xff]
    %v378 = vld [vmem:[%s1 + $0xad8] sm:$0xff]
    %v379 = vld [vmem:[%s1 + $0xae0] sm:$0xff]
    %v380 = vld [vmem:[%s1 + $0xae8] sm:$0xff]
    %v381 = vld [vmem:[%s1 + $0xaf0] sm:$0xff]
    %v382 = vld [vmem:[%s1 + $0xaf8] sm:$0xff]
    %v383 = vld [vmem:[%s1 + $0xb00] sm:$0xff]
    %v384 = vld [vmem:[%s1 + $0xb08] sm:$0xff]
    %v385 = vld [vmem:[%s1 + $0xb10] sm:$0xff]
    %v386 = vld [vmem:[%s1 + $0xb18] sm:$0xff]
    %v387 = vld [vmem:[%s1 + $0xb20] sm:$0xff]
    %v388 = vld [vmem:[%s1 + $0xb28] sm:$0xff]
    %v389 = vld [vmem:[%s1 + $0xb30] sm:$0xff]
    %v390 = vld [vmem:[%s1 + $0xb38] sm:$0xff]
    %v391 = vld [vmem:[%s1 + $0xb40] sm:$0xff]
    %v392 = vld [vmem:[%s1 + $0xb48] sm:$0xff]
    %v393 = vld [vmem:[%s1 + $0xb50] sm:$0xff]
    %v394 = vld [vmem:[%s1 + $0xb58] sm:$0xff]
    %v395 = vld [vmem:[%s1 + $0xb60] sm:$0xff]
    %v396 = vld [vmem:[%s1 + $0xb68] sm:$0xff]
    %v397 = vld [vmem:[%s1 + $0xb70] sm:$0xff]
    %v398 = vld [vmem:[%s1 + $0xb78] sm:$0xff]
    %v399 = vld [vmem:[%s1 + $0xb80] sm:$0xff]
    %v400 = vld [vmem:[%s1 + $0xb88] sm:$0xff]
    %v401 = vld [vmem:[%s1 + $0xb90] sm:$0xff]
    %v402 = vld [vmem:[%s1 + $0xb98] sm:$0xff]
    %v403 = vld [vmem:[%s1 + $0xba0] sm:$0xff]
    %v404 = vld [vmem:[%s1 + $0xba8] sm:$0xff]
    %v405 = vld [vmem:[%s1 + $0xbb0] sm:$0xff]
    %v406 = vld [vmem:[%s1 + $0xbb8] sm:$0xff]
    %v407 = vld [vmem:[%s1 + $0xbc0] sm:$0xff]
    %v408 = vld [vmem:[%s1 + $0xbc8] sm:$0xff]
    %v409 = vld [vmem:[%s1 + $0xbd0] sm:$0xff]
    %v410 = vld [vmem:[%s1 + $0xbd8] sm:$0xff]
    %v411 = vld [vmem:[%s1 + $0xbe0] sm:$0xff]
    %v412 = vld [vmem:[%s1 + $0xbe8] sm:$0xff]
    %v413 = vld [vmem:[%s1 + $0xbf0] sm:$0xff]
    %v414 = vld [vmem:[%s1 + $0xbf8] sm:$0xff]
    %v415 = vld [vmem:[%s1 + $0xc00] sm:$0xff]
    %v416 = vld [vmem:[%s1 + $0xc08] sm:$0xff]
    %v417 = vld [vmem:[%s1 + $0xc10] sm:$0xff]
    %v418 = vld [vmem:[%s1 + $0xc18] sm:$0xff]
    %v419 = vld [vmem:[%s1 + $0xc20] sm:$0xff]
    %v420 = vld [vmem:[%s1 + $0xc28] sm:$0xff]
    %v421 = vld [vmem:[%s1 + $0xc30] sm:$0xff]
    %v422 = vld [vmem:[%s1 + $0xc38] sm:$0xff]
    %v423 = vld [vmem:[%s1 + $0xc40] sm:$0xff]
    %v424 = vld [vmem:[%s1 + $0xc48] sm:$0xff]
    %v425 = vld [vmem:[%s1 + $0xc50] sm:$0xff]
    %v426 = vld [vmem:[%s1 + $0xc58] sm:$0xff]
    %v427 = vld [vmem:[%s1 + $0xc60] sm:$0xff]
    %v428 = vld [vmem:[%s1 + $0xc68] sm:$0xff]
    %v429 = vld [vmem:[%s1 + $0xc70] sm:$0xff]
    %v430 = vld [vmem:[%s1 + $0xc78] sm:$0xff]
    %v431 = vld [vmem:[%s1 + $0xc80] sm:$0xff]
    %v432 = vld [vmem:[%s1 + $0xc88] sm:$0xff]
    %v433 = vld [vmem:[%s1 + $0xc90] sm:$0xff]
    %v434 = vld [vmem:[%s1 + $0xc98] sm:$0xff]
    %v435 = vld [vmem:[%s1 + $0xca0] sm:$0xff]
    %v436 = vld [vmem:[%s1 + $0xca8] sm:$0xff]
    %v437 = vld [vmem:[%s1 + $0xcb0] sm:$0xff]
    %v438 = vld [vmem:[%s1 + $0xcb8] sm:$0xff]
    %v439 = vld [vmem:[%s1 + $0xcc0] sm:$0xff]
    %v440 = vld [vmem:[%s1 + $0xcc8] sm:$0xff]
    %v441 = vld [vmem:[%s1 + $0xcd0] sm:$0xff]
    %v442 = vld [vmem:[%s1 + $0xcd8] sm:$0xff]
    %v443 = vld [vmem:[%s1 + $0xce0] sm:$0xff]
    %v444 = vld [vmem:[%s1 + $0xce8] sm:$0xff]
    %v445 = vld [vmem:[%s1 + $0xcf0] sm:$0xff]
    %v446 = vld [vmem:[%s1 + $0xcf8] sm:$0xff]
    %v447 = vld [vmem:[%s1 + $0xd00] sm:$0xff]
    %v448 = vld [vmem:[%s1 + $0xd08] sm:$0xff]
    %v449 = vld [vmem:[%s1 + $0xd10] sm:$0xff]
    %v450 = vld [vmem:[%s1 + $0xd18] sm:$0xff]
    %v451 = vld [vmem:[%s1 + $0xd20] sm:$0xff]
    %v452 = vld [vmem:[%s1 + $0xd28] sm:$0xff]
    %v453 = vld [vmem:[%s1 + $0xd30] sm:$0xff]
    %v454 = vld [vmem:[%s1 + $0xd38] sm:$0xff]
    %v455 = vld [vmem:[%s1 + $0xd40] sm:$0xff]
    %v456 = vld [vmem:[%s1 + $0xd48] sm:$0xff]
    %v457 = vld [vmem:[%s1 + $0xd50] sm:$0xff]
    %v458 = vld [vmem:[%s1 + $0xd58] sm:$0xff]
    %v459 = vld [vmem:[%s1 + $0xd60] sm:$0xff]
    %v460 = vld [vmem:[%s1 + $0xd68] sm:$0xff]
    %v461 = vld [vmem:[%s1 + $0xd70] sm:$0xff]
    %v462 = vld [vmem:[%s1 + $0xd78] sm:$0xff]
    %v463 = vld [vmem:[%s1 + $0xd80] sm:$0xff]
    %v464 = vld [vmem:[%s1 + $0xd88] sm:$0xff]
    %v465 = vld [vmem:[%s1 + $0xd90] sm:$0xff]
    %v466 = vld [vmem:[%s1 + $0xd98] sm:$0xff]
    %v467 = vld [vmem:[%s1 + $0xda0] sm:$0xff]
    %v468 = vld [vmem:[%s1 + $0xda8] sm:$0xff]
    %v469 = vld [vmem:[%s1 + $0xdb0] sm:$0xff]
    %v470 = vld [vmem:[%s1 + $0xdb8] sm:$0xff]
    %v471 = vld [vmem:[%s1 + $0xdc0] sm:$0xff]
    %v472 = vld [vmem:[%s1 + $0xdc8] sm:$0xff]
    %v473 = vld [vmem:[%s1 + $0xdd0] sm:$0xff]
    %v474 = vld [vmem:[%s1 + $0xdd8] sm:$0xff]
    %v475 = vld [vmem:[%s1 + $0xde0] sm:$0xff]
    %v476 = vld [vmem:[%s1 + $0xde8] sm:$0xff]
    %v477 = vld [vmem:[%s1 + $0xdf0] sm:$0xff]
    %v478 = vld [vmem:[%s1 + $0xdf8] sm:$0xff]
    %v479 = vld [vmem:[%s1 + $0xe00] sm:$0xff]
    %v480 = vld [vmem:[%s1 + $0xe08] sm:$0xff]
    %v481 = vld [vmem:[%s1 + $0xe10] sm:$0xff]
    %v482 = vld [vmem:[%s1 + $0xe18] sm:$0xff]
    %v483 = vld [vmem:[%s1 + $0xe20] sm:$0xff]
    %v484 = vld [vmem:[%s1 + $0xe28] sm:$0xff]
    %v485 = vld [vmem:[%s1 + $0xe30] sm:$0xff]
    %v486 = vld [vmem:[%s1 + $0xe38] sm:$0xff]
    %v487 = vld [vmem:[%s1 + $0xe40] sm:$0xff]
    %v488 = vld [vmem:[%s1 + $0xe48] sm:$0xff]
    %v489 = vld [vmem:[%s1 + $0xe50] sm:$0xff]
    %v490 = vld [vmem:[%s1 + $0xe58] sm:$0xff]
    %v491 = vld [vmem:[%s1 + $0xe60] sm:$0xff]
    %v492 = vld [vmem:[%s1 + $0xe68] sm:$0xff]
    %v493 = vld [vmem:[%s1 + $0xe70] sm:$0xff]
    %v494 = vld [vmem:[%s1 + $0xe78] sm:$0xff]
    %v495 = vld [vmem:[%s1 + $0xe80] sm:$0xff]
    %v496 = vld [vmem:[%s1 + $0xe88] sm:$0xff]
    %v497 = vld [vmem:[%s1 + $0xe90] sm:$0xff]
    %v498 = vld [vmem:[%s1 + $0xe98] sm:$0xff]
    %v499 = vld [vmem:[%s1 + $0xea0] sm:$0xff]
    %v500 = vld [vmem:[%s1 + $0xea8] sm:$0xff]
    %v501 = vld [vmem:[%s1 + $0xeb0] sm:$0xff]
    %v502 = vld [vmem:[%s1 + $0xeb8] sm:$0xff]
    %v503 = vld [vmem:[%s1 + $0xec0] sm:$0xff]
    %v504 = vld [vmem:[%s1 + $0xec8] sm:$0xff]
    %v505 = vld [vmem:[%s1 + $0xed0] sm:$0xff]
    %v506 = vld [vmem:[%s1 + $0xed8] sm:$0xff]
    %v507 = vld [vmem:[%s1 + $0xee0] sm:$0xff]
    %v508 = vld [vmem:[%s1 + $0xee8] sm:$0xff]
    %v509 = vld [vmem:[%s1 + $0xef0] sm:$0xff]
    %v510 = vld [vmem:[%s1 + $0xef8] sm:$0xff]
    %v511 = vld [vmem:[%s1 + $0xf00] sm:$0xff]
    %v512 = vld [vmem:[%s1 + $0xf08] sm:$0xff]
    %v513 = vld [vmem:[%s1 + $0xf10] sm:$0xff]
    %v514 = vld [vmem:[%s1 + $0xf18] sm:$0xff]
    %v515 = vld [vmem:[%s1 + $0xf20] sm:$0xff]
    %v516 = vld [vmem:[%s1 + $0xf28] sm:$0xff]
    %v517 = vld [vmem:[%s1 + $0xf30] sm:$0xff]
    %v518 = vld [vmem:[%s1 + $0xf38] sm:$0xff]
    %v519 = vld [vmem:[%s1 + $0xf40] sm:$0xff]
    %v520 = vld [vmem:[%s1 + $0xf48] sm:$0xff]
    %v521 = vld [vmem:[%s1 + $0xf50] sm:$0xff]
    %v522 = vld [vmem:[%s1 + $0xf58] sm:$0xff]
    %v523 = vld [vmem:[%s1 + $0xf60] sm:$0xff]
    %v524 = vld [vmem:[%s1 + $0xf68] sm:$0xff]
    %v525 = vld [vmem:[%s1 + $0xf70] sm:$0xff]
    %v526 = vld [vmem:[%s1 + $0xf78] sm:$0xff]
    %v527 = vld [vmem:[%s1 + $0xf80] sm:$0xff]
    %v528 = vld [vmem:[%s1 + $0xf88] sm:$0xff]
    %v529 = vld [vmem:[%s1 + $0xf90] sm:$0xff]
    %v530 = vld [vmem:[%s1 + $0xf98] sm:$0xff]
    %v531 = vld [vmem:[%s1 + $0xfa0] sm:$0xff]
    %v532 = vld [vmem:[%s1 + $0xfa8] sm:$0xff]
    %v533 = vld [vmem:[%s1 + $0xfb0] sm:$0xff]
    %v534 = vld [vmem:[%s1 + $0xfb8] sm:$0xff]
    %v535 = vld [vmem:[%s1 + $0xfc0] sm:$0xff]
    %v536 = vld [vmem:[%s1 + $0xfc8] sm:$0xff]
    %v537 = vld [vmem:[%s1 + $0xfd0] sm:$0xff]
    %v538 = vld [vmem:[%s1 + $0xfd8] sm:$0xff]
    %v539 = vld [vmem:[%s1 + $0xfe0] sm:$0xff]
    %v540 = vld [vmem:[%s1 + $0xfe8] sm:$0xff]
    %v541 = vld [vmem:[%s1 + $0xff0] sm:$0xff]
    %v542 = vld [vmem:[%s1 + $0xff8] sm:$0xff]
    %v543 = vld [vmem:[%s1 + $0x1000] sm:$0xff]
    %v544 = vld [vmem:[%s1 + $0x1008] sm:$0xff]
    %v545 = vld [vmem:[%s1 + $0x1010] sm:$0xff]
    %v546 = vld [vmem:[%s1 + $0x1018] sm:$0xff]
    %v547 = vld [vmem:[%s1 + $0x1020] sm:$0xff]
    %v548 = vld [vmem:[%s1 + $0x1028] sm:$0xff]
    %v549 = vld [vmem:[%s1 + $0x1030] sm:$0xff]
    %v550 = vld [vmem:[%s1 + $0x1038] sm:$0xff]
    %v551 = vld [vmem:[%s1 + $0x1040] sm:$0xff]
    %v552 = vld [vmem:[%s1 + $0x1048] sm:$0xff]
    %v553 = vld [vmem:[%s1 + $0x1050] sm:$0xff]
    %v554 = vld [vmem:[%s1 + $0x1058] sm:$0xff]
    %v555 = vld [vmem:[%s1 + $0x1060] sm:$0xff]
    %v556 = vld [vmem:[%s1 + $0x1068] sm:$0xff]
    %v557 = vld [vmem:[%s1 + $0x1070] sm:$0xff]
    %v558 = vld [vmem:[%s1 + $0x1078] sm:$0xff]
    %v559 = vld [vmem:[%s1 + $0x1080] sm:$0xff]
    %v560 = vld [vmem:[%s1 + $0x1088] sm:$0xff]
    %v561 = vld [vmem:[%s1 + $0x1090] sm:$0xff]
    %v562 = vld [vmem:[%s1 + $0x1098] sm:$0xff]
    %v563 = vld [vmem:[%s1 + $0x10a0] sm:$0xff]
    %v564 = vld [vmem:[%s1 + $0x10a8] sm:$0xff]
    %v565 = vld [vmem:[%s1 + $0x10b0] sm:$0xff]
    %v566 = vld [vmem:[%s1 + $0x10b8] sm:$0xff]
    %v567 = vld [vmem:[%s1 + $0x10c0] sm:$0xff]
    %v568 = vld [vmem:[%s1 + $0x10c8] sm:$0xff]
    %v569 = vld [vmem:[%s1 + $0x10d0] sm:$0xff]
    %v570 = vld [vmem:[%s1 + $0x10d8] sm:$0xff]
    %v571 = vld [vmem:[%s1 + $0x10e0] sm:$0xff]
    %v572 = vld [vmem:[%s1 + $0x10e8] sm:$0xff]
    %v573 = vld [vmem:[%s1 + $0x10f0] sm:$0xff]
    %v574 = vld [vmem:[%s1 + $0x10f8] sm:$0xff]
    %v575 = vld [vmem:[%s1 + $0x1100] sm:$0xff]
    %v576 = vld [vmem:[%s1 + $0x1108] sm:$0xff]
    %v577 = vld [vmem:[%s1 + $0x1110] sm:$0xff]
    %v578 = vld [vmem:[%s1 + $0x1118] sm:$0xff]
    %v579 = vld [vmem:[%s1 + $0x1120] sm:$0xff]
    %v580 = vld [vmem:[%s1 + $0x1128] sm:$0xff]
    %v581 = vld [vmem:[%s1 + $0x1130] sm:$0xff]
    %v582 = vld [vmem:[%s1 + $0x1138] sm:$0xff]
    %v583 = vld [vmem:[%s1 + $0x1140] sm:$0xff]
    %v584 = vld [vmem:[%s1 + $0x1148] sm:$0xff]
    %v585 = vld [vmem:[%s1 + $0x1150] sm:$0xff]
    %v586 = vld [vmem:[%s1 + $0x1158] sm:$0xff]
    %v587 = vld [vmem:[%s1 + $0x1160] sm:$0xff]
    %v588 = vld [vmem:[%s1 + $0x1168] sm:$0xff]
    %v589 = vld [vmem:[%s1 + $0x1170] sm:$0xff]
    %v590 = vld [vmem:[%s1 + $0x1178] sm:$0xff]
    %v591 = vld [vmem:[%s1 + $0x1180] sm:$0xff]
    %v592 = vld [vmem:[%s1 + $0x1188] sm:$0xff]
    %v593 = vld [vmem:[%s1 + $0x1190] sm:$0xff]
    %v594 = vld [vmem:[%s1 + $0x1198] sm:$0xff]
    %v595 = vld [vmem:[%s1 + $0x11a0] sm:$0xff]
    %v596 = vld [vmem:[%s1 + $0x11a8] sm:$0xff]
    %v597 = vld [vmem:[%s1 + $0x11b0] sm:$0xff]
    %v598 = vld [vmem:[%s1 + $0x11b8] sm:$0xff]
    %v599 = vld [vmem:[%s1 + $0x11c0] sm:$0xff]
    %v600 = vld [vmem:[%s1 + $0x11c8] sm:$0xff]
    %v601 = vld [vmem:[%s1 + $0x11d0] sm:$0xff]
    %v602 = vld [vmem:[%s1 + $0x11d8] sm:$0xff]
    %v603 = vld [vmem:[%s1 + $0x11e0] sm:$0xff]
    %v604 = vld [vmem:[%s1 + $0x11e8] sm:$0xff]
    %v605 = vld [vmem:[%s1 + $0x11f0] sm:$0xff]
    %v606 = vld [vmem:[%s1 + $0x11f8] sm:$0xff]
    %v607 = vld [vmem:[%s2] sm:$0xf]
    %v609 = vperm.slane %v607, 0
    %v610 = vperm.slane %v607, 1
    %v611 = vperm.slane %v607, 2
    %v612 = vperm.slane %v607, 3
    %618 = vst [vmem:[#allocation1] ss:$9 sm:$0xff] %v28
    %v619 = vld [vmem:[#allocation1] sm:$0xff]
    %v620 = vld [vmem:[#allocation1 + $0x9] sm:$0xff]
    %v621 = vld [vmem:[#allocation1 + $0x12] sm:$0xff]
    %v622 = vld [vmem:[#allocation1 + $0x1b] sm:$0xff]
    %v623 = vld [vmem:[#allocation1 + $0x24] sm:$0xff]
    %v624 = vld [vmem:[#allocation1 + $0x2d] sm:$0xff]
    %v625 = vld [vmem:[#allocation1 + $0x36] sm:$0xff]
    %v626 = vld [vmem:[#allocation1 + $0x3f] sm:$0xff]
    %628 = vst [vmem:[#allocation1] ss:$9 sm:$0xff] %v29
    %v629 = vld [vmem:[#allocation1] sm:$0xff]
    %v630 = vld [vmem:[#allocation1 + $0x9] sm:$0xff]
    %v631 = vld [vmem:[#allocation1 + $0x12] sm:$0xff]
    %v632 = vld [vmem:[#allocation1 + $0x1b] sm:$0xff]
    %v633 = vld [vmem:[#allocation1 + $0x24] sm:$0xff]
    %v634 = vld [vmem:[#allocation1 + $0x2d] sm:$0xff]
    %v635 = vld [vmem:[#allocation1 + $0x36] sm:$0xff]
    %v636 = vld [vmem:[#allocation1 + $0x3f] sm:$0xff]
    %638 = vst [vmem:[#allocation1] ss:$9 sm:$0xff] %v30
    %v639 = vld [vmem:[#allocation1] sm:$0xff]
    %v640 = vld [vmem:[#allocation1 + $0x9] sm:$0xff]
    %v1235 = vunpack.c.l.b16 %v31
    %v1236 = vunpack.c.h.b16 %v31
    %v1237 = vunpack.c.l.b16 %v32
    %v1238 = vunpack.c.h.b16 %v32
    %v1239 = vunpack.c.l.b16 %v33
    %v1240 = vunpack.c.h.b16 %v33
    %v1241 = vunpack.c.l.b16 %v34
    %v1242 = vunpack.c.h.b16 %v34
    %v1243 = vunpack.c.l.b16 %v35
    %v1244 = vunpack.c.h.b16 %v35
    %v1245 = vunpack.c.l.b16 %v36
    %v1246 = vunpack.c.h.b16 %v36
    %v1247 = vunpack.c.l.b16 %v37
    %v1248 = vunpack.c.h.b16 %v37
    %v1249 = vunpack.c.l.b16 %v38
    %v1250 = vunpack.c.h.b16 %v38
    %v1251 = vunpack.c.l.b16 %v39
    %v1252 = vunpack.c.h.b16 %v39
    %v1253 = vunpack.c.l.b16 %v40
    %v1254 = vunpack.c.h.b16 %v40
    %v1255 = vunpack.c.l.b16 %v41
    %v1256 = vunpack.c.h.b16 %v41
    %v1257 = vunpack.c.l.b16 %v42
    %v1258 = vunpack.c.h.b16 %v42
    %v1259 = vunpack.c.l.b16 %v43
    %v1260 = vunpack.c.h.b16 %v43
    %v1261 = vunpack.c.l.b16 %v44
    %v1262 = vunpack.c.h.b16 %v44
    %v1263 = vunpack.c.l.b16 %v45
    %v1264 = vunpack.c.h.b16 %v45
    %v1265 = vunpack.c.l.b16 %v46
    %v1266 = vunpack.c.h.b16 %v46
    %v1267 = vunpack.c.l.b16 %v47
    %v1268 = vunpack.c.h.b16 %v47
    %v1269 = vunpack.c.l.b16 %v48
    %v1270 = vunpack.c.h.b16 %v48
    %v1271 = vunpack.c.l.b16 %v49
    %v1272 = vunpack.c.h.b16 %v49
    %v1273 = vunpack.c.l.b16 %v50
    %v1274 = vunpack.c.h.b16 %v50
    %v1275 = vunpack.c.l.b16 %v51
    %v1276 = vunpack.c.h.b16 %v51
    %v1277 = vunpack.c.l.b16 %v52
    %v1278 = vunpack.c.h.b16 %v52
    %v1279 = vunpack.c.l.b16 %v53
    %v1280 = vunpack.c.h.b16 %v53
    %v1281 = vunpack.c.l.b16 %v54
    %v1282 = vunpack.c.h.b16 %v54
    %v1283 = vunpack.c.l.b16 %v55
    %v1284 = vunpack.c.h.b16 %v55
    %v1285 = vunpack.c.l.b16 %v56
    %v1286 = vunpack.c.h.b16 %v56
    %v1287 = vunpack.c.l.b16 %v57
    %v1288 = vunpack.c.h.b16 %v57
    %v1289 = vunpack.c.l.b16 %v58
    %v1290 = vunpack.c.h.b16 %v58
    %v1291 = vunpack.c.l.b16 %v59
    %v1292 = vunpack.c.h.b16 %v59
    %v1293 = vunpack.c.l.b16 %v60
    %v1294 = vunpack.c.h.b16 %v60
    %v1295 = vunpack.c.l.b16 %v61
    %v1296 = vunpack.c.h.b16 %v61
    %v1297 = vunpack.c.l.b16 %v62
    %v1298 = vunpack.c.h.b16 %v62
    %v1299 = vunpack.c.l.b16 %v63
    %v1300 = vunpack.c.h.b16 %v63
    %v1301 = vunpack.c.l.b16 %v64
    %v1302 = vunpack.c.h.b16 %v64
    %v1303 = vunpack.c.l.b16 %v65
    %v1304 = vunpack.c.h.b16 %v65
    %v1305 = vunpack.c.l.b16 %v66
    %v1306 = vunpack.c.h.b16 %v66
    %v1307 = vunpack.c.l.b16 %v67
    %v1308 = vunpack.c.h.b16 %v67
    %v1309 = vunpack.c.l.b16 %v68
    %v1310 = vunpack.c.h.b16 %v68
    %v1311 = vunpack.c.l.b16 %v69
    %v1312 = vunpack.c.h.b16 %v69
    %v1313 = vunpack.c.l.b16 %v70
    %v1314 = vunpack.c.h.b16 %v70
    %v1315 = vunpack.c.l.b16 %v71
    %v1316 = vunpack.c.h.b16 %v71
    %v1317 = vunpack.c.l.b16 %v72
    %v1318 = vunpack.c.h.b16 %v72
    %v1319 = vunpack.c.l.b16 %v73
    %v1320 = vunpack.c.h.b16 %v73
    %v1321 = vunpack.c.l.b16 %v74
    %v1322 = vunpack.c.h.b16 %v74
    %v1323 = vunpack.c.l.b16 %v75
    %v1324 = vunpack.c.h.b16 %v75
    %v1325 = vunpack.c.l.b16 %v76
    %v1326 = vunpack.c.h.b16 %v76
    %v1327 = vunpack.c.l.b16 %v77
    %v1328 = vunpack.c.h.b16 %v77
    %v1329 = vunpack.c.l.b16 %v78
    %v1330 = vunpack.c.h.b16 %v78
    %v1331 = vunpack.c.l.b16 %v79
    %v1332 = vunpack.c.h.b16 %v79
    %v1333 = vunpack.c.l.b16 %v80
    %v1334 = vunpack.c.h.b16 %v80
    %v1335 = vunpack.c.l.b16 %v81
    %v1336 = vunpack.c.h.b16 %v81
    %v1337 = vunpack.c.l.b16 %v82
    %v1338 = vunpack.c.h.b16 %v82
    %v1339 = vunpack.c.l.b16 %v83
    %v1340 = vunpack.c.h.b16 %v83
    %v1341 = vunpack.c.l.b16 %v84
    %v1342 = vunpack.c.h.b16 %v84
    %v1343 = vunpack.c.l.b16 %v85
    %v1344 = vunpack.c.h.b16 %v85
    %v1345 = vunpack.c.l.b16 %v86
    %v1346 = vunpack.c.h.b16 %v86
    %v1347 = vunpack.c.l.b16 %v87
    %v1348 = vunpack.c.h.b16 %v87
    %v1349 = vunpack.c.l.b16 %v88
    %v1350 = vunpack.c.h.b16 %v88
    %v1351 = vunpack.c.l.b16 %v89
    %v1352 = vunpack.c.h.b16 %v89
    %v1353 = vunpack.c.l.b16 %v90
    %v1354 = vunpack.c.h.b16 %v90
    %v1355 = vunpack.c.l.b16 %v91
    %v1356 = vunpack.c.h.b16 %v91
    %v1357 = vunpack.c.l.b16 %v92
    %v1358 = vunpack.c.h.b16 %v92
    %v1359 = vunpack.c.l.b16 %v93
    %v1360 = vunpack.c.h.b16 %v93
    %v1361 = vunpack.c.l.b16 %v94
    %v1362 = vunpack.c.h.b16 %v94
    %v1363 = vunpack.c.l.b16 %v95
    %v1364 = vunpack.c.h.b16 %v95
    %v1365 = vunpack.c.l.b16 %v96
    %v1366 = vunpack.c.h.b16 %v96
    %v1367 = vunpack.c.l.b16 %v97
    %v1368 = vunpack.c.h.b16 %v97
    %v1369 = vunpack.c.l.b16 %v98
    %v1370 = vunpack.c.h.b16 %v98
    %v1371 = vunpack.c.l.b16 %v99
    %v1372 = vunpack.c.h.b16 %v99
    %v1373 = vunpack.c.l.b16 %v100
    %v1374 = vunpack.c.h.b16 %v100
    %v1375 = vunpack.c.l.b16 %v101
    %v1376 = vunpack.c.h.b16 %v101
    %v1377 = vunpack.c.l.b16 %v102
    %v1378 = vunpack.c.h.b16 %v102
    %v1379 = vunpack.c.l.b16 %v103
    %v1380 = vunpack.c.h.b16 %v103
    %v1381 = vunpack.c.l.b16 %v104
    %v1382 = vunpack.c.h.b16 %v104
    %v1383 = vunpack.c.l.b16 %v105
    %v1384 = vunpack.c.h.b16 %v105
    %v1385 = vunpack.c.l.b16 %v106
    %v1386 = vunpack.c.h.b16 %v106
    %v1387 = vunpack.c.l.b16 %v107
    %v1388 = vunpack.c.h.b16 %v107
    %v1389 = vunpack.c.l.b16 %v108
    %v1390 = vunpack.c.h.b16 %v108
    %v1391 = vunpack.c.l.b16 %v109
    %v1392 = vunpack.c.h.b16 %v109
    %v1393 = vunpack.c.l.b16 %v110
    %v1394 = vunpack.c.h.b16 %v110
    %v1395 = vunpack.c.l.b16 %v111
    %v1396 = vunpack.c.h.b16 %v111
    %v1397 = vunpack.c.l.b16 %v112
    %v1398 = vunpack.c.h.b16 %v112
    %v1399 = vunpack.c.l.b16 %v113
    %v1400 = vunpack.c.h.b16 %v113
    %v1401 = vunpack.c.l.b16 %v114
    %v1402 = vunpack.c.h.b16 %v114
    %v1403 = vunpack.c.l.b16 %v115
    %v1404 = vunpack.c.h.b16 %v115
    %v1405 = vunpack.c.l.b16 %v116
    %v1406 = vunpack.c.h.b16 %v116
    %v1407 = vunpack.c.l.b16 %v117
    %v1408 = vunpack.c.h.b16 %v117
    %v1409 = vunpack.c.l.b16 %v118
    %v1410 = vunpack.c.h.b16 %v118
    %v1411 = vunpack.c.l.b16 %v119
    %v1412 = vunpack.c.h.b16 %v119
    %v1413 = vunpack.c.l.b16 %v120
    %v1414 = vunpack.c.h.b16 %v120
    %v1415 = vunpack.c.l.b16 %v121
    %v1416 = vunpack.c.h.b16 %v121
    %v1417 = vunpack.c.l.b16 %v122
    %v1418 = vunpack.c.h.b16 %v122
    %v1419 = vunpack.c.l.b16 %v123
    %v1420 = vunpack.c.h.b16 %v123
    %v1421 = vunpack.c.l.b16 %v124
    %v1422 = vunpack.c.h.b16 %v124
    %v1423 = vunpack.c.l.b16 %v125
    %v1424 = vunpack.c.h.b16 %v125
    %v1425 = vunpack.c.l.b16 %v126
    %v1426 = vunpack.c.h.b16 %v126
    %v1427 = vunpack.c.l.b16 %v127
    %v1428 = vunpack.c.h.b16 %v127
    %v1429 = vunpack.c.l.b16 %v128
    %v1430 = vunpack.c.h.b16 %v128
    %v1431 = vunpack.c.l.b16 %v129
    %v1432 = vunpack.c.h.b16 %v129
    %v1433 = vunpack.c.l.b16 %v130
    %v1434 = vunpack.c.h.b16 %v130
    %v1435 = vunpack.c.l.b16 %v131
    %v1436 = vunpack.c.h.b16 %v131
    %v1437 = vunpack.c.l.b16 %v132
    %v1438 = vunpack.c.h.b16 %v132
    %v1439 = vunpack.c.l.b16 %v133
    %v1440 = vunpack.c.h.b16 %v133
    %v1441 = vunpack.c.l.b16 %v134
    %v1442 = vunpack.c.h.b16 %v134
    %v1443 = vunpack.c.l.b16 %v135
    %v1444 = vunpack.c.h.b16 %v135
    %v1445 = vunpack.c.l.b16 %v136
    %v1446 = vunpack.c.h.b16 %v136
    %v1447 = vunpack.c.l.b16 %v137
    %v1448 = vunpack.c.h.b16 %v137
    %v1449 = vunpack.c.l.b16 %v138
    %v1450 = vunpack.c.h.b16 %v138
    %v1451 = vunpack.c.l.b16 %v139
    %v1452 = vunpack.c.h.b16 %v139
    %v1453 = vunpack.c.l.b16 %v140
    %v1454 = vunpack.c.h.b16 %v140
    %v1455 = vunpack.c.l.b16 %v141
    %v1456 = vunpack.c.h.b16 %v141
    %v1457 = vunpack.c.l.b16 %v142
    %v1458 = vunpack.c.h.b16 %v142
    %v1459 = vunpack.c.l.b16 %v143
    %v1460 = vunpack.c.h.b16 %v143
    %v1461 = vunpack.c.l.b16 %v144
    %v1462 = vunpack.c.h.b16 %v144
    %v1463 = vunpack.c.l.b16 %v145
    %v1464 = vunpack.c.h.b16 %v145
    %v1465 = vunpack.c.l.b16 %v146
    %v1466 = vunpack.c.h.b16 %v146
    %v1467 = vunpack.c.l.b16 %v147
    %v1468 = vunpack.c.h.b16 %v147
    %v1469 = vunpack.c.l.b16 %v148
    %v1470 = vunpack.c.h.b16 %v148
    %v1471 = vunpack.c.l.b16 %v149
    %v1472 = vunpack.c.h.b16 %v149
    %v1473 = vunpack.c.l.b16 %v150
    %v1474 = vunpack.c.h.b16 %v150
    %v1475 = vunpack.c.l.b16 %v151
    %v1476 = vunpack.c.h.b16 %v151
    %v1477 = vunpack.c.l.b16 %v152
    %v1478 = vunpack.c.h.b16 %v152
    %v1479 = vunpack.c.l.b16 %v153
    %v1480 = vunpack.c.h.b16 %v153
    %v1481 = vunpack.c.l.b16 %v154
    %v1482 = vunpack.c.h.b16 %v154
    %v1483 = vunpack.c.l.b16 %v155
    %v1484 = vunpack.c.h.b16 %v155
    %v1485 = vunpack.c.l.b16 %v156
    %v1486 = vunpack.c.h.b16 %v156
    %v1487 = vunpack.c.l.b16 %v157
    %v1488 = vunpack.c.h.b16 %v157
    %v1489 = vunpack.c.l.b16 %v158
    %v1490 = vunpack.c.h.b16 %v158
    %v1491 = vunpack.c.l.b16 %v159
    %v1492 = vunpack.c.h.b16 %v159
    %v1493 = vunpack.c.l.b16 %v160
    %v1494 = vunpack.c.h.b16 %v160
    %v1495 = vunpack.c.l.b16 %v161
    %v1496 = vunpack.c.h.b16 %v161
    %v1497 = vunpack.c.l.b16 %v162
    %v1498 = vunpack.c.h.b16 %v162
    %v1499 = vunpack.c.l.b16 %v163
    %v1500 = vunpack.c.h.b16 %v163
    %v1501 = vunpack.c.l.b16 %v164
    %v1502 = vunpack.c.h.b16 %v164
    %v1503 = vunpack.c.l.b16 %v165
    %v1504 = vunpack.c.h.b16 %v165
    %v1505 = vunpack.c.l.b16 %v166
    %v1506 = vunpack.c.h.b16 %v166
    %v1507 = vunpack.c.l.b16 %v167
    %v1508 = vunpack.c.h.b16 %v167
    %v1509 = vunpack.c.l.b16 %v168
    %v1510 = vunpack.c.h.b16 %v168
    %v1511 = vunpack.c.l.b16 %v169
    %v1512 = vunpack.c.h.b16 %v169
    %v1513 = vunpack.c.l.b16 %v170
    %v1514 = vunpack.c.h.b16 %v170
    %v1515 = vunpack.c.l.b16 %v171
    %v1516 = vunpack.c.h.b16 %v171
    %v1517 = vunpack.c.l.b16 %v172
    %v1518 = vunpack.c.h.b16 %v172
    %v1519 = vunpack.c.l.b16 %v173
    %v1520 = vunpack.c.h.b16 %v173
    %v1521 = vunpack.c.l.b16 %v174
    %v1522 = vunpack.c.h.b16 %v174
    %v1523 = vunpack.c.l.b16 %v175
    %v1524 = vunpack.c.h.b16 %v175
    %v1525 = vunpack.c.l.b16 %v176
    %v1526 = vunpack.c.h.b16 %v176
    %v1527 = vunpack.c.l.b16 %v177
    %v1528 = vunpack.c.h.b16 %v177
    %v1529 = vunpack.c.l.b16 %v178
    %v1530 = vunpack.c.h.b16 %v178
    %v1531 = vunpack.c.l.b16 %v179
    %v1532 = vunpack.c.h.b16 %v179
    %v1533 = vunpack.c.l.b16 %v180
    %v1534 = vunpack.c.h.b16 %v180
    %v1535 = vunpack.c.l.b16 %v181
    %v1536 = vunpack.c.h.b16 %v181
    %v1537 = vunpack.c.l.b16 %v182
    %v1538 = vunpack.c.h.b16 %v182
    %v1539 = vunpack.c.l.b16 %v183
    %v1540 = vunpack.c.h.b16 %v183
    %v1541 = vunpack.c.l.b16 %v184
    %v1542 = vunpack.c.h.b16 %v184
    %v1543 = vunpack.c.l.b16 %v185
    %v1544 = vunpack.c.h.b16 %v185
    %v1545 = vunpack.c.l.b16 %v186
    %v1546 = vunpack.c.h.b16 %v186
    %v1547 = vunpack.c.l.b16 %v187
    %v1548 = vunpack.c.h.b16 %v187
    %v1549 = vunpack.c.l.b16 %v188
    %v1550 = vunpack.c.h.b16 %v188
    %v1551 = vunpack.c.l.b16 %v189
    %v1552 = vunpack.c.h.b16 %v189
    %v1553 = vunpack.c.l.b16 %v190
    %v1554 = vunpack.c.h.b16 %v190
    %v1555 = vunpack.c.l.b16 %v191
    %v1556 = vunpack.c.h.b16 %v191
    %v1557 = vunpack.c.l.b16 %v192
    %v1558 = vunpack.c.h.b16 %v192
    %v1559 = vunpack.c.l.b16 %v193
    %v1560 = vunpack.c.h.b16 %v193
    %v1561 = vunpack.c.l.b16 %v194
    %v1562 = vunpack.c.h.b16 %v194
    %v1563 = vunpack.c.l.b16 %v195
    %v1564 = vunpack.c.h.b16 %v195
    %v1565 = vunpack.c.l.b16 %v196
    %v1566 = vunpack.c.h.b16 %v196
    %v1567 = vunpack.c.l.b16 %v197
    %v1568 = vunpack.c.h.b16 %v197
    %v1569 = vunpack.c.l.b16 %v198
    %v1570 = vunpack.c.h.b16 %v198
    %v1571 = vunpack.c.l.b16 %v199
    %v1572 = vunpack.c.h.b16 %v199
    %v1573 = vunpack.c.l.b16 %v200
    %v1574 = vunpack.c.h.b16 %v200
    %v1575 = vunpack.c.l.b16 %v201
    %v1576 = vunpack.c.h.b16 %v201
    %v1577 = vunpack.c.l.b16 %v202
    %v1578 = vunpack.c.h.b16 %v202
    %v1579 = vunpack.c.l.b16 %v203
    %v1580 = vunpack.c.h.b16 %v203
    %v1581 = vunpack.c.l.b16 %v204
    %v1582 = vunpack.c.h.b16 %v204
    %v1583 = vunpack.c.l.b16 %v205
    %v1584 = vunpack.c.h.b16 %v205
    %v1585 = vunpack.c.l.b16 %v206
    %v1586 = vunpack.c.h.b16 %v206
    %v1587 = vunpack.c.l.b16 %v207
    %v1588 = vunpack.c.h.b16 %v207
    %v1589 = vunpack.c.l.b16 %v208
    %v1590 = vunpack.c.h.b16 %v208
    %v1591 = vunpack.c.l.b16 %v209
    %v1592 = vunpack.c.h.b16 %v209
    %v1593 = vunpack.c.l.b16 %v210
    %v1594 = vunpack.c.h.b16 %v210
    %v1595 = vunpack.c.l.b16 %v211
    %v1596 = vunpack.c.h.b16 %v211
    %v1597 = vunpack.c.l.b16 %v212
    %v1598 = vunpack.c.h.b16 %v212
    %v1599 = vunpack.c.l.b16 %v213
    %v1600 = vunpack.c.h.b16 %v213
    %v1601 = vunpack.c.l.b16 %v214
    %v1602 = vunpack.c.h.b16 %v214
    %v1603 = vunpack.c.l.b16 %v215
    %v1604 = vunpack.c.h.b16 %v215
    %v1605 = vunpack.c.l.b16 %v216
    %v1606 = vunpack.c.h.b16 %v216
    %v1607 = vunpack.c.l.b16 %v217
    %v1608 = vunpack.c.h.b16 %v217
    %v1609 = vunpack.c.l.b16 %v218
    %v1610 = vunpack.c.h.b16 %v218
    %v1611 = vunpack.c.l.b16 %v219
    %v1612 = vunpack.c.h.b16 %v219
    %v1613 = vunpack.c.l.b16 %v220
    %v1614 = vunpack.c.h.b16 %v220
    %v1615 = vunpack.c.l.b16 %v221
    %v1616 = vunpack.c.h.b16 %v221
    %v1617 = vunpack.c.l.b16 %v222
    %v1618 = vunpack.c.h.b16 %v222
    %v1619 = vunpack.c.l.b16 %v223
    %v1620 = vunpack.c.h.b16 %v223
    %v1621 = vunpack.c.l.b16 %v224
    %v1622 = vunpack.c.h.b16 %v224
    %v1623 = vunpack.c.l.b16 %v225
    %v1624 = vunpack.c.h.b16 %v225
    %v1625 = vunpack.c.l.b16 %v226
    %v1626 = vunpack.c.h.b16 %v226
    %v1627 = vunpack.c.l.b16 %v227
    %v1628 = vunpack.c.h.b16 %v227
    %v1629 = vunpack.c.l.b16 %v228
    %v1630 = vunpack.c.h.b16 %v228
    %v1631 = vunpack.c.l.b16 %v229
    %v1632 = vunpack.c.h.b16 %v229
    %v1633 = vunpack.c.l.b16 %v230
    %v1634 = vunpack.c.h.b16 %v230
    %v1635 = vunpack.c.l.b16 %v231
    %v1636 = vunpack.c.h.b16 %v231
    %v1637 = vunpack.c.l.b16 %v232
    %v1638 = vunpack.c.h.b16 %v232
    %v1639 = vunpack.c.l.b16 %v233
    %v1640 = vunpack.c.h.b16 %v233
    %v1641 = vunpack.c.l.b16 %v234
    %v1642 = vunpack.c.h.b16 %v234
    %v1643 = vunpack.c.l.b16 %v235
    %v1644 = vunpack.c.h.b16 %v235
    %v1645 = vunpack.c.l.b16 %v236
    %v1646 = vunpack.c.h.b16 %v236
    %v1647 = vunpack.c.l.b16 %v237
    %v1648 = vunpack.c.h.b16 %v237
    %v1649 = vunpack.c.l.b16 %v238
    %v1650 = vunpack.c.h.b16 %v238
    %v1651 = vunpack.c.l.b16 %v239
    %v1652 = vunpack.c.h.b16 %v239
    %v1653 = vunpack.c.l.b16 %v240
    %v1654 = vunpack.c.h.b16 %v240
    %v1655 = vunpack.c.l.b16 %v241
    %v1656 = vunpack.c.h.b16 %v241
    %v1657 = vunpack.c.l.b16 %v242
    %v1658 = vunpack.c.h.b16 %v242
    %v1659 = vunpack.c.l.b16 %v243
    %v1660 = vunpack.c.h.b16 %v243
    %v1661 = vunpack.c.l.b16 %v244
    %v1662 = vunpack.c.h.b16 %v244
    %v1663 = vunpack.c.l.b16 %v245
    %v1664 = vunpack.c.h.b16 %v245
    %v1665 = vunpack.c.l.b16 %v246
    %v1666 = vunpack.c.h.b16 %v246
    %v1667 = vunpack.c.l.b16 %v247
    %v1668 = vunpack.c.h.b16 %v247
    %v1669 = vunpack.c.l.b16 %v248
    %v1670 = vunpack.c.h.b16 %v248
    %v1671 = vunpack.c.l.b16 %v249
    %v1672 = vunpack.c.h.b16 %v249
    %v1673 = vunpack.c.l.b16 %v250
    %v1674 = vunpack.c.h.b16 %v250
    %v1675 = vunpack.c.l.b16 %v251
    %v1676 = vunpack.c.h.b16 %v251
    %v1677 = vunpack.c.l.b16 %v252
    %v1678 = vunpack.c.h.b16 %v252
    %v1679 = vunpack.c.l.b16 %v253
    %v1680 = vunpack.c.h.b16 %v253
    %v1681 = vunpack.c.l.b16 %v254
    %v1682 = vunpack.c.h.b16 %v254
    %v1683 = vunpack.c.l.b16 %v255
    %v1684 = vunpack.c.h.b16 %v255
    %v1685 = vunpack.c.l.b16 %v256
    %v1686 = vunpack.c.h.b16 %v256
    %v1687 = vunpack.c.l.b16 %v257
    %v1688 = vunpack.c.h.b16 %v257
    %v1689 = vunpack.c.l.b16 %v258
    %v1690 = vunpack.c.h.b16 %v258
    %v1691 = vunpack.c.l.b16 %v259
    %v1692 = vunpack.c.h.b16 %v259
    %v1693 = vunpack.c.l.b16 %v260
    %v1694 = vunpack.c.h.b16 %v260
    %v1695 = vunpack.c.l.b16 %v261
    %v1696 = vunpack.c.h.b16 %v261
    %v1697 = vunpack.c.l.b16 %v262
    %v1698 = vunpack.c.h.b16 %v262
    %v1699 = vunpack.c.l.b16 %v263
    %v1700 = vunpack.c.h.b16 %v263
    %v1701 = vunpack.c.l.b16 %v264
    %v1702 = vunpack.c.h.b16 %v264
    %v1703 = vunpack.c.l.b16 %v265
    %v1704 = vunpack.c.h.b16 %v265
    %v1705 = vunpack.c.l.b16 %v266
    %v1706 = vunpack.c.h.b16 %v266
    %v1707 = vunpack.c.l.b16 %v267
    %v1708 = vunpack.c.h.b16 %v267
    %v1709 = vunpack.c.l.b16 %v268
    %v1710 = vunpack.c.h.b16 %v268
    %v1711 = vunpack.c.l.b16 %v269
    %v1712 = vunpack.c.h.b16 %v269
    %v1713 = vunpack.c.l.b16 %v270
    %v1714 = vunpack.c.h.b16 %v270
    %v1715 = vunpack.c.l.b16 %v271
    %v1716 = vunpack.c.h.b16 %v271
    %v1717 = vunpack.c.l.b16 %v272
    %v1718 = vunpack.c.h.b16 %v272
    %v1719 = vunpack.c.l.b16 %v273
    %v1720 = vunpack.c.h.b16 %v273
    %v1721 = vunpack.c.l.b16 %v274
    %v1722 = vunpack.c.h.b16 %v274
    %v1723 = vunpack.c.l.b16 %v275
    %v1724 = vunpack.c.h.b16 %v275
    %v1725 = vunpack.c.l.b16 %v276
    %v1726 = vunpack.c.h.b16 %v276
    %v1727 = vunpack.c.l.b16 %v277
    %v1728 = vunpack.c.h.b16 %v277
    %v1729 = vunpack.c.l.b16 %v278
    %v1730 = vunpack.c.h.b16 %v278
    %v1731 = vunpack.c.l.b16 %v279
    %v1732 = vunpack.c.h.b16 %v279
    %v1733 = vunpack.c.l.b16 %v280
    %v1734 = vunpack.c.h.b16 %v280
    %v1735 = vunpack.c.l.b16 %v281
    %v1736 = vunpack.c.h.b16 %v281
    %v1737 = vunpack.c.l.b16 %v282
    %v1738 = vunpack.c.h.b16 %v282
    %v1739 = vunpack.c.l.b16 %v283
    %v1740 = vunpack.c.h.b16 %v283
    %v1741 = vunpack.c.l.b16 %v284
    %v1742 = vunpack.c.h.b16 %v284
    %v1743 = vunpack.c.l.b16 %v285
    %v1744 = vunpack.c.h.b16 %v285
    %v1745 = vunpack.c.l.b16 %v286
    %v1746 = vunpack.c.h.b16 %v286
    %v1747 = vunpack.c.l.b16 %v287
    %v1748 = vunpack.c.h.b16 %v287
    %v1749 = vunpack.c.l.b16 %v288
    %v1750 = vunpack.c.h.b16 %v288
    %v1751 = vunpack.c.l.b16 %v289
    %v1752 = vunpack.c.h.b16 %v289
    %v1753 = vunpack.c.l.b16 %v290
    %v1754 = vunpack.c.h.b16 %v290
    %v1755 = vunpack.c.l.b16 %v291
    %v1756 = vunpack.c.h.b16 %v291
    %v1757 = vunpack.c.l.b16 %v292
    %v1758 = vunpack.c.h.b16 %v292
    %v1759 = vunpack.c.l.b16 %v293
    %v1760 = vunpack.c.h.b16 %v293
    %v1761 = vunpack.c.l.b16 %v294
    %v1762 = vunpack.c.h.b16 %v294
    %v1763 = vunpack.c.l.b16 %v295
    %v1764 = vunpack.c.h.b16 %v295
    %v1765 = vunpack.c.l.b16 %v296
    %v1766 = vunpack.c.h.b16 %v296
    %v1767 = vunpack.c.l.b16 %v297
    %v1768 = vunpack.c.h.b16 %v297
    %v1769 = vunpack.c.l.b16 %v298
    %v1770 = vunpack.c.h.b16 %v298
    %v1771 = vunpack.c.l.b16 %v299
    %v1772 = vunpack.c.h.b16 %v299
    %v1773 = vunpack.c.l.b16 %v300
    %v1774 = vunpack.c.h.b16 %v300
    %v1775 = vunpack.c.l.b16 %v301
    %v1776 = vunpack.c.h.b16 %v301
    %v1777 = vunpack.c.l.b16 %v302
    %v1778 = vunpack.c.h.b16 %v302
    %v1779 = vunpack.c.l.b16 %v303
    %v1780 = vunpack.c.h.b16 %v303
    %v1781 = vunpack.c.l.b16 %v304
    %v1782 = vunpack.c.h.b16 %v304
    %v1783 = vunpack.c.l.b16 %v305
    %v1784 = vunpack.c.h.b16 %v305
    %v1785 = vunpack.c.l.b16 %v306
    %v1786 = vunpack.c.h.b16 %v306
    %v1787 = vunpack.c.l.b16 %v307
    %v1788 = vunpack.c.h.b16 %v307
    %v1789 = vunpack.c.l.b16 %v308
    %v1790 = vunpack.c.h.b16 %v308
    %v1791 = vunpack.c.l.b16 %v309
    %v1792 = vunpack.c.h.b16 %v309
    %v1793 = vunpack.c.l.b16 %v310
    %v1794 = vunpack.c.h.b16 %v310
    %v1795 = vunpack.c.l.b16 %v311
    %v1796 = vunpack.c.h.b16 %v311
    %v1797 = vunpack.c.l.b16 %v312
    %v1798 = vunpack.c.h.b16 %v312
    %v1799 = vunpack.c.l.b16 %v313
    %v1800 = vunpack.c.h.b16 %v313
    %v1801 = vunpack.c.l.b16 %v314
    %v1802 = vunpack.c.h.b16 %v314
    %v1803 = vunpack.c.l.b16 %v315
    %v1804 = vunpack.c.h.b16 %v315
    %v1805 = vunpack.c.l.b16 %v316
    %v1806 = vunpack.c.h.b16 %v316
    %v1807 = vunpack.c.l.b16 %v317
    %v1808 = vunpack.c.h.b16 %v317
    %v1809 = vunpack.c.l.b16 %v318
    %v1810 = vunpack.c.h.b16 %v318
    %v1811 = vunpack.c.l.b16 %v319
    %v1812 = vunpack.c.h.b16 %v319
    %v1813 = vunpack.c.l.b16 %v320
    %v1814 = vunpack.c.h.b16 %v320
    %v1815 = vunpack.c.l.b16 %v321
    %v1816 = vunpack.c.h.b16 %v321
    %v1817 = vunpack.c.l.b16 %v322
    %v1818 = vunpack.c.h.b16 %v322
    %v1819 = vunpack.c.l.b16 %v323
    %v1820 = vunpack.c.h.b16 %v323
    %v1821 = vunpack.c.l.b16 %v324
    %v1822 = vunpack.c.h.b16 %v324
    %v1823 = vunpack.c.l.b16 %v325
    %v1824 = vunpack.c.h.b16 %v325
    %v1825 = vunpack.c.l.b16 %v326
    %v1826 = vunpack.c.h.b16 %v326
    %v1827 = vunpack.c.l.b16 %v327
    %v1828 = vunpack.c.h.b16 %v327
    %v1829 = vunpack.c.l.b16 %v328
    %v1830 = vunpack.c.h.b16 %v328
    %v1831 = vunpack.c.l.b16 %v329
    %v1832 = vunpack.c.h.b16 %v329
    %v1833 = vunpack.c.l.b16 %v330
    %v1834 = vunpack.c.h.b16 %v330
    %v1835 = vunpack.c.l.b16 %v331
    %v1836 = vunpack.c.h.b16 %v331
    %v1837 = vunpack.c.l.b16 %v332
    %v1838 = vunpack.c.h.b16 %v332
    %v1839 = vunpack.c.l.b16 %v333
    %v1840 = vunpack.c.h.b16 %v333
    %v1841 = vunpack.c.l.b16 %v334
    %v1842 = vunpack.c.h.b16 %v334
    %v1843 = vunpack.c.l.b16 %v335
    %v1844 = vunpack.c.h.b16 %v335
    %v1845 = vunpack.c.l.b16 %v336
    %v1846 = vunpack.c.h.b16 %v336
    %v1847 = vunpack.c.l.b16 %v337
    %v1848 = vunpack.c.h.b16 %v337
    %v1849 = vunpack.c.l.b16 %v338
    %v1850 = vunpack.c.h.b16 %v338
    %v1851 = vunpack.c.l.b16 %v339
    %v1852 = vunpack.c.h.b16 %v339
    %v1853 = vunpack.c.l.b16 %v340
    %v1854 = vunpack.c.h.b16 %v340
    %v1855 = vunpack.c.l.b16 %v341
    %v1856 = vunpack.c.h.b16 %v341
    %v1857 = vunpack.c.l.b16 %v342
    %v1858 = vunpack.c.h.b16 %v342
    %v1859 = vunpack.c.l.b16 %v343
    %v1860 = vunpack.c.h.b16 %v343
    %v1861 = vunpack.c.l.b16 %v344
    %v1862 = vunpack.c.h.b16 %v344
    %v1863 = vunpack.c.l.b16 %v345
    %v1864 = vunpack.c.h.b16 %v345
    %v1865 = vunpack.c.l.b16 %v346
    %v1866 = vunpack.c.h.b16 %v346
    %v1867 = vunpack.c.l.b16 %v347
    %v1868 = vunpack.c.h.b16 %v347
    %v1869 = vunpack.c.l.b16 %v348
    %v1870 = vunpack.c.h.b16 %v348
    %v1871 = vunpack.c.l.b16 %v349
    %v1872 = vunpack.c.h.b16 %v349
    %v1873 = vunpack.c.l.b16 %v350
    %v1874 = vunpack.c.h.b16 %v350
    %v1875 = vunpack.c.l.b16 %v351
    %v1876 = vunpack.c.h.b16 %v351
    %v1877 = vunpack.c.l.b16 %v352
    %v1878 = vunpack.c.h.b16 %v352
    %v1879 = vunpack.c.l.b16 %v353
    %v1880 = vunpack.c.h.b16 %v353
    %v1881 = vunpack.c.l.b16 %v354
    %v1882 = vunpack.c.h.b16 %v354
    %v1883 = vunpack.c.l.b16 %v355
    %v1884 = vunpack.c.h.b16 %v355
    %v1885 = vunpack.c.l.b16 %v356
    %v1886 = vunpack.c.h.b16 %v356
    %v1887 = vunpack.c.l.b16 %v357
    %v1888 = vunpack.c.h.b16 %v357
    %v1889 = vunpack.c.l.b16 %v358
    %v1890 = vunpack.c.h.b16 %v358
    %v1891 = vunpack.c.l.b16 %v359
    %v1892 = vunpack.c.h.b16 %v359
    %v1893 = vunpack.c.l.b16 %v360
    %v1894 = vunpack.c.h.b16 %v360
    %v1895 = vunpack.c.l.b16 %v361
    %v1896 = vunpack.c.h.b16 %v361
    %v1897 = vunpack.c.l.b16 %v362
    %v1898 = vunpack.c.h.b16 %v362
    %v1899 = vunpack.c.l.b16 %v363
    %v1900 = vunpack.c.h.b16 %v363
    %v1901 = vunpack.c.l.b16 %v364
    %v1902 = vunpack.c.h.b16 %v364
    %v1903 = vunpack.c.l.b16 %v365
    %v1904 = vunpack.c.h.b16 %v365
    %v1905 = vunpack.c.l.b16 %v366
    %v1906 = vunpack.c.h.b16 %v366
    %v1907 = vunpack.c.l.b16 %v367
    %v1908 = vunpack.c.h.b16 %v367
    %v1909 = vunpack.c.l.b16 %v368
    %v1910 = vunpack.c.h.b16 %v368
    %v1911 = vunpack.c.l.b16 %v369
    %v1912 = vunpack.c.h.b16 %v369
    %v1913 = vunpack.c.l.b16 %v370
    %v1914 = vunpack.c.h.b16 %v370
    %v1915 = vunpack.c.l.b16 %v371
    %v1916 = vunpack.c.h.b16 %v371
    %v1917 = vunpack.c.l.b16 %v372
    %v1918 = vunpack.c.h.b16 %v372
    %v1919 = vunpack.c.l.b16 %v373
    %v1920 = vunpack.c.h.b16 %v373
    %v1921 = vunpack.c.l.b16 %v374
    %v1922 = vunpack.c.h.b16 %v374
    %v1923 = vunpack.c.l.b16 %v375
    %v1924 = vunpack.c.h.b16 %v375
    %v1925 = vunpack.c.l.b16 %v376
    %v1926 = vunpack.c.h.b16 %v376
    %v1927 = vunpack.c.l.b16 %v377
    %v1928 = vunpack.c.h.b16 %v377
    %v1929 = vunpack.c.l.b16 %v378
    %v1930 = vunpack.c.h.b16 %v378
    %v1931 = vunpack.c.l.b16 %v379
    %v1932 = vunpack.c.h.b16 %v379
    %v1933 = vunpack.c.l.b16 %v380
    %v1934 = vunpack.c.h.b16 %v380
    %v1935 = vunpack.c.l.b16 %v381
    %v1936 = vunpack.c.h.b16 %v381
    %v1937 = vunpack.c.l.b16 %v382
    %v1938 = vunpack.c.h.b16 %v382
    %v1939 = vunpack.c.l.b16 %v383
    %v1940 = vunpack.c.h.b16 %v383
    %v1941 = vunpack.c.l.b16 %v384
    %v1942 = vunpack.c.h.b16 %v384
    %v1943 = vunpack.c.l.b16 %v385
    %v1944 = vunpack.c.h.b16 %v385
    %v1945 = vunpack.c.l.b16 %v386
    %v1946 = vunpack.c.h.b16 %v386
    %v1947 = vunpack.c.l.b16 %v387
    %v1948 = vunpack.c.h.b16 %v387
    %v1949 = vunpack.c.l.b16 %v388
    %v1950 = vunpack.c.h.b16 %v388
    %v1951 = vunpack.c.l.b16 %v389
    %v1952 = vunpack.c.h.b16 %v389
    %v1953 = vunpack.c.l.b16 %v390
    %v1954 = vunpack.c.h.b16 %v390
    %v1955 = vunpack.c.l.b16 %v391
    %v1956 = vunpack.c.h.b16 %v391
    %v1957 = vunpack.c.l.b16 %v392
    %v1958 = vunpack.c.h.b16 %v392
    %v1959 = vunpack.c.l.b16 %v393
    %v1960 = vunpack.c.h.b16 %v393
    %v1961 = vunpack.c.l.b16 %v394
    %v1962 = vunpack.c.h.b16 %v394
    %v1963 = vunpack.c.l.b16 %v395
    %v1964 = vunpack.c.h.b16 %v395
    %v1965 = vunpack.c.l.b16 %v396
    %v1966 = vunpack.c.h.b16 %v396
    %v1967 = vunpack.c.l.b16 %v397
    %v1968 = vunpack.c.h.b16 %v397
    %v1969 = vunpack.c.l.b16 %v398
    %v1970 = vunpack.c.h.b16 %v398
    %v1971 = vunpack.c.l.b16 %v399
    %v1972 = vunpack.c.h.b16 %v399
    %v1973 = vunpack.c.l.b16 %v400
    %v1974 = vunpack.c.h.b16 %v400
    %v1975 = vunpack.c.l.b16 %v401
    %v1976 = vunpack.c.h.b16 %v401
    %v1977 = vunpack.c.l.b16 %v402
    %v1978 = vunpack.c.h.b16 %v402
    %v1979 = vunpack.c.l.b16 %v403
    %v1980 = vunpack.c.h.b16 %v403
    %v1981 = vunpack.c.l.b16 %v404
    %v1982 = vunpack.c.h.b16 %v404
    %v1983 = vunpack.c.l.b16 %v405
    %v1984 = vunpack.c.h.b16 %v405
    %v1985 = vunpack.c.l.b16 %v406
    %v1986 = vunpack.c.h.b16 %v406
    %v1987 = vunpack.c.l.b16 %v407
    %v1988 = vunpack.c.h.b16 %v407
    %v1989 = vunpack.c.l.b16 %v408
    %v1990 = vunpack.c.h.b16 %v408
    %v1991 = vunpack.c.l.b16 %v409
    %v1992 = vunpack.c.h.b16 %v409
    %v1993 = vunpack.c.l.b16 %v410
    %v1994 = vunpack.c.h.b16 %v410
    %v1995 = vunpack.c.l.b16 %v411
    %v1996 = vunpack.c.h.b16 %v411
    %v1997 = vunpack.c.l.b16 %v412
    %v1998 = vunpack.c.h.b16 %v412
    %v1999 = vunpack.c.l.b16 %v413
    %v2000 = vunpack.c.h.b16 %v413
    %v2001 = vunpack.c.l.b16 %v414
    %v2002 = vunpack.c.h.b16 %v414
    %v2003 = vunpack.c.l.b16 %v415
    %v2004 = vunpack.c.h.b16 %v415
    %v2005 = vunpack.c.l.b16 %v416
    %v2006 = vunpack.c.h.b16 %v416
    %v2007 = vunpack.c.l.b16 %v417
    %v2008 = vunpack.c.h.b16 %v417
    %v2009 = vunpack.c.l.b16 %v418
    %v2010 = vunpack.c.h.b16 %v418
    %v2011 = vunpack.c.l.b16 %v419
    %v2012 = vunpack.c.h.b16 %v419
    %v2013 = vunpack.c.l.b16 %v420
    %v2014 = vunpack.c.h.b16 %v420
    %v2015 = vunpack.c.l.b16 %v421
    %v2016 = vunpack.c.h.b16 %v421
    %v2017 = vunpack.c.l.b16 %v422
    %v2018 = vunpack.c.h.b16 %v422
    %v2019 = vunpack.c.l.b16 %v423
    %v2020 = vunpack.c.h.b16 %v423
    %v2021 = vunpack.c.l.b16 %v424
    %v2022 = vunpack.c.h.b16 %v424
    %v2023 = vunpack.c.l.b16 %v425
    %v2024 = vunpack.c.h.b16 %v425
    %v2025 = vunpack.c.l.b16 %v426
    %v2026 = vunpack.c.h.b16 %v426
    %v2027 = vunpack.c.l.b16 %v427
    %v2028 = vunpack.c.h.b16 %v427
    %v2029 = vunpack.c.l.b16 %v428
    %v2030 = vunpack.c.h.b16 %v428
    %v2031 = vunpack.c.l.b16 %v429
    %v2032 = vunpack.c.h.b16 %v429
    %v2033 = vunpack.c.l.b16 %v430
    %v2034 = vunpack.c.h.b16 %v430
    %v2035 = vunpack.c.l.b16 %v431
    %v2036 = vunpack.c.h.b16 %v431
    %v2037 = vunpack.c.l.b16 %v432
    %v2038 = vunpack.c.h.b16 %v432
    %v2039 = vunpack.c.l.b16 %v433
    %v2040 = vunpack.c.h.b16 %v433
    %v2041 = vunpack.c.l.b16 %v434
    %v2042 = vunpack.c.h.b16 %v434
    %v2043 = vunpack.c.l.b16 %v435
    %v2044 = vunpack.c.h.b16 %v435
    %v2045 = vunpack.c.l.b16 %v436
    %v2046 = vunpack.c.h.b16 %v436
    %v2047 = vunpack.c.l.b16 %v437
    %v2048 = vunpack.c.h.b16 %v437
    %v2049 = vunpack.c.l.b16 %v438
    %v2050 = vunpack.c.h.b16 %v438
    %v2051 = vunpack.c.l.b16 %v439
    %v2052 = vunpack.c.h.b16 %v439
    %v2053 = vunpack.c.l.b16 %v440
    %v2054 = vunpack.c.h.b16 %v440
    %v2055 = vunpack.c.l.b16 %v441
    %v2056 = vunpack.c.h.b16 %v441
    %v2057 = vunpack.c.l.b16 %v442
    %v2058 = vunpack.c.h.b16 %v442
    %v2059 = vunpack.c.l.b16 %v443
    %v2060 = vunpack.c.h.b16 %v443
    %v2061 = vunpack.c.l.b16 %v444
    %v2062 = vunpack.c.h.b16 %v444
    %v2063 = vunpack.c.l.b16 %v445
    %v2064 = vunpack.c.h.b16 %v445
    %v2065 = vunpack.c.l.b16 %v446
    %v2066 = vunpack.c.h.b16 %v446
    %v2067 = vunpack.c.l.b16 %v447
    %v2068 = vunpack.c.h.b16 %v447
    %v2069 = vunpack.c.l.b16 %v448
    %v2070 = vunpack.c.h.b16 %v448
    %v2071 = vunpack.c.l.b16 %v449
    %v2072 = vunpack.c.h.b16 %v449
    %v2073 = vunpack.c.l.b16 %v450
    %v2074 = vunpack.c.h.b16 %v450
    %v2075 = vunpack.c.l.b16 %v451
    %v2076 = vunpack.c.h.b16 %v451
    %v2077 = vunpack.c.l.b16 %v452
    %v2078 = vunpack.c.h.b16 %v452
    %v2079 = vunpack.c.l.b16 %v453
    %v2080 = vunpack.c.h.b16 %v453
    %v2081 = vunpack.c.l.b16 %v454
    %v2082 = vunpack.c.h.b16 %v454
    %v2083 = vunpack.c.l.b16 %v455
    %v2084 = vunpack.c.h.b16 %v455
    %v2085 = vunpack.c.l.b16 %v456
    %v2086 = vunpack.c.h.b16 %v456
    %v2087 = vunpack.c.l.b16 %v457
    %v2088 = vunpack.c.h.b16 %v457
    %v2089 = vunpack.c.l.b16 %v458
    %v2090 = vunpack.c.h.b16 %v458
    %v2091 = vunpack.c.l.b16 %v459
    %v2092 = vunpack.c.h.b16 %v459
    %v2093 = vunpack.c.l.b16 %v460
    %v2094 = vunpack.c.h.b16 %v460
    %v2095 = vunpack.c.l.b16 %v461
    %v2096 = vunpack.c.h.b16 %v461
    %v2097 = vunpack.c.l.b16 %v462
    %v2098 = vunpack.c.h.b16 %v462
    %v2099 = vunpack.c.l.b16 %v463
    %v2100 = vunpack.c.h.b16 %v463
    %v2101 = vunpack.c.l.b16 %v464
    %v2102 = vunpack.c.h.b16 %v464
    %v2103 = vunpack.c.l.b16 %v465
    %v2104 = vunpack.c.h.b16 %v465
    %v2105 = vunpack.c.l.b16 %v466
    %v2106 = vunpack.c.h.b16 %v466
    %v2107 = vunpack.c.l.b16 %v467
    %v2108 = vunpack.c.h.b16 %v467
    %v2109 = vunpack.c.l.b16 %v468
    %v2110 = vunpack.c.h.b16 %v468
    %v2111 = vunpack.c.l.b16 %v469
    %v2112 = vunpack.c.h.b16 %v469
    %v2113 = vunpack.c.l.b16 %v470
    %v2114 = vunpack.c.h.b16 %v470
    %v2115 = vunpack.c.l.b16 %v471
    %v2116 = vunpack.c.h.b16 %v471
    %v2117 = vunpack.c.l.b16 %v472
    %v2118 = vunpack.c.h.b16 %v472
    %v2119 = vunpack.c.l.b16 %v473
    %v2120 = vunpack.c.h.b16 %v473
    %v2121 = vunpack.c.l.b16 %v474
    %v2122 = vunpack.c.h.b16 %v474
    %v2123 = vunpack.c.l.b16 %v475
    %v2124 = vunpack.c.h.b16 %v475
    %v2125 = vunpack.c.l.b16 %v476
    %v2126 = vunpack.c.h.b16 %v476
    %v2127 = vunpack.c.l.b16 %v477
    %v2128 = vunpack.c.h.b16 %v477
    %v2129 = vunpack.c.l.b16 %v478
    %v2130 = vunpack.c.h.b16 %v478
    %v2131 = vunpack.c.l.b16 %v479
    %v2132 = vunpack.c.h.b16 %v479
    %v2133 = vunpack.c.l.b16 %v480
    %v2134 = vunpack.c.h.b16 %v480
    %v2135 = vunpack.c.l.b16 %v481
    %v2136 = vunpack.c.h.b16 %v481
    %v2137 = vunpack.c.l.b16 %v482
    %v2138 = vunpack.c.h.b16 %v482
    %v2139 = vunpack.c.l.b16 %v483
    %v2140 = vunpack.c.h.b16 %v483
    %v2141 = vunpack.c.l.b16 %v484
    %v2142 = vunpack.c.h.b16 %v484
    %v2143 = vunpack.c.l.b16 %v485
    %v2144 = vunpack.c.h.b16 %v485
    %v2145 = vunpack.c.l.b16 %v486
    %v2146 = vunpack.c.h.b16 %v486
    %v2147 = vunpack.c.l.b16 %v487
    %v2148 = vunpack.c.h.b16 %v487
    %v2149 = vunpack.c.l.b16 %v488
    %v2150 = vunpack.c.h.b16 %v488
    %v2151 = vunpack.c.l.b16 %v489
    %v2152 = vunpack.c.h.b16 %v489
    %v2153 = vunpack.c.l.b16 %v490
    %v2154 = vunpack.c.h.b16 %v490
    %v2155 = vunpack.c.l.b16 %v491
    %v2156 = vunpack.c.h.b16 %v491
    %v2157 = vunpack.c.l.b16 %v492
    %v2158 = vunpack.c.h.b16 %v492
    %v2159 = vunpack.c.l.b16 %v493
    %v2160 = vunpack.c.h.b16 %v493
    %v2161 = vunpack.c.l.b16 %v494
    %v2162 = vunpack.c.h.b16 %v494
    %v2163 = vunpack.c.l.b16 %v495
    %v2164 = vunpack.c.h.b16 %v495
    %v2165 = vunpack.c.l.b16 %v496
    %v2166 = vunpack.c.h.b16 %v496
    %v2167 = vunpack.c.l.b16 %v497
    %v2168 = vunpack.c.h.b16 %v497
    %v2169 = vunpack.c.l.b16 %v498
    %v2170 = vunpack.c.h.b16 %v498
    %v2171 = vunpack.c.l.b16 %v499
    %v2172 = vunpack.c.h.b16 %v499
    %v2173 = vunpack.c.l.b16 %v500
    %v2174 = vunpack.c.h.b16 %v500
    %v2175 = vunpack.c.l.b16 %v501
    %v2176 = vunpack.c.h.b16 %v501
    %v2177 = vunpack.c.l.b16 %v502
    %v2178 = vunpack.c.h.b16 %v502
    %v2179 = vunpack.c.l.b16 %v503
    %v2180 = vunpack.c.h.b16 %v503
    %v2181 = vunpack.c.l.b16 %v504
    %v2182 = vunpack.c.h.b16 %v504
    %v2183 = vunpack.c.l.b16 %v505
    %v2184 = vunpack.c.h.b16 %v505
    %v2185 = vunpack.c.l.b16 %v506
    %v2186 = vunpack.c.h.b16 %v506
    %v2187 = vunpack.c.l.b16 %v507
    %v2188 = vunpack.c.h.b16 %v507
    %v2189 = vunpack.c.l.b16 %v508
    %v2190 = vunpack.c.h.b16 %v508
    %v2191 = vunpack.c.l.b16 %v509
    %v2192 = vunpack.c.h.b16 %v509
    %v2193 = vunpack.c.l.b16 %v510
    %v2194 = vunpack.c.h.b16 %v510
    %v2195 = vunpack.c.l.b16 %v511
    %v2196 = vunpack.c.h.b16 %v511
    %v2197 = vunpack.c.l.b16 %v512
    %v2198 = vunpack.c.h.b16 %v512
    %v2199 = vunpack.c.l.b16 %v513
    %v2200 = vunpack.c.h.b16 %v513
    %v2201 = vunpack.c.l.b16 %v514
    %v2202 = vunpack.c.h.b16 %v514
    %v2203 = vunpack.c.l.b16 %v515
    %v2204 = vunpack.c.h.b16 %v515
    %v2205 = vunpack.c.l.b16 %v516
    %v2206 = vunpack.c.h.b16 %v516
    %v2207 = vunpack.c.l.b16 %v517
    %v2208 = vunpack.c.h.b16 %v517
    %v2209 = vunpack.c.l.b16 %v518
    %v2210 = vunpack.c.h.b16 %v518
    %v2211 = vunpack.c.l.b16 %v519
    %v2212 = vunpack.c.h.b16 %v519
    %v2213 = vunpack.c.l.b16 %v520
    %v2214 = vunpack.c.h.b16 %v520
    %v2215 = vunpack.c.l.b16 %v521
    %v2216 = vunpack.c.h.b16 %v521
    %v2217 = vunpack.c.l.b16 %v522
    %v2218 = vunpack.c.h.b16 %v522
    %v2219 = vunpack.c.l.b16 %v523
    %v2220 = vunpack.c.h.b16 %v523
    %v2221 = vunpack.c.l.b16 %v524
    %v2222 = vunpack.c.h.b16 %v524
    %v2223 = vunpack.c.l.b16 %v525
    %v2224 = vunpack.c.h.b16 %v525
    %v2225 = vunpack.c.l.b16 %v526
    %v2226 = vunpack.c.h.b16 %v526
    %v2227 = vunpack.c.l.b16 %v527
    %v2228 = vunpack.c.h.b16 %v527
    %v2229 = vunpack.c.l.b16 %v528
    %v2230 = vunpack.c.h.b16 %v528
    %v2231 = vunpack.c.l.b16 %v529
    %v2232 = vunpack.c.h.b16 %v529
    %v2233 = vunpack.c.l.b16 %v530
    %v2234 = vunpack.c.h.b16 %v530
    %v2235 = vunpack.c.l.b16 %v531
    %v2236 = vunpack.c.h.b16 %v531
    %v2237 = vunpack.c.l.b16 %v532
    %v2238 = vunpack.c.h.b16 %v532
    %v2239 = vunpack.c.l.b16 %v533
    %v2240 = vunpack.c.h.b16 %v533
    %v2241 = vunpack.c.l.b16 %v534
    %v2242 = vunpack.c.h.b16 %v534
    %v2243 = vunpack.c.l.b16 %v535
    %v2244 = vunpack.c.h.b16 %v535
    %v2245 = vunpack.c.l.b16 %v536
    %v2246 = vunpack.c.h.b16 %v536
    %v2247 = vunpack.c.l.b16 %v537
    %v2248 = vunpack.c.h.b16 %v537
    %v2249 = vunpack.c.l.b16 %v538
    %v2250 = vunpack.c.h.b16 %v538
    %v2251 = vunpack.c.l.b16 %v539
    %v2252 = vunpack.c.h.b16 %v539
    %v2253 = vunpack.c.l.b16 %v540
    %v2254 = vunpack.c.h.b16 %v540
    %v2255 = vunpack.c.l.b16 %v541
    %v2256 = vunpack.c.h.b16 %v541
    %v2257 = vunpack.c.l.b16 %v542
    %v2258 = vunpack.c.h.b16 %v542
    %v2259 = vunpack.c.l.b16 %v543
    %v2260 = vunpack.c.h.b16 %v543
    %v2261 = vunpack.c.l.b16 %v544
    %v2262 = vunpack.c.h.b16 %v544
    %v2263 = vunpack.c.l.b16 %v545
    %v2264 = vunpack.c.h.b16 %v545
    %v2265 = vunpack.c.l.b16 %v546
    %v2266 = vunpack.c.h.b16 %v546
    %v2267 = vunpack.c.l.b16 %v547
    %v2268 = vunpack.c.h.b16 %v547
    %v2269 = vunpack.c.l.b16 %v548
    %v2270 = vunpack.c.h.b16 %v548
    %v2271 = vunpack.c.l.b16 %v549
    %v2272 = vunpack.c.h.b16 %v549
    %v2273 = vunpack.c.l.b16 %v550
    %v2274 = vunpack.c.h.b16 %v550
    %v2275 = vunpack.c.l.b16 %v551
    %v2276 = vunpack.c.h.b16 %v551
    %v2277 = vunpack.c.l.b16 %v552
    %v2278 = vunpack.c.h.b16 %v552
    %v2279 = vunpack.c.l.b16 %v553
    %v2280 = vunpack.c.h.b16 %v553
    %v2281 = vunpack.c.l.b16 %v554
    %v2282 = vunpack.c.h.b16 %v554
    %v2283 = vunpack.c.l.b16 %v555
    %v2284 = vunpack.c.h.b16 %v555
    %v2285 = vunpack.c.l.b16 %v556
    %v2286 = vunpack.c.h.b16 %v556
    %v2287 = vunpack.c.l.b16 %v557
    %v2288 = vunpack.c.h.b16 %v557
    %v2289 = vunpack.c.l.b16 %v558
    %v2290 = vunpack.c.h.b16 %v558
    %v2291 = vunpack.c.l.b16 %v559
    %v2292 = vunpack.c.h.b16 %v559
    %v2293 = vunpack.c.l.b16 %v560
    %v2294 = vunpack.c.h.b16 %v560
    %v2295 = vunpack.c.l.b16 %v561
    %v2296 = vunpack.c.h.b16 %v561
    %v2297 = vunpack.c.l.b16 %v562
    %v2298 = vunpack.c.h.b16 %v562
    %v2299 = vunpack.c.l.b16 %v563
    %v2300 = vunpack.c.h.b16 %v563
    %v2301 = vunpack.c.l.b16 %v564
    %v2302 = vunpack.c.h.b16 %v564
    %v2303 = vunpack.c.l.b16 %v565
    %v2304 = vunpack.c.h.b16 %v565
    %v2305 = vunpack.c.l.b16 %v566
    %v2306 = vunpack.c.h.b16 %v566
    %v2307 = vunpack.c.l.b16 %v567
    %v2308 = vunpack.c.h.b16 %v567
    %v2309 = vunpack.c.l.b16 %v568
    %v2310 = vunpack.c.h.b16 %v568
    %v2311 = vunpack.c.l.b16 %v569
    %v2312 = vunpack.c.h.b16 %v569
    %v2313 = vunpack.c.l.b16 %v570
    %v2314 = vunpack.c.h.b16 %v570
    %v2315 = vunpack.c.l.b16 %v571
    %v2316 = vunpack.c.h.b16 %v571
    %v2317 = vunpack.c.l.b16 %v572
    %v2318 = vunpack.c.h.b16 %v572
    %v2319 = vunpack.c.l.b16 %v573
    %v2320 = vunpack.c.h.b16 %v573
    %v2321 = vunpack.c.l.b16 %v574
    %v2322 = vunpack.c.h.b16 %v574
    %v2323 = vunpack.c.l.b16 %v575
    %v2324 = vunpack.c.h.b16 %v575
    %v2325 = vunpack.c.l.b16 %v576
    %v2326 = vunpack.c.h.b16 %v576
    %v2327 = vunpack.c.l.b16 %v577
    %v2328 = vunpack.c.h.b16 %v577
    %v2329 = vunpack.c.l.b16 %v578
    %v2330 = vunpack.c.h.b16 %v578
    %v2331 = vunpack.c.l.b16 %v579
    %v2332 = vunpack.c.h.b16 %v579
    %v2333 = vunpack.c.l.b16 %v580
    %v2334 = vunpack.c.h.b16 %v580
    %v2335 = vunpack.c.l.b16 %v581
    %v2336 = vunpack.c.h.b16 %v581
    %v2337 = vunpack.c.l.b16 %v582
    %v2338 = vunpack.c.h.b16 %v582
    %v2339 = vunpack.c.l.b16 %v583
    %v2340 = vunpack.c.h.b16 %v583
    %v2341 = vunpack.c.l.b16 %v584
    %v2342 = vunpack.c.h.b16 %v584
    %v2343 = vunpack.c.l.b16 %v585
    %v2344 = vunpack.c.h.b16 %v585
    %v2345 = vunpack.c.l.b16 %v586
    %v2346 = vunpack.c.h.b16 %v586
    %v2347 = vunpack.c.l.b16 %v587
    %v2348 = vunpack.c.h.b16 %v587
    %v2349 = vunpack.c.l.b16 %v588
    %v2350 = vunpack.c.h.b16 %v588
    %v2351 = vunpack.c.l.b16 %v589
    %v2352 = vunpack.c.h.b16 %v589
    %v2353 = vunpack.c.l.b16 %v590
    %v2354 = vunpack.c.h.b16 %v590
    %v2355 = vunpack.c.l.b16 %v591
    %v2356 = vunpack.c.h.b16 %v591
    %v2357 = vunpack.c.l.b16 %v592
    %v2358 = vunpack.c.h.b16 %v592
    %v2359 = vunpack.c.l.b16 %v593
    %v2360 = vunpack.c.h.b16 %v593
    %v2361 = vunpack.c.l.b16 %v594
    %v2362 = vunpack.c.h.b16 %v594
    %v2363 = vunpack.c.l.b16 %v595
    %v2364 = vunpack.c.h.b16 %v595
    %v2365 = vunpack.c.l.b16 %v596
    %v2366 = vunpack.c.h.b16 %v596
    %v2367 = vunpack.c.l.b16 %v597
    %v2368 = vunpack.c.h.b16 %v597
    %v2369 = vunpack.c.l.b16 %v598
    %v2370 = vunpack.c.h.b16 %v598
    %v2371 = vunpack.c.l.b16 %v599
    %v2372 = vunpack.c.h.b16 %v599
    %v2373 = vunpack.c.l.b16 %v600
    %v2374 = vunpack.c.h.b16 %v600
    %v2375 = vunpack.c.l.b16 %v601
    %v2376 = vunpack.c.h.b16 %v601
    %v2377 = vunpack.c.l.b16 %v602
    %v2378 = vunpack.c.h.b16 %v602
    %v2379 = vunpack.c.l.b16 %v603
    %v2380 = vunpack.c.h.b16 %v603
    %v2381 = vunpack.c.l.b16 %v604
    %v2382 = vunpack.c.h.b16 %v604
    %v2383 = vunpack.c.l.b16 %v605
    %v2384 = vunpack.c.h.b16 %v605
    %v2385 = vunpack.c.l.b16 %v606
    %v2386 = vunpack.c.h.b16 %v606
    %v2387 = vpack.c.b16 %v1239, %v1235
    %v2388 = vpack.c.b16 %v1240, %v1236
    %v2389 = vpack.c.b16 %v1241, %v1237
    %v2390 = vpack.c.b16 %v1242, %v1238
    %v2391 = vpack.c.b16 %v1247, %v1243
    %v2392 = vpack.c.b16 %v1248, %v1244
    %v2393 = vpack.c.b16 %v1249, %v1245
    %v2394 = vpack.c.b16 %v1250, %v1246
    %v2395 = vpack.c.b16 %v1255, %v1251
    %v2396 = vpack.c.b16 %v1256, %v1252
    %v2397 = vpack.c.b16 %v1257, %v1253
    %v2398 = vpack.c.b16 %v1258, %v1254
    %v2399 = vpack.c.b16 %v1263, %v1259
    %v2400 = vpack.c.b16 %v1264, %v1260
    %v2401 = vpack.c.b16 %v1265, %v1261
    %v2402 = vpack.c.b16 %v1266, %v1262
    %v2403 = vpack.c.b16 %v1271, %v1267
    %v2404 = vpack.c.b16 %v1272, %v1268
    %v2405 = vpack.c.b16 %v1273, %v1269
    %v2406 = vpack.c.b16 %v1274, %v1270
    %v2407 = vpack.c.b16 %v1279, %v1275
    %v2408 = vpack.c.b16 %v1280, %v1276
    %v2409 = vpack.c.b16 %v1281, %v1277
    %v2410 = vpack.c.b16 %v1282, %v1278
    %v2411 = vpack.c.b16 %v1287, %v1283
    %v2412 = vpack.c.b16 %v1288, %v1284
    %v2413 = vpack.c.b16 %v1289, %v1285
    %v2414 = vpack.c.b16 %v1290, %v1286
    %v2415 = vpack.c.b16 %v1295, %v1291
    %v2416 = vpack.c.b16 %v1296, %v1292
    %v2417 = vpack.c.b16 %v1297, %v1293
    %v2418 = vpack.c.b16 %v1298, %v1294
    %v2419 = vpack.c.b16 %v1303, %v1299
    %v2420 = vpack.c.b16 %v1304, %v1300
    %v2421 = vpack.c.b16 %v1305, %v1301
    %v2422 = vpack.c.b16 %v1306, %v1302
    %v2423 = vpack.c.b16 %v1311, %v1307
    %v2424 = vpack.c.b16 %v1312, %v1308
    %v2425 = vpack.c.b16 %v1313, %v1309
    %v2426 = vpack.c.b16 %v1314, %v1310
    %v2427 = vpack.c.b16 %v1319, %v1315
    %v2428 = vpack.c.b16 %v1320, %v1316
    %v2429 = vpack.c.b16 %v1321, %v1317
    %v2430 = vpack.c.b16 %v1322, %v1318
    %v2431 = vpack.c.b16 %v1327, %v1323
    %v2432 = vpack.c.b16 %v1328, %v1324
    %v2433 = vpack.c.b16 %v1329, %v1325
    %v2434 = vpack.c.b16 %v1330, %v1326
    %v2435 = vpack.c.b16 %v1335, %v1331
    %v2436 = vpack.c.b16 %v1336, %v1332
    %v2437 = vpack.c.b16 %v1337, %v1333
    %v2438 = vpack.c.b16 %v1338, %v1334
    %v2439 = vpack.c.b16 %v1343, %v1339
    %v2440 = vpack.c.b16 %v1344, %v1340
    %v2441 = vpack.c.b16 %v1345, %v1341
    %v2442 = vpack.c.b16 %v1346, %v1342
    %v2443 = vpack.c.b16 %v1351, %v1347
    %v2444 = vpack.c.b16 %v1352, %v1348
    %v2445 = vpack.c.b16 %v1353, %v1349
    %v2446 = vpack.c.b16 %v1354, %v1350
    %v2447 = vpack.c.b16 %v1359, %v1355
    %v2448 = vpack.c.b16 %v1360, %v1356
    %v2449 = vpack.c.b16 %v1361, %v1357
    %v2450 = vpack.c.b16 %v1362, %v1358
    %v2451 = vpack.c.b16 %v1367, %v1363
    %v2452 = vpack.c.b16 %v1368, %v1364
    %v2453 = vpack.c.b16 %v1369, %v1365
    %v2454 = vpack.c.b16 %v1370, %v1366
    %v2455 = vpack.c.b16 %v1375, %v1371
    %v2456 = vpack.c.b16 %v1376, %v1372
    %v2457 = vpack.c.b16 %v1377, %v1373
    %v2458 = vpack.c.b16 %v1378, %v1374
    %v2459 = vpack.c.b16 %v1383, %v1379
    %v2460 = vpack.c.b16 %v1384, %v1380
    %v2461 = vpack.c.b16 %v1385, %v1381
    %v2462 = vpack.c.b16 %v1386, %v1382
    %v2463 = vpack.c.b16 %v1391, %v1387
    %v2464 = vpack.c.b16 %v1392, %v1388
    %v2465 = vpack.c.b16 %v1393, %v1389
    %v2466 = vpack.c.b16 %v1394, %v1390
    %v2467 = vpack.c.b16 %v1399, %v1395
    %v2468 = vpack.c.b16 %v1400, %v1396
    %v2469 = vpack.c.b16 %v1401, %v1397
    %v2470 = vpack.c.b16 %v1402, %v1398
    %v2471 = vpack.c.b16 %v1407, %v1403
    %v2472 = vpack.c.b16 %v1408, %v1404
    %v2473 = vpack.c.b16 %v1409, %v1405
    %v2474 = vpack.c.b16 %v1410, %v1406
    %v2475 = vpack.c.b16 %v1415, %v1411
    %v2476 = vpack.c.b16 %v1416, %v1412
    %v2477 = vpack.c.b16 %v1417, %v1413
    %v2478 = vpack.c.b16 %v1418, %v1414
    %v2479 = vpack.c.b16 %v1423, %v1419
    %v2480 = vpack.c.b16 %v1424, %v1420
    %v2481 = vpack.c.b16 %v1425, %v1421
    %v2482 = vpack.c.b16 %v1426, %v1422
    %v2483 = vpack.c.b16 %v1431, %v1427
    %v2484 = vpack.c.b16 %v1432, %v1428
    %v2485 = vpack.c.b16 %v1433, %v1429
    %v2486 = vpack.c.b16 %v1434, %v1430
    %v2487 = vpack.c.b16 %v1439, %v1435
    %v2488 = vpack.c.b16 %v1440, %v1436
    %v2489 = vpack.c.b16 %v1441, %v1437
    %v2490 = vpack.c.b16 %v1442, %v1438
    %v2491 = vpack.c.b16 %v1447, %v1443
    %v2492 = vpack.c.b16 %v1448, %v1444
    %v2493 = vpack.c.b16 %v1449, %v1445
    %v2494 = vpack.c.b16 %v1450, %v1446
    %v2495 = vpack.c.b16 %v1455, %v1451
    %v2496 = vpack.c.b16 %v1456, %v1452
    %v2497 = vpack.c.b16 %v1457, %v1453
    %v2498 = vpack.c.b16 %v1458, %v1454
    %v2499 = vpack.c.b16 %v1463, %v1459
    %v2500 = vpack.c.b16 %v1464, %v1460
    %v2501 = vpack.c.b16 %v1465, %v1461
    %v2502 = vpack.c.b16 %v1466, %v1462
    %v2503 = vpack.c.b16 %v1471, %v1467
    %v2504 = vpack.c.b16 %v1472, %v1468
    %v2505 = vpack.c.b16 %v1473, %v1469
    %v2506 = vpack.c.b16 %v1474, %v1470
    %v2507 = vpack.c.b16 %v1479, %v1475
    %v2508 = vpack.c.b16 %v1480, %v1476
    %v2509 = vpack.c.b16 %v1481, %v1477
    %v2510 = vpack.c.b16 %v1482, %v1478
    %v2511 = vpack.c.b16 %v1487, %v1483
    %v2512 = vpack.c.b16 %v1488, %v1484
    %v2513 = vpack.c.b16 %v1489, %v1485
    %v2514 = vpack.c.b16 %v1490, %v1486
    %v2515 = vpack.c.b16 %v1495, %v1491
    %v2516 = vpack.c.b16 %v1496, %v1492
    %v2517 = vpack.c.b16 %v1497, %v1493
    %v2518 = vpack.c.b16 %v1498, %v1494
    %v2519 = vpack.c.b16 %v1503, %v1499
    %v2520 = vpack.c.b16 %v1504, %v1500
    %v2521 = vpack.c.b16 %v1505, %v1501
    %v2522 = vpack.c.b16 %v1506, %v1502
    %v2523 = vpack.c.b16 %v1511, %v1507
    %v2524 = vpack.c.b16 %v1512, %v1508
    %v2525 = vpack.c.b16 %v1513, %v1509
    %v2526 = vpack.c.b16 %v1514, %v1510
    %v2527 = vpack.c.b16 %v1519, %v1515
    %v2528 = vpack.c.b16 %v1520, %v1516
    %v2529 = vpack.c.b16 %v1521, %v1517
    %v2530 = vpack.c.b16 %v1522, %v1518
    %v2531 = vpack.c.b16 %v1527, %v1523
    %v2532 = vpack.c.b16 %v1528, %v1524
    %v2533 = vpack.c.b16 %v1529, %v1525
    %v2534 = vpack.c.b16 %v1530, %v1526
    %v2535 = vpack.c.b16 %v1535, %v1531
    %v2536 = vpack.c.b16 %v1536, %v1532
    %v2537 = vpack.c.b16 %v1537, %v1533
    %v2538 = vpack.c.b16 %v1538, %v1534
    %v2539 = vpack.c.b16 %v1543, %v1539
    %v2540 = vpack.c.b16 %v1544, %v1540
    %v2541 = vpack.c.b16 %v1545, %v1541
    %v2542 = vpack.c.b16 %v1546, %v1542
    %v2543 = vpack.c.b16 %v1551, %v1547
    %v2544 = vpack.c.b16 %v1552, %v1548
    %v2545 = vpack.c.b16 %v1553, %v1549
    %v2546 = vpack.c.b16 %v1554, %v1550
    %v2547 = vpack.c.b16 %v1559, %v1555
    %v2548 = vpack.c.b16 %v1560, %v1556
    %v2549 = vpack.c.b16 %v1561, %v1557
    %v2550 = vpack.c.b16 %v1562, %v1558
    %v2551 = vpack.c.b16 %v1567, %v1563
    %v2552 = vpack.c.b16 %v1568, %v1564
    %v2553 = vpack.c.b16 %v1569, %v1565
    %v2554 = vpack.c.b16 %v1570, %v1566
    %v2555 = vpack.c.b16 %v1575, %v1571
    %v2556 = vpack.c.b16 %v1576, %v1572
    %v2557 = vpack.c.b16 %v1577, %v1573
    %v2558 = vpack.c.b16 %v1578, %v1574
    %v2559 = vpack.c.b16 %v1583, %v1579
    %v2560 = vpack.c.b16 %v1584, %v1580
    %v2561 = vpack.c.b16 %v1585, %v1581
    %v2562 = vpack.c.b16 %v1586, %v1582
    %v2563 = vpack.c.b16 %v1591, %v1587
    %v2564 = vpack.c.b16 %v1592, %v1588
    %v2565 = vpack.c.b16 %v1593, %v1589
    %v2566 = vpack.c.b16 %v1594, %v1590
    %v2567 = vpack.c.b16 %v1599, %v1595
    %v2568 = vpack.c.b16 %v1600, %v1596
    %v2569 = vpack.c.b16 %v1601, %v1597
    %v2570 = vpack.c.b16 %v1602, %v1598
    %v2571 = vpack.c.b16 %v1607, %v1603
    %v2572 = vpack.c.b16 %v1608, %v1604
    %v2573 = vpack.c.b16 %v1609, %v1605
    %v2574 = vpack.c.b16 %v1610, %v1606
    %v2575 = vpack.c.b16 %v1615, %v1611
    %v2576 = vpack.c.b16 %v1616, %v1612
    %v2577 = vpack.c.b16 %v1617, %v1613
    %v2578 = vpack.c.b16 %v1618, %v1614
    %v2579 = vpack.c.b16 %v1623, %v1619
    %v2580 = vpack.c.b16 %v1624, %v1620
    %v2581 = vpack.c.b16 %v1625, %v1621
    %v2582 = vpack.c.b16 %v1626, %v1622
    %v2583 = vpack.c.b16 %v1631, %v1627
    %v2584 = vpack.c.b16 %v1632, %v1628
    %v2585 = vpack.c.b16 %v1633, %v1629
    %v2586 = vpack.c.b16 %v1634, %v1630
    %v2587 = vpack.c.b16 %v1639, %v1635
    %v2588 = vpack.c.b16 %v1640, %v1636
    %v2589 = vpack.c.b16 %v1641, %v1637
    %v2590 = vpack.c.b16 %v1642, %v1638
    %v2591 = vpack.c.b16 %v1647, %v1643
    %v2592 = vpack.c.b16 %v1648, %v1644
    %v2593 = vpack.c.b16 %v1649, %v1645
    %v2594 = vpack.c.b16 %v1650, %v1646
    %v2595 = vpack.c.b16 %v1655, %v1651
    %v2596 = vpack.c.b16 %v1656, %v1652
    %v2597 = vpack.c.b16 %v1657, %v1653
    %v2598 = vpack.c.b16 %v1658, %v1654
    %v2599 = vpack.c.b16 %v1663, %v1659
    %v2600 = vpack.c.b16 %v1664, %v1660
    %v2601 = vpack.c.b16 %v1665, %v1661
    %v2602 = vpack.c.b16 %v1666, %v1662
    %v2603 = vpack.c.b16 %v1671, %v1667
    %v2604 = vpack.c.b16 %v1672, %v1668
    %v2605 = vpack.c.b16 %v1673, %v1669
    %v2606 = vpack.c.b16 %v1674, %v1670
    %v2607 = vpack.c.b16 %v1679, %v1675
    %v2608 = vpack.c.b16 %v1680, %v1676
    %v2609 = vpack.c.b16 %v1681, %v1677
    %v2610 = vpack.c.b16 %v1682, %v1678
    %v2611 = vpack.c.b16 %v1687, %v1683
    %v2612 = vpack.c.b16 %v1688, %v1684
    %v2613 = vpack.c.b16 %v1689, %v1685
    %v2614 = vpack.c.b16 %v1690, %v1686
    %v2615 = vpack.c.b16 %v1695, %v1691
    %v2616 = vpack.c.b16 %v1696, %v1692
    %v2617 = vpack.c.b16 %v1697, %v1693
    %v2618 = vpack.c.b16 %v1698, %v1694
    %v2619 = vpack.c.b16 %v1703, %v1699
    %v2620 = vpack.c.b16 %v1704, %v1700
    %v2621 = vpack.c.b16 %v1705, %v1701
    %v2622 = vpack.c.b16 %v1706, %v1702
    %v2623 = vpack.c.b16 %v1711, %v1707
    %v2624 = vpack.c.b16 %v1712, %v1708
    %v2625 = vpack.c.b16 %v1713, %v1709
    %v2626 = vpack.c.b16 %v1714, %v1710
    %v2627 = vpack.c.b16 %v1719, %v1715
    %v2628 = vpack.c.b16 %v1720, %v1716
    %v2629 = vpack.c.b16 %v1721, %v1717
    %v2630 = vpack.c.b16 %v1722, %v1718
    %v2631 = vpack.c.b16 %v1727, %v1723
    %v2632 = vpack.c.b16 %v1728, %v1724
    %v2633 = vpack.c.b16 %v1729, %v1725
    %v2634 = vpack.c.b16 %v1730, %v1726
    %v2635 = vpack.c.b16 %v1735, %v1731
    %v2636 = vpack.c.b16 %v1736, %v1732
    %v2637 = vpack.c.b16 %v1737, %v1733
    %v2638 = vpack.c.b16 %v1738, %v1734
    %v2639 = vpack.c.b16 %v1743, %v1739
    %v2640 = vpack.c.b16 %v1744, %v1740
    %v2641 = vpack.c.b16 %v1745, %v1741
    %v2642 = vpack.c.b16 %v1746, %v1742
    %v2643 = vpack.c.b16 %v1751, %v1747
    %v2644 = vpack.c.b16 %v1752, %v1748
    %v2645 = vpack.c.b16 %v1753, %v1749
    %v2646 = vpack.c.b16 %v1754, %v1750
    %v2647 = vpack.c.b16 %v1759, %v1755
    %v2648 = vpack.c.b16 %v1760, %v1756
    %v2649 = vpack.c.b16 %v1761, %v1757
    %v2650 = vpack.c.b16 %v1762, %v1758
    %v2651 = vpack.c.b16 %v1767, %v1763
    %v2652 = vpack.c.b16 %v1768, %v1764
    %v2653 = vpack.c.b16 %v1769, %v1765
    %v2654 = vpack.c.b16 %v1770, %v1766
    %v2655 = vpack.c.b16 %v1775, %v1771
    %v2656 = vpack.c.b16 %v1776, %v1772
    %v2657 = vpack.c.b16 %v1777, %v1773
    %v2658 = vpack.c.b16 %v1778, %v1774
    %v2659 = vpack.c.b16 %v1783, %v1779
    %v2660 = vpack.c.b16 %v1784, %v1780
    %v2661 = vpack.c.b16 %v1785, %v1781
    %v2662 = vpack.c.b16 %v1786, %v1782
    %v2663 = vpack.c.b16 %v1791, %v1787
    %v2664 = vpack.c.b16 %v1792, %v1788
    %v2665 = vpack.c.b16 %v1793, %v1789
    %v2666 = vpack.c.b16 %v1794, %v1790
    %v2667 = vpack.c.b16 %v1799, %v1795
    %v2668 = vpack.c.b16 %v1800, %v1796
    %v2669 = vpack.c.b16 %v1801, %v1797
    %v2670 = vpack.c.b16 %v1802, %v1798
    %v2671 = vpack.c.b16 %v1807, %v1803
    %v2672 = vpack.c.b16 %v1808, %v1804
    %v2673 = vpack.c.b16 %v1809, %v1805
    %v2674 = vpack.c.b16 %v1810, %v1806
    %v2675 = vpack.c.b16 %v1815, %v1811
    %v2676 = vpack.c.b16 %v1816, %v1812
    %v2677 = vpack.c.b16 %v1817, %v1813
    %v2678 = vpack.c.b16 %v1818, %v1814
    %v2679 = vpack.c.b16 %v1823, %v1819
    %v2680 = vpack.c.b16 %v1824, %v1820
    %v2681 = vpack.c.b16 %v1825, %v1821
    %v2682 = vpack.c.b16 %v1826, %v1822
    %v2683 = vpack.c.b16 %v1831, %v1827
    %v2684 = vpack.c.b16 %v1832, %v1828
    %v2685 = vpack.c.b16 %v1833, %v1829
    %v2686 = vpack.c.b16 %v1834, %v1830
    %v2687 = vpack.c.b16 %v1839, %v1835
    %v2688 = vpack.c.b16 %v1840, %v1836
    %v2689 = vpack.c.b16 %v1841, %v1837
    %v2690 = vpack.c.b16 %v1842, %v1838
    %v2691 = vpack.c.b16 %v1847, %v1843
    %v2692 = vpack.c.b16 %v1848, %v1844
    %v2693 = vpack.c.b16 %v1849, %v1845
    %v2694 = vpack.c.b16 %v1850, %v1846
    %v2695 = vpack.c.b16 %v1855, %v1851
    %v2696 = vpack.c.b16 %v1856, %v1852
    %v2697 = vpack.c.b16 %v1857, %v1853
    %v2698 = vpack.c.b16 %v1858, %v1854
    %v2699 = vpack.c.b16 %v1863, %v1859
    %v2700 = vpack.c.b16 %v1864, %v1860
    %v2701 = vpack.c.b16 %v1865, %v1861
    %v2702 = vpack.c.b16 %v1866, %v1862
    %v2703 = vpack.c.b16 %v1871, %v1867
    %v2704 = vpack.c.b16 %v1872, %v1868
    %v2705 = vpack.c.b16 %v1873, %v1869
    %v2706 = vpack.c.b16 %v1874, %v1870
    %v2707 = vpack.c.b16 %v1879, %v1875
    %v2708 = vpack.c.b16 %v1880, %v1876
    %v2709 = vpack.c.b16 %v1881, %v1877
    %v2710 = vpack.c.b16 %v1882, %v1878
    %v2711 = vpack.c.b16 %v1887, %v1883
    %v2712 = vpack.c.b16 %v1888, %v1884
    %v2713 = vpack.c.b16 %v1889, %v1885
    %v2714 = vpack.c.b16 %v1890, %v1886
    %v2715 = vpack.c.b16 %v1895, %v1891
    %v2716 = vpack.c.b16 %v1896, %v1892
    %v2717 = vpack.c.b16 %v1897, %v1893
    %v2718 = vpack.c.b16 %v1898, %v1894
    %v2719 = vpack.c.b16 %v1903, %v1899
    %v2720 = vpack.c.b16 %v1904, %v1900
    %v2721 = vpack.c.b16 %v1905, %v1901
    %v2722 = vpack.c.b16 %v1906, %v1902
    %v2723 = vpack.c.b16 %v1911, %v1907
    %v2724 = vpack.c.b16 %v1912, %v1908
    %v2725 = vpack.c.b16 %v1913, %v1909
    %v2726 = vpack.c.b16 %v1914, %v1910
    %v2727 = vpack.c.b16 %v1919, %v1915
    %v2728 = vpack.c.b16 %v1920, %v1916
    %v2729 = vpack.c.b16 %v1921, %v1917
    %v2730 = vpack.c.b16 %v1922, %v1918
    %v2731 = vpack.c.b16 %v1927, %v1923
    %v2732 = vpack.c.b16 %v1928, %v1924
    %v2733 = vpack.c.b16 %v1929, %v1925
    %v2734 = vpack.c.b16 %v1930, %v1926
    %v2735 = vpack.c.b16 %v1935, %v1931
    %v2736 = vpack.c.b16 %v1936, %v1932
    %v2737 = vpack.c.b16 %v1937, %v1933
    %v2738 = vpack.c.b16 %v1938, %v1934
    %v2739 = vpack.c.b16 %v1943, %v1939
    %v2740 = vpack.c.b16 %v1944, %v1940
    %v2741 = vpack.c.b16 %v1945, %v1941
    %v2742 = vpack.c.b16 %v1946, %v1942
    %v2743 = vpack.c.b16 %v1951, %v1947
    %v2744 = vpack.c.b16 %v1952, %v1948
    %v2745 = vpack.c.b16 %v1953, %v1949
    %v2746 = vpack.c.b16 %v1954, %v1950
    %v2747 = vpack.c.b16 %v1959, %v1955
    %v2748 = vpack.c.b16 %v1960, %v1956
    %v2749 = vpack.c.b16 %v1961, %v1957
    %v2750 = vpack.c.b16 %v1962, %v1958
    %v2751 = vpack.c.b16 %v1967, %v1963
    %v2752 = vpack.c.b16 %v1968, %v1964
    %v2753 = vpack.c.b16 %v1969, %v1965
    %v2754 = vpack.c.b16 %v1970, %v1966
    %v2755 = vpack.c.b16 %v1975, %v1971
    %v2756 = vpack.c.b16 %v1976, %v1972
    %v2757 = vpack.c.b16 %v1977, %v1973
    %v2758 = vpack.c.b16 %v1978, %v1974
    %v2759 = vpack.c.b16 %v1983, %v1979
    %v2760 = vpack.c.b16 %v1984, %v1980
    %v2761 = vpack.c.b16 %v1985, %v1981
    %v2762 = vpack.c.b16 %v1986, %v1982
    %v2763 = vpack.c.b16 %v1991, %v1987
    %v2764 = vpack.c.b16 %v1992, %v1988
    %v2765 = vpack.c.b16 %v1993, %v1989
    %v2766 = vpack.c.b16 %v1994, %v1990
    %v2767 = vpack.c.b16 %v1999, %v1995
    %v2768 = vpack.c.b16 %v2000, %v1996
    %v2769 = vpack.c.b16 %v2001, %v1997
    %v2770 = vpack.c.b16 %v2002, %v1998
    %v2771 = vpack.c.b16 %v2007, %v2003
    %v2772 = vpack.c.b16 %v2008, %v2004
    %v2773 = vpack.c.b16 %v2009, %v2005
    %v2774 = vpack.c.b16 %v2010, %v2006
    %v2775 = vpack.c.b16 %v2015, %v2011
    %v2776 = vpack.c.b16 %v2016, %v2012
    %v2777 = vpack.c.b16 %v2017, %v2013
    %v2778 = vpack.c.b16 %v2018, %v2014
    %v2779 = vpack.c.b16 %v2023, %v2019
    %v2780 = vpack.c.b16 %v2024, %v2020
    %v2781 = vpack.c.b16 %v2025, %v2021
    %v2782 = vpack.c.b16 %v2026, %v2022
    %v2783 = vpack.c.b16 %v2031, %v2027
    %v2784 = vpack.c.b16 %v2032, %v2028
    %v2785 = vpack.c.b16 %v2033, %v2029
    %v2786 = vpack.c.b16 %v2034, %v2030
    %v2787 = vpack.c.b16 %v2039, %v2035
    %v2788 = vpack.c.b16 %v2040, %v2036
    %v2789 = vpack.c.b16 %v2041, %v2037
    %v2790 = vpack.c.b16 %v2042, %v2038
    %v2791 = vpack.c.b16 %v2047, %v2043
    %v2792 = vpack.c.b16 %v2048, %v2044
    %v2793 = vpack.c.b16 %v2049, %v2045
    %v2794 = vpack.c.b16 %v2050, %v2046
    %v2795 = vpack.c.b16 %v2055, %v2051
    %v2796 = vpack.c.b16 %v2056, %v2052
    %v2797 = vpack.c.b16 %v2057, %v2053
    %v2798 = vpack.c.b16 %v2058, %v2054
    %v2799 = vpack.c.b16 %v2063, %v2059
    %v2800 = vpack.c.b16 %v2064, %v2060
    %v2801 = vpack.c.b16 %v2065, %v2061
    %v2802 = vpack.c.b16 %v2066, %v2062
    %v2803 = vpack.c.b16 %v2071, %v2067
    %v2804 = vpack.c.b16 %v2072, %v2068
    %v2805 = vpack.c.b16 %v2073, %v2069
    %v2806 = vpack.c.b16 %v2074, %v2070
    %v2807 = vpack.c.b16 %v2079, %v2075
    %v2808 = vpack.c.b16 %v2080, %v2076
    %v2809 = vpack.c.b16 %v2081, %v2077
    %v2810 = vpack.c.b16 %v2082, %v2078
    %v2811 = vpack.c.b16 %v2087, %v2083
    %v2812 = vpack.c.b16 %v2088, %v2084
    %v2813 = vpack.c.b16 %v2089, %v2085
    %v2814 = vpack.c.b16 %v2090, %v2086
    %v2815 = vpack.c.b16 %v2095, %v2091
    %v2816 = vpack.c.b16 %v2096, %v2092
    %v2817 = vpack.c.b16 %v2097, %v2093
    %v2818 = vpack.c.b16 %v2098, %v2094
    %v2819 = vpack.c.b16 %v2103, %v2099
    %v2820 = vpack.c.b16 %v2104, %v2100
    %v2821 = vpack.c.b16 %v2105, %v2101
    %v2822 = vpack.c.b16 %v2106, %v2102
    %v2823 = vpack.c.b16 %v2111, %v2107
    %v2824 = vpack.c.b16 %v2112, %v2108
    %v2825 = vpack.c.b16 %v2113, %v2109
    %v2826 = vpack.c.b16 %v2114, %v2110
    %v2827 = vpack.c.b16 %v2119, %v2115
    %v2828 = vpack.c.b16 %v2120, %v2116
    %v2829 = vpack.c.b16 %v2121, %v2117
    %v2830 = vpack.c.b16 %v2122, %v2118
    %v2831 = vpack.c.b16 %v2127, %v2123
    %v2832 = vpack.c.b16 %v2128, %v2124
    %v2833 = vpack.c.b16 %v2129, %v2125
    %v2834 = vpack.c.b16 %v2130, %v2126
    %v2835 = vpack.c.b16 %v2135, %v2131
    %v2836 = vpack.c.b16 %v2136, %v2132
    %v2837 = vpack.c.b16 %v2137, %v2133
    %v2838 = vpack.c.b16 %v2138, %v2134
    %v2839 = vpack.c.b16 %v2143, %v2139
    %v2840 = vpack.c.b16 %v2144, %v2140
    %v2841 = vpack.c.b16 %v2145, %v2141
    %v2842 = vpack.c.b16 %v2146, %v2142
    %v2843 = vpack.c.b16 %v2151, %v2147
    %v2844 = vpack.c.b16 %v2152, %v2148
    %v2845 = vpack.c.b16 %v2153, %v2149
    %v2846 = vpack.c.b16 %v2154, %v2150
    %v2847 = vpack.c.b16 %v2159, %v2155
    %v2848 = vpack.c.b16 %v2160, %v2156
    %v2849 = vpack.c.b16 %v2161, %v2157
    %v2850 = vpack.c.b16 %v2162, %v2158
    %v2851 = vpack.c.b16 %v2167, %v2163
    %v2852 = vpack.c.b16 %v2168, %v2164
    %v2853 = vpack.c.b16 %v2169, %v2165
    %v2854 = vpack.c.b16 %v2170, %v2166
    %v2855 = vpack.c.b16 %v2175, %v2171
    %v2856 = vpack.c.b16 %v2176, %v2172
    %v2857 = vpack.c.b16 %v2177, %v2173
    %v2858 = vpack.c.b16 %v2178, %v2174
    %v2859 = vpack.c.b16 %v2183, %v2179
    %v2860 = vpack.c.b16 %v2184, %v2180
    %v2861 = vpack.c.b16 %v2185, %v2181
    %v2862 = vpack.c.b16 %v2186, %v2182
    %v2863 = vpack.c.b16 %v2191, %v2187
    %v2864 = vpack.c.b16 %v2192, %v2188
    %v2865 = vpack.c.b16 %v2193, %v2189
    %v2866 = vpack.c.b16 %v2194, %v2190
    %v2867 = vpack.c.b16 %v2199, %v2195
    %v2868 = vpack.c.b16 %v2200, %v2196
    %v2869 = vpack.c.b16 %v2201, %v2197
    %v2870 = vpack.c.b16 %v2202, %v2198
    %v2871 = vpack.c.b16 %v2207, %v2203
    %v2872 = vpack.c.b16 %v2208, %v2204
    %v2873 = vpack.c.b16 %v2209, %v2205
    %v2874 = vpack.c.b16 %v2210, %v2206
    %v2875 = vpack.c.b16 %v2215, %v2211
    %v2876 = vpack.c.b16 %v2216, %v2212
    %v2877 = vpack.c.b16 %v2217, %v2213
    %v2878 = vpack.c.b16 %v2218, %v2214
    %v2879 = vpack.c.b16 %v2223, %v2219
    %v2880 = vpack.c.b16 %v2224, %v2220
    %v2881 = vpack.c.b16 %v2225, %v2221
    %v2882 = vpack.c.b16 %v2226, %v2222
    %v2883 = vpack.c.b16 %v2231, %v2227
    %v2884 = vpack.c.b16 %v2232, %v2228
    %v2885 = vpack.c.b16 %v2233, %v2229
    %v2886 = vpack.c.b16 %v2234, %v2230
    %v2887 = vpack.c.b16 %v2239, %v2235
    %v2888 = vpack.c.b16 %v2240, %v2236
    %v2889 = vpack.c.b16 %v2241, %v2237
    %v2890 = vpack.c.b16 %v2242, %v2238
    %v2891 = vpack.c.b16 %v2247, %v2243
    %v2892 = vpack.c.b16 %v2248, %v2244
    %v2893 = vpack.c.b16 %v2249, %v2245
    %v2894 = vpack.c.b16 %v2250, %v2246
    %v2895 = vpack.c.b16 %v2255, %v2251
    %v2896 = vpack.c.b16 %v2256, %v2252
    %v2897 = vpack.c.b16 %v2257, %v2253
    %v2898 = vpack.c.b16 %v2258, %v2254
    %v2899 = vpack.c.b16 %v2263, %v2259
    %v2900 = vpack.c.b16 %v2264, %v2260
    %v2901 = vpack.c.b16 %v2265, %v2261
    %v2902 = vpack.c.b16 %v2266, %v2262
    %v2903 = vpack.c.b16 %v2271, %v2267
    %v2904 = vpack.c.b16 %v2272, %v2268
    %v2905 = vpack.c.b16 %v2273, %v2269
    %v2906 = vpack.c.b16 %v2274, %v2270
    %v2907 = vpack.c.b16 %v2279, %v2275
    %v2908 = vpack.c.b16 %v2280, %v2276
    %v2909 = vpack.c.b16 %v2281, %v2277
    %v2910 = vpack.c.b16 %v2282, %v2278
    %v2911 = vpack.c.b16 %v2287, %v2283
    %v2912 = vpack.c.b16 %v2288, %v2284
    %v2913 = vpack.c.b16 %v2289, %v2285
    %v2914 = vpack.c.b16 %v2290, %v2286
    %v2915 = vpack.c.b16 %v2295, %v2291
    %v2916 = vpack.c.b16 %v2296, %v2292
    %v2917 = vpack.c.b16 %v2297, %v2293
    %v2918 = vpack.c.b16 %v2298, %v2294
    %v2919 = vpack.c.b16 %v2303, %v2299
    %v2920 = vpack.c.b16 %v2304, %v2300
    %v2921 = vpack.c.b16 %v2305, %v2301
    %v2922 = vpack.c.b16 %v2306, %v2302
    %v2923 = vpack.c.b16 %v2311, %v2307
    %v2924 = vpack.c.b16 %v2312, %v2308
    %v2925 = vpack.c.b16 %v2313, %v2309
    %v2926 = vpack.c.b16 %v2314, %v2310
    %v2927 = vpack.c.b16 %v2319, %v2315
    %v2928 = vpack.c.b16 %v2320, %v2316
    %v2929 = vpack.c.b16 %v2321, %v2317
    %v2930 = vpack.c.b16 %v2322, %v2318
    %v2931 = vpack.c.b16 %v2327, %v2323
    %v2932 = vpack.c.b16 %v2328, %v2324
    %v2933 = vpack.c.b16 %v2329, %v2325
    %v2934 = vpack.c.b16 %v2330, %v2326
    %v2935 = vpack.c.b16 %v2335, %v2331
    %v2936 = vpack.c.b16 %v2336, %v2332
    %v2937 = vpack.c.b16 %v2337, %v2333
    %v2938 = vpack.c.b16 %v2338, %v2334
    %v2939 = vpack.c.b16 %v2343, %v2339
    %v2940 = vpack.c.b16 %v2344, %v2340
    %v2941 = vpack.c.b16 %v2345, %v2341
    %v2942 = vpack.c.b16 %v2346, %v2342
    %v2943 = vpack.c.b16 %v2351, %v2347
    %v2944 = vpack.c.b16 %v2352, %v2348
    %v2945 = vpack.c.b16 %v2353, %v2349
    %v2946 = vpack.c.b16 %v2354, %v2350
    %v2947 = vpack.c.b16 %v2359, %v2355
    %v2948 = vpack.c.b16 %v2360, %v2356
    %v2949 = vpack.c.b16 %v2361, %v2357
    %v2950 = vpack.c.b16 %v2362, %v2358
    %v2951 = vpack.c.b16 %v2367, %v2363
    %v2952 = vpack.c.b16 %v2368, %v2364
    %v2953 = vpack.c.b16 %v2369, %v2365
    %v2954 = vpack.c.b16 %v2370, %v2366
    %v2955 = vpack.c.b16 %v2375, %v2371
    %v2956 = vpack.c.b16 %v2376, %v2372
    %v2957 = vpack.c.b16 %v2377, %v2373
    %v2958 = vpack.c.b16 %v2378, %v2374
    %v2959 = vpack.c.b16 %v2383, %v2379
    %v2960 = vpack.c.b16 %v2384, %v2380
    %v2961 = vpack.c.b16 %v2385, %v2381
    %v2962 = vpack.c.b16 %v2386, %v2382
    %3539 = vmatpush.bf16.msra.mxu0 %v2415
    %3540 = vmatpush.bf16.msra.mxu0 %v2411
    %3541 = vmatpush.bf16.msra.mxu0 %v2407
    %3542 = vmatpush.bf16.msra.mxu0 %v2403
    %3543 = vmatpush.bf16.msra.mxu0 %v2399
    %3544 = vmatpush.bf16.msra.mxu0 %v2395
    %3545 = vmatpush.bf16.msra.mxu0 %v2391
    %3546 = vmatpush.bf16.msra.mxu0 %v2387
    %3547 = vmatmul.bf16.gmra.mxu0 %v619
    %v3548 = vpop.f32.mrf.mxu0
    %v3549 = vadd.f32 %v609, %v3548
    %v3550 = vpop.f32.mrf.mxu0
    %3551 = vdwg.mxu0
    %3552 = vmatpush.bf16.msra.mxu0 %v2447
    %3553 = vmatpush.bf16.msra.mxu0 %v2443
    %3554 = vmatpush.bf16.msra.mxu0 %v2439
    %3555 = vmatpush.bf16.msra.mxu0 %v2435
    %3556 = vmatpush.bf16.msra.mxu0 %v2431
    %3557 = vmatpush.bf16.msra.mxu0 %v2427
    %3558 = vmatpush.bf16.msra.mxu0 %v2423
    %3559 = vmatpush.bf16.msra.mxu0 %v2419
    %3560 = vmatmul.bf16.gmra.mxu0 %v620
    %v3561 = vpop.f32.mrf.mxu0
    %v3562 = vadd.f32 %v3549, %v3561
    %v3563 = vpop.f32.mrf.mxu0
    %3564 = vdwg.mxu0
    %3565 = vmatpush.bf16.msra.mxu0 %v2479
    %3566 = vmatpush.bf16.msra.mxu0 %v2475
    %3567 = vmatpush.bf16.msra.mxu0 %v2471
    %3568 = vmatpush.bf16.msra.mxu0 %v2467
    %3569 = vmatpush.bf16.msra.mxu0 %v2463
    %3570 = vmatpush.bf16.msra.mxu0 %v2459
    %3571 = vmatpush.bf16.msra.mxu0 %v2455
    %3572 = vmatpush.bf16.msra.mxu0 %v2451
    %3573 = vmatmul.bf16.gmra.mxu0 %v621
    %v3574 = vpop.f32.mrf.mxu0
    %v3575 = vadd.f32 %v3562, %v3574
    %v3576 = vpop.f32.mrf.mxu0
    %3577 = vdwg.mxu0
    %3578 = vmatpush.bf16.msra.mxu0 %v2511
    %3579 = vmatpush.bf16.msra.mxu0 %v2507
    %3580 = vmatpush.bf16.msra.mxu0 %v2503
    %3581 = vmatpush.bf16.msra.mxu0 %v2499
    %3582 = vmatpush.bf16.msra.mxu0 %v2495
    %3583 = vmatpush.bf16.msra.mxu0 %v2491
    %3584 = vmatpush.bf16.msra.mxu0 %v2487
    %3585 = vmatpush.bf16.msra.mxu0 %v2483
    %3586 = vmatmul.bf16.gmra.mxu0 %v622
    %v3587 = vpop.f32.mrf.mxu0
    %v3588 = vadd.f32 %v3575, %v3587
    %v3589 = vpop.f32.mrf.mxu0
    %3590 = vdwg.mxu0
    %3591 = vmatpush.bf16.msra.mxu0 %v2543
    %3592 = vmatpush.bf16.msra.mxu0 %v2539
    %3593 = vmatpush.bf16.msra.mxu0 %v2535
    %3594 = vmatpush.bf16.msra.mxu0 %v2531
    %3595 = vmatpush.bf16.msra.mxu0 %v2527
    %3596 = vmatpush.bf16.msra.mxu0 %v2523
    %3597 = vmatpush.bf16.msra.mxu0 %v2519
    %3598 = vmatpush.bf16.msra.mxu0 %v2515
    %3599 = vmatmul.bf16.gmra.mxu0 %v623
    %v3600 = vpop.f32.mrf.mxu0
    %v3601 = vadd.f32 %v3588, %v3600
    %v3602 = vpop.f32.mrf.mxu0
    %3603 = vdwg.mxu0
    %3604 = vmatpush.bf16.msra.mxu0 %v2575
    %3605 = vmatpush.bf16.msra.mxu0 %v2571
    %3606 = vmatpush.bf16.msra.mxu0 %v2567
    %3607 = vmatpush.bf16.msra.mxu0 %v2563
    %3608 = vmatpush.bf16.msra.mxu0 %v2559
    %3609 = vmatpush.bf16.msra.mxu0 %v2555
    %3610 = vmatpush.bf16.msra.mxu0 %v2551
    %3611 = vmatpush.bf16.msra.mxu0 %v2547
    %3612 = vmatmul.bf16.gmra.mxu0 %v624
    %v3613 = vpop.f32.mrf.mxu0
    %v3614 = vadd.f32 %v3601, %v3613
    %v3615 = vpop.f32.mrf.mxu0
    %3616 = vdwg.mxu0
    %3617 = vmatpush.bf16.msra.mxu0 %v2607
    %3618 = vmatpush.bf16.msra.mxu0 %v2603
    %3619 = vmatpush.bf16.msra.mxu0 %v2599
    %3620 = vmatpush.bf16.msra.mxu0 %v2595
    %3621 = vmatpush.bf16.msra.mxu0 %v2591
    %3622 = vmatpush.bf16.msra.mxu0 %v2587
    %3623 = vmatpush.bf16.msra.mxu0 %v2583
    %3624 = vmatpush.bf16.msra.mxu0 %v2579
    %3625 = vmatmul.bf16.gmra.mxu0 %v625
    %v3626 = vpop.f32.mrf.mxu0
    %v3627 = vadd.f32 %v3614, %v3626
    %v3628 = vpop.f32.mrf.mxu0
    %3629 = vdwg.mxu0
    %3630 = vmatpush.bf16.msra.mxu0 %v2639
    %3631 = vmatpush.bf16.msra.mxu0 %v2635
    %3632 = vmatpush.bf16.msra.mxu0 %v2631
    %3633 = vmatpush.bf16.msra.mxu0 %v2627
    %3634 = vmatpush.bf16.msra.mxu0 %v2623
    %3635 = vmatpush.bf16.msra.mxu0 %v2619
    %3636 = vmatpush.bf16.msra.mxu0 %v2615
    %3637 = vmatpush.bf16.msra.mxu0 %v2611
    %3638 = vmatmul.bf16.gmra.mxu0 %v626
    %v3639 = vpop.f32.mrf.mxu0
    %v3640 = vadd.f32 %v3627, %v3639
    %v3641 = vpop.f32.mrf.mxu0
    %3642 = vdwg.mxu0
    %3643 = vmatpush.bf16.msra.mxu0 %v2671
    %3644 = vmatpush.bf16.msra.mxu0 %v2667
    %3645 = vmatpush.bf16.msra.mxu0 %v2663
    %3646 = vmatpush.bf16.msra.mxu0 %v2659
    %3647 = vmatpush.bf16.msra.mxu0 %v2655
    %3648 = vmatpush.bf16.msra.mxu0 %v2651
    %3649 = vmatpush.bf16.msra.mxu0 %v2647
    %3650 = vmatpush.bf16.msra.mxu0 %v2643
    %3651 = vmatmul.bf16.gmra.mxu0 %v629
    %v3652 = vpop.f32.mrf.mxu0
    %v3653 = vadd.f32 %v3640, %v3652
    %v3654 = vpop.f32.mrf.mxu0
    %3655 = vdwg.mxu0
    %3656 = vmatpush.bf16.msra.mxu0 %v2703
    %3657 = vmatpush.bf16.msra.mxu0 %v2699
    %3658 = vmatpush.bf16.msra.mxu0 %v2695
    %3659 = vmatpush.bf16.msra.mxu0 %v2691
    %3660 = vmatpush.bf16.msra.mxu0 %v2687
    %3661 = vmatpush.bf16.msra.mxu0 %v2683
    %3662 = vmatpush.bf16.msra.mxu0 %v2679
    %3663 = vmatpush.bf16.msra.mxu0 %v2675
    %3664 = vmatmul.bf16.gmra.mxu0 %v630
    %v3665 = vpop.f32.mrf.mxu0
    %v3666 = vadd.f32 %v3653, %v3665
    %v3667 = vpop.f32.mrf.mxu0
    %3668 = vdwg.mxu0
    %3669 = vmatpush.bf16.msra.mxu0 %v2735
    %3670 = vmatpush.bf16.msra.mxu0 %v2731
    %3671 = vmatpush.bf16.msra.mxu0 %v2727
    %3672 = vmatpush.bf16.msra.mxu0 %v2723
    %3673 = vmatpush.bf16.msra.mxu0 %v2719
    %3674 = vmatpush.bf16.msra.mxu0 %v2715
    %3675 = vmatpush.bf16.msra.mxu0 %v2711
    %3676 = vmatpush.bf16.msra.mxu0 %v2707
    %3677 = vmatmul.bf16.gmra.mxu0 %v631
    %v3678 = vpop.f32.mrf.mxu0
    %v3679 = vadd.f32 %v3666, %v3678
    %v3680 = vpop.f32.mrf.mxu0
    %3681 = vdwg.mxu0
    %3682 = vmatpush.bf16.msra.mxu0 %v2767
    %3683 = vmatpush.bf16.msra.mxu0 %v2763
    %3684 = vmatpush.bf16.msra.mxu0 %v2759
    %3685 = vmatpush.bf16.msra.mxu0 %v2755
    %3686 = vmatpush.bf16.msra.mxu0 %v2751
    %3687 = vmatpush.bf16.msra.mxu0 %v2747
    %3688 = vmatpush.bf16.msra.mxu0 %v2743
    %3689 = vmatpush.bf16.msra.mxu0 %v2739
    %3690 = vmatmul.bf16.gmra.mxu0 %v632
    %v3691 = vpop.f32.mrf.mxu0
    %v3692 = vadd.f32 %v3679, %v3691
    %v3693 = vpop.f32.mrf.mxu0
    %3694 = vdwg.mxu0
    %3695 = vmatpush.bf16.msra.mxu0 %v2799
    %3696 = vmatpush.bf16.msra.mxu0 %v2795
    %3697 = vmatpush.bf16.msra.mxu0 %v2791
    %3698 = vmatpush.bf16.msra.mxu0 %v2787
    %3699 = vmatpush.bf16.msra.mxu0 %v2783
    %3700 = vmatpush.bf16.msra.mxu0 %v2779
    %3701 = vmatpush.bf16.msra.mxu0 %v2775
    %3702 = vmatpush.bf16.msra.mxu0 %v2771
    %3703 = vmatmul.bf16.gmra.mxu0 %v633
    %v3704 = vpop.f32.mrf.mxu0
    %v3705 = vadd.f32 %v3692, %v3704
    %v3706 = vpop.f32.mrf.mxu0
    %3707 = vdwg.mxu0
    %3708 = vmatpush.bf16.msra.mxu0 %v2831
    %3709 = vmatpush.bf16.msra.mxu0 %v2827
    %3710 = vmatpush.bf16.msra.mxu0 %v2823
    %3711 = vmatpush.bf16.msra.mxu0 %v2819
    %3712 = vmatpush.bf16.msra.mxu0 %v2815
    %3713 = vmatpush.bf16.msra.mxu0 %v2811
    %3714 = vmatpush.bf16.msra.mxu0 %v2807
    %3715 = vmatpush.bf16.msra.mxu0 %v2803
    %3716 = vmatmul.bf16.gmra.mxu0 %v634
    %v3717 = vpop.f32.mrf.mxu0
    %v3718 = vadd.f32 %v3705, %v3717
    %v3719 = vpop.f32.mrf.mxu0
    %3720 = vdwg.mxu0
    %3721 = vmatpush.bf16.msra.mxu0 %v2863
    %3722 = vmatpush.bf16.msra.mxu0 %v2859
    %3723 = vmatpush.bf16.msra.mxu0 %v2855
    %3724 = vmatpush.bf16.msra.mxu0 %v2851
    %3725 = vmatpush.bf16.msra.mxu0 %v2847
    %3726 = vmatpush.bf16.msra.mxu0 %v2843
    %3727 = vmatpush.bf16.msra.mxu0 %v2839
    %3728 = vmatpush.bf16.msra.mxu0 %v2835
    %3729 = vmatmul.bf16.gmra.mxu0 %v635
    %v3730 = vpop.f32.mrf.mxu0
    %v3731 = vadd.f32 %v3718, %v3730
    %v3732 = vpop.f32.mrf.mxu0
    %3733 = vdwg.mxu0
    %3734 = vmatpush.bf16.msra.mxu0 %v2895
    %3735 = vmatpush.bf16.msra.mxu0 %v2891
    %3736 = vmatpush.bf16.msra.mxu0 %v2887
    %3737 = vmatpush.bf16.msra.mxu0 %v2883
    %3738 = vmatpush.bf16.msra.mxu0 %v2879
    %3739 = vmatpush.bf16.msra.mxu0 %v2875
    %3740 = vmatpush.bf16.msra.mxu0 %v2871
    %3741 = vmatpush.bf16.msra.mxu0 %v2867
    %3742 = vmatmul.bf16.gmra.mxu0 %v636
    %v3743 = vpop.f32.mrf.mxu0
    %v3744 = vadd.f32 %v3731, %v3743
    %v3745 = vpop.f32.mrf.mxu0
    %3746 = vdwg.mxu0
    %3747 = vmatpush.bf16.msra.mxu0 %v2927
    %3748 = vmatpush.bf16.msra.mxu0 %v2923
    %3749 = vmatpush.bf16.msra.mxu0 %v2919
    %3750 = vmatpush.bf16.msra.mxu0 %v2915
    %3751 = vmatpush.bf16.msra.mxu0 %v2911
    %3752 = vmatpush.bf16.msra.mxu0 %v2907
    %3753 = vmatpush.bf16.msra.mxu0 %v2903
    %3754 = vmatpush.bf16.msra.mxu0 %v2899
    %3755 = vmatmul.bf16.gmra.mxu0 %v639
    %v3756 = vpop.f32.mrf.mxu0
    %v3757 = vadd.f32 %v3744, %v3756
    %v3758 = vpop.f32.mrf.mxu0
    %3759 = vdwg.mxu0
    %3760 = vmatpush.bf16.msra.mxu0 %v2959
    %3761 = vmatpush.bf16.msra.mxu0 %v2955
    %3762 = vmatpush.bf16.msra.mxu0 %v2951
    %3763 = vmatpush.bf16.msra.mxu0 %v2947
    %3764 = vmatpush.bf16.msra.mxu0 %v2943
    %3765 = vmatpush.bf16.msra.mxu0 %v2939
    %3766 = vmatpush.bf16.msra.mxu0 %v2935
    %3767 = vmatpush.bf16.msra.mxu0 %v2931
    %3768 = vmatmul.bf16.gmra.mxu0 %v640
    %v3769 = vpop.f32.mrf.mxu0
    %v3770 = vadd.f32 %v3757, %v3769
    %v3771 = vpop.f32.mrf.mxu0
    %3772 = vdwg.mxu0
    %3773 = vmatpush.bf16.msra.mxu0 %v2416
    %3774 = vmatpush.bf16.msra.mxu0 %v2412
    %3775 = vmatpush.bf16.msra.mxu0 %v2408
    %3776 = vmatpush.bf16.msra.mxu0 %v2404
    %3777 = vmatpush.bf16.msra.mxu0 %v2400
    %3778 = vmatpush.bf16.msra.mxu0 %v2396
    %3779 = vmatpush.bf16.msra.mxu0 %v2392
    %3780 = vmatpush.bf16.msra.mxu0 %v2388
    %3781 = vmatmul.bf16.gmra.mxu0 %v619
    %v3782 = vpop.f32.mrf.mxu0
    %v3783 = vadd.f32 %v610, %v3782
    %v3784 = vpop.f32.mrf.mxu0
    %3785 = vdwg.mxu0
    %3786 = vmatpush.bf16.msra.mxu0 %v2448
    %3787 = vmatpush.bf16.msra.mxu0 %v2444
    %3788 = vmatpush.bf16.msra.mxu0 %v2440
    %3789 = vmatpush.bf16.msra.mxu0 %v2436
    %3790 = vmatpush.bf16.msra.mxu0 %v2432
    %3791 = vmatpush.bf16.msra.mxu0 %v2428
    %3792 = vmatpush.bf16.msra.mxu0 %v2424
    %3793 = vmatpush.bf16.msra.mxu0 %v2420
    %3794 = vmatmul.bf16.gmra.mxu0 %v620
    %v3795 = vpop.f32.mrf.mxu0
    %v3796 = vadd.f32 %v3783, %v3795
    %v3797 = vpop.f32.mrf.mxu0
    %3798 = vdwg.mxu0
    %3799 = vmatpush.bf16.msra.mxu0 %v2480
    %3800 = vmatpush.bf16.msra.mxu0 %v2476
    %3801 = vmatpush.bf16.msra.mxu0 %v2472
    %3802 = vmatpush.bf16.msra.mxu0 %v2468
    %3803 = vmatpush.bf16.msra.mxu0 %v2464
    %3804 = vmatpush.bf16.msra.mxu0 %v2460
    %3805 = vmatpush.bf16.msra.mxu0 %v2456
    %3806 = vmatpush.bf16.msra.mxu0 %v2452
    %3807 = vmatmul.bf16.gmra.mxu0 %v621
    %v3808 = vpop.f32.mrf.mxu0
    %v3809 = vadd.f32 %v3796, %v3808
    %v3810 = vpop.f32.mrf.mxu0
    %3811 = vdwg.mxu0
    %3812 = vmatpush.bf16.msra.mxu0 %v2512
    %3813 = vmatpush.bf16.msra.mxu0 %v2508
    %3814 = vmatpush.bf16.msra.mxu0 %v2504
    %3815 = vmatpush.bf16.msra.mxu0 %v2500
    %3816 = vmatpush.bf16.msra.mxu0 %v2496
    %3817 = vmatpush.bf16.msra.mxu0 %v2492
    %3818 = vmatpush.bf16.msra.mxu0 %v2488
    %3819 = vmatpush.bf16.msra.mxu0 %v2484
    %3820 = vmatmul.bf16.gmra.mxu0 %v622
    %v3821 = vpop.f32.mrf.mxu0
    %v3822 = vadd.f32 %v3809, %v3821
    %v3823 = vpop.f32.mrf.mxu0
    %3824 = vdwg.mxu0
    %3825 = vmatpush.bf16.msra.mxu0 %v2544
    %3826 = vmatpush.bf16.msra.mxu0 %v2540
    %3827 = vmatpush.bf16.msra.mxu0 %v2536
    %3828 = vmatpush.bf16.msra.mxu0 %v2532
    %3829 = vmatpush.bf16.msra.mxu0 %v2528
    %3830 = vmatpush.bf16.msra.mxu0 %v2524
    %3831 = vmatpush.bf16.msra.mxu0 %v2520
    %3832 = vmatpush.bf16.msra.mxu0 %v2516
    %3833 = vmatmul.bf16.gmra.mxu0 %v623
    %v3834 = vpop.f32.mrf.mxu0
    %v3835 = vadd.f32 %v3822, %v3834
    %v3836 = vpop.f32.mrf.mxu0
    %3837 = vdwg.mxu0
    %3838 = vmatpush.bf16.msra.mxu0 %v2576
    %3839 = vmatpush.bf16.msra.mxu0 %v2572
    %3840 = vmatpush.bf16.msra.mxu0 %v2568
    %3841 = vmatpush.bf16.msra.mxu0 %v2564
    %3842 = vmatpush.bf16.msra.mxu0 %v2560
    %3843 = vmatpush.bf16.msra.mxu0 %v2556
    %3844 = vmatpush.bf16.msra.mxu0 %v2552
    %3845 = vmatpush.bf16.msra.mxu0 %v2548
    %3846 = vmatmul.bf16.gmra.mxu0 %v624
    %v3847 = vpop.f32.mrf.mxu0
    %v3848 = vadd.f32 %v3835, %v3847
    %v3849 = vpop.f32.mrf.mxu0
    %3850 = vdwg.mxu0
    %3851 = vmatpush.bf16.msra.mxu0 %v2608
    %3852 = vmatpush.bf16.msra.mxu0 %v2604
    %3853 = vmatpush.bf16.msra.mxu0 %v2600
    %3854 = vmatpush.bf16.msra.mxu0 %v2596
    %3855 = vmatpush.bf16.msra.mxu0 %v2592
    %3856 = vmatpush.bf16.msra.mxu0 %v2588
    %3857 = vmatpush.bf16.msra.mxu0 %v2584
    %3858 = vmatpush.bf16.msra.mxu0 %v2580
    %3859 = vmatmul.bf16.gmra.mxu0 %v625
    %v3860 = vpop.f32.mrf.mxu0
    %v3861 = vadd.f32 %v3848, %v3860
    %v3862 = vpop.f32.mrf.mxu0
    %3863 = vdwg.mxu0
    %3864 = vmatpush.bf16.msra.mxu0 %v2640
    %3865 = vmatpush.bf16.msra.mxu0 %v2636
    %3866 = vmatpush.bf16.msra.mxu0 %v2632
    %3867 = vmatpush.bf16.msra.mxu0 %v2628
    %3868 = vmatpush.bf16.msra.mxu0 %v2624
    %3869 = vmatpush.bf16.msra.mxu0 %v2620
    %3870 = vmatpush.bf16.msra.mxu0 %v2616
    %3871 = vmatpush.bf16.msra.mxu0 %v2612
    %3872 = vmatmul.bf16.gmra.mxu0 %v626
    %v3873 = vpop.f32.mrf.mxu0
    %v3874 = vadd.f32 %v3861, %v3873
    %v3875 = vpop.f32.mrf.mxu0
    %3876 = vdwg.mxu0
    %3877 = vmatpush.bf16.msra.mxu0 %v2672
    %3878 = vmatpush.bf16.msra.mxu0 %v2668
    %3879 = vmatpush.bf16.msra.mxu0 %v2664
    %3880 = vmatpush.bf16.msra.mxu0 %v2660
    %3881 = vmatpush.bf16.msra.mxu0 %v2656
    %3882 = vmatpush.bf16.msra.mxu0 %v2652
    %3883 = vmatpush.bf16.msra.mxu0 %v2648
    %3884 = vmatpush.bf16.msra.mxu0 %v2644
    %3885 = vmatmul.bf16.gmra.mxu0 %v629
    %v3886 = vpop.f32.mrf.mxu0
    %v3887 = vadd.f32 %v3874, %v3886
    %v3888 = vpop.f32.mrf.mxu0
    %3889 = vdwg.mxu0
    %3890 = vmatpush.bf16.msra.mxu0 %v2704
    %3891 = vmatpush.bf16.msra.mxu0 %v2700
    %3892 = vmatpush.bf16.msra.mxu0 %v2696
    %3893 = vmatpush.bf16.msra.mxu0 %v2692
    %3894 = vmatpush.bf16.msra.mxu0 %v2688
    %3895 = vmatpush.bf16.msra.mxu0 %v2684
    %3896 = vmatpush.bf16.msra.mxu0 %v2680
    %3897 = vmatpush.bf16.msra.mxu0 %v2676
    %3898 = vmatmul.bf16.gmra.mxu0 %v630
    %v3899 = vpop.f32.mrf.mxu0
    %v3900 = vadd.f32 %v3887, %v3899
    %v3901 = vpop.f32.mrf.mxu0
    %3902 = vdwg.mxu0
    %3903 = vmatpush.bf16.msra.mxu0 %v2736
    %3904 = vmatpush.bf16.msra.mxu0 %v2732
    %3905 = vmatpush.bf16.msra.mxu0 %v2728
    %3906 = vmatpush.bf16.msra.mxu0 %v2724
    %3907 = vmatpush.bf16.msra.mxu0 %v2720
    %3908 = vmatpush.bf16.msra.mxu0 %v2716
    %3909 = vmatpush.bf16.msra.mxu0 %v2712
    %3910 = vmatpush.bf16.msra.mxu0 %v2708
    %3911 = vmatmul.bf16.gmra.mxu0 %v631
    %v3912 = vpop.f32.mrf.mxu0
    %v3913 = vadd.f32 %v3900, %v3912
    %v3914 = vpop.f32.mrf.mxu0
    %3915 = vdwg.mxu0
    %3916 = vmatpush.bf16.msra.mxu0 %v2768
    %3917 = vmatpush.bf16.msra.mxu0 %v2764
    %3918 = vmatpush.bf16.msra.mxu0 %v2760
    %3919 = vmatpush.bf16.msra.mxu0 %v2756
    %3920 = vmatpush.bf16.msra.mxu0 %v2752
    %3921 = vmatpush.bf16.msra.mxu0 %v2748
    %3922 = vmatpush.bf16.msra.mxu0 %v2744
    %3923 = vmatpush.bf16.msra.mxu0 %v2740
    %3924 = vmatmul.bf16.gmra.mxu0 %v632
    %v3925 = vpop.f32.mrf.mxu0
    %v3926 = vadd.f32 %v3913, %v3925
    %v3927 = vpop.f32.mrf.mxu0
    %3928 = vdwg.mxu0
    %3929 = vmatpush.bf16.msra.mxu0 %v2800
    %3930 = vmatpush.bf16.msra.mxu0 %v2796
    %3931 = vmatpush.bf16.msra.mxu0 %v2792
    %3932 = vmatpush.bf16.msra.mxu0 %v2788
    %3933 = vmatpush.bf16.msra.mxu0 %v2784
    %3934 = vmatpush.bf16.msra.mxu0 %v2780
    %3935 = vmatpush.bf16.msra.mxu0 %v2776
    %3936 = vmatpush.bf16.msra.mxu0 %v2772
    %3937 = vmatmul.bf16.gmra.mxu0 %v633
    %v3938 = vpop.f32.mrf.mxu0
    %v3939 = vadd.f32 %v3926, %v3938
    %v3940 = vpop.f32.mrf.mxu0
    %3941 = vdwg.mxu0
    %3942 = vmatpush.bf16.msra.mxu0 %v2832
    %3943 = vmatpush.bf16.msra.mxu0 %v2828
    %3944 = vmatpush.bf16.msra.mxu0 %v2824
    %3945 = vmatpush.bf16.msra.mxu0 %v2820
    %3946 = vmatpush.bf16.msra.mxu0 %v2816
    %3947 = vmatpush.bf16.msra.mxu0 %v2812
    %3948 = vmatpush.bf16.msra.mxu0 %v2808
    %3949 = vmatpush.bf16.msra.mxu0 %v2804
    %3950 = vmatmul.bf16.gmra.mxu0 %v634
    %v3951 = vpop.f32.mrf.mxu0
    %v3952 = vadd.f32 %v3939, %v3951
    %v3953 = vpop.f32.mrf.mxu0
    %3954 = vdwg.mxu0
    %3955 = vmatpush.bf16.msra.mxu0 %v2864
    %3956 = vmatpush.bf16.msra.mxu0 %v2860
    %3957 = vmatpush.bf16.msra.mxu0 %v2856
    %3958 = vmatpush.bf16.msra.mxu0 %v2852
    %3959 = vmatpush.bf16.msra.mxu0 %v2848
    %3960 = vmatpush.bf16.msra.mxu0 %v2844
    %3961 = vmatpush.bf16.msra.mxu0 %v2840
    %3962 = vmatpush.bf16.msra.mxu0 %v2836
    %3963 = vmatmul.bf16.gmra.mxu0 %v635
    %v3964 = vpop.f32.mrf.mxu0
    %v3965 = vadd.f32 %v3952, %v3964
    %v3966 = vpop.f32.mrf.mxu0
    %3967 = vdwg.mxu0
    %3968 = vmatpush.bf16.msra.mxu0 %v2896
    %3969 = vmatpush.bf16.msra.mxu0 %v2892
    %3970 = vmatpush.bf16.msra.mxu0 %v2888
    %3971 = vmatpush.bf16.msra.mxu0 %v2884
    %3972 = vmatpush.bf16.msra.mxu0 %v2880
    %3973 = vmatpush.bf16.msra.mxu0 %v2876
    %3974 = vmatpush.bf16.msra.mxu0 %v2872
    %3975 = vmatpush.bf16.msra.mxu0 %v2868
    %3976 = vmatmul.bf16.gmra.mxu0 %v636
    %v3977 = vpop.f32.mrf.mxu0
    %v3978 = vadd.f32 %v3965, %v3977
    %v3979 = vpop.f32.mrf.mxu0
    %3980 = vdwg.mxu0
    %3981 = vmatpush.bf16.msra.mxu0 %v2928
    %3982 = vmatpush.bf16.msra.mxu0 %v2924
    %3983 = vmatpush.bf16.msra.mxu0 %v2920
    %3984 = vmatpush.bf16.msra.mxu0 %v2916
    %3985 = vmatpush.bf16.msra.mxu0 %v2912
    %3986 = vmatpush.bf16.msra.mxu0 %v2908
    %3987 = vmatpush.bf16.msra.mxu0 %v2904
    %3988 = vmatpush.bf16.msra.mxu0 %v2900
    %3989 = vmatmul.bf16.gmra.mxu0 %v639
    %v3990 = vpop.f32.mrf.mxu0
    %v3991 = vadd.f32 %v3978, %v3990
    %v3992 = vpop.f32.mrf.mxu0
    %3993 = vdwg.mxu0
    %3994 = vmatpush.bf16.msra.mxu0 %v2960
    %3995 = vmatpush.bf16.msra.mxu0 %v2956
    %3996 = vmatpush.bf16.msra.mxu0 %v2952
    %3997 = vmatpush.bf16.msra.mxu0 %v2948
    %3998 = vmatpush.bf16.msra.mxu0 %v2944
    %3999 = vmatpush.bf16.msra.mxu0 %v2940
    %4000 = vmatpush.bf16.msra.mxu0 %v2936
    %4001 = vmatpush.bf16.msra.mxu0 %v2932
    %4002 = vmatmul.bf16.gmra.mxu0 %v640
    %v4003 = vpop.f32.mrf.mxu0
    %v4004 = vadd.f32 %v3991, %v4003
    %v4005 = vpop.f32.mrf.mxu0
    %4006 = vdwg.mxu0
    %4007 = vmatpush.bf16.msra.mxu0 %v2417
    %4008 = vmatpush.bf16.msra.mxu0 %v2413
    %4009 = vmatpush.bf16.msra.mxu0 %v2409
    %4010 = vmatpush.bf16.msra.mxu0 %v2405
    %4011 = vmatpush.bf16.msra.mxu0 %v2401
    %4012 = vmatpush.bf16.msra.mxu0 %v2397
    %4013 = vmatpush.bf16.msra.mxu0 %v2393
    %4014 = vmatpush.bf16.msra.mxu0 %v2389
    %4015 = vmatmul.bf16.gmra.mxu0 %v619
    %v4016 = vpop.f32.mrf.mxu0
    %v4017 = vadd.f32 %v611, %v4016
    %v4018 = vpop.f32.mrf.mxu0
    %4019 = vdwg.mxu0
    %4020 = vmatpush.bf16.msra.mxu0 %v2449
    %4021 = vmatpush.bf16.msra.mxu0 %v2445
    %4022 = vmatpush.bf16.msra.mxu0 %v2441
    %4023 = vmatpush.bf16.msra.mxu0 %v2437
    %4024 = vmatpush.bf16.msra.mxu0 %v2433
    %4025 = vmatpush.bf16.msra.mxu0 %v2429
    %4026 = vmatpush.bf16.msra.mxu0 %v2425
    %4027 = vmatpush.bf16.msra.mxu0 %v2421
    %4028 = vmatmul.bf16.gmra.mxu0 %v620
    %v4029 = vpop.f32.mrf.mxu0
    %v4030 = vadd.f32 %v4017, %v4029
    %v4031 = vpop.f32.mrf.mxu0
    %4032 = vdwg.mxu0
    %4033 = vmatpush.bf16.msra.mxu0 %v2481
    %4034 = vmatpush.bf16.msra.mxu0 %v2477
    %4035 = vmatpush.bf16.msra.mxu0 %v2473
    %4036 = vmatpush.bf16.msra.mxu0 %v2469
    %4037 = vmatpush.bf16.msra.mxu0 %v2465
    %4038 = vmatpush.bf16.msra.mxu0 %v2461
    %4039 = vmatpush.bf16.msra.mxu0 %v2457
    %4040 = vmatpush.bf16.msra.mxu0 %v2453
    %4041 = vmatmul.bf16.gmra.mxu0 %v621
    %v4042 = vpop.f32.mrf.mxu0
    %v4043 = vadd.f32 %v4030, %v4042
    %v4044 = vpop.f32.mrf.mxu0
    %4045 = vdwg.mxu0
    %4046 = vmatpush.bf16.msra.mxu0 %v2513
    %4047 = vmatpush.bf16.msra.mxu0 %v2509
    %4048 = vmatpush.bf16.msra.mxu0 %v2505
    %4049 = vmatpush.bf16.msra.mxu0 %v2501
    %4050 = vmatpush.bf16.msra.mxu0 %v2497
    %4051 = vmatpush.bf16.msra.mxu0 %v2493
    %4052 = vmatpush.bf16.msra.mxu0 %v2489
    %4053 = vmatpush.bf16.msra.mxu0 %v2485
    %4054 = vmatmul.bf16.gmra.mxu0 %v622
    %v4055 = vpop.f32.mrf.mxu0
    %v4056 = vadd.f32 %v4043, %v4055
    %v4057 = vpop.f32.mrf.mxu0
    %4058 = vdwg.mxu0
    %4059 = vmatpush.bf16.msra.mxu0 %v2545
    %4060 = vmatpush.bf16.msra.mxu0 %v2541
    %4061 = vmatpush.bf16.msra.mxu0 %v2537
    %4062 = vmatpush.bf16.msra.mxu0 %v2533
    %4063 = vmatpush.bf16.msra.mxu0 %v2529
    %4064 = vmatpush.bf16.msra.mxu0 %v2525
    %4065 = vmatpush.bf16.msra.mxu0 %v2521
    %4066 = vmatpush.bf16.msra.mxu0 %v2517
    %4067 = vmatmul.bf16.gmra.mxu0 %v623
    %v4068 = vpop.f32.mrf.mxu0
    %v4069 = vadd.f32 %v4056, %v4068
    %v4070 = vpop.f32.mrf.mxu0
    %4071 = vdwg.mxu0
    %4072 = vmatpush.bf16.msra.mxu0 %v2577
    %4073 = vmatpush.bf16.msra.mxu0 %v2573
    %4074 = vmatpush.bf16.msra.mxu0 %v2569
    %4075 = vmatpush.bf16.msra.mxu0 %v2565
    %4076 = vmatpush.bf16.msra.mxu0 %v2561
    %4077 = vmatpush.bf16.msra.mxu0 %v2557
    %4078 = vmatpush.bf16.msra.mxu0 %v2553
    %4079 = vmatpush.bf16.msra.mxu0 %v2549
    %4080 = vmatmul.bf16.gmra.mxu0 %v624
    %v4081 = vpop.f32.mrf.mxu0
    %v4082 = vadd.f32 %v4069, %v4081
    %v4083 = vpop.f32.mrf.mxu0
    %4084 = vdwg.mxu0
    %4085 = vmatpush.bf16.msra.mxu0 %v2609
    %4086 = vmatpush.bf16.msra.mxu0 %v2605
    %4087 = vmatpush.bf16.msra.mxu0 %v2601
    %4088 = vmatpush.bf16.msra.mxu0 %v2597
    %4089 = vmatpush.bf16.msra.mxu0 %v2593
    %4090 = vmatpush.bf16.msra.mxu0 %v2589
    %4091 = vmatpush.bf16.msra.mxu0 %v2585
    %4092 = vmatpush.bf16.msra.mxu0 %v2581
    %4093 = vmatmul.bf16.gmra.mxu0 %v625
    %v4094 = vpop.f32.mrf.mxu0
    %v4095 = vadd.f32 %v4082, %v4094
    %v4096 = vpop.f32.mrf.mxu0
    %4097 = vdwg.mxu0
    %4098 = vmatpush.bf16.msra.mxu0 %v2641
    %4099 = vmatpush.bf16.msra.mxu0 %v2637
    %4100 = vmatpush.bf16.msra.mxu0 %v2633
    %4101 = vmatpush.bf16.msra.mxu0 %v2629
    %4102 = vmatpush.bf16.msra.mxu0 %v2625
    %4103 = vmatpush.bf16.msra.mxu0 %v2621
    %4104 = vmatpush.bf16.msra.mxu0 %v2617
    %4105 = vmatpush.bf16.msra.mxu0 %v2613
    %4106 = vmatmul.bf16.gmra.mxu0 %v626
    %v4107 = vpop.f32.mrf.mxu0
    %v4108 = vadd.f32 %v4095, %v4107
    %v4109 = vpop.f32.mrf.mxu0
    %4110 = vdwg.mxu0
    %4111 = vmatpush.bf16.msra.mxu0 %v2673
    %4112 = vmatpush.bf16.msra.mxu0 %v2669
    %4113 = vmatpush.bf16.msra.mxu0 %v2665
    %4114 = vmatpush.bf16.msra.mxu0 %v2661
    %4115 = vmatpush.bf16.msra.mxu0 %v2657
    %4116 = vmatpush.bf16.msra.mxu0 %v2653
    %4117 = vmatpush.bf16.msra.mxu0 %v2649
    %4118 = vmatpush.bf16.msra.mxu0 %v2645
    %4119 = vmatmul.bf16.gmra.mxu0 %v629
    %v4120 = vpop.f32.mrf.mxu0
    %v4121 = vadd.f32 %v4108, %v4120
    %v4122 = vpop.f32.mrf.mxu0
    %4123 = vdwg.mxu0
    %4124 = vmatpush.bf16.msra.mxu0 %v2705
    %4125 = vmatpush.bf16.msra.mxu0 %v2701
    %4126 = vmatpush.bf16.msra.mxu0 %v2697
    %4127 = vmatpush.bf16.msra.mxu0 %v2693
    %4128 = vmatpush.bf16.msra.mxu0 %v2689
    %4129 = vmatpush.bf16.msra.mxu0 %v2685
    %4130 = vmatpush.bf16.msra.mxu0 %v2681
    %4131 = vmatpush.bf16.msra.mxu0 %v2677
    %4132 = vmatmul.bf16.gmra.mxu0 %v630
    %v4133 = vpop.f32.mrf.mxu0
    %v4134 = vadd.f32 %v4121, %v4133
    %v4135 = vpop.f32.mrf.mxu0
    %4136 = vdwg.mxu0
    %4137 = vmatpush.bf16.msra.mxu0 %v2737
    %4138 = vmatpush.bf16.msra.mxu0 %v2733
    %4139 = vmatpush.bf16.msra.mxu0 %v2729
    %4140 = vmatpush.bf16.msra.mxu0 %v2725
    %4141 = vmatpush.bf16.msra.mxu0 %v2721
    %4142 = vmatpush.bf16.msra.mxu0 %v2717
    %4143 = vmatpush.bf16.msra.mxu0 %v2713
    %4144 = vmatpush.bf16.msra.mxu0 %v2709
    %4145 = vmatmul.bf16.gmra.mxu0 %v631
    %v4146 = vpop.f32.mrf.mxu0
    %v4147 = vadd.f32 %v4134, %v4146
    %v4148 = vpop.f32.mrf.mxu0
    %4149 = vdwg.mxu0
    %4150 = vmatpush.bf16.msra.mxu0 %v2769
    %4151 = vmatpush.bf16.msra.mxu0 %v2765
    %4152 = vmatpush.bf16.msra.mxu0 %v2761
    %4153 = vmatpush.bf16.msra.mxu0 %v2757
    %4154 = vmatpush.bf16.msra.mxu0 %v2753
    %4155 = vmatpush.bf16.msra.mxu0 %v2749
    %4156 = vmatpush.bf16.msra.mxu0 %v2745
    %4157 = vmatpush.bf16.msra.mxu0 %v2741
    %4158 = vmatmul.bf16.gmra.mxu0 %v632
    %v4159 = vpop.f32.mrf.mxu0
    %v4160 = vadd.f32 %v4147, %v4159
    %v4161 = vpop.f32.mrf.mxu0
    %4162 = vdwg.mxu0
    %4163 = vmatpush.bf16.msra.mxu0 %v2801
    %4164 = vmatpush.bf16.msra.mxu0 %v2797
    %4165 = vmatpush.bf16.msra.mxu0 %v2793
    %4166 = vmatpush.bf16.msra.mxu0 %v2789
    %4167 = vmatpush.bf16.msra.mxu0 %v2785
    %4168 = vmatpush.bf16.msra.mxu0 %v2781
    %4169 = vmatpush.bf16.msra.mxu0 %v2777
    %4170 = vmatpush.bf16.msra.mxu0 %v2773
    %4171 = vmatmul.bf16.gmra.mxu0 %v633
    %v4172 = vpop.f32.mrf.mxu0
    %v4173 = vadd.f32 %v4160, %v4172
    %v4174 = vpop.f32.mrf.mxu0
    %4175 = vdwg.mxu0
    %4176 = vmatpush.bf16.msra.mxu0 %v2833
    %4177 = vmatpush.bf16.msra.mxu0 %v2829
    %4178 = vmatpush.bf16.msra.mxu0 %v2825
    %4179 = vmatpush.bf16.msra.mxu0 %v2821
    %4180 = vmatpush.bf16.msra.mxu0 %v2817
    %4181 = vmatpush.bf16.msra.mxu0 %v2813
    %4182 = vmatpush.bf16.msra.mxu0 %v2809
    %4183 = vmatpush.bf16.msra.mxu0 %v2805
    %4184 = vmatmul.bf16.gmra.mxu0 %v634
    %v4185 = vpop.f32.mrf.mxu0
    %v4186 = vadd.f32 %v4173, %v4185
    %v4187 = vpop.f32.mrf.mxu0
    %4188 = vdwg.mxu0
    %4189 = vmatpush.bf16.msra.mxu0 %v2865
    %4190 = vmatpush.bf16.msra.mxu0 %v2861
    %4191 = vmatpush.bf16.msra.mxu0 %v2857
    %4192 = vmatpush.bf16.msra.mxu0 %v2853
    %4193 = vmatpush.bf16.msra.mxu0 %v2849
    %4194 = vmatpush.bf16.msra.mxu0 %v2845
    %4195 = vmatpush.bf16.msra.mxu0 %v2841
    %4196 = vmatpush.bf16.msra.mxu0 %v2837
    %4197 = vmatmul.bf16.gmra.mxu0 %v635
    %v4198 = vpop.f32.mrf.mxu0
    %v4199 = vadd.f32 %v4186, %v4198
    %v4200 = vpop.f32.mrf.mxu0
    %4201 = vdwg.mxu0
    %4202 = vmatpush.bf16.msra.mxu0 %v2897
    %4203 = vmatpush.bf16.msra.mxu0 %v2893
    %4204 = vmatpush.bf16.msra.mxu0 %v2889
    %4205 = vmatpush.bf16.msra.mxu0 %v2885
    %4206 = vmatpush.bf16.msra.mxu0 %v2881
    %4207 = vmatpush.bf16.msra.mxu0 %v2877
    %4208 = vmatpush.bf16.msra.mxu0 %v2873
    %4209 = vmatpush.bf16.msra.mxu0 %v2869
    %4210 = vmatmul.bf16.gmra.mxu0 %v636
    %v4211 = vpop.f32.mrf.mxu0
    %v4212 = vadd.f32 %v4199, %v4211
    %v4213 = vpop.f32.mrf.mxu0
    %4214 = vdwg.mxu0
    %4215 = vmatpush.bf16.msra.mxu0 %v2929
    %4216 = vmatpush.bf16.msra.mxu0 %v2925
    %4217 = vmatpush.bf16.msra.mxu0 %v2921
    %4218 = vmatpush.bf16.msra.mxu0 %v2917
    %4219 = vmatpush.bf16.msra.mxu0 %v2913
    %4220 = vmatpush.bf16.msra.mxu0 %v2909
    %4221 = vmatpush.bf16.msra.mxu0 %v2905
    %4222 = vmatpush.bf16.msra.mxu0 %v2901
    %4223 = vmatmul.bf16.gmra.mxu0 %v639
    %v4224 = vpop.f32.mrf.mxu0
    %v4225 = vadd.f32 %v4212, %v4224
    %v4226 = vpop.f32.mrf.mxu0
    %4227 = vdwg.mxu0
    %4228 = vmatpush.bf16.msra.mxu0 %v2961
    %4229 = vmatpush.bf16.msra.mxu0 %v2957
    %4230 = vmatpush.bf16.msra.mxu0 %v2953
    %4231 = vmatpush.bf16.msra.mxu0 %v2949
    %4232 = vmatpush.bf16.msra.mxu0 %v2945
    %4233 = vmatpush.bf16.msra.mxu0 %v2941
    %4234 = vmatpush.bf16.msra.mxu0 %v2937
    %4235 = vmatpush.bf16.msra.mxu0 %v2933
    %4236 = vmatmul.bf16.gmra.mxu0 %v640
    %v4237 = vpop.f32.mrf.mxu0
    %v4238 = vadd.f32 %v4225, %v4237
    %v4239 = vpop.f32.mrf.mxu0
    %4240 = vdwg.mxu0
    %4241 = vmatpush.bf16.msra.mxu0 %v2418
    %4242 = vmatpush.bf16.msra.mxu0 %v2414
    %4243 = vmatpush.bf16.msra.mxu0 %v2410
    %4244 = vmatpush.bf16.msra.mxu0 %v2406
    %4245 = vmatpush.bf16.msra.mxu0 %v2402
    %4246 = vmatpush.bf16.msra.mxu0 %v2398
    %4247 = vmatpush.bf16.msra.mxu0 %v2394
    %4248 = vmatpush.bf16.msra.mxu0 %v2390
    %4249 = vmatmul.bf16.gmra.mxu0 %v619
    %v4250 = vpop.f32.mrf.mxu0
    %v4251 = vadd.f32 %v612, %v4250
    %v4252 = vpop.f32.mrf.mxu0
    %4253 = vdwg.mxu0
    %4254 = vmatpush.bf16.msra.mxu0 %v2450
    %4255 = vmatpush.bf16.msra.mxu0 %v2446
    %4256 = vmatpush.bf16.msra.mxu0 %v2442
    %4257 = vmatpush.bf16.msra.mxu0 %v2438
    %4258 = vmatpush.bf16.msra.mxu0 %v2434
    %4259 = vmatpush.bf16.msra.mxu0 %v2430
    %4260 = vmatpush.bf16.msra.mxu0 %v2426
    %4261 = vmatpush.bf16.msra.mxu0 %v2422
    %4262 = vmatmul.bf16.gmra.mxu0 %v620
    %v4263 = vpop.f32.mrf.mxu0
    %v4264 = vadd.f32 %v4251, %v4263
    %v4265 = vpop.f32.mrf.mxu0
    %4266 = vdwg.mxu0
    %4267 = vmatpush.bf16.msra.mxu0 %v2482
    %4268 = vmatpush.bf16.msra.mxu0 %v2478
    %4269 = vmatpush.bf16.msra.mxu0 %v2474
    %4270 = vmatpush.bf16.msra.mxu0 %v2470
    %4271 = vmatpush.bf16.msra.mxu0 %v2466
    %4272 = vmatpush.bf16.msra.mxu0 %v2462
    %4273 = vmatpush.bf16.msra.mxu0 %v2458
    %4274 = vmatpush.bf16.msra.mxu0 %v2454
    %4275 = vmatmul.bf16.gmra.mxu0 %v621
    %v4276 = vpop.f32.mrf.mxu0
    %v4277 = vadd.f32 %v4264, %v4276
    %v4278 = vpop.f32.mrf.mxu0
    %4279 = vdwg.mxu0
    %4280 = vmatpush.bf16.msra.mxu0 %v2514
    %4281 = vmatpush.bf16.msra.mxu0 %v2510
    %4282 = vmatpush.bf16.msra.mxu0 %v2506
    %4283 = vmatpush.bf16.msra.mxu0 %v2502
    %4284 = vmatpush.bf16.msra.mxu0 %v2498
    %4285 = vmatpush.bf16.msra.mxu0 %v2494
    %4286 = vmatpush.bf16.msra.mxu0 %v2490
    %4287 = vmatpush.bf16.msra.mxu0 %v2486
    %4288 = vmatmul.bf16.gmra.mxu0 %v622
    %v4289 = vpop.f32.mrf.mxu0
    %v4290 = vadd.f32 %v4277, %v4289
    %v4291 = vpop.f32.mrf.mxu0
    %4292 = vdwg.mxu0
    %4293 = vmatpush.bf16.msra.mxu0 %v2546
    %4294 = vmatpush.bf16.msra.mxu0 %v2542
    %4295 = vmatpush.bf16.msra.mxu0 %v2538
    %4296 = vmatpush.bf16.msra.mxu0 %v2534
    %4297 = vmatpush.bf16.msra.mxu0 %v2530
    %4298 = vmatpush.bf16.msra.mxu0 %v2526
    %4299 = vmatpush.bf16.msra.mxu0 %v2522
    %4300 = vmatpush.bf16.msra.mxu0 %v2518
    %4301 = vmatmul.bf16.gmra.mxu0 %v623
    %v4302 = vpop.f32.mrf.mxu0
    %v4303 = vadd.f32 %v4290, %v4302
    %v4304 = vpop.f32.mrf.mxu0
    %4305 = vdwg.mxu0
    %4306 = vmatpush.bf16.msra.mxu0 %v2578
    %4307 = vmatpush.bf16.msra.mxu0 %v2574
    %4308 = vmatpush.bf16.msra.mxu0 %v2570
    %4309 = vmatpush.bf16.msra.mxu0 %v2566
    %4310 = vmatpush.bf16.msra.mxu0 %v2562
    %4311 = vmatpush.bf16.msra.mxu0 %v2558
    %4312 = vmatpush.bf16.msra.mxu0 %v2554
    %4313 = vmatpush.bf16.msra.mxu0 %v2550
    %4314 = vmatmul.bf16.gmra.mxu0 %v624
    %v4315 = vpop.f32.mrf.mxu0
    %v4316 = vadd.f32 %v4303, %v4315
    %v4317 = vpop.f32.mrf.mxu0
    %4318 = vdwg.mxu0
    %4319 = vmatpush.bf16.msra.mxu0 %v2610
    %4320 = vmatpush.bf16.msra.mxu0 %v2606
    %4321 = vmatpush.bf16.msra.mxu0 %v2602
    %4322 = vmatpush.bf16.msra.mxu0 %v2598
    %4323 = vmatpush.bf16.msra.mxu0 %v2594
    %4324 = vmatpush.bf16.msra.mxu0 %v2590
    %4325 = vmatpush.bf16.msra.mxu0 %v2586
    %4326 = vmatpush.bf16.msra.mxu0 %v2582
    %4327 = vmatmul.bf16.gmra.mxu0 %v625
    %v4328 = vpop.f32.mrf.mxu0
    %v4329 = vadd.f32 %v4316, %v4328
    %v4330 = vpop.f32.mrf.mxu0
    %4331 = vdwg.mxu0
    %4332 = vmatpush.bf16.msra.mxu0 %v2642
    %4333 = vmatpush.bf16.msra.mxu0 %v2638
    %4334 = vmatpush.bf16.msra.mxu0 %v2634
    %4335 = vmatpush.bf16.msra.mxu0 %v2630
    %4336 = vmatpush.bf16.msra.mxu0 %v2626
    %4337 = vmatpush.bf16.msra.mxu0 %v2622
    %4338 = vmatpush.bf16.msra.mxu0 %v2618
    %4339 = vmatpush.bf16.msra.mxu0 %v2614
    %4340 = vmatmul.bf16.gmra.mxu0 %v626
    %v4341 = vpop.f32.mrf.mxu0
    %v4342 = vadd.f32 %v4329, %v4341
    %v4343 = vpop.f32.mrf.mxu0
    %4344 = vdwg.mxu0
    %4345 = vmatpush.bf16.msra.mxu0 %v2674
    %4346 = vmatpush.bf16.msra.mxu0 %v2670
    %4347 = vmatpush.bf16.msra.mxu0 %v2666
    %4348 = vmatpush.bf16.msra.mxu0 %v2662
    %4349 = vmatpush.bf16.msra.mxu0 %v2658
    %4350 = vmatpush.bf16.msra.mxu0 %v2654
    %4351 = vmatpush.bf16.msra.mxu0 %v2650
    %4352 = vmatpush.bf16.msra.mxu0 %v2646
    %4353 = vmatmul.bf16.gmra.mxu0 %v629
    %v4354 = vpop.f32.mrf.mxu0
    %v4355 = vadd.f32 %v4342, %v4354
    %v4356 = vpop.f32.mrf.mxu0
    %4357 = vdwg.mxu0
    %4358 = vmatpush.bf16.msra.mxu0 %v2706
    %4359 = vmatpush.bf16.msra.mxu0 %v2702
    %4360 = vmatpush.bf16.msra.mxu0 %v2698
    %4361 = vmatpush.bf16.msra.mxu0 %v2694
    %4362 = vmatpush.bf16.msra.mxu0 %v2690
    %4363 = vmatpush.bf16.msra.mxu0 %v2686
    %4364 = vmatpush.bf16.msra.mxu0 %v2682
    %4365 = vmatpush.bf16.msra.mxu0 %v2678
    %4366 = vmatmul.bf16.gmra.mxu0 %v630
    %v4367 = vpop.f32.mrf.mxu0
    %v4368 = vadd.f32 %v4355, %v4367
    %v4369 = vpop.f32.mrf.mxu0
    %4370 = vdwg.mxu0
    %4371 = vmatpush.bf16.msra.mxu0 %v2738
    %4372 = vmatpush.bf16.msra.mxu0 %v2734
    %4373 = vmatpush.bf16.msra.mxu0 %v2730
    %4374 = vmatpush.bf16.msra.mxu0 %v2726
    %4375 = vmatpush.bf16.msra.mxu0 %v2722
    %4376 = vmatpush.bf16.msra.mxu0 %v2718
    %4377 = vmatpush.bf16.msra.mxu0 %v2714
    %4378 = vmatpush.bf16.msra.mxu0 %v2710
    %4379 = vmatmul.bf16.gmra.mxu0 %v631
    %v4380 = vpop.f32.mrf.mxu0
    %v4381 = vadd.f32 %v4368, %v4380
    %v4382 = vpop.f32.mrf.mxu0
    %4383 = vdwg.mxu0
    %4384 = vmatpush.bf16.msra.mxu0 %v2770
    %4385 = vmatpush.bf16.msra.mxu0 %v2766
    %4386 = vmatpush.bf16.msra.mxu0 %v2762
    %4387 = vmatpush.bf16.msra.mxu0 %v2758
    %4388 = vmatpush.bf16.msra.mxu0 %v2754
    %4389 = vmatpush.bf16.msra.mxu0 %v2750
    %4390 = vmatpush.bf16.msra.mxu0 %v2746
    %4391 = vmatpush.bf16.msra.mxu0 %v2742
    %4392 = vmatmul.bf16.gmra.mxu0 %v632
    %v4393 = vpop.f32.mrf.mxu0
    %v4394 = vadd.f32 %v4381, %v4393
    %v4395 = vpop.f32.mrf.mxu0
    %4396 = vdwg.mxu0
    %4397 = vmatpush.bf16.msra.mxu0 %v2802
    %4398 = vmatpush.bf16.msra.mxu0 %v2798
    %4399 = vmatpush.bf16.msra.mxu0 %v2794
    %4400 = vmatpush.bf16.msra.mxu0 %v2790
    %4401 = vmatpush.bf16.msra.mxu0 %v2786
    %4402 = vmatpush.bf16.msra.mxu0 %v2782
    %4403 = vmatpush.bf16.msra.mxu0 %v2778
    %4404 = vmatpush.bf16.msra.mxu0 %v2774
    %4405 = vmatmul.bf16.gmra.mxu0 %v633
    %v4406 = vpop.f32.mrf.mxu0
    %v4407 = vadd.f32 %v4394, %v4406
    %v4408 = vpop.f32.mrf.mxu0
    %4409 = vdwg.mxu0
    %4410 = vmatpush.bf16.msra.mxu0 %v2834
    %4411 = vmatpush.bf16.msra.mxu0 %v2830
    %4412 = vmatpush.bf16.msra.mxu0 %v2826
    %4413 = vmatpush.bf16.msra.mxu0 %v2822
    %4414 = vmatpush.bf16.msra.mxu0 %v2818
    %4415 = vmatpush.bf16.msra.mxu0 %v2814
    %4416 = vmatpush.bf16.msra.mxu0 %v2810
    %4417 = vmatpush.bf16.msra.mxu0 %v2806
    %4418 = vmatmul.bf16.gmra.mxu0 %v634
    %v4419 = vpop.f32.mrf.mxu0
    %v4420 = vadd.f32 %v4407, %v4419
    %v4421 = vpop.f32.mrf.mxu0
    %4422 = vdwg.mxu0
    %4423 = vmatpush.bf16.msra.mxu0 %v2866
    %4424 = vmatpush.bf16.msra.mxu0 %v2862
    %4425 = vmatpush.bf16.msra.mxu0 %v2858
    %4426 = vmatpush.bf16.msra.mxu0 %v2854
    %4427 = vmatpush.bf16.msra.mxu0 %v2850
    %4428 = vmatpush.bf16.msra.mxu0 %v2846
    %4429 = vmatpush.bf16.msra.mxu0 %v2842
    %4430 = vmatpush.bf16.msra.mxu0 %v2838
    %4431 = vmatmul.bf16.gmra.mxu0 %v635
    %v4432 = vpop.f32.mrf.mxu0
    %v4433 = vadd.f32 %v4420, %v4432
    %v4434 = vpop.f32.mrf.mxu0
    %4435 = vdwg.mxu0
    %4436 = vmatpush.bf16.msra.mxu0 %v2898
    %4437 = vmatpush.bf16.msra.mxu0 %v2894
    %4438 = vmatpush.bf16.msra.mxu0 %v2890
    %4439 = vmatpush.bf16.msra.mxu0 %v2886
    %4440 = vmatpush.bf16.msra.mxu0 %v2882
    %4441 = vmatpush.bf16.msra.mxu0 %v2878
    %4442 = vmatpush.bf16.msra.mxu0 %v2874
    %4443 = vmatpush.bf16.msra.mxu0 %v2870
    %4444 = vmatmul.bf16.gmra.mxu0 %v636
    %v4445 = vpop.f32.mrf.mxu0
    %v4446 = vadd.f32 %v4433, %v4445
    %v4447 = vpop.f32.mrf.mxu0
    %4448 = vdwg.mxu0
    %4449 = vmatpush.bf16.msra.mxu0 %v2930
    %4450 = vmatpush.bf16.msra.mxu0 %v2926
    %4451 = vmatpush.bf16.msra.mxu0 %v2922
    %4452 = vmatpush.bf16.msra.mxu0 %v2918
    %4453 = vmatpush.bf16.msra.mxu0 %v2914
    %4454 = vmatpush.bf16.msra.mxu0 %v2910
    %4455 = vmatpush.bf16.msra.mxu0 %v2906
    %4456 = vmatpush.bf16.msra.mxu0 %v2902
    %4457 = vmatmul.bf16.gmra.mxu0 %v639
    %v4458 = vpop.f32.mrf.mxu0
    %v4459 = vadd.f32 %v4446, %v4458
    %v4460 = vpop.f32.mrf.mxu0
    %4461 = vdwg.mxu0
    %4462 = vmatpush.bf16.msra.mxu0 %v2962
    %4463 = vmatpush.bf16.msra.mxu0 %v2958
    %4464 = vmatpush.bf16.msra.mxu0 %v2954
    %4465 = vmatpush.bf16.msra.mxu0 %v2950
    %4466 = vmatpush.bf16.msra.mxu0 %v2946
    %4467 = vmatpush.bf16.msra.mxu0 %v2942
    %4468 = vmatpush.bf16.msra.mxu0 %v2938
    %4469 = vmatpush.bf16.msra.mxu0 %v2934
    %4470 = vmatmul.bf16.gmra.mxu0 %v640
    %v4471 = vpop.f32.mrf.mxu0
    %v4472 = vadd.f32 %v4459, %v4471
    %v4473 = vpop.f32.mrf.mxu0
    %4474 = vdwg.mxu0
    %v4475 = vmax.f32 %v3770, 0.0
    %v4476 = vmax.f32 %v4004, 0.0
    %v4477 = vmax.f32 %v4238, 0.0
    %v4478 = vmax.f32 %v4472, 0.0
    %v4479 = vpack.c.bf16 %v4475, %v4475
    %v4480 = vpack.c.bf16 %v4476, %v4476
    %v4481 = vpack.c.bf16 %v4477, %v4477
    %v4482 = vpack.c.bf16 %v4478, %v4478
    %v4483 = vld [vmem:[%s3] sm:$0xf]
    %v4484 = vld [vmem:[%s3 + $0x4] sm:$0xf]
    %v4485 = vld [vmem:[%s3 + $0x8] sm:$0xf]
    %v4486 = vld [vmem:[%s3 + $0xc] sm:$0xf]
    %v4487 = vld [vmem:[%s3 + $0x10] sm:$0xf]
    %v4488 = vld [vmem:[%s3 + $0x14] sm:$0xf]
    %v4489 = vld [vmem:[%s3 + $0x18] sm:$0xf]
    %v4490 = vld [vmem:[%s3 + $0x1c] sm:$0xf]
    %v4491 = vld [vmem:[%s3 + $0x20] sm:$0xf]
    %v4492 = vld [vmem:[%s3 + $0x24] sm:$0xf]
    %v4493 = vld [vmem:[%s3 + $0x28] sm:$0xf]
    %v4494 = vld [vmem:[%s3 + $0x2c] sm:$0xf]
    %v4495 = vld [vmem:[%s3 + $0x30] sm:$0xf]
    %v4496 = vld [vmem:[%s3 + $0x34] sm:$0xf]
    %v4497 = vld [vmem:[%s3 + $0x38] sm:$0xf]
    %v4498 = vld [vmem:[%s3 + $0x3c] sm:$0xf]
    %v4499 = vld [vmem:[%s3 + $0x40] sm:$0xf]
    %v4500 = vld [vmem:[%s3 + $0x44] sm:$0xf]
    %v4501 = vld [vmem:[%s3 + $0x48] sm:$0xf]
    %v4502 = vld [vmem:[%s3 + $0x4c] sm:$0xf]
    %v4503 = vld [vmem:[%s3 + $0x50] sm:$0xf]
    %v4504 = vld [vmem:[%s3 + $0x54] sm:$0xf]
    %v4505 = vld [vmem:[%s3 + $0x58] sm:$0xf]
    %v4506 = vld [vmem:[%s3 + $0x5c] sm:$0xf]
    %v4507 = vld [vmem:[%s3 + $0x60] sm:$0xf]
    %v4508 = vld [vmem:[%s3 + $0x64] sm:$0xf]
    %v4509 = vld [vmem:[%s3 + $0x68] sm:$0xf]
    %v4510 = vld [vmem:[%s3 + $0x6c] sm:$0xf]
    %v4511 = vld [vmem:[%s3 + $0x70] sm:$0xf]
    %v4512 = vld [vmem:[%s3 + $0x74] sm:$0xf]
    %v4513 = vld [vmem:[%s3 + $0x78] sm:$0xf]
    %v4514 = vld [vmem:[%s3 + $0x7c] sm:$0xf]
    %v4515 = vld [vmem:[%s3 + $0x80] sm:$0xf]
    %v4516 = vld [vmem:[%s3 + $0x84] sm:$0xf]
    %v4517 = vld [vmem:[%s3 + $0x88] sm:$0xf]
    %v4518 = vld [vmem:[%s3 + $0x8c] sm:$0xf]
    %v4519 = vld [vmem:[%s3 + $0x90] sm:$0xf]
    %v4520 = vld [vmem:[%s3 + $0x94] sm:$0xf]
    %v4521 = vld [vmem:[%s3 + $0x98] sm:$0xf]
    %v4522 = vld [vmem:[%s3 + $0x9c] sm:$0xf]
    %v4523 = vld [vmem:[%s3 + $0xa0] sm:$0xf]
    %v4524 = vld [vmem:[%s3 + $0xa4] sm:$0xf]
    %v4525 = vld [vmem:[%s3 + $0xa8] sm:$0xf]
    %v4526 = vld [vmem:[%s3 + $0xac] sm:$0xf]
    %v4527 = vld [vmem:[%s3 + $0xb0] sm:$0xf]
    %v4528 = vld [vmem:[%s3 + $0xb4] sm:$0xf]
    %v4529 = vld [vmem:[%s3 + $0xb8] sm:$0xf]
    %v4530 = vld [vmem:[%s3 + $0xbc] sm:$0xf]
    %v4531 = vld [vmem:[%s3 + $0xc0] sm:$0xf]
    %v4532 = vld [vmem:[%s3 + $0xc4] sm:$0xf]
    %v4533 = vld [vmem:[%s3 + $0xc8] sm:$0xf]
    %v4534 = vld [vmem:[%s3 + $0xcc] sm:$0xf]
    %v4535 = vld [vmem:[%s3 + $0xd0] sm:$0xf]
    %v4536 = vld [vmem:[%s3 + $0xd4] sm:$0xf]
    %v4537 = vld [vmem:[%s3 + $0xd8] sm:$0xf]
    %v4538 = vld [vmem:[%s3 + $0xdc] sm:$0xf]
    %v4539 = vld [vmem:[%s3 + $0xe0] sm:$0xf]
    %v4540 = vld [vmem:[%s3 + $0xe4] sm:$0xf]
    %v4541 = vld [vmem:[%s3 + $0xe8] sm:$0xf]
    %v4542 = vld [vmem:[%s3 + $0xec] sm:$0xf]
    %v4543 = vld [vmem:[%s3 + $0xf0] sm:$0xf]
    %v4544 = vld [vmem:[%s3 + $0xf4] sm:$0xf]
    %v4545 = vld [vmem:[%s3 + $0xf8] sm:$0x3]
    %v4546 = vld [vmem:[%s4] sm:$0x1]
    %v4548 = vperm.slane %v4546, 0
    %v4613 = vunpack.c.l.b16 %v4483
    %v4614 = vunpack.c.l.b16 %v4484
    %v4615 = vunpack.c.l.b16 %v4485
    %v4616 = vunpack.c.l.b16 %v4486
    %v4617 = vunpack.c.l.b16 %v4487
    %v4618 = vunpack.c.l.b16 %v4488
    %v4619 = vunpack.c.l.b16 %v4489
    %v4620 = vunpack.c.l.b16 %v4490
    %v4621 = vunpack.c.l.b16 %v4491
    %v4622 = vunpack.c.l.b16 %v4492
    %v4623 = vunpack.c.l.b16 %v4493
    %v4624 = vunpack.c.l.b16 %v4494
    %v4625 = vunpack.c.l.b16 %v4495
    %v4626 = vunpack.c.l.b16 %v4496
    %v4627 = vunpack.c.l.b16 %v4497
    %v4628 = vunpack.c.l.b16 %v4498
    %v4629 = vunpack.c.l.b16 %v4499
    %v4630 = vunpack.c.l.b16 %v4500
    %v4631 = vunpack.c.l.b16 %v4501
    %v4632 = vunpack.c.l.b16 %v4502
    %v4633 = vunpack.c.l.b16 %v4503
    %v4634 = vunpack.c.l.b16 %v4504
    %v4635 = vunpack.c.l.b16 %v4505
    %v4636 = vunpack.c.l.b16 %v4506
    %v4637 = vunpack.c.l.b16 %v4507
    %v4638 = vunpack.c.l.b16 %v4508
    %v4639 = vunpack.c.l.b16 %v4509
    %v4640 = vunpack.c.l.b16 %v4510
    %v4641 = vunpack.c.l.b16 %v4511
    %v4642 = vunpack.c.l.b16 %v4512
    %v4643 = vunpack.c.l.b16 %v4513
    %v4644 = vunpack.c.l.b16 %v4514
    %v4645 = vunpack.c.l.b16 %v4515
    %v4646 = vunpack.c.l.b16 %v4516
    %v4647 = vunpack.c.l.b16 %v4517
    %v4648 = vunpack.c.l.b16 %v4518
    %v4649 = vunpack.c.l.b16 %v4519
    %v4650 = vunpack.c.l.b16 %v4520
    %v4651 = vunpack.c.l.b16 %v4521
    %v4652 = vunpack.c.l.b16 %v4522
    %v4653 = vunpack.c.l.b16 %v4523
    %v4654 = vunpack.c.l.b16 %v4524
    %v4655 = vunpack.c.l.b16 %v4525
    %v4656 = vunpack.c.l.b16 %v4526
    %v4657 = vunpack.c.l.b16 %v4527
    %v4658 = vunpack.c.l.b16 %v4528
    %v4659 = vunpack.c.l.b16 %v4529
    %v4660 = vunpack.c.l.b16 %v4530
    %v4661 = vunpack.c.l.b16 %v4531
    %v4662 = vunpack.c.l.b16 %v4532
    %v4663 = vunpack.c.l.b16 %v4533
    %v4664 = vunpack.c.l.b16 %v4534
    %v4665 = vunpack.c.l.b16 %v4535
    %v4666 = vunpack.c.l.b16 %v4536
    %v4667 = vunpack.c.l.b16 %v4537
    %v4668 = vunpack.c.l.b16 %v4538
    %v4669 = vunpack.c.l.b16 %v4539
    %v4670 = vunpack.c.l.b16 %v4540
    %v4671 = vunpack.c.l.b16 %v4541
    %v4672 = vunpack.c.l.b16 %v4542
    %v4673 = vunpack.c.l.b16 %v4543
    %v4674 = vunpack.c.l.b16 %v4544
    %v4675 = vunpack.c.l.b16 %v4545
    %v4676 = vpack.c.b16 %v4614, %v4613
    %v4677 = vpack.c.b16 %v4616, %v4615
    %v4678 = vpack.c.b16 %v4618, %v4617
    %v4679 = vpack.c.b16 %v4620, %v4619
    %v4680 = vpack.c.b16 %v4622, %v4621
    %v4681 = vpack.c.b16 %v4624, %v4623
    %v4682 = vpack.c.b16 %v4626, %v4625
    %v4683 = vpack.c.b16 %v4628, %v4627
    %v4684 = vpack.c.b16 %v4630, %v4629
    %v4685 = vpack.c.b16 %v4632, %v4631
    %v4686 = vpack.c.b16 %v4634, %v4633
    %v4687 = vpack.c.b16 %v4636, %v4635
    %v4688 = vpack.c.b16 %v4638, %v4637
    %v4689 = vpack.c.b16 %v4640, %v4639
    %v4690 = vpack.c.b16 %v4642, %v4641
    %v4691 = vpack.c.b16 %v4644, %v4643
    %v4692 = vpack.c.b16 %v4646, %v4645
    %v4693 = vpack.c.b16 %v4648, %v4647
    %v4694 = vpack.c.b16 %v4650, %v4649
    %v4695 = vpack.c.b16 %v4652, %v4651
    %v4696 = vpack.c.b16 %v4654, %v4653
    %v4697 = vpack.c.b16 %v4656, %v4655
    %v4698 = vpack.c.b16 %v4658, %v4657
    %v4699 = vpack.c.b16 %v4660, %v4659
    %v4700 = vpack.c.b16 %v4662, %v4661
    %v4701 = vpack.c.b16 %v4664, %v4663
    %v4702 = vpack.c.b16 %v4666, %v4665
    %v4703 = vpack.c.b16 %v4668, %v4667
    %v4704 = vpack.c.b16 %v4670, %v4669
    %v4705 = vpack.c.b16 %v4672, %v4671
    %v4706 = vpack.c.b16 %v4674, %v4673
    %v4707 = vpack.c.b16 %v4675, %v4675
    %vm4739 = vcmask 949248
    %v4741 = vsel %vm4739, %v4482, 0
    %vm4743 = vcmask 1041408
    %v4745 = vsel %vm4743, %v4707, 0
    %4747 = vmatpush.bf16.msra.mxu0 %v4683
    %4748 = vmatpush.bf16.msra.mxu0 %v4682
    %4749 = vmatpush.bf16.msra.mxu0 %v4681
    %4750 = vmatpush.bf16.msra.mxu0 %v4680
    %4751 = vmatpush.bf16.msra.mxu0 %v4679
    %4752 = vmatpush.bf16.msra.mxu0 %v4678
    %4753 = vmatpush.bf16.msra.mxu0 %v4677
    %4754 = vmatpush.bf16.msra.mxu0 %v4676
    %4755 = vmatmul.bf16.gmra.mxu0 %v4479
    %v4756 = vpop.f32.mrf.mxu0
    %v4757 = vadd.f32 %v4548, %v4756
    %v4758 = vpop.f32.mrf.mxu0
    %4759 = vdwg.mxu0
    %4760 = vmatpush.bf16.msra.mxu0 %v4691
    %4761 = vmatpush.bf16.msra.mxu0 %v4690
    %4762 = vmatpush.bf16.msra.mxu0 %v4689
    %4763 = vmatpush.bf16.msra.mxu0 %v4688
    %4764 = vmatpush.bf16.msra.mxu0 %v4687
    %4765 = vmatpush.bf16.msra.mxu0 %v4686
    %4766 = vmatpush.bf16.msra.mxu0 %v4685
    %4767 = vmatpush.bf16.msra.mxu0 %v4684
    %4768 = vmatmul.bf16.gmra.mxu0 %v4480
    %v4769 = vpop.f32.mrf.mxu0
    %v4770 = vadd.f32 %v4757, %v4769
    %v4771 = vpop.f32.mrf.mxu0
    %4772 = vdwg.mxu0
    %4773 = vmatpush.bf16.msra.mxu0 %v4699
    %4774 = vmatpush.bf16.msra.mxu0 %v4698
    %4775 = vmatpush.bf16.msra.mxu0 %v4697
    %4776 = vmatpush.bf16.msra.mxu0 %v4696
    %4777 = vmatpush.bf16.msra.mxu0 %v4695
    %4778 = vmatpush.bf16.msra.mxu0 %v4694
    %4779 = vmatpush.bf16.msra.mxu0 %v4693
    %4780 = vmatpush.bf16.msra.mxu0 %v4692
    %4781 = vmatmul.bf16.gmra.mxu0 %v4481
    %v4782 = vpop.f32.mrf.mxu0
    %v4783 = vadd.f32 %v4770, %v4782
    %v4784 = vpop.f32.mrf.mxu0
    %4785 = vdwg.mxu0
    %4786 = vmatpush.bf16.msra.mxu0 %v4745
    %4787 = vmatpush.bf16.msra.mxu0 %v4706
    %4788 = vmatpush.bf16.msra.mxu0 %v4705
    %4789 = vmatpush.bf16.msra.mxu0 %v4704
    %4790 = vmatpush.bf16.msra.mxu0 %v4703
    %4791 = vmatpush.bf16.msra.mxu0 %v4702
    %4792 = vmatpush.bf16.msra.mxu0 %v4701
    %4793 = vmatpush.bf16.msra.mxu0 %v4700
    %4794 = vmatmul.bf16.gmra.mxu0 %v4741
    %v4795 = vpop.f32.mrf.mxu0
    %v4796 = vadd.f32 %v4783, %v4795
    %v4797 = vpop.f32.mrf.mxu0
    %4798 = vdwg.mxu0
    %v4799 = vmax.f32 %v4796, 0.0
    %v4800 = vpack.c.bf16 %v4799, %v4799
    %v4801 = vld [vmem:[%s5] sm:$0xf]
    %v4802 = vld [vmem:[%s5 + $0x4] sm:$0xf]
    %v4803 = vld [vmem:[%s5 + $0x8] sm:$0xf]
    %v4804 = vld [vmem:[%s5 + $0xc] sm:$0xf]
    %v4805 = vld [vmem:[%s5 + $0x10] sm:$0xf]
    %v4806 = vld [vmem:[%s5 + $0x14] sm:$0xf]
    %v4807 = vld [vmem:[%s5 + $0x18] sm:$0x1]
    %v4808 = vld [vmem:[%s6] sm:$0x1]
    %v4810 = vperm.slane %v4808, 0
    %v4819 = vunpack.c.l.b16 %v4801
    %v4820 = vunpack.c.l.b16 %v4802
    %v4821 = vunpack.c.l.b16 %v4803
    %v4822 = vunpack.c.l.b16 %v4804
    %v4823 = vunpack.c.l.b16 %v4805
    %v4824 = vunpack.c.l.b16 %v4806
    %v4825 = vunpack.c.l.b16 %v4807
    %v4826 = vpack.c.b16 %v4820, %v4819
    %v4827 = vpack.c.b16 %v4822, %v4821
    %v4828 = vpack.c.b16 %v4824, %v4823
    %v4829 = vpack.c.b16 %v4825, %v4825
    %vm4833 = vcmask 408576
    %v4835 = vsel %vm4833, %v4800, 0
    %vm4837 = vcmask 1040384
    %v4839 = vsel %vm4837, %v4829, 0
    %4841 = vmatpush.bf16.msra.mxu0 0
    %4842 = vmatpush.bf16.msra.mxu0 0
    %4843 = vmatpush.bf16.msra.mxu0 0
    %4844 = vmatpush.bf16.msra.mxu0 0
    %4845 = vmatpush.bf16.msra.mxu0 %v4839
    %4846 = vmatpush.bf16.msra.mxu0 %v4828
    %4847 = vmatpush.bf16.msra.mxu0 %v4827
    %4848 = vmatpush.bf16.msra.mxu0 %v4826
    %4849 = vmatmul.bf16.gmra.mxu0 %v4835
    %v4850 = vpop.f32.mrf.mxu0
    %v4851 = vadd.f32 %v4810, %v4850
    %v4852 = vpop.f32.mrf.mxu0
    %4853 = vdwg.mxu0
    %vm4854 = vcmask 9216
    %4855 = vst.msk [vmem:[#allocation2] sm:$0x3] %vm4854, %v4851
    // Predicated region
    $region30: #{cat_dog_cnn_forward.13} parent=1 // pred_check
      _
    $region31: #{cat_dog_cnn_forward.13} parent=1 // pred_check_branch
      %4857 = sbr.rel (0) target = $region33
    $region32: #{cat_dog_cnn_forward.13} parent=1 // pred_region
      %4859 = vsyncadd [#allocation3], 0
      %s4861 = sshll.u32 [#allocation2], 4
      %s4862 = int_to_ptr.vmem [resolvable:$true] %s4861
      %s4863 = sshll.u32 %s7, 4
      %s4864 = int_to_ptr.hbm [resolvable:$true] %s4863
      %4866 = dma.vmem_to_hbm [thread:$0]  %s4862, 32, %s4864, [#allocation3]
    $region33: #{cat_dog_cnn_forward.13} parent=1 // pred_fallthru
      _
    // Predicated region
    $region34: #{cat_dog_cnn_forward.13} parent=1 // pred_check
      _
    $region35: #{cat_dog_cnn_forward.13} parent=1 // pred_check_branch
      %4868 = sbr.rel (0) target = $region37
    $region36: #{cat_dog_cnn_forward.13} parent=1 // pred_region
      %4870 = dma.done [#allocation3], 32
    $region37: #{cat_dog_cnn_forward.13} parent=1 // pred_fallthru
      _
    %4871 = vsyncpa [#allocation3], 1

</llo_original>
